<compile_context>
chip_gen: v5e
topology: v5e:2x2
jax: 0.10.0
libtpu: 0.0.40
codegen_flags: <defaults>
</compile_context>

<pallas_src>
import functools

import jax
import jax.numpy as jnp
from jax.experimental import pallas as pl
from jax.experimental.pallas import tpu as pltpu

EPS = 1e-5


def _vmem_cap_bytes():
    try:
        return int(pltpu.get_tpu_info().vmem_capacity_bytes)
    except Exception:
        return 128 << 20  # conservative default (v5e/v6e class parts)


def _pick_row_tile(ho, wo, c_out, budget_bytes=2 << 20):
    """Row tile (in output rows) dividing Ho.

    Blocks use flattened spatial (tho*wo); when the tile is a strict subset of the image
    we keep tho*wo a multiple of 128 so the flattened blocks stay lane-dense and
    layout-legal.  Tiny widths (wo % 8 != 0) use whole-image tiles (the kernel then
    takes the reshape-free per-row path)."""
    if wo % 8 != 0:
        return ho
    ok = [d for d in range(1, ho + 1)
          if ho % d == 0 and (d == ho or (d * wo) % 128 == 0)]
    fit = [d for d in ok if d * wo * c_out * 4 <= budget_bytes]
    return max(fit) if fit else min(ok)


# --------------------- Pass 1: in-VMEM conv (16 tap matmuls) + per-image stats ---------------------
def _conv_stats_kernel(x_ref, w_ref, y_ref, sum_ref, sq_ref, *, tho, wo):
    """One (image, row-tile) step of Conv2d(4, s=2, p=1, reflect) + per-channel sum/sumsq.

    x_ref  : (1, 4, Hq, Wq, C_in) bf16 -- whole padded image, 2x2 phase split
             (phase = 2*row_parity + col_parity); resident across the row-tile axis,
             so it is DMA'd from HBM once per image.
    w_ref  : (16, C_in, C_out)    bf16 -- per-tap weights, tap t = 4*kh + kw.
    y_ref  : (1, tho*wo, C_out)   bf16 -- conv output, flattened spatial, channels-last.
    sum_ref/sq_ref : (1, 1, C_out) f32 -- per-image partials (indexed by the batch axis,
             so the batch grid axis can be 'parallel' / megacore without races).
    """
    r = pl.program_id(1)
    c_in = x_ref.shape[-1]
    c_out = w_ref.shape[-1]
    r0 = r * tho  # first output row of this tile

    if wo % 16 == 0:
        # Main path: one (tho*wo, C_in) operand per tap.  The merge of (tho, wo) is
        # layout-free because wo is a multiple of the bf16 sublane tile (16).
        acc = jnp.zeros((tho * wo, c_out), jnp.float32)
        for i in range(4):                       # kernel-height tap
            csh, d = divmod(i, 2)                # row shift / row parity
            for j in range(4):                   # kernel-width tap
                a, b = divmod(j, 2)              # col shift / col parity
                lhs = x_ref[0, 2 * d + b, pl.ds(r0 + csh, tho), pl.ds(a, wo), :]
                lhs = lhs.reshape(tho * wo, c_in)
                acc += jnp.dot(lhs, w_ref[4 * i + j],
                               preferred_element_type=jnp.float32)
        y_ref[0] = acc.astype(y_ref.dtype)
        s = jnp.sum(acc, axis=0, keepdims=True)
        sq = jnp.sum(acc * acc, axis=0, keepdims=True)
    else:
        # Narrow-width path (wo not a multiple of 16): per-output-row matmuls, no
        # in-kernel reshapes at all (robust for the small deep-layer spatial sizes).
        s = jnp.zeros((1, c_out), jnp.float32)
        sq = jnp.zeros((1, c_out), jnp.float32)
        for t in range(tho):
            acc_t = jnp.zeros((wo, c_out), jnp.float32)
            for i in range(4):
                csh, d = divmod(i, 2)
                for j in range(4):
                    a, b = divmod(j, 2)
                    lhs = x_ref[0, 2 * d + b, r0 + t + csh, pl.ds(a, wo), :]
                    acc_t += jnp.dot(lhs, w_ref[4 * i + j],
                                     preferred_element_type=jnp.float32)
            y_ref[0, pl.ds(t * wo, wo), :] = acc_t.astype(y_ref.dtype)
            s += jnp.sum(acc_t, axis=0, keepdims=True)
            sq += jnp.sum(acc_t * acc_t, axis=0, keepdims=True)

    # Per-image single-pass statistics (resident across the 'arbitrary' row-tile axis).
    @pl.when(r == 0)
    def _():
        sum_ref[...] = jnp.zeros_like(sum_ref)
        sq_ref[...] = jnp.zeros_like(sq_ref)

    sum_ref[...] += s.reshape(sum_ref.shape)
    sq_ref[...] += sq.reshape(sq_ref.shape)


# --------------------- Pass 2: folded BatchNorm affine + ReLU, written as NCHW ---------------------
def _bn_relu_to_nchw_kernel(y_ref, scale_ref, shift_ref, o_ref):
    """y_ref: (1, tho*wo, C_out) bf16; scale/shift: (1, C_out) f32;
    o_ref: (1, C_out, tho*wo) f32 -- NCHW with flattened spatial (final reshape is free)."""
    y = y_ref[0].astype(jnp.float32)
    y = jnp.maximum(y * scale_ref[...] + shift_ref[...], 0.0)
    o_ref[0] = y.T.astype(o_ref.dtype)  # single 2-D XLU transpose -> channels-first


@jax.jit
def unet_block_forward(x, weight, gamma, beta):
    """x: (N, C_in, H, W) f32; weight: (C_out, C_in, 4, 4) f32; gamma/beta: (C_out,) f32."""
    n, c_in, h, w = x.shape
    c_out = weight.shape[0]
    assert h % 2 == 0 and w % 2 == 0
    ho, wo = h // 2, w // 2
    hq, wq = ho + 1, wo + 1

    # ---- single input repack: reflect-pad -> 2x2 spatial phase split, channels-last bf16
    # phases[n, 2*d + b, p, q, c] = x_pad[n, c, 2*p + d, 2*q + b]; each conv tap then reads a
    # contiguous (rows, wo, C_in) window of one phase (no strided/halo access, no im2col).
    xp = jnp.pad(x, ((0, 0), (0, 0), (1, 1), (1, 1)), mode="reflect")
    xph = xp.reshape(n, c_in, hq, 2, wq, 2)
    xph = xph.transpose(0, 3, 5, 2, 4, 1).astype(jnp.bfloat16)    # (N, 2, 2, Hq, Wq, C_in)
    xph = xph.reshape(n, 4, hq, wq, c_in)                         # merge parities (free)

    # Per-tap weights: w_taps[4*kh + kw, ci, co] = weight[co, ci, kh, kw]
    w_taps = weight.astype(jnp.bfloat16).transpose(2, 3, 1, 0).reshape(16, c_in, c_out)

    tho = _pick_row_tile(ho, wo, c_out)
    n_rt = ho // tho
    grid = (n, n_rt)

    # Generation-aware VMEM budget from the actual per-step blocks.
    x_blk_bytes = (xph.size // n) * 2
    blk = (2 * x_blk_bytes                               # phase image, double-buffered
           + 2 * w_taps.size * 2                         # tap weights, double-buffered
           + 2 * tho * wo * c_out * (2 + 4)              # conv_out (bf16) / final (f32) blocks
           + 6 * tho * wo * max(c_in, 8) * 4)            # live tap operands + f32 accumulator
    vmem_limit = int(min(max(3 * blk, 32 << 20), int(0.85 * _vmem_cap_bytes())))

    conv_out, ch_sum, ch_sq = pl.pallas_call(
        functools.partial(_conv_stats_kernel, tho=tho, wo=wo),
        grid=grid,
        in_specs=[
            # whole phase-split image; DMA'd only when the batch index changes
            pl.BlockSpec((1, 4, hq, wq, c_in), lambda b, r: (b, 0, 0, 0, 0)),
            pl.BlockSpec((16, c_in, c_out), lambda b, r: (0, 0, 0)),
        ],
        out_specs=[
            pl.BlockSpec((1, tho * wo, c_out), lambda b, r: (b, r, 0)),
            pl.BlockSpec((1, 1, c_out), lambda b, r: (b, 0, 0)),
            pl.BlockSpec((1, 1, c_out), lambda b, r: (b, 0, 0)),
        ],
        out_shape=(
            jax.ShapeDtypeStruct((n, ho * wo, c_out), jnp.bfloat16),
            jax.ShapeDtypeStruct((n, 1, c_out), jnp.float32),
            jax.ShapeDtypeStruct((n, 1, c_out), jnp.float32),
        ),
        compiler_params=pltpu.CompilerParams(
            dimension_semantics=("parallel", "arbitrary"),
            vmem_limit_bytes=vmem_limit,
        ),
        cost_estimate=pl.CostEstimate(
            flops=2 * n * ho * wo * 16 * c_in * c_out,
            transcendentals=0,
            bytes_accessed=(xph.size * 2 + w_taps.size * 2
                            + n * ho * wo * c_out * 2 + 2 * n * c_out * 4),
        ),
    )(xph, w_taps)

    # Fold BN statistics (true element count, biased variance) + affine into scale/shift.
    m = jnp.float32(n * ho * wo)
    mean = jnp.sum(ch_sum, axis=(0, 1)) / m
    var = jnp.maximum(jnp.sum(ch_sq, axis=(0, 1)) / m - mean * mean, 0.0)
    inv_std = jax.lax.rsqrt(var + EPS)
    scale_v = gamma.astype(jnp.float32) * inv_std
    shift_v = beta.astype(jnp.float32) - mean * scale_v
    scale = scale_v.reshape(1, c_out)
    shift = shift_v.reshape(1, c_out)

    out_flat = pl.pallas_call(
        _bn_relu_to_nchw_kernel,
        grid=grid,
        in_specs=[
            pl.BlockSpec((1, tho * wo, c_out), lambda b, r: (b, r, 0)),
            pl.BlockSpec((1, c_out), lambda b, r: (0, 0)),
            pl.BlockSpec((1, c_out), lambda b, r: (0, 0)),
        ],
        out_specs=pl.BlockSpec((1, c_out, tho * wo), lambda b, r: (b, 0, r)),
        out_shape=jax.ShapeDtypeStruct((n, c_out, ho * wo), jnp.float32),
        compiler_params=pltpu.CompilerParams(
            dimension_semantics=("parallel", "parallel"),
            vmem_limit_bytes=vmem_limit,
        ),
        cost_estimate=pl.CostEstimate(
            flops=3 * n * ho * wo * c_out,
            transcendentals=0,
            bytes_accessed=n * ho * wo * c_out * (2 + 4) + 2 * c_out * 4,
        ),
    )(conv_out, scale, shift)

    # Layout-preserving split of the flattened spatial dim (no extra HBM pass).
    return out_flat.reshape(n, c_out, ho, wo)


def _reference_forward(x, weight, gamma, beta):
    """Plain-JAX reference mirroring the PyTorch module (training-mode BN); bf16 conv
    operands to match the kernel's MXU precision, f32 accumulation and BN math."""
    xp = jnp.pad(x, ((0, 0), (0, 0), (1, 1), (1, 1)), mode="reflect")
    y = jax.lax.conv_general_dilated(
        xp.astype(jnp.bfloat16), weight.astype(jnp.bfloat16),
        window_strides=(2, 2), padding="VALID",
        dimension_numbers=("NCHW", "OIHW", "NCHW"),
        preferred_element_type=jnp.float32)
    mean = y.mean(axis=(0, 2, 3), keepdims=True)
    var = ((y - mean) ** 2).mean(axis=(0, 2, 3), keepdims=True)   # biased
    y_hat = (y - mean) / jnp.sqrt(var + EPS)
    y_bn = y_hat * gamma.reshape(1, -1, 1, 1) + beta.reshape(1, -1, 1, 1)
    return jnp.maximum(y_bn, 0.0)


if __name__ == "__main__":
    # Small shapes consistent with the module's forward.
    N, C_IN, C_OUT, H, W = 2, 4, 8, 16, 16

    key = jax.random.PRNGKey(0)
    kx, kw_ = jax.random.split(key)
    x = jax.random.normal(kx, (N, C_IN, H, W), dtype=jnp.float32)
    weight = 0.1 * jax.random.normal(kw_, (C_OUT, C_IN, 4, 4), dtype=jnp.float32)
    gamma = jnp.ones((C_OUT,), dtype=jnp.float32)   # PyTorch BatchNorm2d default affine init
    beta = jnp.zeros((C_OUT,), dtype=jnp.float32)

    out = unet_block_forward(x, weight, gamma, beta)
    out = jax.block_until_ready(out)

    ref = _reference_forward(x, weight, gamma, beta)
    assert out.shape == (N, C_OUT, H // 2, W // 2), out.shape
    # Tolerance covers the bf16 inter-pass conv intermediate (review item 3):
    # |y| * 2^-9 / std  ~< 1e-2 for these inputs.
    max_err = float(jnp.max(jnp.abs(out - ref)))
    assert max_err < 2e-2, max_err

    print("KERNEL_OK")
</pallas_src>

<mosaic_0001>
module attributes {stable_mosaic.version = 11 : i64} {
  func.func @_bn_relu_to_nchw_kernel(%arg0: i32, %arg1: i32, %arg2: memref<1x64x8xbf16, #tpu.memory_space<vmem>>, %arg3: memref<1x8xf32, #tpu.memory_space<vmem>>, %arg4: memref<1x8xf32, #tpu.memory_space<vmem>>, %arg5: memref<1x8x64xf32, #tpu.memory_space<vmem>>) attributes {dimension_semantics = [#tpu.dimension_semantics<parallel>, #tpu.dimension_semantics<parallel>], iteration_bounds = array<i64: 2, 1>, scalar_prefetch = 0 : i64, scratch_operands = 0 : i64, tpu.core_type = #tpu.core_type<tc>, window_params = [{transform_indices = @transform_0, window_bounds = array<i64: 1, 64, 8>}, {pipeline_mode = #tpu.pipeline_mode<synchronous>, transform_indices = @transform_1, window_bounds = array<i64: 1, 8>}, {pipeline_mode = #tpu.pipeline_mode<synchronous>, transform_indices = @transform_2, window_bounds = array<i64: 1, 8>}, {transform_indices = @transform_3, window_bounds = array<i64: 1, 8, 64>}]} {
    %c0 = arith.constant 0 : index
    %c0_0 = arith.constant 0 : index
    %c0_1 = arith.constant 0 : index
    %0 = vector.load %arg2[%c0, %c0_0, %c0_1] : memref<1x64x8xbf16, #tpu.memory_space<vmem>>, vector<1x64x8xbf16>
    %1 = vector.shape_cast %0 : vector<1x64x8xbf16> to vector<64x8xbf16>
    %2 = arith.extf %1 : vector<64x8xbf16> to vector<64x8xf32>
    %c0_2 = arith.constant 0 : index
    %c0_3 = arith.constant 0 : index
    %3 = vector.load %arg3[%c0_2, %c0_3] : memref<1x8xf32, #tpu.memory_space<vmem>>, vector<1x8xf32>
    %4 = vector.broadcast %3 : vector<1x8xf32> to vector<64x8xf32>
    %5 = arith.mulf %2, %4 : vector<64x8xf32>
    %c0_4 = arith.constant 0 : index
    %c0_5 = arith.constant 0 : index
    %6 = vector.load %arg4[%c0_4, %c0_5] : memref<1x8xf32, #tpu.memory_space<vmem>>, vector<1x8xf32>
    %7 = vector.broadcast %6 : vector<1x8xf32> to vector<64x8xf32>
    %8 = arith.addf %5, %7 : vector<64x8xf32>
    %cst = arith.constant 0.000000e+00 : f32
    %9 = vector.broadcast %cst : f32 to vector<64x8xf32>
    %10 = arith.maximumf %8, %9 : vector<64x8xf32>
    %11 = tpu.transpose %10, [1, 0] : vector<64x8xf32> -> vector<8x64xf32>
    %c0_6 = arith.constant 0 : index
    %c0_7 = arith.constant 0 : index
    %c0_8 = arith.constant 0 : index
    %12 = vector.load %arg5[%c0_6, %c0_7, %c0_8] : memref<1x8x64xf32, #tpu.memory_space<vmem>>, vector<1x8x64xf32>
    %13 = vector.shape_cast %12 : vector<1x8x64xf32> to vector<8x64xf32>
    %14 = vector.shape_cast %11 : vector<8x64xf32> to vector<1x8x64xf32>
    tpu.vector_store %arg5[%c0_6, %c0_7, %c0_8], %14 {strides = array<i32>} : memref<1x8x64xf32, #tpu.memory_space<vmem>>, vector<1x8x64xf32>,
    return
  }
  func.func @transform_0(%arg0: i32, %arg1: i32) -> (i32, i32, i32) {
    %c0_i32 = arith.constant 0 : i32
    %c0_i32_0 = arith.constant 0 : i32
    return %arg0, %arg1, %c0_i32 : i32, i32, i32
  }
  func.func @transform_1(%arg0: i32, %arg1: i32) -> (i32, i32) {
    %c0_i32 = arith.constant 0 : i32
    %c0_i32_0 = arith.constant 0 : i32
    %c0_i32_1 = arith.constant 0 : i32
    return %c0_i32, %c0_i32_0 : i32, i32
  }
  func.func @transform_2(%arg0: i32, %arg1: i32) -> (i32, i32) {
    %c0_i32 = arith.constant 0 : i32
    %c0_i32_0 = arith.constant 0 : i32
    %c0_i32_1 = arith.constant 0 : i32
    return %c0_i32, %c0_i32_0 : i32, i32
  }
  func.func @transform_3(%arg0: i32, %arg1: i32) -> (i32, i32, i32) {
    %c0_i32 = arith.constant 0 : i32
    %c0_i32_0 = arith.constant 0 : i32
    return %arg0, %c0_i32, %arg1 : i32, i32, i32
  }
}

module attributes {stable_mosaic.version = 11 : i64} {
  func.func @_conv_stats_kernel(%arg0: i32, %arg1: i32, %arg2: memref<1x4x9x9x4xbf16, #tpu.memory_space<vmem>>, %arg3: memref<16x4x8xbf16, #tpu.memory_space<vmem>>, %arg4: memref<1x64x8xbf16, #tpu.memory_space<vmem>>, %arg5: memref<1x1x8xf32, #tpu.memory_space<vmem>>, %arg6: memref<1x1x8xf32, #tpu.memory_space<vmem>>) attributes {dimension_semantics = [#tpu.dimension_semantics<parallel>, #tpu.dimension_semantics<arbitrary>], iteration_bounds = array<i64: 2, 1>, scalar_prefetch = 0 : i64, scratch_operands = 0 : i64, tpu.core_type = #tpu.core_type<tc>, window_params = [{transform_indices = @transform_0, window_bounds = array<i64: 1, 4, 9, 9, 4>}, {pipeline_mode = #tpu.pipeline_mode<synchronous>, transform_indices = @transform_1, window_bounds = array<i64: 16, 4, 8>}, {transform_indices = @transform_2, window_bounds = array<i64: 1, 64, 8>}, {transform_indices = @transform_3, window_bounds = array<i64: 1, 1, 8>}, {transform_indices = @transform_4, window_bounds = array<i64: 1, 1, 8>}]} {
    %c8_i32 = arith.constant 8 : i32
    %0 = arith.muli %arg1, %c8_i32 : i32
    %cst = arith.constant 0.000000e+00 : f32
    %1 = vector.broadcast %cst : f32 to vector<1x8xf32>
    %cst_0 = arith.constant 0.000000e+00 : f32
    %2 = vector.broadcast %cst_0 : f32 to vector<1x8xf32>
    %cst_1 = arith.constant 0.000000e+00 : f32
    %3 = vector.broadcast %cst_1 : f32 to vector<8x8xf32>
    %c0_i32 = arith.constant 0 : i32
    %4 = arith.addi %0, %c0_i32 : i32
    %c0_i32_2 = arith.constant 0 : i32
    %5 = arith.addi %4, %c0_i32_2 : i32
    %c0 = arith.constant 0 : index
    %c0_3 = arith.constant 0 : index
    %6 = arith.index_cast %5 : i32 to index
    %c0_4 = arith.constant 0 : index
    %c0_5 = arith.constant 0 : index
    %7 = vector.load %arg2[%c0, %c0_3, %6, %c0_4, %c0_5] : memref<1x4x9x9x4xbf16, #tpu.memory_space<vmem>>, vector<1x1x1x8x4xbf16>
    %8 = vector.shape_cast %7 : vector<1x1x1x8x4xbf16> to vector<8x4xbf16>
    %c0_6 = arith.constant 0 : index
    %c0_7 = arith.constant 0 : index
    %c0_8 = arith.constant 0 : index
    %9 = vector.load %arg3[%c0_6, %c0_7, %c0_8] : memref<16x4x8xbf16, #tpu.memory_space<vmem>>, vector<1x4x8xbf16>
    %10 = vector.shape_cast %9 : vector<1x4x8xbf16> to vector<4x8xbf16>
    %cst_9 = arith.constant dense<0.000000e+00> : vector<8x8xf32>
    %11 = tpu.matmul %8, %10, %cst_9 {dimension_numbers = #tpu.dot_dimension_numbers<[1], [0], [0], [1], [0, 0, 1, 1], [], []>} : vector<8x4xbf16>, vector<4x8xbf16>, vector<8x8xf32> -> vector<8x8xf32>
    %12 = arith.addf %3, %11 : vector<8x8xf32>
    %c0_i32_10 = arith.constant 0 : i32
    %13 = arith.addi %0, %c0_i32_10 : i32
    %c0_i32_11 = arith.constant 0 : i32
    %14 = arith.addi %13, %c0_i32_11 : i32
    %c0_12 = arith.constant 0 : index
    %c1 = arith.constant 1 : index
    %15 = arith.index_cast %14 : i32 to index
    %c0_13 = arith.constant 0 : index
    %c0_14 = arith.constant 0 : index
    %16 = vector.load %arg2[%c0_12, %c1, %15, %c0_13, %c0_14] : memref<1x4x9x9x4xbf16, #tpu.memory_space<vmem>>, vector<1x1x1x8x4xbf16>
    %17 = vector.shape_cast %16 : vector<1x1x1x8x4xbf16> to vector<8x4xbf16>
    %c1_15 = arith.constant 1 : index
    %c0_16 = arith.constant 0 : index
    %c0_17 = arith.constant 0 : index
    %18 = vector.load %arg3[%c1_15, %c0_16, %c0_17] : memref<16x4x8xbf16, #tpu.memory_space<vmem>>, vector<1x4x8xbf16>
    %19 = vector.shape_cast %18 : vector<1x4x8xbf16> to vector<4x8xbf16>
    %cst_18 = arith.constant dense<0.000000e+00> : vector<8x8xf32>
    %20 = tpu.matmul %17, %19, %cst_18 {dimension_numbers = #tpu.dot_dimension_numbers<[1], [0], [0], [1], [0, 0, 1, 1], [], []>} : vector<8x4xbf16>, vector<4x8xbf16>, vector<8x8xf32> -> vector<8x8xf32>
    %21 = arith.addf %12, %20 : vector<8x8xf32>
    %c0_i32_19 = arith.constant 0 : i32
    %22 = arith.addi %0, %c0_i32_19 : i32
    %c0_i32_20 = arith.constant 0 : i32
    %23 = arith.addi %22, %c0_i32_20 : i32
    %c0_21 = arith.constant 0 : index
    %c0_22 = arith.constant 0 : index
    %24 = arith.index_cast %23 : i32 to index
    %c1_23 = arith.constant 1 : index
    %c0_24 = arith.constant 0 : index
    %25 = vector.load %arg2[%c0_21, %c0_22, %24, %c1_23, %c0_24] : memref<1x4x9x9x4xbf16, #tpu.memory_space<vmem>>, vector<1x1x1x8x4xbf16>
    %26 = vector.shape_cast %25 : vector<1x1x1x8x4xbf16> to vector<8x4xbf16>
    %c2 = arith.constant 2 : index
    %c0_25 = arith.constant 0 : index
    %c0_26 = arith.constant 0 : index
    %27 = vector.load %arg3[%c2, %c0_25, %c0_26] : memref<16x4x8xbf16, #tpu.memory_space<vmem>>, vector<1x4x8xbf16>
    %28 = vector.shape_cast %27 : vector<1x4x8xbf16> to vector<4x8xbf16>
    %cst_27 = arith.constant dense<0.000000e+00> : vector<8x8xf32>
    %29 = tpu.matmul %26, %28, %cst_27 {dimension_numbers = #tpu.dot_dimension_numbers<[1], [0], [0], [1], [0, 0, 1, 1], [], []>} : vector<8x4xbf16>, vector<4x8xbf16>, vector<8x8xf32> -> vector<8x8xf32>
    %30 = arith.addf %21, %29 : vector<8x8xf32>
    %c0_i32_28 = arith.constant 0 : i32
    %31 = arith.addi %0, %c0_i32_28 : i32
    %c0_i32_29 = arith.constant 0 : i32
    %32 = arith.addi %31, %c0_i32_29 : i32
    %c0_30 = arith.constant 0 : index
    %c1_31 = arith.constant 1 : index
    %33 = arith.index_cast %32 : i32 to index
    %c1_32 = arith.constant 1 : index
    %c0_33 = arith.constant 0 : index
    %34 = vector.load %arg2[%c0_30, %c1_31, %33, %c1_32, %c0_33] : memref<1x4x9x9x4xbf16, #tpu.memory_space<vmem>>, vector<1x1x1x8x4xbf16>
    %35 = vector.shape_cast %34 : vector<1x1x1x8x4xbf16> to vector<8x4xbf16>
    %c3 = arith.constant 3 : index
    %c0_34 = arith.constant 0 : index
    %c0_35 = arith.constant 0 : index
    %36 = vector.load %arg3[%c3, %c0_34, %c0_35] : memref<16x4x8xbf16, #tpu.memory_space<vmem>>, vector<1x4x8xbf16>
    %37 = vector.shape_cast %36 : vector<1x4x8xbf16> to vector<4x8xbf16>
    %cst_36 = arith.constant dense<0.000000e+00> : vector<8x8xf32>
    %38 = tpu.matmul %35, %37, %cst_36 {dimension_numbers = #tpu.dot_dimension_numbers<[1], [0], [0], [1], [0, 0, 1, 1], [], []>} : vector<8x4xbf16>, vector<4x8xbf16>, vector<8x8xf32> -> vector<8x8xf32>
    %39 = arith.addf %30, %38 : vector<8x8xf32>
    %c0_i32_37 = arith.constant 0 : i32
    %40 = arith.addi %0, %c0_i32_37 : i32
    %c0_i32_38 = arith.constant 0 : i32
    %41 = arith.addi %40, %c0_i32_38 : i32
    %c0_39 = arith.constant 0 : index
    %c2_40 = arith.constant 2 : index
    %42 = arith.index_cast %41 : i32 to index
    %c0_41 = arith.constant 0 : index
    %c0_42 = arith.constant 0 : index
    %43 = vector.load %arg2[%c0_39, %c2_40, %42, %c0_41, %c0_42] : memref<1x4x9x9x4xbf16, #tpu.memory_space<vmem>>, vector<1x1x1x8x4xbf16>
    %44 = vector.shape_cast %43 : vector<1x1x1x8x4xbf16> to vector<8x4xbf16>
    %c4 = arith.constant 4 : index
    %c0_43 = arith.constant 0 : index
    %c0_44 = arith.constant 0 : index
    %45 = vector.load %arg3[%c4, %c0_43, %c0_44] : memref<16x4x8xbf16, #tpu.memory_space<vmem>>, vector<1x4x8xbf16>
    %46 = vector.shape_cast %45 : vector<1x4x8xbf16> to vector<4x8xbf16>
    %cst_45 = arith.constant dense<0.000000e+00> : vector<8x8xf32>
    %47 = tpu.matmul %44, %46, %cst_45 {dimension_numbers = #tpu.dot_dimension_numbers<[1], [0], [0], [1], [0, 0, 1, 1], [], []>} : vector<8x4xbf16>, vector<4x8xbf16>, vector<8x8xf32> -> vector<8x8xf32>
    %48 = arith.addf %39, %47 : vector<8x8xf32>
    %c0_i32_46 = arith.constant 0 : i32
    %49 = arith.addi %0, %c0_i32_46 : i32
    %c0_i32_47 = arith.constant 0 : i32
    %50 = arith.addi %49, %c0_i32_47 : i32
    %c0_48 = arith.constant 0 : index
    %c3_49 = arith.constant 3 : index
    %51 = arith.index_cast %50 : i32 to index
    %c0_50 = arith.constant 0 : index
    %c0_51 = arith.constant 0 : index
    %52 = vector.load %arg2[%c0_48, %c3_49, %51, %c0_50, %c0_51] : memref<1x4x9x9x4xbf16, #tpu.memory_space<vmem>>, vector<1x1x1x8x4xbf16>
    %53 = vector.shape_cast %52 : vector<1x1x1x8x4xbf16> to vector<8x4xbf16>
    %c5 = arith.constant 5 : index
    %c0_52 = arith.constant 0 : index
    %c0_53 = arith.constant 0 : index
    %54 = vector.load %arg3[%c5, %c0_52, %c0_53] : memref<16x4x8xbf16, #tpu.memory_space<vmem>>, vector<1x4x8xbf16>
    %55 = vector.shape_cast %54 : vector<1x4x8xbf16> to vector<4x8xbf16>
    %cst_54 = arith.constant dense<0.000000e+00> : vector<8x8xf32>
    %56 = tpu.matmul %53, %55, %cst_54 {dimension_numbers = #tpu.dot_dimension_numbers<[1], [0], [0], [1], [0, 0, 1, 1], [], []>} : vector<8x4xbf16>, vector<4x8xbf16>, vector<8x8xf32> -> vector<8x8xf32>
    %57 = arith.addf %48, %56 : vector<8x8xf32>
    %c0_i32_55 = arith.constant 0 : i32
    %58 = arith.addi %0, %c0_i32_55 : i32
    %c0_i32_56 = arith.constant 0 : i32
    %59 = arith.addi %58, %c0_i32_56 : i32
    %c0_57 = arith.constant 0 : index
    %c2_58 = arith.constant 2 : index
    %60 = arith.index_cast %59 : i32 to index
    %c1_59 = arith.constant 1 : index
    %c0_60 = arith.constant 0 : index
    %61 = vector.load %arg2[%c0_57, %c2_58, %60, %c1_59, %c0_60] : memref<1x4x9x9x4xbf16, #tpu.memory_space<vmem>>, vector<1x1x1x8x4xbf16>
    %62 = vector.shape_cast %61 : vector<1x1x1x8x4xbf16> to vector<8x4xbf16>
    %c6 = arith.constant 6 : index
    %c0_61 = arith.constant 0 : index
    %c0_62 = arith.constant 0 : index
    %63 = vector.load %arg3[%c6, %c0_61, %c0_62] : memref<16x4x8xbf16, #tpu.memory_space<vmem>>, vector<1x4x8xbf16>
    %64 = vector.shape_cast %63 : vector<1x4x8xbf16> to vector<4x8xbf16>
    %cst_63 = arith.constant dense<0.000000e+00> : vector<8x8xf32>
    %65 = tpu.matmul %62, %64, %cst_63 {dimension_numbers = #tpu.dot_dimension_numbers<[1], [0], [0], [1], [0, 0, 1, 1], [], []>} : vector<8x4xbf16>, vector<4x8xbf16>, vector<8x8xf32> -> vector<8x8xf32>
    %66 = arith.addf %57, %65 : vector<8x8xf32>
    %c0_i32_64 = arith.constant 0 : i32
    %67 = arith.addi %0, %c0_i32_64 : i32
    %c0_i32_65 = arith.constant 0 : i32
    %68 = arith.addi %67, %c0_i32_65 : i32
    %c0_66 = arith.constant 0 : index
    %c3_67 = arith.constant 3 : index
    %69 = arith.index_cast %68 : i32 to index
    %c1_68 = arith.constant 1 : index
    %c0_69 = arith.constant 0 : index
    %70 = vector.load %arg2[%c0_66, %c3_67, %69, %c1_68, %c0_69] : memref<1x4x9x9x4xbf16, #tpu.memory_space<vmem>>, vector<1x1x1x8x4xbf16>
    %71 = vector.shape_cast %70 : vector<1x1x1x8x4xbf16> to vector<8x4xbf16>
    %c7 = arith.constant 7 : index
    %c0_70 = arith.constant 0 : index
    %c0_71 = arith.constant 0 : index
    %72 = vector.load %arg3[%c7, %c0_70, %c0_71] : memref<16x4x8xbf16, #tpu.memory_space<vmem>>, vector<1x4x8xbf16>
    %73 = vector.shape_cast %72 : vector<1x4x8xbf16> to vector<4x8xbf16>
    %cst_72 = arith.constant dense<0.000000e+00> : vector<8x8xf32>
    %74 = tpu.matmul %71, %73, %cst_72 {dimension_numbers = #tpu.dot_dimension_numbers<[1], [0], [0], [1], [0, 0, 1, 1], [], []>} : vector<8x4xbf16>, vector<4x8xbf16>, vector<8x8xf32> -> vector<8x8xf32>
    %75 = arith.addf %66, %74 : vector<8x8xf32>
    %c0_i32_73 = arith.constant 0 : i32
    %76 = arith.addi %0, %c0_i32_73 : i32
    %c1_i32 = arith.constant 1 : i32
    %77 = arith.addi %76, %c1_i32 : i32
    %c0_74 = arith.constant 0 : index
    %c0_75 = arith.constant 0 : index
    %78 = arith.index_cast %77 : i32 to index
    %c0_76 = arith.constant 0 : index
    %c0_77 = arith.constant 0 : index
    %79 = vector.load %arg2[%c0_74, %c0_75, %78, %c0_76, %c0_77] : memref<1x4x9x9x4xbf16, #tpu.memory_space<vmem>>, vector<1x1x1x8x4xbf16>
    %80 = vector.shape_cast %79 : vector<1x1x1x8x4xbf16> to vector<8x4xbf16>
    %c8 = arith.constant 8 : index
    %c0_78 = arith.constant 0 : index
    %c0_79 = arith.constant 0 : index
    %81 = vector.load %arg3[%c8, %c0_78, %c0_79] : memref<16x4x8xbf16, #tpu.memory_space<vmem>>, vector<1x4x8xbf16>
    %82 = vector.shape_cast %81 : vector<1x4x8xbf16> to vector<4x8xbf16>
    %cst_80 = arith.constant dense<0.000000e+00> : vector<8x8xf32>
    %83 = tpu.matmul %80, %82, %cst_80 {dimension_numbers = #tpu.dot_dimension_numbers<[1], [0], [0], [1], [0, 0, 1, 1], [], []>} : vector<8x4xbf16>, vector<4x8xbf16>, vector<8x8xf32> -> vector<8x8xf32>
    %84 = arith.addf %75, %83 : vector<8x8xf32>
    %c0_i32_81 = arith.constant 0 : i32
    %85 = arith.addi %0, %c0_i32_81 : i32
    %c1_i32_82 = arith.constant 1 : i32
    %86 = arith.addi %85, %c1_i32_82 : i32
    %c0_83 = arith.constant 0 : index
    %c1_84 = arith.constant 1 : index
    %87 = arith.index_cast %86 : i32 to index
    %c0_85 = arith.constant 0 : index
    %c0_86 = arith.constant 0 : index
    %88 = vector.load %arg2[%c0_83, %c1_84, %87, %c0_85, %c0_86] : memref<1x4x9x9x4xbf16, #tpu.memory_space<vmem>>, vector<1x1x1x8x4xbf16>
    %89 = vector.shape_cast %88 : vector<1x1x1x8x4xbf16> to vector<8x4xbf16>
    %c9 = arith.constant 9 : index
    %c0_87 = arith.constant 0 : index
    %c0_88 = arith.constant 0 : index
    %90 = vector.load %arg3[%c9, %c0_87, %c0_88] : memref<16x4x8xbf16, #tpu.memory_space<vmem>>, vector<1x4x8xbf16>
    %91 = vector.shape_cast %90 : vector<1x4x8xbf16> to vector<4x8xbf16>
    %cst_89 = arith.constant dense<0.000000e+00> : vector<8x8xf32>
    %92 = tpu.matmul %89, %91, %cst_89 {dimension_numbers = #tpu.dot_dimension_numbers<[1], [0], [0], [1], [0, 0, 1, 1], [], []>} : vector<8x4xbf16>, vector<4x8xbf16>, vector<8x8xf32> -> vector<8x8xf32>
    %93 = arith.addf %84, %92 : vector<8x8xf32>
    %c0_i32_90 = arith.constant 0 : i32
    %94 = arith.addi %0, %c0_i32_90 : i32
    %c1_i32_91 = arith.constant 1 : i32
    %95 = arith.addi %94, %c1_i32_91 : i32
    %c0_92 = arith.constant 0 : index
    %c0_93 = arith.constant 0 : index
    %96 = arith.index_cast %95 : i32 to index
    %c1_94 = arith.constant 1 : index
    %c0_95 = arith.constant 0 : index
    %97 = vector.load %arg2[%c0_92, %c0_93, %96, %c1_94, %c0_95] : memref<1x4x9x9x4xbf16, #tpu.memory_space<vmem>>, vector<1x1x1x8x4xbf16>
    %98 = vector.shape_cast %97 : vector<1x1x1x8x4xbf16> to vector<8x4xbf16>
    %c10 = arith.constant 10 : index
    %c0_96 = arith.constant 0 : index
    %c0_97 = arith.constant 0 : index
    %99 = vector.load %arg3[%c10, %c0_96, %c0_97] : memref<16x4x8xbf16, #tpu.memory_space<vmem>>, vector<1x4x8xbf16>
    %100 = vector.shape_cast %99 : vector<1x4x8xbf16> to vector<4x8xbf16>
    %cst_98 = arith.constant dense<0.000000e+00> : vector<8x8xf32>
    %101 = tpu.matmul %98, %100, %cst_98 {dimension_numbers = #tpu.dot_dimension_numbers<[1], [0], [0], [1], [0, 0, 1, 1], [], []>} : vector<8x4xbf16>, vector<4x8xbf16>, vector<8x8xf32> -> vector<8x8xf32>
    %102 = arith.addf %93, %101 : vector<8x8xf32>
    %c0_i32_99 = arith.constant 0 : i32
    %103 = arith.addi %0, %c0_i32_99 : i32
    %c1_i32_100 = arith.constant 1 : i32
    %104 = arith.addi %103, %c1_i32_100 : i32
    %c0_101 = arith.constant 0 : index
    %c1_102 = arith.constant 1 : index
    %105 = arith.index_cast %104 : i32 to index
    %c1_103 = arith.constant 1 : index
    %c0_104 = arith.constant 0 : index
    %106 = vector.load %arg2[%c0_101, %c1_102, %105, %c1_103, %c0_104] : memref<1x4x9x9x4xbf16, #tpu.memory_space<vmem>>, vector<1x1x1x8x4xbf16>
    %107 = vector.shape_cast %106 : vector<1x1x1x8x4xbf16> to vector<8x4xbf16>
    %c11 = arith.constant 11 : index
    %c0_105 = arith.constant 0 : index
    %c0_106 = arith.constant 0 : index
    %108 = vector.load %arg3[%c11, %c0_105, %c0_106] : memref<16x4x8xbf16, #tpu.memory_space<vmem>>, vector<1x4x8xbf16>
    %109 = vector.shape_cast %108 : vector<1x4x8xbf16> to vector<4x8xbf16>
    %cst_107 = arith.constant dense<0.000000e+00> : vector<8x8xf32>
    %110 = tpu.matmul %107, %109, %cst_107 {dimension_numbers = #tpu.dot_dimension_numbers<[1], [0], [0], [1], [0, 0, 1, 1], [], []>} : vector<8x4xbf16>, vector<4x8xbf16>, vector<8x8xf32> -> vector<8x8xf32>
    %111 = arith.addf %102, %110 : vector<8x8xf32>
    %c0_i32_108 = arith.constant 0 : i32
    %112 = arith.addi %0, %c0_i32_108 : i32
    %c1_i32_109 = arith.constant 1 : i32
    %113 = arith.addi %112, %c1_i32_109 : i32
    %c0_110 = arith.constant 0 : index
    %c2_111 = arith.constant 2 : index
    %114 = arith.index_cast %113 : i32 to index
    %c0_112 = arith.constant 0 : index
    %c0_113 = arith.constant 0 : index
    %115 = vector.load %arg2[%c0_110, %c2_111, %114, %c0_112, %c0_113] : memref<1x4x9x9x4xbf16, #tpu.memory_space<vmem>>, vector<1x1x1x8x4xbf16>
    %116 = vector.shape_cast %115 : vector<1x1x1x8x4xbf16> to vector<8x4xbf16>
    %c12 = arith.constant 12 : index
    %c0_114 = arith.constant 0 : index
    %c0_115 = arith.constant 0 : index
    %117 = vector.load %arg3[%c12, %c0_114, %c0_115] : memref<16x4x8xbf16, #tpu.memory_space<vmem>>, vector<1x4x8xbf16>
    %118 = vector.shape_cast %117 : vector<1x4x8xbf16> to vector<4x8xbf16>
    %cst_116 = arith.constant dense<0.000000e+00> : vector<8x8xf32>
    %119 = tpu.matmul %116, %118, %cst_116 {dimension_numbers = #tpu.dot_dimension_numbers<[1], [0], [0], [1], [0, 0, 1, 1], [], []>} : vector<8x4xbf16>, vector<4x8xbf16>, vector<8x8xf32> -> vector<8x8xf32>
    %120 = arith.addf %111, %119 : vector<8x8xf32>
    %c0_i32_117 = arith.constant 0 : i32
    %121 = arith.addi %0, %c0_i32_117 : i32
    %c1_i32_118 = arith.constant 1 : i32
    %122 = arith.addi %121, %c1_i32_118 : i32
    %c0_119 = arith.constant 0 : index
    %c3_120 = arith.constant 3 : index
    %123 = arith.index_cast %122 : i32 to index
    %c0_121 = arith.constant 0 : index
    %c0_122 = arith.constant 0 : index
    %124 = vector.load %arg2[%c0_119, %c3_120, %123, %c0_121, %c0_122] : memref<1x4x9x9x4xbf16, #tpu.memory_space<vmem>>, vector<1x1x1x8x4xbf16>
    %125 = vector.shape_cast %124 : vector<1x1x1x8x4xbf16> to vector<8x4xbf16>
    %c13 = arith.constant 13 : index
    %c0_123 = arith.constant 0 : index
    %c0_124 = arith.constant 0 : index
    %126 = vector.load %arg3[%c13, %c0_123, %c0_124] : memref<16x4x8xbf16, #tpu.memory_space<vmem>>, vector<1x4x8xbf16>
    %127 = vector.shape_cast %126 : vector<1x4x8xbf16> to vector<4x8xbf16>
    %cst_125 = arith.constant dense<0.000000e+00> : vector<8x8xf32>
    %128 = tpu.matmul %125, %127, %cst_125 {dimension_numbers = #tpu.dot_dimension_numbers<[1], [0], [0], [1], [0, 0, 1, 1], [], []>} : vector<8x4xbf16>, vector<4x8xbf16>, vector<8x8xf32> -> vector<8x8xf32>
    %129 = arith.addf %120, %128 : vector<8x8xf32>
    %c0_i32_126 = arith.constant 0 : i32
    %130 = arith.addi %0, %c0_i32_126 : i32
    %c1_i32_127 = arith.constant 1 : i32
    %131 = arith.addi %130, %c1_i32_127 : i32
    %c0_128 = arith.constant 0 : index
    %c2_129 = arith.constant 2 : index
    %132 = arith.index_cast %131 : i32 to index
    %c1_130 = arith.constant 1 : index
    %c0_131 = arith.constant 0 : index
    %133 = vector.load %arg2[%c0_128, %c2_129, %132, %c1_130, %c0_131] : memref<1x4x9x9x4xbf16, #tpu.memory_space<vmem>>, vector<1x1x1x8x4xbf16>
    %134 = vector.shape_cast %133 : vector<1x1x1x8x4xbf16> to vector<8x4xbf16>
    %c14 = arith.constant 14 : index
    %c0_132 = arith.constant 0 : index
    %c0_133 = arith.constant 0 : index
    %135 = vector.load %arg3[%c14, %c0_132, %c0_133] : memref<16x4x8xbf16, #tpu.memory_space<vmem>>, vector<1x4x8xbf16>
    %136 = vector.shape_cast %135 : vector<1x4x8xbf16> to vector<4x8xbf16>
    %cst_134 = arith.constant dense<0.000000e+00> : vector<8x8xf32>
    %137 = tpu.matmul %134, %136, %cst_134 {dimension_numbers = #tpu.dot_dimension_numbers<[1], [0], [0], [1], [0, 0, 1, 1], [], []>} : vector<8x4xbf16>, vector<4x8xbf16>, vector<8x8xf32> -> vector<8x8xf32>
    %138 = arith.addf %129, %137 : vector<8x8xf32>
    %c0_i32_135 = arith.constant 0 : i32
    %139 = arith.addi %0, %c0_i32_135 : i32
    %c1_i32_136 = arith.constant 1 : i32
    %140 = arith.addi %139, %c1_i32_136 : i32
    %c0_137 = arith.constant 0 : index
    %c3_138 = arith.constant 3 : index
    %141 = arith.index_cast %140 : i32 to index
    %c1_139 = arith.constant 1 : index
    %c0_140 = arith.constant 0 : index
    %142 = vector.load %arg2[%c0_137, %c3_138, %141, %c1_139, %c0_140] : memref<1x4x9x9x4xbf16, #tpu.memory_space<vmem>>, vector<1x1x1x8x4xbf16>
    %143 = vector.shape_cast %142 : vector<1x1x1x8x4xbf16> to vector<8x4xbf16>
    %c15 = arith.constant 15 : index
    %c0_141 = arith.constant 0 : index
    %c0_142 = arith.constant 0 : index
    %144 = vector.load %arg3[%c15, %c0_141, %c0_142] : memref<16x4x8xbf16, #tpu.memory_space<vmem>>, vector<1x4x8xbf16>
    %145 = vector.shape_cast %144 : vector<1x4x8xbf16> to vector<4x8xbf16>
    %cst_143 = arith.constant dense<0.000000e+00> : vector<8x8xf32>
    %146 = tpu.matmul %143, %145, %cst_143 {dimension_numbers = #tpu.dot_dimension_numbers<[1], [0], [0], [1], [0, 0, 1, 1], [], []>} : vector<8x4xbf16>, vector<4x8xbf16>, vector<8x8xf32> -> vector<8x8xf32>
    %147 = arith.addf %138, %146 : vector<8x8xf32>
    %148 = arith.truncf %147 : vector<8x8xf32> to vector<8x8xbf16>
    %c0_144 = arith.constant 0 : index
    %c0_145 = arith.constant 0 : index
    %c0_146 = arith.constant 0 : index
    %149 = vector.load %arg4[%c0_144, %c0_145, %c0_146] : memref<1x64x8xbf16, #tpu.memory_space<vmem>>, vector<1x8x8xbf16>
    %150 = vector.shape_cast %149 : vector<1x8x8xbf16> to vector<8x8xbf16>
    %151 = vector.shape_cast %148 : vector<8x8xbf16> to vector<1x8x8xbf16>
    tpu.vector_store %arg4[%c0_144, %c0_145, %c0_146], %151 {strides = array<i32>} : memref<1x64x8xbf16, #tpu.memory_space<vmem>>, vector<1x8x8xbf16>,
    %cst_147 = arith.constant dense<0.000000e+00> : vector<8xf32>
    %152 = vector.multi_reduction <add>, %147, %cst_147 [0] : vector<8x8xf32> to vector<8xf32>
    %153 = vector.shape_cast %152 : vector<8xf32> to vector<1x8xf32>
    %154 = arith.addf %1, %153 : vector<1x8xf32>
    %155 = arith.mulf %147, %147 : vector<8x8xf32>
    %cst_148 = arith.constant dense<0.000000e+00> : vector<8xf32>
    %156 = vector.multi_reduction <add>, %155, %cst_148 [0] : vector<8x8xf32> to vector<8xf32>
    %157 = vector.shape_cast %156 : vector<8xf32> to vector<1x8xf32>
    %158 = arith.addf %2, %157 : vector<1x8xf32>
    %cst_149 = arith.constant 0.000000e+00 : f32
    %159 = vector.broadcast %cst_149 : f32 to vector<8x8xf32>
    %c1_i32_150 = arith.constant 1 : i32
    %160 = arith.addi %0, %c1_i32_150 : i32
    %c0_i32_151 = arith.constant 0 : i32
    %161 = arith.addi %160, %c0_i32_151 : i32
    %c0_152 = arith.constant 0 : index
    %c0_153 = arith.constant 0 : index
    %162 = arith.index_cast %161 : i32 to index
    %c0_154 = arith.constant 0 : index
    %c0_155 = arith.constant 0 : index
    %163 = vector.load %arg2[%c0_152, %c0_153, %162, %c0_154, %c0_155] : memref<1x4x9x9x4xbf16, #tpu.memory_space<vmem>>, vector<1x1x1x8x4xbf16>
    %164 = vector.shape_cast %163 : vector<1x1x1x8x4xbf16> to vector<8x4xbf16>
    %c0_156 = arith.constant 0 : index
    %c0_157 = arith.constant 0 : index
    %c0_158 = arith.constant 0 : index
    %165 = vector.load %arg3[%c0_156, %c0_157, %c0_158] : memref<16x4x8xbf16, #tpu.memory_space<vmem>>, vector<1x4x8xbf16>
    %166 = vector.shape_cast %165 : vector<1x4x8xbf16> to vector<4x8xbf16>
    %cst_159 = arith.constant dense<0.000000e+00> : vector<8x8xf32>
    %167 = tpu.matmul %164, %166, %cst_159 {dimension_numbers = #tpu.dot_dimension_numbers<[1], [0], [0], [1], [0, 0, 1, 1], [], []>} : vector<8x4xbf16>, vector<4x8xbf16>, vector<8x8xf32> -> vector<8x8xf32>
    %168 = arith.addf %159, %167 : vector<8x8xf32>
    %c1_i32_160 = arith.constant 1 : i32
    %169 = arith.addi %0, %c1_i32_160 : i32
    %c0_i32_161 = arith.constant 0 : i32
    %170 = arith.addi %169, %c0_i32_161 : i32
    %c0_162 = arith.constant 0 : index
    %c1_163 = arith.constant 1 : index
    %171 = arith.index_cast %170 : i32 to index
    %c0_164 = arith.constant 0 : index
    %c0_165 = arith.constant 0 : index
    %172 = vector.load %arg2[%c0_162, %c1_163, %171, %c0_164, %c0_165] : memref<1x4x9x9x4xbf16, #tpu.memory_space<vmem>>, vector<1x1x1x8x4xbf16>
    %173 = vector.shape_cast %172 : vector<1x1x1x8x4xbf16> to vector<8x4xbf16>
    %c1_166 = arith.constant 1 : index
    %c0_167 = arith.constant 0 : index
    %c0_168 = arith.constant 0 : index
    %174 = vector.load %arg3[%c1_166, %c0_167, %c0_168] : memref<16x4x8xbf16, #tpu.memory_space<vmem>>, vector<1x4x8xbf16>
    %175 = vector.shape_cast %174 : vector<1x4x8xbf16> to vector<4x8xbf16>
    %cst_169 = arith.constant dense<0.000000e+00> : vector<8x8xf32>
    %176 = tpu.matmul %173, %175, %cst_169 {dimension_numbers = #tpu.dot_dimension_numbers<[1], [0], [0], [1], [0, 0, 1, 1], [], []>} : vector<8x4xbf16>, vector<4x8xbf16>, vector<8x8xf32> -> vector<8x8xf32>
    %177 = arith.addf %168, %176 : vector<8x8xf32>
    %c1_i32_170 = arith.constant 1 : i32
    %178 = arith.addi %0, %c1_i32_170 : i32
    %c0_i32_171 = arith.constant 0 : i32
    %179 = arith.addi %178, %c0_i32_171 : i32
    %c0_172 = arith.constant 0 : index
    %c0_173 = arith.constant 0 : index
    %180 = arith.index_cast %179 : i32 to index
    %c1_174 = arith.constant 1 : index
    %c0_175 = arith.constant 0 : index
    %181 = vector.load %arg2[%c0_172, %c0_173, %180, %c1_174, %c0_175] : memref<1x4x9x9x4xbf16, #tpu.memory_space<vmem>>, vector<1x1x1x8x4xbf16>
    %182 = vector.shape_cast %181 : vector<1x1x1x8x4xbf16> to vector<8x4xbf16>
    %c2_176 = arith.constant 2 : index
    %c0_177 = arith.constant 0 : index
    %c0_178 = arith.constant 0 : index
    %183 = vector.load %arg3[%c2_176, %c0_177, %c0_178] : memref<16x4x8xbf16, #tpu.memory_space<vmem>>, vector<1x4x8xbf16>
    %184 = vector.shape_cast %183 : vector<1x4x8xbf16> to vector<4x8xbf16>
    %cst_179 = arith.constant dense<0.000000e+00> : vector<8x8xf32>
    %185 = tpu.matmul %182, %184, %cst_179 {dimension_numbers = #tpu.dot_dimension_numbers<[1], [0], [0], [1], [0, 0, 1, 1], [], []>} : vector<8x4xbf16>, vector<4x8xbf16>, vector<8x8xf32> -> vector<8x8xf32>
    %186 = arith.addf %177, %185 : vector<8x8xf32>
    %c1_i32_180 = arith.constant 1 : i32
    %187 = arith.addi %0, %c1_i32_180 : i32
    %c0_i32_181 = arith.constant 0 : i32
    %188 = arith.addi %187, %c0_i32_181 : i32
    %c0_182 = arith.constant 0 : index
    %c1_183 = arith.constant 1 : index
    %189 = arith.index_cast %188 : i32 to index
    %c1_184 = arith.constant 1 : index
    %c0_185 = arith.constant 0 : index
    %190 = vector.load %arg2[%c0_182, %c1_183, %189, %c1_184, %c0_185] : memref<1x4x9x9x4xbf16, #tpu.memory_space<vmem>>, vector<1x1x1x8x4xbf16>
    %191 = vector.shape_cast %190 : vector<1x1x1x8x4xbf16> to vector<8x4xbf16>
    %c3_186 = arith.constant 3 : index
    %c0_187 = arith.constant 0 : index
    %c0_188 = arith.constant 0 : index
    %192 = vector.load %arg3[%c3_186, %c0_187, %c0_188] : memref<16x4x8xbf16, #tpu.memory_space<vmem>>, vector<1x4x8xbf16>
    %193 = vector.shape_cast %192 : vector<1x4x8xbf16> to vector<4x8xbf16>
    %cst_189 = arith.constant dense<0.000000e+00> : vector<8x8xf32>
    %194 = tpu.matmul %191, %193, %cst_189 {dimension_numbers = #tpu.dot_dimension_numbers<[1], [0], [0], [1], [0, 0, 1, 1], [], []>} : vector<8x4xbf16>, vector<4x8xbf16>, vector<8x8xf32> -> vector<8x8xf32>
    %195 = arith.addf %186, %194 : vector<8x8xf32>
    %c1_i32_190 = arith.constant 1 : i32
    %196 = arith.addi %0, %c1_i32_190 : i32
    %c0_i32_191 = arith.constant 0 : i32
    %197 = arith.addi %196, %c0_i32_191 : i32
    %c0_192 = arith.constant 0 : index
    %c2_193 = arith.constant 2 : index
    %198 = arith.index_cast %197 : i32 to index
    %c0_194 = arith.constant 0 : index
    %c0_195 = arith.constant 0 : index
    %199 = vector.load %arg2[%c0_192, %c2_193, %198, %c0_194, %c0_195] : memref<1x4x9x9x4xbf16, #tpu.memory_space<vmem>>, vector<1x1x1x8x4xbf16>
    %200 = vector.shape_cast %199 : vector<1x1x1x8x4xbf16> to vector<8x4xbf16>
    %c4_196 = arith.constant 4 : index
    %c0_197 = arith.constant 0 : index
    %c0_198 = arith.constant 0 : index
    %201 = vector.load %arg3[%c4_196, %c0_197, %c0_198] : memref<16x4x8xbf16, #tpu.memory_space<vmem>>, vector<1x4x8xbf16>
    %202 = vector.shape_cast %201 : vector<1x4x8xbf16> to vector<4x8xbf16>
    %cst_199 = arith.constant dense<0.000000e+00> : vector<8x8xf32>
    %203 = tpu.matmul %200, %202, %cst_199 {dimension_numbers = #tpu.dot_dimension_numbers<[1], [0], [0], [1], [0, 0, 1, 1], [], []>} : vector<8x4xbf16>, vector<4x8xbf16>, vector<8x8xf32> -> vector<8x8xf32>
    %204 = arith.addf %195, %203 : vector<8x8xf32>
    %c1_i32_200 = arith.constant 1 : i32
    %205 = arith.addi %0, %c1_i32_200 : i32
    %c0_i32_201 = arith.constant 0 : i32
    %206 = arith.addi %205, %c0_i32_201 : i32
    %c0_202 = arith.constant 0 : index
    %c3_203 = arith.constant 3 : index
    %207 = arith.index_cast %206 : i32 to index
    %c0_204 = arith.constant 0 : index
    %c0_205 = arith.constant 0 : index
    %208 = vector.load %arg2[%c0_202, %c3_203, %207, %c0_204, %c0_205] : memref<1x4x9x9x4xbf16, #tpu.memory_space<vmem>>, vector<1x1x1x8x4xbf16>
    %209 = vector.shape_cast %208 : vector<1x1x1x8x4xbf16> to vector<8x4xbf16>
    %c5_206 = arith.constant 5 : index
    %c0_207 = arith.constant 0 : index
    %c0_208 = arith.constant 0 : index
    %210 = vector.load %arg3[%c5_206, %c0_207, %c0_208] : memref<16x4x8xbf16, #tpu.memory_space<vmem>>, vector<1x4x8xbf16>
    %211 = vector.shape_cast %210 : vector<1x4x8xbf16> to vector<4x8xbf16>
    %cst_209 = arith.constant dense<0.000000e+00> : vector<8x8xf32>
    %212 = tpu.matmul %209, %211, %cst_209 {dimension_numbers = #tpu.dot_dimension_numbers<[1], [0], [0], [1], [0, 0, 1, 1], [], []>} : vector<8x4xbf16>, vector<4x8xbf16>, vector<8x8xf32> -> vector<8x8xf32>
    %213 = arith.addf %204, %212 : vector<8x8xf32>
    %c1_i32_210 = arith.constant 1 : i32
    %214 = arith.addi %0, %c1_i32_210 : i32
    %c0_i32_211 = arith.constant 0 : i32
    %215 = arith.addi %214, %c0_i32_211 : i32
    %c0_212 = arith.constant 0 : index
    %c2_213 = arith.constant 2 : index
    %216 = arith.index_cast %215 : i32 to index
    %c1_214 = arith.constant 1 : index
    %c0_215 = arith.constant 0 : index
    %217 = vector.load %arg2[%c0_212, %c2_213, %216, %c1_214, %c0_215] : memref<1x4x9x9x4xbf16, #tpu.memory_space<vmem>>, vector<1x1x1x8x4xbf16>
    %218 = vector.shape_cast %217 : vector<1x1x1x8x4xbf16> to vector<8x4xbf16>
    %c6_216 = arith.constant 6 : index
    %c0_217 = arith.constant 0 : index
    %c0_218 = arith.constant 0 : index
    %219 = vector.load %arg3[%c6_216, %c0_217, %c0_218] : memref<16x4x8xbf16, #tpu.memory_space<vmem>>, vector<1x4x8xbf16>
    %220 = vector.shape_cast %219 : vector<1x4x8xbf16> to vector<4x8xbf16>
    %cst_219 = arith.constant dense<0.000000e+00> : vector<8x8xf32>
    %221 = tpu.matmul %218, %220, %cst_219 {dimension_numbers = #tpu.dot_dimension_numbers<[1], [0], [0], [1], [0, 0, 1, 1], [], []>} : vector<8x4xbf16>, vector<4x8xbf16>, vector<8x8xf32> -> vector<8x8xf32>
    %222 = arith.addf %213, %221 : vector<8x8xf32>
    %c1_i32_220 = arith.constant 1 : i32
    %223 = arith.addi %0, %c1_i32_220 : i32
    %c0_i32_221 = arith.constant 0 : i32
    %224 = arith.addi %223, %c0_i32_221 : i32
    %c0_222 = arith.constant 0 : index
    %c3_223 = arith.constant 3 : index
    %225 = arith.index_cast %224 : i32 to index
    %c1_224 = arith.constant 1 : index
    %c0_225 = arith.constant 0 : index
    %226 = vector.load %arg2[%c0_222, %c3_223, %225, %c1_224, %c0_225] : memref<1x4x9x9x4xbf16, #tpu.memory_space<vmem>>, vector<1x1x1x8x4xbf16>
    %227 = vector.shape_cast %226 : vector<1x1x1x8x4xbf16> to vector<8x4xbf16>
    %c7_226 = arith.constant 7 : index
    %c0_227 = arith.constant 0 : index
    %c0_228 = arith.constant 0 : index
    %228 = vector.load %arg3[%c7_226, %c0_227, %c0_228] : memref<16x4x8xbf16, #tpu.memory_space<vmem>>, vector<1x4x8xbf16>
    %229 = vector.shape_cast %228 : vector<1x4x8xbf16> to vector<4x8xbf16>
    %cst_229 = arith.constant dense<0.000000e+00> : vector<8x8xf32>
    %230 = tpu.matmul %227, %229, %cst_229 {dimension_numbers = #tpu.dot_dimension_numbers<[1], [0], [0], [1], [0, 0, 1, 1], [], []>} : vector<8x4xbf16>, vector<4x8xbf16>, vector<8x8xf32> -> vector<8x8xf32>
    %231 = arith.addf %222, %230 : vector<8x8xf32>
    %c1_i32_230 = arith.constant 1 : i32
    %232 = arith.addi %0, %c1_i32_230 : i32
    %c1_i32_231 = arith.constant 1 : i32
    %233 = arith.addi %232, %c1_i32_231 : i32
    %c0_232 = arith.constant 0 : index
    %c0_233 = arith.constant 0 : index
    %234 = arith.index_cast %233 : i32 to index
    %c0_234 = arith.constant 0 : index
    %c0_235 = arith.constant 0 : index
    %235 = vector.load %arg2[%c0_232, %c0_233, %234, %c0_234, %c0_235] : memref<1x4x9x9x4xbf16, #tpu.memory_space<vmem>>, vector<1x1x1x8x4xbf16>
    %236 = vector.shape_cast %235 : vector<1x1x1x8x4xbf16> to vector<8x4xbf16>
    %c8_236 = arith.constant 8 : index
    %c0_237 = arith.constant 0 : index
    %c0_238 = arith.constant 0 : index
    %237 = vector.load %arg3[%c8_236, %c0_237, %c0_238] : memref<16x4x8xbf16, #tpu.memory_space<vmem>>, vector<1x4x8xbf16>
    %238 = vector.shape_cast %237 : vector<1x4x8xbf16> to vector<4x8xbf16>
    %cst_239 = arith.constant dense<0.000000e+00> : vector<8x8xf32>
    %239 = tpu.matmul %236, %238, %cst_239 {dimension_numbers = #tpu.dot_dimension_numbers<[1], [0], [0], [1], [0, 0, 1, 1], [], []>} : vector<8x4xbf16>, vector<4x8xbf16>, vector<8x8xf32> -> vector<8x8xf32>
    %240 = arith.addf %231, %239 : vector<8x8xf32>
    %c1_i32_240 = arith.constant 1 : i32
    %241 = arith.addi %0, %c1_i32_240 : i32
    %c1_i32_241 = arith.constant 1 : i32
    %242 = arith.addi %241, %c1_i32_241 : i32
    %c0_242 = arith.constant 0 : index
    %c1_243 = arith.constant 1 : index
    %243 = arith.index_cast %242 : i32 to index
    %c0_244 = arith.constant 0 : index
    %c0_245 = arith.constant 0 : index
    %244 = vector.load %arg2[%c0_242, %c1_243, %243, %c0_244, %c0_245] : memref<1x4x9x9x4xbf16, #tpu.memory_space<vmem>>, vector<1x1x1x8x4xbf16>
    %245 = vector.shape_cast %244 : vector<1x1x1x8x4xbf16> to vector<8x4xbf16>
    %c9_246 = arith.constant 9 : index
    %c0_247 = arith.constant 0 : index
    %c0_248 = arith.constant 0 : index
    %246 = vector.load %arg3[%c9_246, %c0_247, %c0_248] : memref<16x4x8xbf16, #tpu.memory_space<vmem>>, vector<1x4x8xbf16>
    %247 = vector.shape_cast %246 : vector<1x4x8xbf16> to vector<4x8xbf16>
    %cst_249 = arith.constant dense<0.000000e+00> : vector<8x8xf32>
    %248 = tpu.matmul %245, %247, %cst_249 {dimension_numbers = #tpu.dot_dimension_numbers<[1], [0], [0], [1], [0, 0, 1, 1], [], []>} : vector<8x4xbf16>, vector<4x8xbf16>, vector<8x8xf32> -> vector<8x8xf32>
    %249 = arith.addf %240, %248 : vector<8x8xf32>
    %c1_i32_250 = arith.constant 1 : i32
    %250 = arith.addi %0, %c1_i32_250 : i32
    %c1_i32_251 = arith.constant 1 : i32
    %251 = arith.addi %250, %c1_i32_251 : i32
    %c0_252 = arith.constant 0 : index
    %c0_253 = arith.constant 0 : index
    %252 = arith.index_cast %251 : i32 to index
    %c1_254 = arith.constant 1 : index
    %c0_255 = arith.constant 0 : index
    %253 = vector.load %arg2[%c0_252, %c0_253, %252, %c1_254, %c0_255] : memref<1x4x9x9x4xbf16, #tpu.memory_space<vmem>>, vector<1x1x1x8x4xbf16>
    %254 = vector.shape_cast %253 : vector<1x1x1x8x4xbf16> to vector<8x4xbf16>
    %c10_256 = arith.constant 10 : index
    %c0_257 = arith.constant 0 : index
    %c0_258 = arith.constant 0 : index
    %255 = vector.load %arg3[%c10_256, %c0_257, %c0_258] : memref<16x4x8xbf16, #tpu.memory_space<vmem>>, vector<1x4x8xbf16>
    %256 = vector.shape_cast %255 : vector<1x4x8xbf16> to vector<4x8xbf16>
    %cst_259 = arith.constant dense<0.000000e+00> : vector<8x8xf32>
    %257 = tpu.matmul %254, %256, %cst_259 {dimension_numbers = #tpu.dot_dimension_numbers<[1], [0], [0], [1], [0, 0, 1, 1], [], []>} : vector<8x4xbf16>, vector<4x8xbf16>, vector<8x8xf32> -> vector<8x8xf32>
    %258 = arith.addf %249, %257 : vector<8x8xf32>
    %c1_i32_260 = arith.constant 1 : i32
    %259 = arith.addi %0, %c1_i32_260 : i32
    %c1_i32_261 = arith.constant 1 : i32
    %260 = arith.addi %259, %c1_i32_261 : i32
    %c0_262 = arith.constant 0 : index
    %c1_263 = arith.constant 1 : index
    %261 = arith.index_cast %260 : i32 to index
    %c1_264 = arith.constant 1 : index
    %c0_265 = arith.constant 0 : index
    %262 = vector.load %arg2[%c0_262, %c1_263, %261, %c1_264, %c0_265] : memref<1x4x9x9x4xbf16, #tpu.memory_space<vmem>>, vector<1x1x1x8x4xbf16>
    %263 = vector.shape_cast %262 : vector<1x1x1x8x4xbf16> to vector<8x4xbf16>
    %c11_266 = arith.constant 11 : index
    %c0_267 = arith.constant 0 : index
    %c0_268 = arith.constant 0 : index
    %264 = vector.load %arg3[%c11_266, %c0_267, %c0_268] : memref<16x4x8xbf16, #tpu.memory_space<vmem>>, vector<1x4x8xbf16>
    %265 = vector.shape_cast %264 : vector<1x4x8xbf16> to vector<4x8xbf16>
    %cst_269 = arith.constant dense<0.000000e+00> : vector<8x8xf32>
    %266 = tpu.matmul %263, %265, %cst_269 {dimension_numbers = #tpu.dot_dimension_numbers<[1], [0], [0], [1], [0, 0, 1, 1], [], []>} : vector<8x4xbf16>, vector<4x8xbf16>, vector<8x8xf32> -> vector<8x8xf32>
    %267 = arith.addf %258, %266 : vector<8x8xf32>
    %c1_i32_270 = arith.constant 1 : i32
    %268 = arith.addi %0, %c1_i32_270 : i32
    %c1_i32_271 = arith.constant 1 : i32
    %269 = arith.addi %268, %c1_i32_271 : i32
    %c0_272 = arith.constant 0 : index
    %c2_273 = arith.constant 2 : index
    %270 = arith.index_cast %269 : i32 to index
    %c0_274 = arith.constant 0 : index
    %c0_275 = arith.constant 0 : index
    %271 = vector.load %arg2[%c0_272, %c2_273, %270, %c0_274, %c0_275] : memref<1x4x9x9x4xbf16, #tpu.memory_space<vmem>>, vector<1x1x1x8x4xbf16>
    %272 = vector.shape_cast %271 : vector<1x1x1x8x4xbf16> to vector<8x4xbf16>
    %c12_276 = arith.constant 12 : index
    %c0_277 = arith.constant 0 : index
    %c0_278 = arith.constant 0 : index
    %273 = vector.load %arg3[%c12_276, %c0_277, %c0_278] : memref<16x4x8xbf16, #tpu.memory_space<vmem>>, vector<1x4x8xbf16>
    %274 = vector.shape_cast %273 : vector<1x4x8xbf16> to vector<4x8xbf16>
    %cst_279 = arith.constant dense<0.000000e+00> : vector<8x8xf32>
    %275 = tpu.matmul %272, %274, %cst_279 {dimension_numbers = #tpu.dot_dimension_numbers<[1], [0], [0], [1], [0, 0, 1, 1], [], []>} : vector<8x4xbf16>, vector<4x8xbf16>, vector<8x8xf32> -> vector<8x8xf32>
    %276 = arith.addf %267, %275 : vector<8x8xf32>
    %c1_i32_280 = arith.constant 1 : i32
    %277 = arith.addi %0, %c1_i32_280 : i32
    %c1_i32_281 = arith.constant 1 : i32
    %278 = arith.addi %277, %c1_i32_281 : i32
    %c0_282 = arith.constant 0 : index
    %c3_283 = arith.constant 3 : index
    %279 = arith.index_cast %278 : i32 to index
    %c0_284 = arith.constant 0 : index
    %c0_285 = arith.constant 0 : index
    %280 = vector.load %arg2[%c0_282, %c3_283, %279, %c0_284, %c0_285] : memref<1x4x9x9x4xbf16, #tpu.memory_space<vmem>>, vector<1x1x1x8x4xbf16>
    %281 = vector.shape_cast %280 : vector<1x1x1x8x4xbf16> to vector<8x4xbf16>
    %c13_286 = arith.constant 13 : index
    %c0_287 = arith.constant 0 : index
    %c0_288 = arith.constant 0 : index
    %282 = vector.load %arg3[%c13_286, %c0_287, %c0_288] : memref<16x4x8xbf16, #tpu.memory_space<vmem>>, vector<1x4x8xbf16>
    %283 = vector.shape_cast %282 : vector<1x4x8xbf16> to vector<4x8xbf16>
    %cst_289 = arith.constant dense<0.000000e+00> : vector<8x8xf32>
    %284 = tpu.matmul %281, %283, %cst_289 {dimension_numbers = #tpu.dot_dimension_numbers<[1], [0], [0], [1], [0, 0, 1, 1], [], []>} : vector<8x4xbf16>, vector<4x8xbf16>, vector<8x8xf32> -> vector<8x8xf32>
    %285 = arith.addf %276, %284 : vector<8x8xf32>
    %c1_i32_290 = arith.constant 1 : i32
    %286 = arith.addi %0, %c1_i32_290 : i32
    %c1_i32_291 = arith.constant 1 : i32
    %287 = arith.addi %286, %c1_i32_291 : i32
    %c0_292 = arith.constant 0 : index
    %c2_293 = arith.constant 2 : index
    %288 = arith.index_cast %287 : i32 to index
    %c1_294 = arith.constant 1 : index
    %c0_295 = arith.constant 0 : index
    %289 = vector.load %arg2[%c0_292, %c2_293, %288, %c1_294, %c0_295] : memref<1x4x9x9x4xbf16, #tpu.memory_space<vmem>>, vector<1x1x1x8x4xbf16>
    %290 = vector.shape_cast %289 : vector<1x1x1x8x4xbf16> to vector<8x4xbf16>
    %c14_296 = arith.constant 14 : index
    %c0_297 = arith.constant 0 : index
    %c0_298 = arith.constant 0 : index
    %291 = vector.load %arg3[%c14_296, %c0_297, %c0_298] : memref<16x4x8xbf16, #tpu.memory_space<vmem>>, vector<1x4x8xbf16>
    %292 = vector.shape_cast %291 : vector<1x4x8xbf16> to vector<4x8xbf16>
    %cst_299 = arith.constant dense<0.000000e+00> : vector<8x8xf32>
    %293 = tpu.matmul %290, %292, %cst_299 {dimension_numbers = #tpu.dot_dimension_numbers<[1], [0], [0], [1], [0, 0, 1, 1], [], []>} : vector<8x4xbf16>, vector<4x8xbf16>, vector<8x8xf32> -> vector<8x8xf32>
    %294 = arith.addf %285, %293 : vector<8x8xf32>
    %c1_i32_300 = arith.constant 1 : i32
    %295 = arith.addi %0, %c1_i32_300 : i32
    %c1_i32_301 = arith.constant 1 : i32
    %296 = arith.addi %295, %c1_i32_301 : i32
    %c0_302 = arith.constant 0 : index
    %c3_303 = arith.constant 3 : index
    %297 = arith.index_cast %296 : i32 to index
    %c1_304 = arith.constant 1 : index
    %c0_305 = arith.constant 0 : index
    %298 = vector.load %arg2[%c0_302, %c3_303, %297, %c1_304, %c0_305] : memref<1x4x9x9x4xbf16, #tpu.memory_space<vmem>>, vector<1x1x1x8x4xbf16>
    %299 = vector.shape_cast %298 : vector<1x1x1x8x4xbf16> to vector<8x4xbf16>
    %c15_306 = arith.constant 15 : index
    %c0_307 = arith.constant 0 : index
    %c0_308 = arith.constant 0 : index
    %300 = vector.load %arg3[%c15_306, %c0_307, %c0_308] : memref<16x4x8xbf16, #tpu.memory_space<vmem>>, vector<1x4x8xbf16>
    %301 = vector.shape_cast %300 : vector<1x4x8xbf16> to vector<4x8xbf16>
    %cst_309 = arith.constant dense<0.000000e+00> : vector<8x8xf32>
    %302 = tpu.matmul %299, %301, %cst_309 {dimension_numbers = #tpu.dot_dimension_numbers<[1], [0], [0], [1], [0, 0, 1, 1], [], []>} : vector<8x4xbf16>, vector<4x8xbf16>, vector<8x8xf32> -> vector<8x8xf32>
    %303 = arith.addf %294, %302 : vector<8x8xf32>
    %304 = arith.truncf %303 : vector<8x8xf32> to vector<8x8xbf16>
    %c0_310 = arith.constant 0 : index
    %c8_311 = arith.constant 8 : index
    %c0_312 = arith.constant 0 : index
    %305 = vector.load %arg4[%c0_310, %c8_311, %c0_312] : memref<1x64x8xbf16, #tpu.memory_space<vmem>>, vector<1x8x8xbf16>
    %306 = vector.shape_cast %305 : vector<1x8x8xbf16> to vector<8x8xbf16>
    %307 = vector.shape_cast %304 : vector<8x8xbf16> to vector<1x8x8xbf16>
    tpu.vector_store %arg4[%c0_310, %c8_311, %c0_312], %307 {strides = array<i32>} : memref<1x64x8xbf16, #tpu.memory_space<vmem>>, vector<1x8x8xbf16>,
    %cst_313 = arith.constant dense<0.000000e+00> : vector<8xf32>
    %308 = vector.multi_reduction <add>, %303, %cst_313 [0] : vector<8x8xf32> to vector<8xf32>
    %309 = vector.shape_cast %308 : vector<8xf32> to vector<1x8xf32>
    %310 = arith.addf %154, %309 : vector<1x8xf32>
    %311 = arith.mulf %303, %303 : vector<8x8xf32>
    %cst_314 = arith.constant dense<0.000000e+00> : vector<8xf32>
    %312 = vector.multi_reduction <add>, %311, %cst_314 [0] : vector<8x8xf32> to vector<8xf32>
    %313 = vector.shape_cast %312 : vector<8xf32> to vector<1x8xf32>
    %314 = arith.addf %158, %313 : vector<1x8xf32>
    %cst_315 = arith.constant 0.000000e+00 : f32
    %315 = vector.broadcast %cst_315 : f32 to vector<8x8xf32>
    %c2_i32 = arith.constant 2 : i32
    %316 = arith.addi %0, %c2_i32 : i32
    %c0_i32_316 = arith.constant 0 : i32
    %317 = arith.addi %316, %c0_i32_316 : i32
    %c0_317 = arith.constant 0 : index
    %c0_318 = arith.constant 0 : index
    %318 = arith.index_cast %317 : i32 to index
    %c0_319 = arith.constant 0 : index
    %c0_320 = arith.constant 0 : index
    %319 = vector.load %arg2[%c0_317, %c0_318, %318, %c0_319, %c0_320] : memref<1x4x9x9x4xbf16, #tpu.memory_space<vmem>>, vector<1x1x1x8x4xbf16>
    %320 = vector.shape_cast %319 : vector<1x1x1x8x4xbf16> to vector<8x4xbf16>
    %c0_321 = arith.constant 0 : index
    %c0_322 = arith.constant 0 : index
    %c0_323 = arith.constant 0 : index
    %321 = vector.load %arg3[%c0_321, %c0_322, %c0_323] : memref<16x4x8xbf16, #tpu.memory_space<vmem>>, vector<1x4x8xbf16>
    %322 = vector.shape_cast %321 : vector<1x4x8xbf16> to vector<4x8xbf16>
    %cst_324 = arith.constant dense<0.000000e+00> : vector<8x8xf32>
    %323 = tpu.matmul %320, %322, %cst_324 {dimension_numbers = #tpu.dot_dimension_numbers<[1], [0], [0], [1], [0, 0, 1, 1], [], []>} : vector<8x4xbf16>, vector<4x8xbf16>, vector<8x8xf32> -> vector<8x8xf32>
    %324 = arith.addf %315, %323 : vector<8x8xf32>
    %c2_i32_325 = arith.constant 2 : i32
    %325 = arith.addi %0, %c2_i32_325 : i32
    %c0_i32_326 = arith.constant 0 : i32
    %326 = arith.addi %325, %c0_i32_326 : i32
    %c0_327 = arith.constant 0 : index
    %c1_328 = arith.constant 1 : index
    %327 = arith.index_cast %326 : i32 to index
    %c0_329 = arith.constant 0 : index
    %c0_330 = arith.constant 0 : index
    %328 = vector.load %arg2[%c0_327, %c1_328, %327, %c0_329, %c0_330] : memref<1x4x9x9x4xbf16, #tpu.memory_space<vmem>>, vector<1x1x1x8x4xbf16>
    %329 = vector.shape_cast %328 : vector<1x1x1x8x4xbf16> to vector<8x4xbf16>
    %c1_331 = arith.constant 1 : index
    %c0_332 = arith.constant 0 : index
    %c0_333 = arith.constant 0 : index
    %330 = vector.load %arg3[%c1_331, %c0_332, %c0_333] : memref<16x4x8xbf16, #tpu.memory_space<vmem>>, vector<1x4x8xbf16>
    %331 = vector.shape_cast %330 : vector<1x4x8xbf16> to vector<4x8xbf16>
    %cst_334 = arith.constant dense<0.000000e+00> : vector<8x8xf32>
    %332 = tpu.matmul %329, %331, %cst_334 {dimension_numbers = #tpu.dot_dimension_numbers<[1], [0], [0], [1], [0, 0, 1, 1], [], []>} : vector<8x4xbf16>, vector<4x8xbf16>, vector<8x8xf32> -> vector<8x8xf32>
    %333 = arith.addf %324, %332 : vector<8x8xf32>
    %c2_i32_335 = arith.constant 2 : i32
    %334 = arith.addi %0, %c2_i32_335 : i32
    %c0_i32_336 = arith.constant 0 : i32
    %335 = arith.addi %334, %c0_i32_336 : i32
    %c0_337 = arith.constant 0 : index
    %c0_338 = arith.constant 0 : index
    %336 = arith.index_cast %335 : i32 to index
    %c1_339 = arith.constant 1 : index
    %c0_340 = arith.constant 0 : index
    %337 = vector.load %arg2[%c0_337, %c0_338, %336, %c1_339, %c0_340] : memref<1x4x9x9x4xbf16, #tpu.memory_space<vmem>>, vector<1x1x1x8x4xbf16>
    %338 = vector.shape_cast %337 : vector<1x1x1x8x4xbf16> to vector<8x4xbf16>
    %c2_341 = arith.constant 2 : index
    %c0_342 = arith.constant 0 : index
    %c0_343 = arith.constant 0 : index
    %339 = vector.load %arg3[%c2_341, %c0_342, %c0_343] : memref<16x4x8xbf16, #tpu.memory_space<vmem>>, vector<1x4x8xbf16>
    %340 = vector.shape_cast %339 : vector<1x4x8xbf16> to vector<4x8xbf16>
    %cst_344 = arith.constant dense<0.000000e+00> : vector<8x8xf32>
    %341 = tpu.matmul %338, %340, %cst_344 {dimension_numbers = #tpu.dot_dimension_numbers<[1], [0], [0], [1], [0, 0, 1, 1], [], []>} : vector<8x4xbf16>, vector<4x8xbf16>, vector<8x8xf32> -> vector<8x8xf32>
    %342 = arith.addf %333, %341 : vector<8x8xf32>
    %c2_i32_345 = arith.constant 2 : i32
    %343 = arith.addi %0, %c2_i32_345 : i32
    %c0_i32_346 = arith.constant 0 : i32
    %344 = arith.addi %343, %c0_i32_346 : i32
    %c0_347 = arith.constant 0 : index
    %c1_348 = arith.constant 1 : index
    %345 = arith.index_cast %344 : i32 to index
    %c1_349 = arith.constant 1 : index
    %c0_350 = arith.constant 0 : index
    %346 = vector.load %arg2[%c0_347, %c1_348, %345, %c1_349, %c0_350] : memref<1x4x9x9x4xbf16, #tpu.memory_space<vmem>>, vector<1x1x1x8x4xbf16>
    %347 = vector.shape_cast %346 : vector<1x1x1x8x4xbf16> to vector<8x4xbf16>
    %c3_351 = arith.constant 3 : index
    %c0_352 = arith.constant 0 : index
    %c0_353 = arith.constant 0 : index
    %348 = vector.load %arg3[%c3_351, %c0_352, %c0_353] : memref<16x4x8xbf16, #tpu.memory_space<vmem>>, vector<1x4x8xbf16>
    %349 = vector.shape_cast %348 : vector<1x4x8xbf16> to vector<4x8xbf16>
    %cst_354 = arith.constant dense<0.000000e+00> : vector<8x8xf32>
    %350 = tpu.matmul %347, %349, %cst_354 {dimension_numbers = #tpu.dot_dimension_numbers<[1], [0], [0], [1], [0, 0, 1, 1], [], []>} : vector<8x4xbf16>, vector<4x8xbf16>, vector<8x8xf32> -> vector<8x8xf32>
    %351 = arith.addf %342, %350 : vector<8x8xf32>
    %c2_i32_355 = arith.constant 2 : i32
    %352 = arith.addi %0, %c2_i32_355 : i32
    %c0_i32_356 = arith.constant 0 : i32
    %353 = arith.addi %352, %c0_i32_356 : i32
    %c0_357 = arith.constant 0 : index
    %c2_358 = arith.constant 2 : index
    %354 = arith.index_cast %353 : i32 to index
    %c0_359 = arith.constant 0 : index
    %c0_360 = arith.constant 0 : index
    %355 = vector.load %arg2[%c0_357, %c2_358, %354, %c0_359, %c0_360] : memref<1x4x9x9x4xbf16, #tpu.memory_space<vmem>>, vector<1x1x1x8x4xbf16>
    %356 = vector.shape_cast %355 : vector<1x1x1x8x4xbf16> to vector<8x4xbf16>
    %c4_361 = arith.constant 4 : index
    %c0_362 = arith.constant 0 : index
    %c0_363 = arith.constant 0 : index
    %357 = vector.load %arg3[%c4_361, %c0_362, %c0_363] : memref<16x4x8xbf16, #tpu.memory_space<vmem>>, vector<1x4x8xbf16>
    %358 = vector.shape_cast %357 : vector<1x4x8xbf16> to vector<4x8xbf16>
    %cst_364 = arith.constant dense<0.000000e+00> : vector<8x8xf32>
    %359 = tpu.matmul %356, %358, %cst_364 {dimension_numbers = #tpu.dot_dimension_numbers<[1], [0], [0], [1], [0, 0, 1, 1], [], []>} : vector<8x4xbf16>, vector<4x8xbf16>, vector<8x8xf32> -> vector<8x8xf32>
    %360 = arith.addf %351, %359 : vector<8x8xf32>
    %c2_i32_365 = arith.constant 2 : i32
    %361 = arith.addi %0, %c2_i32_365 : i32
    %c0_i32_366 = arith.constant 0 : i32
    %362 = arith.addi %361, %c0_i32_366 : i32
    %c0_367 = arith.constant 0 : index
    %c3_368 = arith.constant 3 : index
    %363 = arith.index_cast %362 : i32 to index
    %c0_369 = arith.constant 0 : index
    %c0_370 = arith.constant 0 : index
    %364 = vector.load %arg2[%c0_367, %c3_368, %363, %c0_369, %c0_370] : memref<1x4x9x9x4xbf16, #tpu.memory_space<vmem>>, vector<1x1x1x8x4xbf16>
    %365 = vector.shape_cast %364 : vector<1x1x1x8x4xbf16> to vector<8x4xbf16>
    %c5_371 = arith.constant 5 : index
    %c0_372 = arith.constant 0 : index
    %c0_373 = arith.constant 0 : index
    %366 = vector.load %arg3[%c5_371, %c0_372, %c0_373] : memref<16x4x8xbf16, #tpu.memory_space<vmem>>, vector<1x4x8xbf16>
    %367 = vector.shape_cast %366 : vector<1x4x8xbf16> to vector<4x8xbf16>
    %cst_374 = arith.constant dense<0.000000e+00> : vector<8x8xf32>
    %368 = tpu.matmul %365, %367, %cst_374 {dimension_numbers = #tpu.dot_dimension_numbers<[1], [0], [0], [1], [0, 0, 1, 1], [], []>} : vector<8x4xbf16>, vector<4x8xbf16>, vector<8x8xf32> -> vector<8x8xf32>
    %369 = arith.addf %360, %368 : vector<8x8xf32>
    %c2_i32_375 = arith.constant 2 : i32
    %370 = arith.addi %0, %c2_i32_375 : i32
    %c0_i32_376 = arith.constant 0 : i32
    %371 = arith.addi %370, %c0_i32_376 : i32
    %c0_377 = arith.constant 0 : index
    %c2_378 = arith.constant 2 : index
    %372 = arith.index_cast %371 : i32 to index
    %c1_379 = arith.constant 1 : index
    %c0_380 = arith.constant 0 : index
    %373 = vector.load %arg2[%c0_377, %c2_378, %372, %c1_379, %c0_380] : memref<1x4x9x9x4xbf16, #tpu.memory_space<vmem>>, vector<1x1x1x8x4xbf16>
    %374 = vector.shape_cast %373 : vector<1x1x1x8x4xbf16> to vector<8x4xbf16>
    %c6_381 = arith.constant 6 : index
    %c0_382 = arith.constant 0 : index
    %c0_383 = arith.constant 0 : index
    %375 = vector.load %arg3[%c6_381, %c0_382, %c0_383] : memref<16x4x8xbf16, #tpu.memory_space<vmem>>, vector<1x4x8xbf16>
    %376 = vector.shape_cast %375 : vector<1x4x8xbf16> to vector<4x8xbf16>
    %cst_384 = arith.constant dense<0.000000e+00> : vector<8x8xf32>
    %377 = tpu.matmul %374, %376, %cst_384 {dimension_numbers = #tpu.dot_dimension_numbers<[1], [0], [0], [1], [0, 0, 1, 1], [], []>} : vector<8x4xbf16>, vector<4x8xbf16>, vector<8x8xf32> -> vector<8x8xf32>
    %378 = arith.addf %369, %377 : vector<8x8xf32>
    %c2_i32_385 = arith.constant 2 : i32
    %379 = arith.addi %0, %c2_i32_385 : i32
    %c0_i32_386 = arith.constant 0 : i32
    %380 = arith.addi %379, %c0_i32_386 : i32
    %c0_387 = arith.constant 0 : index
    %c3_388 = arith.constant 3 : index
    %381 = arith.index_cast %380 : i32 to index
    %c1_389 = arith.constant 1 : index
    %c0_390 = arith.constant 0 : index
    %382 = vector.load %arg2[%c0_387, %c3_388, %381, %c1_389, %c0_390] : memref<1x4x9x9x4xbf16, #tpu.memory_space<vmem>>, vector<1x1x1x8x4xbf16>
    %383 = vector.shape_cast %382 : vector<1x1x1x8x4xbf16> to vector<8x4xbf16>
    %c7_391 = arith.constant 7 : index
    %c0_392 = arith.constant 0 : index
    %c0_393 = arith.constant 0 : index
    %384 = vector.load %arg3[%c7_391, %c0_392, %c0_393] : memref<16x4x8xbf16, #tpu.memory_space<vmem>>, vector<1x4x8xbf16>
    %385 = vector.shape_cast %384 : vector<1x4x8xbf16> to vector<4x8xbf16>
    %cst_394 = arith.constant dense<0.000000e+00> : vector<8x8xf32>
    %386 = tpu.matmul %383, %385, %cst_394 {dimension_numbers = #tpu.dot_dimension_numbers<[1], [0], [0], [1], [0, 0, 1, 1], [], []>} : vector<8x4xbf16>, vector<4x8xbf16>, vector<8x8xf32> -> vector<8x8xf32>
    %387 = arith.addf %378, %386 : vector<8x8xf32>
    %c2_i32_395 = arith.constant 2 : i32
    %388 = arith.addi %0, %c2_i32_395 : i32
    %c1_i32_396 = arith.constant 1 : i32
    %389 = arith.addi %388, %c1_i32_396 : i32
    %c0_397 = arith.constant 0 : index
    %c0_398 = arith.constant 0 : index
    %390 = arith.index_cast %389 : i32 to index
    %c0_399 = arith.constant 0 : index
    %c0_400 = arith.constant 0 : index
    %391 = vector.load %arg2[%c0_397, %c0_398, %390, %c0_399, %c0_400] : memref<1x4x9x9x4xbf16, #tpu.memory_space<vmem>>, vector<1x1x1x8x4xbf16>
    %392 = vector.shape_cast %391 : vector<1x1x1x8x4xbf16> to vector<8x4xbf16>
    %c8_401 = arith.constant 8 : index
    %c0_402 = arith.constant 0 : index
    %c0_403 = arith.constant 0 : index
    %393 = vector.load %arg3[%c8_401, %c0_402, %c0_403] : memref<16x4x8xbf16, #tpu.memory_space<vmem>>, vector<1x4x8xbf16>
    %394 = vector.shape_cast %393 : vector<1x4x8xbf16> to vector<4x8xbf16>
    %cst_404 = arith.constant dense<0.000000e+00> : vector<8x8xf32>
    %395 = tpu.matmul %392, %394, %cst_404 {dimension_numbers = #tpu.dot_dimension_numbers<[1], [0], [0], [1], [0, 0, 1, 1], [], []>} : vector<8x4xbf16>, vector<4x8xbf16>, vector<8x8xf32> -> vector<8x8xf32>
    %396 = arith.addf %387, %395 : vector<8x8xf32>
    %c2_i32_405 = arith.constant 2 : i32
    %397 = arith.addi %0, %c2_i32_405 : i32
    %c1_i32_406 = arith.constant 1 : i32
    %398 = arith.addi %397, %c1_i32_406 : i32
    %c0_407 = arith.constant 0 : index
    %c1_408 = arith.constant 1 : index
    %399 = arith.index_cast %398 : i32 to index
    %c0_409 = arith.constant 0 : index
    %c0_410 = arith.constant 0 : index
    %400 = vector.load %arg2[%c0_407, %c1_408, %399, %c0_409, %c0_410] : memref<1x4x9x9x4xbf16, #tpu.memory_space<vmem>>, vector<1x1x1x8x4xbf16>
    %401 = vector.shape_cast %400 : vector<1x1x1x8x4xbf16> to vector<8x4xbf16>
    %c9_411 = arith.constant 9 : index
    %c0_412 = arith.constant 0 : index
    %c0_413 = arith.constant 0 : index
    %402 = vector.load %arg3[%c9_411, %c0_412, %c0_413] : memref<16x4x8xbf16, #tpu.memory_space<vmem>>, vector<1x4x8xbf16>
    %403 = vector.shape_cast %402 : vector<1x4x8xbf16> to vector<4x8xbf16>
    %cst_414 = arith.constant dense<0.000000e+00> : vector<8x8xf32>
    %404 = tpu.matmul %401, %403, %cst_414 {dimension_numbers = #tpu.dot_dimension_numbers<[1], [0], [0], [1], [0, 0, 1, 1], [], []>} : vector<8x4xbf16>, vector<4x8xbf16>, vector<8x8xf32> -> vector<8x8xf32>
    %405 = arith.addf %396, %404 : vector<8x8xf32>
    %c2_i32_415 = arith.constant 2 : i32
    %406 = arith.addi %0, %c2_i32_415 : i32
    %c1_i32_416 = arith.constant 1 : i32
    %407 = arith.addi %406, %c1_i32_416 : i32
    %c0_417 = arith.constant 0 : index
    %c0_418 = arith.constant 0 : index
    %408 = arith.index_cast %407 : i32 to index
    %c1_419 = arith.constant 1 : index
    %c0_420 = arith.constant 0 : index
    %409 = vector.load %arg2[%c0_417, %c0_418, %408, %c1_419, %c0_420] : memref<1x4x9x9x4xbf16, #tpu.memory_space<vmem>>, vector<1x1x1x8x4xbf16>
    %410 = vector.shape_cast %409 : vector<1x1x1x8x4xbf16> to vector<8x4xbf16>
    %c10_421 = arith.constant 10 : index
    %c0_422 = arith.constant 0 : index
    %c0_423 = arith.constant 0 : index
    %411 = vector.load %arg3[%c10_421, %c0_422, %c0_423] : memref<16x4x8xbf16, #tpu.memory_space<vmem>>, vector<1x4x8xbf16>
    %412 = vector.shape_cast %411 : vector<1x4x8xbf16> to vector<4x8xbf16>
    %cst_424 = arith.constant dense<0.000000e+00> : vector<8x8xf32>
    %413 = tpu.matmul %410, %412, %cst_424 {dimension_numbers = #tpu.dot_dimension_numbers<[1], [0], [0], [1], [0, 0, 1, 1], [], []>} : vector<8x4xbf16>, vector<4x8xbf16>, vector<8x8xf32> -> vector<8x8xf32>
    %414 = arith.addf %405, %413 : vector<8x8xf32>
    %c2_i32_425 = arith.constant 2 : i32
    %415 = arith.addi %0, %c2_i32_425 : i32
    %c1_i32_426 = arith.constant 1 : i32
    %416 = arith.addi %415, %c1_i32_426 : i32
    %c0_427 = arith.constant 0 : index
    %c1_428 = arith.constant 1 : index
    %417 = arith.index_cast %416 : i32 to index
    %c1_429 = arith.constant 1 : index
    %c0_430 = arith.constant 0 : index
    %418 = vector.load %arg2[%c0_427, %c1_428, %417, %c1_429, %c0_430] : memref<1x4x9x9x4xbf16, #tpu.memory_space<vmem>>, vector<1x1x1x8x4xbf16>
    %419 = vector.shape_cast %418 : vector<1x1x1x8x4xbf16> to vector<8x4xbf16>
    %c11_431 = arith.constant 11 : index
    %c0_432 = arith.constant 0 : index
    %c0_433 = arith.constant 0 : index
    %420 = vector.load %arg3[%c11_431, %c0_432, %c0_433] : memref<16x4x8xbf16, #tpu.memory_space<vmem>>, vector<1x4x8xbf16>
    %421 = vector.shape_cast %420 : vector<1x4x8xbf16> to vector<4x8xbf16>
    %cst_434 = arith.constant dense<0.000000e+00> : vector<8x8xf32>
    %422 = tpu.matmul %419, %421, %cst_434 {dimension_numbers = #tpu.dot_dimension_numbers<[1], [0], [0], [1], [0, 0, 1, 1], [], []>} : vector<8x4xbf16>, vector<4x8xbf16>, vector<8x8xf32> -> vector<8x8xf32>
    %423 = arith.addf %414, %422 : vector<8x8xf32>
    %c2_i32_435 = arith.constant 2 : i32
    %424 = arith.addi %0, %c2_i32_435 : i32
    %c1_i32_436 = arith.constant 1 : i32
    %425 = arith.addi %424, %c1_i32_436 : i32
    %c0_437 = arith.constant 0 : index
    %c2_438 = arith.constant 2 : index
    %426 = arith.index_cast %425 : i32 to index
    %c0_439 = arith.constant 0 : index
    %c0_440 = arith.constant 0 : index
    %427 = vector.load %arg2[%c0_437, %c2_438, %426, %c0_439, %c0_440] : memref<1x4x9x9x4xbf16, #tpu.memory_space<vmem>>, vector<1x1x1x8x4xbf16>
    %428 = vector.shape_cast %427 : vector<1x1x1x8x4xbf16> to vector<8x4xbf16>
    %c12_441 = arith.constant 12 : index
    %c0_442 = arith.constant 0 : index
    %c0_443 = arith.constant 0 : index
    %429 = vector.load %arg3[%c12_441, %c0_442, %c0_443] : memref<16x4x8xbf16, #tpu.memory_space<vmem>>, vector<1x4x8xbf16>
    %430 = vector.shape_cast %429 : vector<1x4x8xbf16> to vector<4x8xbf16>
    %cst_444 = arith.constant dense<0.000000e+00> : vector<8x8xf32>
    %431 = tpu.matmul %428, %430, %cst_444 {dimension_numbers = #tpu.dot_dimension_numbers<[1], [0], [0], [1], [0, 0, 1, 1], [], []>} : vector<8x4xbf16>, vector<4x8xbf16>, vector<8x8xf32> -> vector<8x8xf32>
    %432 = arith.addf %423, %431 : vector<8x8xf32>
    %c2_i32_445 = arith.constant 2 : i32
    %433 = arith.addi %0, %c2_i32_445 : i32
    %c1_i32_446 = arith.constant 1 : i32
    %434 = arith.addi %433, %c1_i32_446 : i32
    %c0_447 = arith.constant 0 : index
    %c3_448 = arith.constant 3 : index
    %435 = arith.index_cast %434 : i32 to index
    %c0_449 = arith.constant 0 : index
    %c0_450 = arith.constant 0 : index
    %436 = vector.load %arg2[%c0_447, %c3_448, %435, %c0_449, %c0_450] : memref<1x4x9x9x4xbf16, #tpu.memory_space<vmem>>, vector<1x1x1x8x4xbf16>
    %437 = vector.shape_cast %436 : vector<1x1x1x8x4xbf16> to vector<8x4xbf16>
    %c13_451 = arith.constant 13 : index
    %c0_452 = arith.constant 0 : index
    %c0_453 = arith.constant 0 : index
    %438 = vector.load %arg3[%c13_451, %c0_452, %c0_453] : memref<16x4x8xbf16, #tpu.memory_space<vmem>>, vector<1x4x8xbf16>
    %439 = vector.shape_cast %438 : vector<1x4x8xbf16> to vector<4x8xbf16>
    %cst_454 = arith.constant dense<0.000000e+00> : vector<8x8xf32>
    %440 = tpu.matmul %437, %439, %cst_454 {dimension_numbers = #tpu.dot_dimension_numbers<[1], [0], [0], [1], [0, 0, 1, 1], [], []>} : vector<8x4xbf16>, vector<4x8xbf16>, vector<8x8xf32> -> vector<8x8xf32>
    %441 = arith.addf %432, %440 : vector<8x8xf32>
    %c2_i32_455 = arith.constant 2 : i32
    %442 = arith.addi %0, %c2_i32_455 : i32
    %c1_i32_456 = arith.constant 1 : i32
    %443 = arith.addi %442, %c1_i32_456 : i32
    %c0_457 = arith.constant 0 : index
    %c2_458 = arith.constant 2 : index
    %444 = arith.index_cast %443 : i32 to index
    %c1_459 = arith.constant 1 : index
    %c0_460 = arith.constant 0 : index
    %445 = vector.load %arg2[%c0_457, %c2_458, %444, %c1_459, %c0_460] : memref<1x4x9x9x4xbf16, #tpu.memory_space<vmem>>, vector<1x1x1x8x4xbf16>
    %446 = vector.shape_cast %445 : vector<1x1x1x8x4xbf16> to vector<8x4xbf16>
    %c14_461 = arith.constant 14 : index
    %c0_462 = arith.constant 0 : index
    %c0_463 = arith.constant 0 : index
    %447 = vector.load %arg3[%c14_461, %c0_462, %c0_463] : memref<16x4x8xbf16, #tpu.memory_space<vmem>>, vector<1x4x8xbf16>
    %448 = vector.shape_cast %447 : vector<1x4x8xbf16> to vector<4x8xbf16>
    %cst_464 = arith.constant dense<0.000000e+00> : vector<8x8xf32>
    %449 = tpu.matmul %446, %448, %cst_464 {dimension_numbers = #tpu.dot_dimension_numbers<[1], [0], [0], [1], [0, 0, 1, 1], [], []>} : vector<8x4xbf16>, vector<4x8xbf16>, vector<8x8xf32> -> vector<8x8xf32>
    %450 = arith.addf %441, %449 : vector<8x8xf32>
    %c2_i32_465 = arith.constant 2 : i32
    %451 = arith.addi %0, %c2_i32_465 : i32
    %c1_i32_466 = arith.constant 1 : i32
    %452 = arith.addi %451, %c1_i32_466 : i32
    %c0_467 = arith.constant 0 : index
    %c3_468 = arith.constant 3 : index
    %453 = arith.index_cast %452 : i32 to index
    %c1_469 = arith.constant 1 : index
    %c0_470 = arith.constant 0 : index
    %454 = vector.load %arg2[%c0_467, %c3_468, %453, %c1_469, %c0_470] : memref<1x4x9x9x4xbf16, #tpu.memory_space<vmem>>, vector<1x1x1x8x4xbf16>
    %455 = vector.shape_cast %454 : vector<1x1x1x8x4xbf16> to vector<8x4xbf16>
    %c15_471 = arith.constant 15 : index
    %c0_472 = arith.constant 0 : index
    %c0_473 = arith.constant 0 : index
    %456 = vector.load %arg3[%c15_471, %c0_472, %c0_473] : memref<16x4x8xbf16, #tpu.memory_space<vmem>>, vector<1x4x8xbf16>
    %457 = vector.shape_cast %456 : vector<1x4x8xbf16> to vector<4x8xbf16>
    %cst_474 = arith.constant dense<0.000000e+00> : vector<8x8xf32>
    %458 = tpu.matmul %455, %457, %cst_474 {dimension_numbers = #tpu.dot_dimension_numbers<[1], [0], [0], [1], [0, 0, 1, 1], [], []>} : vector<8x4xbf16>, vector<4x8xbf16>, vector<8x8xf32> -> vector<8x8xf32>
    %459 = arith.addf %450, %458 : vector<8x8xf32>
    %460 = arith.truncf %459 : vector<8x8xf32> to vector<8x8xbf16>
    %c0_475 = arith.constant 0 : index
    %c16 = arith.constant 16 : index
    %c0_476 = arith.constant 0 : index
    %461 = vector.load %arg4[%c0_475, %c16, %c0_476] : memref<1x64x8xbf16, #tpu.memory_space<vmem>>, vector<1x8x8xbf16>
    %462 = vector.shape_cast %461 : vector<1x8x8xbf16> to vector<8x8xbf16>
    %463 = vector.shape_cast %460 : vector<8x8xbf16> to vector<1x8x8xbf16>
    tpu.vector_store %arg4[%c0_475, %c16, %c0_476], %463 {strides = array<i32>} : memref<1x64x8xbf16, #tpu.memory_space<vmem>>, vector<1x8x8xbf16>,
    %cst_477 = arith.constant dense<0.000000e+00> : vector<8xf32>
    %464 = vector.multi_reduction <add>, %459, %cst_477 [0] : vector<8x8xf32> to vector<8xf32>
    %465 = vector.shape_cast %464 : vector<8xf32> to vector<1x8xf32>
    %466 = arith.addf %310, %465 : vector<1x8xf32>
    %467 = arith.mulf %459, %459 : vector<8x8xf32>
    %cst_478 = arith.constant dense<0.000000e+00> : vector<8xf32>
    %468 = vector.multi_reduction <add>, %467, %cst_478 [0] : vector<8x8xf32> to vector<8xf32>
    %469 = vector.shape_cast %468 : vector<8xf32> to vector<1x8xf32>
    %470 = arith.addf %314, %469 : vector<1x8xf32>
    %cst_479 = arith.constant 0.000000e+00 : f32
    %471 = vector.broadcast %cst_479 : f32 to vector<8x8xf32>
    %c3_i32 = arith.constant 3 : i32
    %472 = arith.addi %0, %c3_i32 : i32
    %c0_i32_480 = arith.constant 0 : i32
    %473 = arith.addi %472, %c0_i32_480 : i32
    %c0_481 = arith.constant 0 : index
    %c0_482 = arith.constant 0 : index
    %474 = arith.index_cast %473 : i32 to index
    %c0_483 = arith.constant 0 : index
    %c0_484 = arith.constant 0 : index
    %475 = vector.load %arg2[%c0_481, %c0_482, %474, %c0_483, %c0_484] : memref<1x4x9x9x4xbf16, #tpu.memory_space<vmem>>, vector<1x1x1x8x4xbf16>
    %476 = vector.shape_cast %475 : vector<1x1x1x8x4xbf16> to vector<8x4xbf16>
    %c0_485 = arith.constant 0 : index
    %c0_486 = arith.constant 0 : index
    %c0_487 = arith.constant 0 : index
    %477 = vector.load %arg3[%c0_485, %c0_486, %c0_487] : memref<16x4x8xbf16, #tpu.memory_space<vmem>>, vector<1x4x8xbf16>
    %478 = vector.shape_cast %477 : vector<1x4x8xbf16> to vector<4x8xbf16>
    %cst_488 = arith.constant dense<0.000000e+00> : vector<8x8xf32>
    %479 = tpu.matmul %476, %478, %cst_488 {dimension_numbers = #tpu.dot_dimension_numbers<[1], [0], [0], [1], [0, 0, 1, 1], [], []>} : vector<8x4xbf16>, vector<4x8xbf16>, vector<8x8xf32> -> vector<8x8xf32>
    %480 = arith.addf %471, %479 : vector<8x8xf32>
    %c3_i32_489 = arith.constant 3 : i32
    %481 = arith.addi %0, %c3_i32_489 : i32
    %c0_i32_490 = arith.constant 0 : i32
    %482 = arith.addi %481, %c0_i32_490 : i32
    %c0_491 = arith.constant 0 : index
    %c1_492 = arith.constant 1 : index
    %483 = arith.index_cast %482 : i32 to index
    %c0_493 = arith.constant 0 : index
    %c0_494 = arith.constant 0 : index
    %484 = vector.load %arg2[%c0_491, %c1_492, %483, %c0_493, %c0_494] : memref<1x4x9x9x4xbf16, #tpu.memory_space<vmem>>, vector<1x1x1x8x4xbf16>
    %485 = vector.shape_cast %484 : vector<1x1x1x8x4xbf16> to vector<8x4xbf16>
    %c1_495 = arith.constant 1 : index
    %c0_496 = arith.constant 0 : index
    %c0_497 = arith.constant 0 : index
    %486 = vector.load %arg3[%c1_495, %c0_496, %c0_497] : memref<16x4x8xbf16, #tpu.memory_space<vmem>>, vector<1x4x8xbf16>
    %487 = vector.shape_cast %486 : vector<1x4x8xbf16> to vector<4x8xbf16>
    %cst_498 = arith.constant dense<0.000000e+00> : vector<8x8xf32>
    %488 = tpu.matmul %485, %487, %cst_498 {dimension_numbers = #tpu.dot_dimension_numbers<[1], [0], [0], [1], [0, 0, 1, 1], [], []>} : vector<8x4xbf16>, vector<4x8xbf16>, vector<8x8xf32> -> vector<8x8xf32>
    %489 = arith.addf %480, %488 : vector<8x8xf32>
    %c3_i32_499 = arith.constant 3 : i32
    %490 = arith.addi %0, %c3_i32_499 : i32
    %c0_i32_500 = arith.constant 0 : i32
    %491 = arith.addi %490, %c0_i32_500 : i32
    %c0_501 = arith.constant 0 : index
    %c0_502 = arith.constant 0 : index
    %492 = arith.index_cast %491 : i32 to index
    %c1_503 = arith.constant 1 : index
    %c0_504 = arith.constant 0 : index
    %493 = vector.load %arg2[%c0_501, %c0_502, %492, %c1_503, %c0_504] : memref<1x4x9x9x4xbf16, #tpu.memory_space<vmem>>, vector<1x1x1x8x4xbf16>
    %494 = vector.shape_cast %493 : vector<1x1x1x8x4xbf16> to vector<8x4xbf16>
    %c2_505 = arith.constant 2 : index
    %c0_506 = arith.constant 0 : index
    %c0_507 = arith.constant 0 : index
    %495 = vector.load %arg3[%c2_505, %c0_506, %c0_507] : memref<16x4x8xbf16, #tpu.memory_space<vmem>>, vector<1x4x8xbf16>
    %496 = vector.shape_cast %495 : vector<1x4x8xbf16> to vector<4x8xbf16>
    %cst_508 = arith.constant dense<0.000000e+00> : vector<8x8xf32>
    %497 = tpu.matmul %494, %496, %cst_508 {dimension_numbers = #tpu.dot_dimension_numbers<[1], [0], [0], [1], [0, 0, 1, 1], [], []>} : vector<8x4xbf16>, vector<4x8xbf16>, vector<8x8xf32> -> vector<8x8xf32>
    %498 = arith.addf %489, %497 : vector<8x8xf32>
    %c3_i32_509 = arith.constant 3 : i32
    %499 = arith.addi %0, %c3_i32_509 : i32
    %c0_i32_510 = arith.constant 0 : i32
    %500 = arith.addi %499, %c0_i32_510 : i32
    %c0_511 = arith.constant 0 : index
    %c1_512 = arith.constant 1 : index
    %501 = arith.index_cast %500 : i32 to index
    %c1_513 = arith.constant 1 : index
    %c0_514 = arith.constant 0 : index
    %502 = vector.load %arg2[%c0_511, %c1_512, %501, %c1_513, %c0_514] : memref<1x4x9x9x4xbf16, #tpu.memory_space<vmem>>, vector<1x1x1x8x4xbf16>
    %503 = vector.shape_cast %502 : vector<1x1x1x8x4xbf16> to vector<8x4xbf16>
    %c3_515 = arith.constant 3 : index
    %c0_516 = arith.constant 0 : index
    %c0_517 = arith.constant 0 : index
    %504 = vector.load %arg3[%c3_515, %c0_516, %c0_517] : memref<16x4x8xbf16, #tpu.memory_space<vmem>>, vector<1x4x8xbf16>
    %505 = vector.shape_cast %504 : vector<1x4x8xbf16> to vector<4x8xbf16>
    %cst_518 = arith.constant dense<0.000000e+00> : vector<8x8xf32>
    %506 = tpu.matmul %503, %505, %cst_518 {dimension_numbers = #tpu.dot_dimension_numbers<[1], [0], [0], [1], [0, 0, 1, 1], [], []>} : vector<8x4xbf16>, vector<4x8xbf16>, vector<8x8xf32> -> vector<8x8xf32>
    %507 = arith.addf %498, %506 : vector<8x8xf32>
    %c3_i32_519 = arith.constant 3 : i32
    %508 = arith.addi %0, %c3_i32_519 : i32
    %c0_i32_520 = arith.constant 0 : i32
    %509 = arith.addi %508, %c0_i32_520 : i32
    %c0_521 = arith.constant 0 : index
    %c2_522 = arith.constant 2 : index
    %510 = arith.index_cast %509 : i32 to index
    %c0_523 = arith.constant 0 : index
    %c0_524 = arith.constant 0 : index
    %511 = vector.load %arg2[%c0_521, %c2_522, %510, %c0_523, %c0_524] : memref<1x4x9x9x4xbf16, #tpu.memory_space<vmem>>, vector<1x1x1x8x4xbf16>
    %512 = vector.shape_cast %511 : vector<1x1x1x8x4xbf16> to vector<8x4xbf16>
    %c4_525 = arith.constant 4 : index
    %c0_526 = arith.constant 0 : index
    %c0_527 = arith.constant 0 : index
    %513 = vector.load %arg3[%c4_525, %c0_526, %c0_527] : memref<16x4x8xbf16, #tpu.memory_space<vmem>>, vector<1x4x8xbf16>
    %514 = vector.shape_cast %513 : vector<1x4x8xbf16> to vector<4x8xbf16>
    %cst_528 = arith.constant dense<0.000000e+00> : vector<8x8xf32>
    %515 = tpu.matmul %512, %514, %cst_528 {dimension_numbers = #tpu.dot_dimension_numbers<[1], [0], [0], [1], [0, 0, 1, 1], [], []>} : vector<8x4xbf16>, vector<4x8xbf16>, vector<8x8xf32> -> vector<8x8xf32>
    %516 = arith.addf %507, %515 : vector<8x8xf32>
    %c3_i32_529 = arith.constant 3 : i32
    %517 = arith.addi %0, %c3_i32_529 : i32
    %c0_i32_530 = arith.constant 0 : i32
    %518 = arith.addi %517, %c0_i32_530 : i32
    %c0_531 = arith.constant 0 : index
    %c3_532 = arith.constant 3 : index
    %519 = arith.index_cast %518 : i32 to index
    %c0_533 = arith.constant 0 : index
    %c0_534 = arith.constant 0 : index
    %520 = vector.load %arg2[%c0_531, %c3_532, %519, %c0_533, %c0_534] : memref<1x4x9x9x4xbf16, #tpu.memory_space<vmem>>, vector<1x1x1x8x4xbf16>
    %521 = vector.shape_cast %520 : vector<1x1x1x8x4xbf16> to vector<8x4xbf16>
    %c5_535 = arith.constant 5 : index
    %c0_536 = arith.constant 0 : index
    %c0_537 = arith.constant 0 : index
    %522 = vector.load %arg3[%c5_535, %c0_536, %c0_537] : memref<16x4x8xbf16, #tpu.memory_space<vmem>>, vector<1x4x8xbf16>
    %523 = vector.shape_cast %522 : vector<1x4x8xbf16> to vector<4x8xbf16>
    %cst_538 = arith.constant dense<0.000000e+00> : vector<8x8xf32>
    %524 = tpu.matmul %521, %523, %cst_538 {dimension_numbers = #tpu.dot_dimension_numbers<[1], [0], [0], [1], [0, 0, 1, 1], [], []>} : vector<8x4xbf16>, vector<4x8xbf16>, vector<8x8xf32> -> vector<8x8xf32>
    %525 = arith.addf %516, %524 : vector<8x8xf32>
    %c3_i32_539 = arith.constant 3 : i32
    %526 = arith.addi %0, %c3_i32_539 : i32
    %c0_i32_540 = arith.constant 0 : i32
    %527 = arith.addi %526, %c0_i32_540 : i32
    %c0_541 = arith.constant 0 : index
    %c2_542 = arith.constant 2 : index
    %528 = arith.index_cast %527 : i32 to index
    %c1_543 = arith.constant 1 : index
    %c0_544 = arith.constant 0 : index
    %529 = vector.load %arg2[%c0_541, %c2_542, %528, %c1_543, %c0_544] : memref<1x4x9x9x4xbf16, #tpu.memory_space<vmem>>, vector<1x1x1x8x4xbf16>
    %530 = vector.shape_cast %529 : vector<1x1x1x8x4xbf16> to vector<8x4xbf16>
    %c6_545 = arith.constant 6 : index
    %c0_546 = arith.constant 0 : index
    %c0_547 = arith.constant 0 : index
    %531 = vector.load %arg3[%c6_545, %c0_546, %c0_547] : memref<16x4x8xbf16, #tpu.memory_space<vmem>>, vector<1x4x8xbf16>
    %532 = vector.shape_cast %531 : vector<1x4x8xbf16> to vector<4x8xbf16>
    %cst_548 = arith.constant dense<0.000000e+00> : vector<8x8xf32>
    %533 = tpu.matmul %530, %532, %cst_548 {dimension_numbers = #tpu.dot_dimension_numbers<[1], [0], [0], [1], [0, 0, 1, 1], [], []>} : vector<8x4xbf16>, vector<4x8xbf16>, vector<8x8xf32> -> vector<8x8xf32>
    %534 = arith.addf %525, %533 : vector<8x8xf32>
    %c3_i32_549 = arith.constant 3 : i32
    %535 = arith.addi %0, %c3_i32_549 : i32
    %c0_i32_550 = arith.constant 0 : i32
    %536 = arith.addi %535, %c0_i32_550 : i32
    %c0_551 = arith.constant 0 : index
    %c3_552 = arith.constant 3 : index
    %537 = arith.index_cast %536 : i32 to index
    %c1_553 = arith.constant 1 : index
    %c0_554 = arith.constant 0 : index
    %538 = vector.load %arg2[%c0_551, %c3_552, %537, %c1_553, %c0_554] : memref<1x4x9x9x4xbf16, #tpu.memory_space<vmem>>, vector<1x1x1x8x4xbf16>
    %539 = vector.shape_cast %538 : vector<1x1x1x8x4xbf16> to vector<8x4xbf16>
    %c7_555 = arith.constant 7 : index
    %c0_556 = arith.constant 0 : index
    %c0_557 = arith.constant 0 : index
    %540 = vector.load %arg3[%c7_555, %c0_556, %c0_557] : memref<16x4x8xbf16, #tpu.memory_space<vmem>>, vector<1x4x8xbf16>
    %541 = vector.shape_cast %540 : vector<1x4x8xbf16> to vector<4x8xbf16>
    %cst_558 = arith.constant dense<0.000000e+00> : vector<8x8xf32>
    %542 = tpu.matmul %539, %541, %cst_558 {dimension_numbers = #tpu.dot_dimension_numbers<[1], [0], [0], [1], [0, 0, 1, 1], [], []>} : vector<8x4xbf16>, vector<4x8xbf16>, vector<8x8xf32> -> vector<8x8xf32>
    %543 = arith.addf %534, %542 : vector<8x8xf32>
    %c3_i32_559 = arith.constant 3 : i32
    %544 = arith.addi %0, %c3_i32_559 : i32
    %c1_i32_560 = arith.constant 1 : i32
    %545 = arith.addi %544, %c1_i32_560 : i32
    %c0_561 = arith.constant 0 : index
    %c0_562 = arith.constant 0 : index
    %546 = arith.index_cast %545 : i32 to index
    %c0_563 = arith.constant 0 : index
    %c0_564 = arith.constant 0 : index
    %547 = vector.load %arg2[%c0_561, %c0_562, %546, %c0_563, %c0_564] : memref<1x4x9x9x4xbf16, #tpu.memory_space<vmem>>, vector<1x1x1x8x4xbf16>
    %548 = vector.shape_cast %547 : vector<1x1x1x8x4xbf16> to vector<8x4xbf16>
    %c8_565 = arith.constant 8 : index
    %c0_566 = arith.constant 0 : index
    %c0_567 = arith.constant 0 : index
    %549 = vector.load %arg3[%c8_565, %c0_566, %c0_567] : memref<16x4x8xbf16, #tpu.memory_space<vmem>>, vector<1x4x8xbf16>
    %550 = vector.shape_cast %549 : vector<1x4x8xbf16> to vector<4x8xbf16>
    %cst_568 = arith.constant dense<0.000000e+00> : vector<8x8xf32>
    %551 = tpu.matmul %548, %550, %cst_568 {dimension_numbers = #tpu.dot_dimension_numbers<[1], [0], [0], [1], [0, 0, 1, 1], [], []>} : vector<8x4xbf16>, vector<4x8xbf16>, vector<8x8xf32> -> vector<8x8xf32>
    %552 = arith.addf %543, %551 : vector<8x8xf32>
    %c3_i32_569 = arith.constant 3 : i32
    %553 = arith.addi %0, %c3_i32_569 : i32
    %c1_i32_570 = arith.constant 1 : i32
    %554 = arith.addi %553, %c1_i32_570 : i32
    %c0_571 = arith.constant 0 : index
    %c1_572 = arith.constant 1 : index
    %555 = arith.index_cast %554 : i32 to index
    %c0_573 = arith.constant 0 : index
    %c0_574 = arith.constant 0 : index
    %556 = vector.load %arg2[%c0_571, %c1_572, %555, %c0_573, %c0_574] : memref<1x4x9x9x4xbf16, #tpu.memory_space<vmem>>, vector<1x1x1x8x4xbf16>
    %557 = vector.shape_cast %556 : vector<1x1x1x8x4xbf16> to vector<8x4xbf16>
    %c9_575 = arith.constant 9 : index
    %c0_576 = arith.constant 0 : index
    %c0_577 = arith.constant 0 : index
    %558 = vector.load %arg3[%c9_575, %c0_576, %c0_577] : memref<16x4x8xbf16, #tpu.memory_space<vmem>>, vector<1x4x8xbf16>
    %559 = vector.shape_cast %558 : vector<1x4x8xbf16> to vector<4x8xbf16>
    %cst_578 = arith.constant dense<0.000000e+00> : vector<8x8xf32>
    %560 = tpu.matmul %557, %559, %cst_578 {dimension_numbers = #tpu.dot_dimension_numbers<[1], [0], [0], [1], [0, 0, 1, 1], [], []>} : vector<8x4xbf16>, vector<4x8xbf16>, vector<8x8xf32> -> vector<8x8xf32>
    %561 = arith.addf %552, %560 : vector<8x8xf32>
    %c3_i32_579 = arith.constant 3 : i32
    %562 = arith.addi %0, %c3_i32_579 : i32
    %c1_i32_580 = arith.constant 1 : i32
    %563 = arith.addi %562, %c1_i32_580 : i32
    %c0_581 = arith.constant 0 : index
    %c0_582 = arith.constant 0 : index
    %564 = arith.index_cast %563 : i32 to index
    %c1_583 = arith.constant 1 : index
    %c0_584 = arith.constant 0 : index
    %565 = vector.load %arg2[%c0_581, %c0_582, %564, %c1_583, %c0_584] : memref<1x4x9x9x4xbf16, #tpu.memory_space<vmem>>, vector<1x1x1x8x4xbf16>
    %566 = vector.shape_cast %565 : vector<1x1x1x8x4xbf16> to vector<8x4xbf16>
    %c10_585 = arith.constant 10 : index
    %c0_586 = arith.constant 0 : index
    %c0_587 = arith.constant 0 : index
    %567 = vector.load %arg3[%c10_585, %c0_586, %c0_587] : memref<16x4x8xbf16, #tpu.memory_space<vmem>>, vector<1x4x8xbf16>
    %568 = vector.shape_cast %567 : vector<1x4x8xbf16> to vector<4x8xbf16>
    %cst_588 = arith.constant dense<0.000000e+00> : vector<8x8xf32>
    %569 = tpu.matmul %566, %568, %cst_588 {dimension_numbers = #tpu.dot_dimension_numbers<[1], [0], [0], [1], [0, 0, 1, 1], [], []>} : vector<8x4xbf16>, vector<4x8xbf16>, vector<8x8xf32> -> vector<8x8xf32>
    %570 = arith.addf %561, %569 : vector<8x8xf32>
    %c3_i32_589 = arith.constant 3 : i32
    %571 = arith.addi %0, %c3_i32_589 : i32
    %c1_i32_590 = arith.constant 1 : i32
    %572 = arith.addi %571, %c1_i32_590 : i32
    %c0_591 = arith.constant 0 : index
    %c1_592 = arith.constant 1 : index
    %573 = arith.index_cast %572 : i32 to index
    %c1_593 = arith.constant 1 : index
    %c0_594 = arith.constant 0 : index
    %574 = vector.load %arg2[%c0_591, %c1_592, %573, %c1_593, %c0_594] : memref<1x4x9x9x4xbf16, #tpu.memory_space<vmem>>, vector<1x1x1x8x4xbf16>
    %575 = vector.shape_cast %574 : vector<1x1x1x8x4xbf16> to vector<8x4xbf16>
    %c11_595 = arith.constant 11 : index
    %c0_596 = arith.constant 0 : index
    %c0_597 = arith.constant 0 : index
    %576 = vector.load %arg3[%c11_595, %c0_596, %c0_597] : memref<16x4x8xbf16, #tpu.memory_space<vmem>>, vector<1x4x8xbf16>
    %577 = vector.shape_cast %576 : vector<1x4x8xbf16> to vector<4x8xbf16>
    %cst_598 = arith.constant dense<0.000000e+00> : vector<8x8xf32>
    %578 = tpu.matmul %575, %577, %cst_598 {dimension_numbers = #tpu.dot_dimension_numbers<[1], [0], [0], [1], [0, 0, 1, 1], [], []>} : vector<8x4xbf16>, vector<4x8xbf16>, vector<8x8xf32> -> vector<8x8xf32>
    %579 = arith.addf %570, %578 : vector<8x8xf32>
    %c3_i32_599 = arith.constant 3 : i32
    %580 = arith.addi %0, %c3_i32_599 : i32
    %c1_i32_600 = arith.constant 1 : i32
    %581 = arith.addi %580, %c1_i32_600 : i32
    %c0_601 = arith.constant 0 : index
    %c2_602 = arith.constant 2 : index
    %582 = arith.index_cast %581 : i32 to index
    %c0_603 = arith.constant 0 : index
    %c0_604 = arith.constant 0 : index
    %583 = vector.load %arg2[%c0_601, %c2_602, %582, %c0_603, %c0_604] : memref<1x4x9x9x4xbf16, #tpu.memory_space<vmem>>, vector<1x1x1x8x4xbf16>
    %584 = vector.shape_cast %583 : vector<1x1x1x8x4xbf16> to vector<8x4xbf16>
    %c12_605 = arith.constant 12 : index
    %c0_606 = arith.constant 0 : index
    %c0_607 = arith.constant 0 : index
    %585 = vector.load %arg3[%c12_605, %c0_606, %c0_607] : memref<16x4x8xbf16, #tpu.memory_space<vmem>>, vector<1x4x8xbf16>
    %586 = vector.shape_cast %585 : vector<1x4x8xbf16> to vector<4x8xbf16>
    %cst_608 = arith.constant dense<0.000000e+00> : vector<8x8xf32>
    %587 = tpu.matmul %584, %586, %cst_608 {dimension_numbers = #tpu.dot_dimension_numbers<[1], [0], [0], [1], [0, 0, 1, 1], [], []>} : vector<8x4xbf16>, vector<4x8xbf16>, vector<8x8xf32> -> vector<8x8xf32>
    %588 = arith.addf %579, %587 : vector<8x8xf32>
    %c3_i32_609 = arith.constant 3 : i32
    %589 = arith.addi %0, %c3_i32_609 : i32
    %c1_i32_610 = arith.constant 1 : i32
    %590 = arith.addi %589, %c1_i32_610 : i32
    %c0_611 = arith.constant 0 : index
    %c3_612 = arith.constant 3 : index
    %591 = arith.index_cast %590 : i32 to index
    %c0_613 = arith.constant 0 : index
    %c0_614 = arith.constant 0 : index
    %592 = vector.load %arg2[%c0_611, %c3_612, %591, %c0_613, %c0_614] : memref<1x4x9x9x4xbf16, #tpu.memory_space<vmem>>, vector<1x1x1x8x4xbf16>
    %593 = vector.shape_cast %592 : vector<1x1x1x8x4xbf16> to vector<8x4xbf16>
    %c13_615 = arith.constant 13 : index
    %c0_616 = arith.constant 0 : index
    %c0_617 = arith.constant 0 : index
    %594 = vector.load %arg3[%c13_615, %c0_616, %c0_617] : memref<16x4x8xbf16, #tpu.memory_space<vmem>>, vector<1x4x8xbf16>
    %595 = vector.shape_cast %594 : vector<1x4x8xbf16> to vector<4x8xbf16>
    %cst_618 = arith.constant dense<0.000000e+00> : vector<8x8xf32>
    %596 = tpu.matmul %593, %595, %cst_618 {dimension_numbers = #tpu.dot_dimension_numbers<[1], [0], [0], [1], [0, 0, 1, 1], [], []>} : vector<8x4xbf16>, vector<4x8xbf16>, vector<8x8xf32> -> vector<8x8xf32>
    %597 = arith.addf %588, %596 : vector<8x8xf32>
    %c3_i32_619 = arith.constant 3 : i32
    %598 = arith.addi %0, %c3_i32_619 : i32
    %c1_i32_620 = arith.constant 1 : i32
    %599 = arith.addi %598, %c1_i32_620 : i32
    %c0_621 = arith.constant 0 : index
    %c2_622 = arith.constant 2 : index
    %600 = arith.index_cast %599 : i32 to index
    %c1_623 = arith.constant 1 : index
    %c0_624 = arith.constant 0 : index
    %601 = vector.load %arg2[%c0_621, %c2_622, %600, %c1_623, %c0_624] : memref<1x4x9x9x4xbf16, #tpu.memory_space<vmem>>, vector<1x1x1x8x4xbf16>
    %602 = vector.shape_cast %601 : vector<1x1x1x8x4xbf16> to vector<8x4xbf16>
    %c14_625 = arith.constant 14 : index
    %c0_626 = arith.constant 0 : index
    %c0_627 = arith.constant 0 : index
    %603 = vector.load %arg3[%c14_625, %c0_626, %c0_627] : memref<16x4x8xbf16, #tpu.memory_space<vmem>>, vector<1x4x8xbf16>
    %604 = vector.shape_cast %603 : vector<1x4x8xbf16> to vector<4x8xbf16>
    %cst_628 = arith.constant dense<0.000000e+00> : vector<8x8xf32>
    %605 = tpu.matmul %602, %604, %cst_628 {dimension_numbers = #tpu.dot_dimension_numbers<[1], [0], [0], [1], [0, 0, 1, 1], [], []>} : vector<8x4xbf16>, vector<4x8xbf16>, vector<8x8xf32> -> vector<8x8xf32>
    %606 = arith.addf %597, %605 : vector<8x8xf32>
    %c3_i32_629 = arith.constant 3 : i32
    %607 = arith.addi %0, %c3_i32_629 : i32
    %c1_i32_630 = arith.constant 1 : i32
    %608 = arith.addi %607, %c1_i32_630 : i32
    %c0_631 = arith.constant 0 : index
    %c3_632 = arith.constant 3 : index
    %609 = arith.index_cast %608 : i32 to index
    %c1_633 = arith.constant 1 : index
    %c0_634 = arith.constant 0 : index
    %610 = vector.load %arg2[%c0_631, %c3_632, %609, %c1_633, %c0_634] : memref<1x4x9x9x4xbf16, #tpu.memory_space<vmem>>, vector<1x1x1x8x4xbf16>
    %611 = vector.shape_cast %610 : vector<1x1x1x8x4xbf16> to vector<8x4xbf16>
    %c15_635 = arith.constant 15 : index
    %c0_636 = arith.constant 0 : index
    %c0_637 = arith.constant 0 : index
    %612 = vector.load %arg3[%c15_635, %c0_636, %c0_637] : memref<16x4x8xbf16, #tpu.memory_space<vmem>>, vector<1x4x8xbf16>
    %613 = vector.shape_cast %612 : vector<1x4x8xbf16> to vector<4x8xbf16>
    %cst_638 = arith.constant dense<0.000000e+00> : vector<8x8xf32>
    %614 = tpu.matmul %611, %613, %cst_638 {dimension_numbers = #tpu.dot_dimension_numbers<[1], [0], [0], [1], [0, 0, 1, 1], [], []>} : vector<8x4xbf16>, vector<4x8xbf16>, vector<8x8xf32> -> vector<8x8xf32>
    %615 = arith.addf %606, %614 : vector<8x8xf32>
    %616 = arith.truncf %615 : vector<8x8xf32> to vector<8x8xbf16>
    %c0_639 = arith.constant 0 : index
    %c24 = arith.constant 24 : index
    %c0_640 = arith.constant 0 : index
    %617 = vector.load %arg4[%c0_639, %c24, %c0_640] : memref<1x64x8xbf16, #tpu.memory_space<vmem>>, vector<1x8x8xbf16>
    %618 = vector.shape_cast %617 : vector<1x8x8xbf16> to vector<8x8xbf16>
    %619 = vector.shape_cast %616 : vector<8x8xbf16> to vector<1x8x8xbf16>
    tpu.vector_store %arg4[%c0_639, %c24, %c0_640], %619 {strides = array<i32>} : memref<1x64x8xbf16, #tpu.memory_space<vmem>>, vector<1x8x8xbf16>,
    %cst_641 = arith.constant dense<0.000000e+00> : vector<8xf32>
    %620 = vector.multi_reduction <add>, %615, %cst_641 [0] : vector<8x8xf32> to vector<8xf32>
    %621 = vector.shape_cast %620 : vector<8xf32> to vector<1x8xf32>
    %622 = arith.addf %466, %621 : vector<1x8xf32>
    %623 = arith.mulf %615, %615 : vector<8x8xf32>
    %cst_642 = arith.constant dense<0.000000e+00> : vector<8xf32>
    %624 = vector.multi_reduction <add>, %623, %cst_642 [0] : vector<8x8xf32> to vector<8xf32>
    %625 = vector.shape_cast %624 : vector<8xf32> to vector<1x8xf32>
    %626 = arith.addf %470, %625 : vector<1x8xf32>
    %cst_643 = arith.constant 0.000000e+00 : f32
    %627 = vector.broadcast %cst_643 : f32 to vector<8x8xf32>
    %c4_i32 = arith.constant 4 : i32
    %628 = arith.addi %0, %c4_i32 : i32
    %c0_i32_644 = arith.constant 0 : i32
    %629 = arith.addi %628, %c0_i32_644 : i32
    %c0_645 = arith.constant 0 : index
    %c0_646 = arith.constant 0 : index
    %630 = arith.index_cast %629 : i32 to index
    %c0_647 = arith.constant 0 : index
    %c0_648 = arith.constant 0 : index
    %631 = vector.load %arg2[%c0_645, %c0_646, %630, %c0_647, %c0_648] : memref<1x4x9x9x4xbf16, #tpu.memory_space<vmem>>, vector<1x1x1x8x4xbf16>
    %632 = vector.shape_cast %631 : vector<1x1x1x8x4xbf16> to vector<8x4xbf16>
    %c0_649 = arith.constant 0 : index
    %c0_650 = arith.constant 0 : index
    %c0_651 = arith.constant 0 : index
    %633 = vector.load %arg3[%c0_649, %c0_650, %c0_651] : memref<16x4x8xbf16, #tpu.memory_space<vmem>>, vector<1x4x8xbf16>
    %634 = vector.shape_cast %633 : vector<1x4x8xbf16> to vector<4x8xbf16>
    %cst_652 = arith.constant dense<0.000000e+00> : vector<8x8xf32>
    %635 = tpu.matmul %632, %634, %cst_652 {dimension_numbers = #tpu.dot_dimension_numbers<[1], [0], [0], [1], [0, 0, 1, 1], [], []>} : vector<8x4xbf16>, vector<4x8xbf16>, vector<8x8xf32> -> vector<8x8xf32>
    %636 = arith.addf %627, %635 : vector<8x8xf32>
    %c4_i32_653 = arith.constant 4 : i32
    %637 = arith.addi %0, %c4_i32_653 : i32
    %c0_i32_654 = arith.constant 0 : i32
    %638 = arith.addi %637, %c0_i32_654 : i32
    %c0_655 = arith.constant 0 : index
    %c1_656 = arith.constant 1 : index
    %639 = arith.index_cast %638 : i32 to index
    %c0_657 = arith.constant 0 : index
    %c0_658 = arith.constant 0 : index
    %640 = vector.load %arg2[%c0_655, %c1_656, %639, %c0_657, %c0_658] : memref<1x4x9x9x4xbf16, #tpu.memory_space<vmem>>, vector<1x1x1x8x4xbf16>
    %641 = vector.shape_cast %640 : vector<1x1x1x8x4xbf16> to vector<8x4xbf16>
    %c1_659 = arith.constant 1 : index
    %c0_660 = arith.constant 0 : index
    %c0_661 = arith.constant 0 : index
    %642 = vector.load %arg3[%c1_659, %c0_660, %c0_661] : memref<16x4x8xbf16, #tpu.memory_space<vmem>>, vector<1x4x8xbf16>
    %643 = vector.shape_cast %642 : vector<1x4x8xbf16> to vector<4x8xbf16>
    %cst_662 = arith.constant dense<0.000000e+00> : vector<8x8xf32>
    %644 = tpu.matmul %641, %643, %cst_662 {dimension_numbers = #tpu.dot_dimension_numbers<[1], [0], [0], [1], [0, 0, 1, 1], [], []>} : vector<8x4xbf16>, vector<4x8xbf16>, vector<8x8xf32> -> vector<8x8xf32>
    %645 = arith.addf %636, %644 : vector<8x8xf32>
    %c4_i32_663 = arith.constant 4 : i32
    %646 = arith.addi %0, %c4_i32_663 : i32
    %c0_i32_664 = arith.constant 0 : i32
    %647 = arith.addi %646, %c0_i32_664 : i32
    %c0_665 = arith.constant 0 : index
    %c0_666 = arith.constant 0 : index
    %648 = arith.index_cast %647 : i32 to index
    %c1_667 = arith.constant 1 : index
    %c0_668 = arith.constant 0 : index
    %649 = vector.load %arg2[%c0_665, %c0_666, %648, %c1_667, %c0_668] : memref<1x4x9x9x4xbf16, #tpu.memory_space<vmem>>, vector<1x1x1x8x4xbf16>
    %650 = vector.shape_cast %649 : vector<1x1x1x8x4xbf16> to vector<8x4xbf16>
    %c2_669 = arith.constant 2 : index
    %c0_670 = arith.constant 0 : index
    %c0_671 = arith.constant 0 : index
    %651 = vector.load %arg3[%c2_669, %c0_670, %c0_671] : memref<16x4x8xbf16, #tpu.memory_space<vmem>>, vector<1x4x8xbf16>
    %652 = vector.shape_cast %651 : vector<1x4x8xbf16> to vector<4x8xbf16>
    %cst_672 = arith.constant dense<0.000000e+00> : vector<8x8xf32>
    %653 = tpu.matmul %650, %652, %cst_672 {dimension_numbers = #tpu.dot_dimension_numbers<[1], [0], [0], [1], [0, 0, 1, 1], [], []>} : vector<8x4xbf16>, vector<4x8xbf16>, vector<8x8xf32> -> vector<8x8xf32>
    %654 = arith.addf %645, %653 : vector<8x8xf32>
    %c4_i32_673 = arith.constant 4 : i32
    %655 = arith.addi %0, %c4_i32_673 : i32
    %c0_i32_674 = arith.constant 0 : i32
    %656 = arith.addi %655, %c0_i32_674 : i32
    %c0_675 = arith.constant 0 : index
    %c1_676 = arith.constant 1 : index
    %657 = arith.index_cast %656 : i32 to index
    %c1_677 = arith.constant 1 : index
    %c0_678 = arith.constant 0 : index
    %658 = vector.load %arg2[%c0_675, %c1_676, %657, %c1_677, %c0_678] : memref<1x4x9x9x4xbf16, #tpu.memory_space<vmem>>, vector<1x1x1x8x4xbf16>
    %659 = vector.shape_cast %658 : vector<1x1x1x8x4xbf16> to vector<8x4xbf16>
    %c3_679 = arith.constant 3 : index
    %c0_680 = arith.constant 0 : index
    %c0_681 = arith.constant 0 : index
    %660 = vector.load %arg3[%c3_679, %c0_680, %c0_681] : memref<16x4x8xbf16, #tpu.memory_space<vmem>>, vector<1x4x8xbf16>
    %661 = vector.shape_cast %660 : vector<1x4x8xbf16> to vector<4x8xbf16>
    %cst_682 = arith.constant dense<0.000000e+00> : vector<8x8xf32>
    %662 = tpu.matmul %659, %661, %cst_682 {dimension_numbers = #tpu.dot_dimension_numbers<[1], [0], [0], [1], [0, 0, 1, 1], [], []>} : vector<8x4xbf16>, vector<4x8xbf16>, vector<8x8xf32> -> vector<8x8xf32>
    %663 = arith.addf %654, %662 : vector<8x8xf32>
    %c4_i32_683 = arith.constant 4 : i32
    %664 = arith.addi %0, %c4_i32_683 : i32
    %c0_i32_684 = arith.constant 0 : i32
    %665 = arith.addi %664, %c0_i32_684 : i32
    %c0_685 = arith.constant 0 : index
    %c2_686 = arith.constant 2 : index
    %666 = arith.index_cast %665 : i32 to index
    %c0_687 = arith.constant 0 : index
    %c0_688 = arith.constant 0 : index
    %667 = vector.load %arg2[%c0_685, %c2_686, %666, %c0_687, %c0_688] : memref<1x4x9x9x4xbf16, #tpu.memory_space<vmem>>, vector<1x1x1x8x4xbf16>
    %668 = vector.shape_cast %667 : vector<1x1x1x8x4xbf16> to vector<8x4xbf16>
    %c4_689 = arith.constant 4 : index
    %c0_690 = arith.constant 0 : index
    %c0_691 = arith.constant 0 : index
    %669 = vector.load %arg3[%c4_689, %c0_690, %c0_691] : memref<16x4x8xbf16, #tpu.memory_space<vmem>>, vector<1x4x8xbf16>
    %670 = vector.shape_cast %669 : vector<1x4x8xbf16> to vector<4x8xbf16>
    %cst_692 = arith.constant dense<0.000000e+00> : vector<8x8xf32>
    %671 = tpu.matmul %668, %670, %cst_692 {dimension_numbers = #tpu.dot_dimension_numbers<[1], [0], [0], [1], [0, 0, 1, 1], [], []>} : vector<8x4xbf16>, vector<4x8xbf16>, vector<8x8xf32> -> vector<8x8xf32>
    %672 = arith.addf %663, %671 : vector<8x8xf32>
    %c4_i32_693 = arith.constant 4 : i32
    %673 = arith.addi %0, %c4_i32_693 : i32
    %c0_i32_694 = arith.constant 0 : i32
    %674 = arith.addi %673, %c0_i32_694 : i32
    %c0_695 = arith.constant 0 : index
    %c3_696 = arith.constant 3 : index
    %675 = arith.index_cast %674 : i32 to index
    %c0_697 = arith.constant 0 : index
    %c0_698 = arith.constant 0 : index
    %676 = vector.load %arg2[%c0_695, %c3_696, %675, %c0_697, %c0_698] : memref<1x4x9x9x4xbf16, #tpu.memory_space<vmem>>, vector<1x1x1x8x4xbf16>
    %677 = vector.shape_cast %676 : vector<1x1x1x8x4xbf16> to vector<8x4xbf16>
    %c5_699 = arith.constant 5 : index
    %c0_700 = arith.constant 0 : index
    %c0_701 = arith.constant 0 : index
    %678 = vector.load %arg3[%c5_699, %c0_700, %c0_701] : memref<16x4x8xbf16, #tpu.memory_space<vmem>>, vector<1x4x8xbf16>
    %679 = vector.shape_cast %678 : vector<1x4x8xbf16> to vector<4x8xbf16>
    %cst_702 = arith.constant dense<0.000000e+00> : vector<8x8xf32>
    %680 = tpu.matmul %677, %679, %cst_702 {dimension_numbers = #tpu.dot_dimension_numbers<[1], [0], [0], [1], [0, 0, 1, 1], [], []>} : vector<8x4xbf16>, vector<4x8xbf16>, vector<8x8xf32> -> vector<8x8xf32>
    %681 = arith.addf %672, %680 : vector<8x8xf32>
    %c4_i32_703 = arith.constant 4 : i32
    %682 = arith.addi %0, %c4_i32_703 : i32
    %c0_i32_704 = arith.constant 0 : i32
    %683 = arith.addi %682, %c0_i32_704 : i32
    %c0_705 = arith.constant 0 : index
    %c2_706 = arith.constant 2 : index
    %684 = arith.index_cast %683 : i32 to index
    %c1_707 = arith.constant 1 : index
    %c0_708 = arith.constant 0 : index
    %685 = vector.load %arg2[%c0_705, %c2_706, %684, %c1_707, %c0_708] : memref<1x4x9x9x4xbf16, #tpu.memory_space<vmem>>, vector<1x1x1x8x4xbf16>
    %686 = vector.shape_cast %685 : vector<1x1x1x8x4xbf16> to vector<8x4xbf16>
    %c6_709 = arith.constant 6 : index
    %c0_710 = arith.constant 0 : index
    %c0_711 = arith.constant 0 : index
    %687 = vector.load %arg3[%c6_709, %c0_710, %c0_711] : memref<16x4x8xbf16, #tpu.memory_space<vmem>>, vector<1x4x8xbf16>
    %688 = vector.shape_cast %687 : vector<1x4x8xbf16> to vector<4x8xbf16>
    %cst_712 = arith.constant dense<0.000000e+00> : vector<8x8xf32>
    %689 = tpu.matmul %686, %688, %cst_712 {dimension_numbers = #tpu.dot_dimension_numbers<[1], [0], [0], [1], [0, 0, 1, 1], [], []>} : vector<8x4xbf16>, vector<4x8xbf16>, vector<8x8xf32> -> vector<8x8xf32>
    %690 = arith.addf %681, %689 : vector<8x8xf32>
    %c4_i32_713 = arith.constant 4 : i32
    %691 = arith.addi %0, %c4_i32_713 : i32
    %c0_i32_714 = arith.constant 0 : i32
    %692 = arith.addi %691, %c0_i32_714 : i32
    %c0_715 = arith.constant 0 : index
    %c3_716 = arith.constant 3 : index
    %693 = arith.index_cast %692 : i32 to index
    %c1_717 = arith.constant 1 : index
    %c0_718 = arith.constant 0 : index
    %694 = vector.load %arg2[%c0_715, %c3_716, %693, %c1_717, %c0_718] : memref<1x4x9x9x4xbf16, #tpu.memory_space<vmem>>, vector<1x1x1x8x4xbf16>
    %695 = vector.shape_cast %694 : vector<1x1x1x8x4xbf16> to vector<8x4xbf16>
    %c7_719 = arith.constant 7 : index
    %c0_720 = arith.constant 0 : index
    %c0_721 = arith.constant 0 : index
    %696 = vector.load %arg3[%c7_719, %c0_720, %c0_721] : memref<16x4x8xbf16, #tpu.memory_space<vmem>>, vector<1x4x8xbf16>
    %697 = vector.shape_cast %696 : vector<1x4x8xbf16> to vector<4x8xbf16>
    %cst_722 = arith.constant dense<0.000000e+00> : vector<8x8xf32>
    %698 = tpu.matmul %695, %697, %cst_722 {dimension_numbers = #tpu.dot_dimension_numbers<[1], [0], [0], [1], [0, 0, 1, 1], [], []>} : vector<8x4xbf16>, vector<4x8xbf16>, vector<8x8xf32> -> vector<8x8xf32>
    %699 = arith.addf %690, %698 : vector<8x8xf32>
    %c4_i32_723 = arith.constant 4 : i32
    %700 = arith.addi %0, %c4_i32_723 : i32
    %c1_i32_724 = arith.constant 1 : i32
    %701 = arith.addi %700, %c1_i32_724 : i32
    %c0_725 = arith.constant 0 : index
    %c0_726 = arith.constant 0 : index
    %702 = arith.index_cast %701 : i32 to index
    %c0_727 = arith.constant 0 : index
    %c0_728 = arith.constant 0 : index
    %703 = vector.load %arg2[%c0_725, %c0_726, %702, %c0_727, %c0_728] : memref<1x4x9x9x4xbf16, #tpu.memory_space<vmem>>, vector<1x1x1x8x4xbf16>
    %704 = vector.shape_cast %703 : vector<1x1x1x8x4xbf16> to vector<8x4xbf16>
    %c8_729 = arith.constant 8 : index
    %c0_730 = arith.constant 0 : index
    %c0_731 = arith.constant 0 : index
    %705 = vector.load %arg3[%c8_729, %c0_730, %c0_731] : memref<16x4x8xbf16, #tpu.memory_space<vmem>>, vector<1x4x8xbf16>
    %706 = vector.shape_cast %705 : vector<1x4x8xbf16> to vector<4x8xbf16>
    %cst_732 = arith.constant dense<0.000000e+00> : vector<8x8xf32>
    %707 = tpu.matmul %704, %706, %cst_732 {dimension_numbers = #tpu.dot_dimension_numbers<[1], [0], [0], [1], [0, 0, 1, 1], [], []>} : vector<8x4xbf16>, vector<4x8xbf16>, vector<8x8xf32> -> vector<8x8xf32>
    %708 = arith.addf %699, %707 : vector<8x8xf32>
    %c4_i32_733 = arith.constant 4 : i32
    %709 = arith.addi %0, %c4_i32_733 : i32
    %c1_i32_734 = arith.constant 1 : i32
    %710 = arith.addi %709, %c1_i32_734 : i32
    %c0_735 = arith.constant 0 : index
    %c1_736 = arith.constant 1 : index
    %711 = arith.index_cast %710 : i32 to index
    %c0_737 = arith.constant 0 : index
    %c0_738 = arith.constant 0 : index
    %712 = vector.load %arg2[%c0_735, %c1_736, %711, %c0_737, %c0_738] : memref<1x4x9x9x4xbf16, #tpu.memory_space<vmem>>, vector<1x1x1x8x4xbf16>
    %713 = vector.shape_cast %712 : vector<1x1x1x8x4xbf16> to vector<8x4xbf16>
    %c9_739 = arith.constant 9 : index
    %c0_740 = arith.constant 0 : index
    %c0_741 = arith.constant 0 : index
    %714 = vector.load %arg3[%c9_739, %c0_740, %c0_741] : memref<16x4x8xbf16, #tpu.memory_space<vmem>>, vector<1x4x8xbf16>
    %715 = vector.shape_cast %714 : vector<1x4x8xbf16> to vector<4x8xbf16>
    %cst_742 = arith.constant dense<0.000000e+00> : vector<8x8xf32>
    %716 = tpu.matmul %713, %715, %cst_742 {dimension_numbers = #tpu.dot_dimension_numbers<[1], [0], [0], [1], [0, 0, 1, 1], [], []>} : vector<8x4xbf16>, vector<4x8xbf16>, vector<8x8xf32> -> vector<8x8xf32>
    %717 = arith.addf %708, %716 : vector<8x8xf32>
    %c4_i32_743 = arith.constant 4 : i32
    %718 = arith.addi %0, %c4_i32_743 : i32
    %c1_i32_744 = arith.constant 1 : i32
    %719 = arith.addi %718, %c1_i32_744 : i32
    %c0_745 = arith.constant 0 : index
    %c0_746 = arith.constant 0 : index
    %720 = arith.index_cast %719 : i32 to index
    %c1_747 = arith.constant 1 : index
    %c0_748 = arith.constant 0 : index
    %721 = vector.load %arg2[%c0_745, %c0_746, %720, %c1_747, %c0_748] : memref<1x4x9x9x4xbf16, #tpu.memory_space<vmem>>, vector<1x1x1x8x4xbf16>
    %722 = vector.shape_cast %721 : vector<1x1x1x8x4xbf16> to vector<8x4xbf16>
    %c10_749 = arith.constant 10 : index
    %c0_750 = arith.constant 0 : index
    %c0_751 = arith.constant 0 : index
    %723 = vector.load %arg3[%c10_749, %c0_750, %c0_751] : memref<16x4x8xbf16, #tpu.memory_space<vmem>>, vector<1x4x8xbf16>
    %724 = vector.shape_cast %723 : vector<1x4x8xbf16> to vector<4x8xbf16>
    %cst_752 = arith.constant dense<0.000000e+00> : vector<8x8xf32>
    %725 = tpu.matmul %722, %724, %cst_752 {dimension_numbers = #tpu.dot_dimension_numbers<[1], [0], [0], [1], [0, 0, 1, 1], [], []>} : vector<8x4xbf16>, vector<4x8xbf16>, vector<8x8xf32> -> vector<8x8xf32>
    %726 = arith.addf %717, %725 : vector<8x8xf32>
    %c4_i32_753 = arith.constant 4 : i32
    %727 = arith.addi %0, %c4_i32_753 : i32
    %c1_i32_754 = arith.constant 1 : i32
    %728 = arith.addi %727, %c1_i32_754 : i32
    %c0_755 = arith.constant 0 : index
    %c1_756 = arith.constant 1 : index
    %729 = arith.index_cast %728 : i32 to index
    %c1_757 = arith.constant 1 : index
    %c0_758 = arith.constant 0 : index
    %730 = vector.load %arg2[%c0_755, %c1_756, %729, %c1_757, %c0_758] : memref<1x4x9x9x4xbf16, #tpu.memory_space<vmem>>, vector<1x1x1x8x4xbf16>
    %731 = vector.shape_cast %730 : vector<1x1x1x8x4xbf16> to vector<8x4xbf16>
    %c11_759 = arith.constant 11 : index
    %c0_760 = arith.constant 0 : index
    %c0_761 = arith.constant 0 : index
    %732 = vector.load %arg3[%c11_759, %c0_760, %c0_761] : memref<16x4x8xbf16, #tpu.memory_space<vmem>>, vector<1x4x8xbf16>
    %733 = vector.shape_cast %732 : vector<1x4x8xbf16> to vector<4x8xbf16>
    %cst_762 = arith.constant dense<0.000000e+00> : vector<8x8xf32>
    %734 = tpu.matmul %731, %733, %cst_762 {dimension_numbers = #tpu.dot_dimension_numbers<[1], [0], [0], [1], [0, 0, 1, 1], [], []>} : vector<8x4xbf16>, vector<4x8xbf16>, vector<8x8xf32> -> vector<8x8xf32>
    %735 = arith.addf %726, %734 : vector<8x8xf32>
    %c4_i32_763 = arith.constant 4 : i32
    %736 = arith.addi %0, %c4_i32_763 : i32
    %c1_i32_764 = arith.constant 1 : i32
    %737 = arith.addi %736, %c1_i32_764 : i32
    %c0_765 = arith.constant 0 : index
    %c2_766 = arith.constant 2 : index
    %738 = arith.index_cast %737 : i32 to index
    %c0_767 = arith.constant 0 : index
    %c0_768 = arith.constant 0 : index
    %739 = vector.load %arg2[%c0_765, %c2_766, %738, %c0_767, %c0_768] : memref<1x4x9x9x4xbf16, #tpu.memory_space<vmem>>, vector<1x1x1x8x4xbf16>
    %740 = vector.shape_cast %739 : vector<1x1x1x8x4xbf16> to vector<8x4xbf16>
    %c12_769 = arith.constant 12 : index
    %c0_770 = arith.constant 0 : index
    %c0_771 = arith.constant 0 : index
    %741 = vector.load %arg3[%c12_769, %c0_770, %c0_771] : memref<16x4x8xbf16, #tpu.memory_space<vmem>>, vector<1x4x8xbf16>
    %742 = vector.shape_cast %741 : vector<1x4x8xbf16> to vector<4x8xbf16>
    %cst_772 = arith.constant dense<0.000000e+00> : vector<8x8xf32>
    %743 = tpu.matmul %740, %742, %cst_772 {dimension_numbers = #tpu.dot_dimension_numbers<[1], [0], [0], [1], [0, 0, 1, 1], [], []>} : vector<8x4xbf16>, vector<4x8xbf16>, vector<8x8xf32> -> vector<8x8xf32>
    %744 = arith.addf %735, %743 : vector<8x8xf32>
    %c4_i32_773 = arith.constant 4 : i32
    %745 = arith.addi %0, %c4_i32_773 : i32
    %c1_i32_774 = arith.constant 1 : i32
    %746 = arith.addi %745, %c1_i32_774 : i32
    %c0_775 = arith.constant 0 : index
    %c3_776 = arith.constant 3 : index
    %747 = arith.index_cast %746 : i32 to index
    %c0_777 = arith.constant 0 : index
    %c0_778 = arith.constant 0 : index
    %748 = vector.load %arg2[%c0_775, %c3_776, %747, %c0_777, %c0_778] : memref<1x4x9x9x4xbf16, #tpu.memory_space<vmem>>, vector<1x1x1x8x4xbf16>
    %749 = vector.shape_cast %748 : vector<1x1x1x8x4xbf16> to vector<8x4xbf16>
    %c13_779 = arith.constant 13 : index
    %c0_780 = arith.constant 0 : index
    %c0_781 = arith.constant 0 : index
    %750 = vector.load %arg3[%c13_779, %c0_780, %c0_781] : memref<16x4x8xbf16, #tpu.memory_space<vmem>>, vector<1x4x8xbf16>
    %751 = vector.shape_cast %750 : vector<1x4x8xbf16> to vector<4x8xbf16>
    %cst_782 = arith.constant dense<0.000000e+00> : vector<8x8xf32>
    %752 = tpu.matmul %749, %751, %cst_782 {dimension_numbers = #tpu.dot_dimension_numbers<[1], [0], [0], [1], [0, 0, 1, 1], [], []>} : vector<8x4xbf16>, vector<4x8xbf16>, vector<8x8xf32> -> vector<8x8xf32>
    %753 = arith.addf %744, %752 : vector<8x8xf32>
    %c4_i32_783 = arith.constant 4 : i32
    %754 = arith.addi %0, %c4_i32_783 : i32
    %c1_i32_784 = arith.constant 1 : i32
    %755 = arith.addi %754, %c1_i32_784 : i32
    %c0_785 = arith.constant 0 : index
    %c2_786 = arith.constant 2 : index
    %756 = arith.index_cast %755 : i32 to index
    %c1_787 = arith.constant 1 : index
    %c0_788 = arith.constant 0 : index
    %757 = vector.load %arg2[%c0_785, %c2_786, %756, %c1_787, %c0_788] : memref<1x4x9x9x4xbf16, #tpu.memory_space<vmem>>, vector<1x1x1x8x4xbf16>
    %758 = vector.shape_cast %757 : vector<1x1x1x8x4xbf16> to vector<8x4xbf16>
    %c14_789 = arith.constant 14 : index
    %c0_790 = arith.constant 0 : index
    %c0_791 = arith.constant 0 : index
    %759 = vector.load %arg3[%c14_789, %c0_790, %c0_791] : memref<16x4x8xbf16, #tpu.memory_space<vmem>>, vector<1x4x8xbf16>
    %760 = vector.shape_cast %759 : vector<1x4x8xbf16> to vector<4x8xbf16>
    %cst_792 = arith.constant dense<0.000000e+00> : vector<8x8xf32>
    %761 = tpu.matmul %758, %760, %cst_792 {dimension_numbers = #tpu.dot_dimension_numbers<[1], [0], [0], [1], [0, 0, 1, 1], [], []>} : vector<8x4xbf16>, vector<4x8xbf16>, vector<8x8xf32> -> vector<8x8xf32>
    %762 = arith.addf %753, %761 : vector<8x8xf32>
    %c4_i32_793 = arith.constant 4 : i32
    %763 = arith.addi %0, %c4_i32_793 : i32
    %c1_i32_794 = arith.constant 1 : i32
    %764 = arith.addi %763, %c1_i32_794 : i32
    %c0_795 = arith.constant 0 : index
    %c3_796 = arith.constant 3 : index
    %765 = arith.index_cast %764 : i32 to index
    %c1_797 = arith.constant 1 : index
    %c0_798 = arith.constant 0 : index
    %766 = vector.load %arg2[%c0_795, %c3_796, %765, %c1_797, %c0_798] : memref<1x4x9x9x4xbf16, #tpu.memory_space<vmem>>, vector<1x1x1x8x4xbf16>
    %767 = vector.shape_cast %766 : vector<1x1x1x8x4xbf16> to vector<8x4xbf16>
    %c15_799 = arith.constant 15 : index
    %c0_800 = arith.constant 0 : index
    %c0_801 = arith.constant 0 : index
    %768 = vector.load %arg3[%c15_799, %c0_800, %c0_801] : memref<16x4x8xbf16, #tpu.memory_space<vmem>>, vector<1x4x8xbf16>
    %769 = vector.shape_cast %768 : vector<1x4x8xbf16> to vector<4x8xbf16>
    %cst_802 = arith.constant dense<0.000000e+00> : vector<8x8xf32>
    %770 = tpu.matmul %767, %769, %cst_802 {dimension_numbers = #tpu.dot_dimension_numbers<[1], [0], [0], [1], [0, 0, 1, 1], [], []>} : vector<8x4xbf16>, vector<4x8xbf16>, vector<8x8xf32> -> vector<8x8xf32>
    %771 = arith.addf %762, %770 : vector<8x8xf32>
    %772 = arith.truncf %771 : vector<8x8xf32> to vector<8x8xbf16>
    %c0_803 = arith.constant 0 : index
    %c32 = arith.constant 32 : index
    %c0_804 = arith.constant 0 : index
    %773 = vector.load %arg4[%c0_803, %c32, %c0_804] : memref<1x64x8xbf16, #tpu.memory_space<vmem>>, vector<1x8x8xbf16>
    %774 = vector.shape_cast %773 : vector<1x8x8xbf16> to vector<8x8xbf16>
    %775 = vector.shape_cast %772 : vector<8x8xbf16> to vector<1x8x8xbf16>
    tpu.vector_store %arg4[%c0_803, %c32, %c0_804], %775 {strides = array<i32>} : memref<1x64x8xbf16, #tpu.memory_space<vmem>>, vector<1x8x8xbf16>,
    %cst_805 = arith.constant dense<0.000000e+00> : vector<8xf32>
    %776 = vector.multi_reduction <add>, %771, %cst_805 [0] : vector<8x8xf32> to vector<8xf32>
    %777 = vector.shape_cast %776 : vector<8xf32> to vector<1x8xf32>
    %778 = arith.addf %622, %777 : vector<1x8xf32>
    %779 = arith.mulf %771, %771 : vector<8x8xf32>
    %cst_806 = arith.constant dense<0.000000e+00> : vector<8xf32>
    %780 = vector.multi_reduction <add>, %779, %cst_806 [0] : vector<8x8xf32> to vector<8xf32>
    %781 = vector.shape_cast %780 : vector<8xf32> to vector<1x8xf32>
    %782 = arith.addf %626, %781 : vector<1x8xf32>
    %cst_807 = arith.constant 0.000000e+00 : f32
    %783 = vector.broadcast %cst_807 : f32 to vector<8x8xf32>
    %c5_i32 = arith.constant 5 : i32
    %784 = arith.addi %0, %c5_i32 : i32
    %c0_i32_808 = arith.constant 0 : i32
    %785 = arith.addi %784, %c0_i32_808 : i32
    %c0_809 = arith.constant 0 : index
    %c0_810 = arith.constant 0 : index
    %786 = arith.index_cast %785 : i32 to index
    %c0_811 = arith.constant 0 : index
    %c0_812 = arith.constant 0 : index
    %787 = vector.load %arg2[%c0_809, %c0_810, %786, %c0_811, %c0_812] : memref<1x4x9x9x4xbf16, #tpu.memory_space<vmem>>, vector<1x1x1x8x4xbf16>
    %788 = vector.shape_cast %787 : vector<1x1x1x8x4xbf16> to vector<8x4xbf16>
    %c0_813 = arith.constant 0 : index
    %c0_814 = arith.constant 0 : index
    %c0_815 = arith.constant 0 : index
    %789 = vector.load %arg3[%c0_813, %c0_814, %c0_815] : memref<16x4x8xbf16, #tpu.memory_space<vmem>>, vector<1x4x8xbf16>
    %790 = vector.shape_cast %789 : vector<1x4x8xbf16> to vector<4x8xbf16>
    %cst_816 = arith.constant dense<0.000000e+00> : vector<8x8xf32>
    %791 = tpu.matmul %788, %790, %cst_816 {dimension_numbers = #tpu.dot_dimension_numbers<[1], [0], [0], [1], [0, 0, 1, 1], [], []>} : vector<8x4xbf16>, vector<4x8xbf16>, vector<8x8xf32> -> vector<8x8xf32>
    %792 = arith.addf %783, %791 : vector<8x8xf32>
    %c5_i32_817 = arith.constant 5 : i32
    %793 = arith.addi %0, %c5_i32_817 : i32
    %c0_i32_818 = arith.constant 0 : i32
    %794 = arith.addi %793, %c0_i32_818 : i32
    %c0_819 = arith.constant 0 : index
    %c1_820 = arith.constant 1 : index
    %795 = arith.index_cast %794 : i32 to index
    %c0_821 = arith.constant 0 : index
    %c0_822 = arith.constant 0 : index
    %796 = vector.load %arg2[%c0_819, %c1_820, %795, %c0_821, %c0_822] : memref<1x4x9x9x4xbf16, #tpu.memory_space<vmem>>, vector<1x1x1x8x4xbf16>
    %797 = vector.shape_cast %796 : vector<1x1x1x8x4xbf16> to vector<8x4xbf16>
    %c1_823 = arith.constant 1 : index
    %c0_824 = arith.constant 0 : index
    %c0_825 = arith.constant 0 : index
    %798 = vector.load %arg3[%c1_823, %c0_824, %c0_825] : memref<16x4x8xbf16, #tpu.memory_space<vmem>>, vector<1x4x8xbf16>
    %799 = vector.shape_cast %798 : vector<1x4x8xbf16> to vector<4x8xbf16>
    %cst_826 = arith.constant dense<0.000000e+00> : vector<8x8xf32>
    %800 = tpu.matmul %797, %799, %cst_826 {dimension_numbers = #tpu.dot_dimension_numbers<[1], [0], [0], [1], [0, 0, 1, 1], [], []>} : vector<8x4xbf16>, vector<4x8xbf16>, vector<8x8xf32> -> vector<8x8xf32>
    %801 = arith.addf %792, %800 : vector<8x8xf32>
    %c5_i32_827 = arith.constant 5 : i32
    %802 = arith.addi %0, %c5_i32_827 : i32
    %c0_i32_828 = arith.constant 0 : i32
    %803 = arith.addi %802, %c0_i32_828 : i32
    %c0_829 = arith.constant 0 : index
    %c0_830 = arith.constant 0 : index
    %804 = arith.index_cast %803 : i32 to index
    %c1_831 = arith.constant 1 : index
    %c0_832 = arith.constant 0 : index
    %805 = vector.load %arg2[%c0_829, %c0_830, %804, %c1_831, %c0_832] : memref<1x4x9x9x4xbf16, #tpu.memory_space<vmem>>, vector<1x1x1x8x4xbf16>
    %806 = vector.shape_cast %805 : vector<1x1x1x8x4xbf16> to vector<8x4xbf16>
    %c2_833 = arith.constant 2 : index
    %c0_834 = arith.constant 0 : index
    %c0_835 = arith.constant 0 : index
    %807 = vector.load %arg3[%c2_833, %c0_834, %c0_835] : memref<16x4x8xbf16, #tpu.memory_space<vmem>>, vector<1x4x8xbf16>
    %808 = vector.shape_cast %807 : vector<1x4x8xbf16> to vector<4x8xbf16>
    %cst_836 = arith.constant dense<0.000000e+00> : vector<8x8xf32>
    %809 = tpu.matmul %806, %808, %cst_836 {dimension_numbers = #tpu.dot_dimension_numbers<[1], [0], [0], [1], [0, 0, 1, 1], [], []>} : vector<8x4xbf16>, vector<4x8xbf16>, vector<8x8xf32> -> vector<8x8xf32>
    %810 = arith.addf %801, %809 : vector<8x8xf32>
    %c5_i32_837 = arith.constant 5 : i32
    %811 = arith.addi %0, %c5_i32_837 : i32
    %c0_i32_838 = arith.constant 0 : i32
    %812 = arith.addi %811, %c0_i32_838 : i32
    %c0_839 = arith.constant 0 : index
    %c1_840 = arith.constant 1 : index
    %813 = arith.index_cast %812 : i32 to index
    %c1_841 = arith.constant 1 : index
    %c0_842 = arith.constant 0 : index
    %814 = vector.load %arg2[%c0_839, %c1_840, %813, %c1_841, %c0_842] : memref<1x4x9x9x4xbf16, #tpu.memory_space<vmem>>, vector<1x1x1x8x4xbf16>
    %815 = vector.shape_cast %814 : vector<1x1x1x8x4xbf16> to vector<8x4xbf16>
    %c3_843 = arith.constant 3 : index
    %c0_844 = arith.constant 0 : index
    %c0_845 = arith.constant 0 : index
    %816 = vector.load %arg3[%c3_843, %c0_844, %c0_845] : memref<16x4x8xbf16, #tpu.memory_space<vmem>>, vector<1x4x8xbf16>
    %817 = vector.shape_cast %816 : vector<1x4x8xbf16> to vector<4x8xbf16>
    %cst_846 = arith.constant dense<0.000000e+00> : vector<8x8xf32>
    %818 = tpu.matmul %815, %817, %cst_846 {dimension_numbers = #tpu.dot_dimension_numbers<[1], [0], [0], [1], [0, 0, 1, 1], [], []>} : vector<8x4xbf16>, vector<4x8xbf16>, vector<8x8xf32> -> vector<8x8xf32>
    %819 = arith.addf %810, %818 : vector<8x8xf32>
    %c5_i32_847 = arith.constant 5 : i32
    %820 = arith.addi %0, %c5_i32_847 : i32
    %c0_i32_848 = arith.constant 0 : i32
    %821 = arith.addi %820, %c0_i32_848 : i32
    %c0_849 = arith.constant 0 : index
    %c2_850 = arith.constant 2 : index
    %822 = arith.index_cast %821 : i32 to index
    %c0_851 = arith.constant 0 : index
    %c0_852 = arith.constant 0 : index
    %823 = vector.load %arg2[%c0_849, %c2_850, %822, %c0_851, %c0_852] : memref<1x4x9x9x4xbf16, #tpu.memory_space<vmem>>, vector<1x1x1x8x4xbf16>
    %824 = vector.shape_cast %823 : vector<1x1x1x8x4xbf16> to vector<8x4xbf16>
    %c4_853 = arith.constant 4 : index
    %c0_854 = arith.constant 0 : index
    %c0_855 = arith.constant 0 : index
    %825 = vector.load %arg3[%c4_853, %c0_854, %c0_855] : memref<16x4x8xbf16, #tpu.memory_space<vmem>>, vector<1x4x8xbf16>
    %826 = vector.shape_cast %825 : vector<1x4x8xbf16> to vector<4x8xbf16>
    %cst_856 = arith.constant dense<0.000000e+00> : vector<8x8xf32>
    %827 = tpu.matmul %824, %826, %cst_856 {dimension_numbers = #tpu.dot_dimension_numbers<[1], [0], [0], [1], [0, 0, 1, 1], [], []>} : vector<8x4xbf16>, vector<4x8xbf16>, vector<8x8xf32> -> vector<8x8xf32>
    %828 = arith.addf %819, %827 : vector<8x8xf32>
    %c5_i32_857 = arith.constant 5 : i32
    %829 = arith.addi %0, %c5_i32_857 : i32
    %c0_i32_858 = arith.constant 0 : i32
    %830 = arith.addi %829, %c0_i32_858 : i32
    %c0_859 = arith.constant 0 : index
    %c3_860 = arith.constant 3 : index
    %831 = arith.index_cast %830 : i32 to index
    %c0_861 = arith.constant 0 : index
    %c0_862 = arith.constant 0 : index
    %832 = vector.load %arg2[%c0_859, %c3_860, %831, %c0_861, %c0_862] : memref<1x4x9x9x4xbf16, #tpu.memory_space<vmem>>, vector<1x1x1x8x4xbf16>
    %833 = vector.shape_cast %832 : vector<1x1x1x8x4xbf16> to vector<8x4xbf16>
    %c5_863 = arith.constant 5 : index
    %c0_864 = arith.constant 0 : index
    %c0_865 = arith.constant 0 : index
    %834 = vector.load %arg3[%c5_863, %c0_864, %c0_865] : memref<16x4x8xbf16, #tpu.memory_space<vmem>>, vector<1x4x8xbf16>
    %835 = vector.shape_cast %834 : vector<1x4x8xbf16> to vector<4x8xbf16>
    %cst_866 = arith.constant dense<0.000000e+00> : vector<8x8xf32>
    %836 = tpu.matmul %833, %835, %cst_866 {dimension_numbers = #tpu.dot_dimension_numbers<[1], [0], [0], [1], [0, 0, 1, 1], [], []>} : vector<8x4xbf16>, vector<4x8xbf16>, vector<8x8xf32> -> vector<8x8xf32>
    %837 = arith.addf %828, %836 : vector<8x8xf32>
    %c5_i32_867 = arith.constant 5 : i32
    %838 = arith.addi %0, %c5_i32_867 : i32
    %c0_i32_868 = arith.constant 0 : i32
    %839 = arith.addi %838, %c0_i32_868 : i32
    %c0_869 = arith.constant 0 : index
    %c2_870 = arith.constant 2 : index
    %840 = arith.index_cast %839 : i32 to index
    %c1_871 = arith.constant 1 : index
    %c0_872 = arith.constant 0 : index
    %841 = vector.load %arg2[%c0_869, %c2_870, %840, %c1_871, %c0_872] : memref<1x4x9x9x4xbf16, #tpu.memory_space<vmem>>, vector<1x1x1x8x4xbf16>
    %842 = vector.shape_cast %841 : vector<1x1x1x8x4xbf16> to vector<8x4xbf16>
    %c6_873 = arith.constant 6 : index
    %c0_874 = arith.constant 0 : index
    %c0_875 = arith.constant 0 : index
    %843 = vector.load %arg3[%c6_873, %c0_874, %c0_875] : memref<16x4x8xbf16, #tpu.memory_space<vmem>>, vector<1x4x8xbf16>
    %844 = vector.shape_cast %843 : vector<1x4x8xbf16> to vector<4x8xbf16>
    %cst_876 = arith.constant dense<0.000000e+00> : vector<8x8xf32>
    %845 = tpu.matmul %842, %844, %cst_876 {dimension_numbers = #tpu.dot_dimension_numbers<[1], [0], [0], [1], [0, 0, 1, 1], [], []>} : vector<8x4xbf16>, vector<4x8xbf16>, vector<8x8xf32> -> vector<8x8xf32>
    %846 = arith.addf %837, %845 : vector<8x8xf32>
    %c5_i32_877 = arith.constant 5 : i32
    %847 = arith.addi %0, %c5_i32_877 : i32
    %c0_i32_878 = arith.constant 0 : i32
    %848 = arith.addi %847, %c0_i32_878 : i32
    %c0_879 = arith.constant 0 : index
    %c3_880 = arith.constant 3 : index
    %849 = arith.index_cast %848 : i32 to index
    %c1_881 = arith.constant 1 : index
    %c0_882 = arith.constant 0 : index
    %850 = vector.load %arg2[%c0_879, %c3_880, %849, %c1_881, %c0_882] : memref<1x4x9x9x4xbf16, #tpu.memory_space<vmem>>, vector<1x1x1x8x4xbf16>
    %851 = vector.shape_cast %850 : vector<1x1x1x8x4xbf16> to vector<8x4xbf16>
    %c7_883 = arith.constant 7 : index
    %c0_884 = arith.constant 0 : index
    %c0_885 = arith.constant 0 : index
    %852 = vector.load %arg3[%c7_883, %c0_884, %c0_885] : memref<16x4x8xbf16, #tpu.memory_space<vmem>>, vector<1x4x8xbf16>
    %853 = vector.shape_cast %852 : vector<1x4x8xbf16> to vector<4x8xbf16>
    %cst_886 = arith.constant dense<0.000000e+00> : vector<8x8xf32>
    %854 = tpu.matmul %851, %853, %cst_886 {dimension_numbers = #tpu.dot_dimension_numbers<[1], [0], [0], [1], [0, 0, 1, 1], [], []>} : vector<8x4xbf16>, vector<4x8xbf16>, vector<8x8xf32> -> vector<8x8xf32>
    %855 = arith.addf %846, %854 : vector<8x8xf32>
    %c5_i32_887 = arith.constant 5 : i32
    %856 = arith.addi %0, %c5_i32_887 : i32
    %c1_i32_888 = arith.constant 1 : i32
    %857 = arith.addi %856, %c1_i32_888 : i32
    %c0_889 = arith.constant 0 : index
    %c0_890 = arith.constant 0 : index
    %858 = arith.index_cast %857 : i32 to index
    %c0_891 = arith.constant 0 : index
    %c0_892 = arith.constant 0 : index
    %859 = vector.load %arg2[%c0_889, %c0_890, %858, %c0_891, %c0_892] : memref<1x4x9x9x4xbf16, #tpu.memory_space<vmem>>, vector<1x1x1x8x4xbf16>
    %860 = vector.shape_cast %859 : vector<1x1x1x8x4xbf16> to vector<8x4xbf16>
    %c8_893 = arith.constant 8 : index
    %c0_894 = arith.constant 0 : index
    %c0_895 = arith.constant 0 : index
    %861 = vector.load %arg3[%c8_893, %c0_894, %c0_895] : memref<16x4x8xbf16, #tpu.memory_space<vmem>>, vector<1x4x8xbf16>
    %862 = vector.shape_cast %861 : vector<1x4x8xbf16> to vector<4x8xbf16>
    %cst_896 = arith.constant dense<0.000000e+00> : vector<8x8xf32>
    %863 = tpu.matmul %860, %862, %cst_896 {dimension_numbers = #tpu.dot_dimension_numbers<[1], [0], [0], [1], [0, 0, 1, 1], [], []>} : vector<8x4xbf16>, vector<4x8xbf16>, vector<8x8xf32> -> vector<8x8xf32>
    %864 = arith.addf %855, %863 : vector<8x8xf32>
    %c5_i32_897 = arith.constant 5 : i32
    %865 = arith.addi %0, %c5_i32_897 : i32
    %c1_i32_898 = arith.constant 1 : i32
    %866 = arith.addi %865, %c1_i32_898 : i32
    %c0_899 = arith.constant 0 : index
    %c1_900 = arith.constant 1 : index
    %867 = arith.index_cast %866 : i32 to index
    %c0_901 = arith.constant 0 : index
    %c0_902 = arith.constant 0 : index
    %868 = vector.load %arg2[%c0_899, %c1_900, %867, %c0_901, %c0_902] : memref<1x4x9x9x4xbf16, #tpu.memory_space<vmem>>, vector<1x1x1x8x4xbf16>
    %869 = vector.shape_cast %868 : vector<1x1x1x8x4xbf16> to vector<8x4xbf16>
    %c9_903 = arith.constant 9 : index
    %c0_904 = arith.constant 0 : index
    %c0_905 = arith.constant 0 : index
    %870 = vector.load %arg3[%c9_903, %c0_904, %c0_905] : memref<16x4x8xbf16, #tpu.memory_space<vmem>>, vector<1x4x8xbf16>
    %871 = vector.shape_cast %870 : vector<1x4x8xbf16> to vector<4x8xbf16>
    %cst_906 = arith.constant dense<0.000000e+00> : vector<8x8xf32>
    %872 = tpu.matmul %869, %871, %cst_906 {dimension_numbers = #tpu.dot_dimension_numbers<[1], [0], [0], [1], [0, 0, 1, 1], [], []>} : vector<8x4xbf16>, vector<4x8xbf16>, vector<8x8xf32> -> vector<8x8xf32>
    %873 = arith.addf %864, %872 : vector<8x8xf32>
    %c5_i32_907 = arith.constant 5 : i32
    %874 = arith.addi %0, %c5_i32_907 : i32
    %c1_i32_908 = arith.constant 1 : i32
    %875 = arith.addi %874, %c1_i32_908 : i32
    %c0_909 = arith.constant 0 : index
    %c0_910 = arith.constant 0 : index
    %876 = arith.index_cast %875 : i32 to index
    %c1_911 = arith.constant 1 : index
    %c0_912 = arith.constant 0 : index
    %877 = vector.load %arg2[%c0_909, %c0_910, %876, %c1_911, %c0_912] : memref<1x4x9x9x4xbf16, #tpu.memory_space<vmem>>, vector<1x1x1x8x4xbf16>
    %878 = vector.shape_cast %877 : vector<1x1x1x8x4xbf16> to vector<8x4xbf16>
    %c10_913 = arith.constant 10 : index
    %c0_914 = arith.constant 0 : index
    %c0_915 = arith.constant 0 : index
    %879 = vector.load %arg3[%c10_913, %c0_914, %c0_915] : memref<16x4x8xbf16, #tpu.memory_space<vmem>>, vector<1x4x8xbf16>
    %880 = vector.shape_cast %879 : vector<1x4x8xbf16> to vector<4x8xbf16>
    %cst_916 = arith.constant dense<0.000000e+00> : vector<8x8xf32>
    %881 = tpu.matmul %878, %880, %cst_916 {dimension_numbers = #tpu.dot_dimension_numbers<[1], [0], [0], [1], [0, 0, 1, 1], [], []>} : vector<8x4xbf16>, vector<4x8xbf16>, vector<8x8xf32> -> vector<8x8xf32>
    %882 = arith.addf %873, %881 : vector<8x8xf32>
    %c5_i32_917 = arith.constant 5 : i32
    %883 = arith.addi %0, %c5_i32_917 : i32
    %c1_i32_918 = arith.constant 1 : i32
    %884 = arith.addi %883, %c1_i32_918 : i32
    %c0_919 = arith.constant 0 : index
    %c1_920 = arith.constant 1 : index
    %885 = arith.index_cast %884 : i32 to index
    %c1_921 = arith.constant 1 : index
    %c0_922 = arith.constant 0 : index
    %886 = vector.load %arg2[%c0_919, %c1_920, %885, %c1_921, %c0_922] : memref<1x4x9x9x4xbf16, #tpu.memory_space<vmem>>, vector<1x1x1x8x4xbf16>
    %887 = vector.shape_cast %886 : vector<1x1x1x8x4xbf16> to vector<8x4xbf16>
    %c11_923 = arith.constant 11 : index
    %c0_924 = arith.constant 0 : index
    %c0_925 = arith.constant 0 : index
    %888 = vector.load %arg3[%c11_923, %c0_924, %c0_925] : memref<16x4x8xbf16, #tpu.memory_space<vmem>>, vector<1x4x8xbf16>
    %889 = vector.shape_cast %888 : vector<1x4x8xbf16> to vector<4x8xbf16>
    %cst_926 = arith.constant dense<0.000000e+00> : vector<8x8xf32>
    %890 = tpu.matmul %887, %889, %cst_926 {dimension_numbers = #tpu.dot_dimension_numbers<[1], [0], [0], [1], [0, 0, 1, 1], [], []>} : vector<8x4xbf16>, vector<4x8xbf16>, vector<8x8xf32> -> vector<8x8xf32>
    %891 = arith.addf %882, %890 : vector<8x8xf32>
    %c5_i32_927 = arith.constant 5 : i32
    %892 = arith.addi %0, %c5_i32_927 : i32
    %c1_i32_928 = arith.constant 1 : i32
    %893 = arith.addi %892, %c1_i32_928 : i32
    %c0_929 = arith.constant 0 : index
    %c2_930 = arith.constant 2 : index
    %894 = arith.index_cast %893 : i32 to index
    %c0_931 = arith.constant 0 : index
    %c0_932 = arith.constant 0 : index
    %895 = vector.load %arg2[%c0_929, %c2_930, %894, %c0_931, %c0_932] : memref<1x4x9x9x4xbf16, #tpu.memory_space<vmem>>, vector<1x1x1x8x4xbf16>
    %896 = vector.shape_cast %895 : vector<1x1x1x8x4xbf16> to vector<8x4xbf16>
    %c12_933 = arith.constant 12 : index
    %c0_934 = arith.constant 0 : index
    %c0_935 = arith.constant 0 : index
    %897 = vector.load %arg3[%c12_933, %c0_934, %c0_935] : memref<16x4x8xbf16, #tpu.memory_space<vmem>>, vector<1x4x8xbf16>
    %898 = vector.shape_cast %897 : vector<1x4x8xbf16> to vector<4x8xbf16>
    %cst_936 = arith.constant dense<0.000000e+00> : vector<8x8xf32>
    %899 = tpu.matmul %896, %898, %cst_936 {dimension_numbers = #tpu.dot_dimension_numbers<[1], [0], [0], [1], [0, 0, 1, 1], [], []>} : vector<8x4xbf16>, vector<4x8xbf16>, vector<8x8xf32> -> vector<8x8xf32>
    %900 = arith.addf %891, %899 : vector<8x8xf32>
    %c5_i32_937 = arith.constant 5 : i32
    %901 = arith.addi %0, %c5_i32_937 : i32
    %c1_i32_938 = arith.constant 1 : i32
    %902 = arith.addi %901, %c1_i32_938 : i32
    %c0_939 = arith.constant 0 : index
    %c3_940 = arith.constant 3 : index
    %903 = arith.index_cast %902 : i32 to index
    %c0_941 = arith.constant 0 : index
    %c0_942 = arith.constant 0 : index
    %904 = vector.load %arg2[%c0_939, %c3_940, %903, %c0_941, %c0_942] : memref<1x4x9x9x4xbf16, #tpu.memory_space<vmem>>, vector<1x1x1x8x4xbf16>
    %905 = vector.shape_cast %904 : vector<1x1x1x8x4xbf16> to vector<8x4xbf16>
    %c13_943 = arith.constant 13 : index
    %c0_944 = arith.constant 0 : index
    %c0_945 = arith.constant 0 : index
    %906 = vector.load %arg3[%c13_943, %c0_944, %c0_945] : memref<16x4x8xbf16, #tpu.memory_space<vmem>>, vector<1x4x8xbf16>
    %907 = vector.shape_cast %906 : vector<1x4x8xbf16> to vector<4x8xbf16>
    %cst_946 = arith.constant dense<0.000000e+00> : vector<8x8xf32>
    %908 = tpu.matmul %905, %907, %cst_946 {dimension_numbers = #tpu.dot_dimension_numbers<[1], [0], [0], [1], [0, 0, 1, 1], [], []>} : vector<8x4xbf16>, vector<4x8xbf16>, vector<8x8xf32> -> vector<8x8xf32>
    %909 = arith.addf %900, %908 : vector<8x8xf32>
    %c5_i32_947 = arith.constant 5 : i32
    %910 = arith.addi %0, %c5_i32_947 : i32
    %c1_i32_948 = arith.constant 1 : i32
    %911 = arith.addi %910, %c1_i32_948 : i32
    %c0_949 = arith.constant 0 : index
    %c2_950 = arith.constant 2 : index
    %912 = arith.index_cast %911 : i32 to index
    %c1_951 = arith.constant 1 : index
    %c0_952 = arith.constant 0 : index
    %913 = vector.load %arg2[%c0_949, %c2_950, %912, %c1_951, %c0_952] : memref<1x4x9x9x4xbf16, #tpu.memory_space<vmem>>, vector<1x1x1x8x4xbf16>
    %914 = vector.shape_cast %913 : vector<1x1x1x8x4xbf16> to vector<8x4xbf16>
    %c14_953 = arith.constant 14 : index
    %c0_954 = arith.constant 0 : index
    %c0_955 = arith.constant 0 : index
    %915 = vector.load %arg3[%c14_953, %c0_954, %c0_955] : memref<16x4x8xbf16, #tpu.memory_space<vmem>>, vector<1x4x8xbf16>
    %916 = vector.shape_cast %915 : vector<1x4x8xbf16> to vector<4x8xbf16>
    %cst_956 = arith.constant dense<0.000000e+00> : vector<8x8xf32>
    %917 = tpu.matmul %914, %916, %cst_956 {dimension_numbers = #tpu.dot_dimension_numbers<[1], [0], [0], [1], [0, 0, 1, 1], [], []>} : vector<8x4xbf16>, vector<4x8xbf16>, vector<8x8xf32> -> vector<8x8xf32>
    %918 = arith.addf %909, %917 : vector<8x8xf32>
    %c5_i32_957 = arith.constant 5 : i32
    %919 = arith.addi %0, %c5_i32_957 : i32
    %c1_i32_958 = arith.constant 1 : i32
    %920 = arith.addi %919, %c1_i32_958 : i32
    %c0_959 = arith.constant 0 : index
    %c3_960 = arith.constant 3 : index
    %921 = arith.index_cast %920 : i32 to index
    %c1_961 = arith.constant 1 : index
    %c0_962 = arith.constant 0 : index
    %922 = vector.load %arg2[%c0_959, %c3_960, %921, %c1_961, %c0_962] : memref<1x4x9x9x4xbf16, #tpu.memory_space<vmem>>, vector<1x1x1x8x4xbf16>
    %923 = vector.shape_cast %922 : vector<1x1x1x8x4xbf16> to vector<8x4xbf16>
    %c15_963 = arith.constant 15 : index
    %c0_964 = arith.constant 0 : index
    %c0_965 = arith.constant 0 : index
    %924 = vector.load %arg3[%c15_963, %c0_964, %c0_965] : memref<16x4x8xbf16, #tpu.memory_space<vmem>>, vector<1x4x8xbf16>
    %925 = vector.shape_cast %924 : vector<1x4x8xbf16> to vector<4x8xbf16>
    %cst_966 = arith.constant dense<0.000000e+00> : vector<8x8xf32>
    %926 = tpu.matmul %923, %925, %cst_966 {dimension_numbers = #tpu.dot_dimension_numbers<[1], [0], [0], [1], [0, 0, 1, 1], [], []>} : vector<8x4xbf16>, vector<4x8xbf16>, vector<8x8xf32> -> vector<8x8xf32>
    %927 = arith.addf %918, %926 : vector<8x8xf32>
    %928 = arith.truncf %927 : vector<8x8xf32> to vector<8x8xbf16>
    %c0_967 = arith.constant 0 : index
    %c40 = arith.constant 40 : index
    %c0_968 = arith.constant 0 : index
    %929 = vector.load %arg4[%c0_967, %c40, %c0_968] : memref<1x64x8xbf16, #tpu.memory_space<vmem>>, vector<1x8x8xbf16>
    %930 = vector.shape_cast %929 : vector<1x8x8xbf16> to vector<8x8xbf16>
    %931 = vector.shape_cast %928 : vector<8x8xbf16> to vector<1x8x8xbf16>
    tpu.vector_store %arg4[%c0_967, %c40, %c0_968], %931 {strides = array<i32>} : memref<1x64x8xbf16, #tpu.memory_space<vmem>>, vector<1x8x8xbf16>,
    %cst_969 = arith.constant dense<0.000000e+00> : vector<8xf32>
    %932 = vector.multi_reduction <add>, %927, %cst_969 [0] : vector<8x8xf32> to vector<8xf32>
    %933 = vector.shape_cast %932 : vector<8xf32> to vector<1x8xf32>
    %934 = arith.addf %778, %933 : vector<1x8xf32>
    %935 = arith.mulf %927, %927 : vector<8x8xf32>
    %cst_970 = arith.constant dense<0.000000e+00> : vector<8xf32>
    %936 = vector.multi_reduction <add>, %935, %cst_970 [0] : vector<8x8xf32> to vector<8xf32>
    %937 = vector.shape_cast %936 : vector<8xf32> to vector<1x8xf32>
    %938 = arith.addf %782, %937 : vector<1x8xf32>
    %cst_971 = arith.constant 0.000000e+00 : f32
    %939 = vector.broadcast %cst_971 : f32 to vector<8x8xf32>
    %c6_i32 = arith.constant 6 : i32
    %940 = arith.addi %0, %c6_i32 : i32
    %c0_i32_972 = arith.constant 0 : i32
    %941 = arith.addi %940, %c0_i32_972 : i32
    %c0_973 = arith.constant 0 : index
    %c0_974 = arith.constant 0 : index
    %942 = arith.index_cast %941 : i32 to index
    %c0_975 = arith.constant 0 : index
    %c0_976 = arith.constant 0 : index
    %943 = vector.load %arg2[%c0_973, %c0_974, %942, %c0_975, %c0_976] : memref<1x4x9x9x4xbf16, #tpu.memory_space<vmem>>, vector<1x1x1x8x4xbf16>
    %944 = vector.shape_cast %943 : vector<1x1x1x8x4xbf16> to vector<8x4xbf16>
    %c0_977 = arith.constant 0 : index
    %c0_978 = arith.constant 0 : index
    %c0_979 = arith.constant 0 : index
    %945 = vector.load %arg3[%c0_977, %c0_978, %c0_979] : memref<16x4x8xbf16, #tpu.memory_space<vmem>>, vector<1x4x8xbf16>
    %946 = vector.shape_cast %945 : vector<1x4x8xbf16> to vector<4x8xbf16>
    %cst_980 = arith.constant dense<0.000000e+00> : vector<8x8xf32>
    %947 = tpu.matmul %944, %946, %cst_980 {dimension_numbers = #tpu.dot_dimension_numbers<[1], [0], [0], [1], [0, 0, 1, 1], [], []>} : vector<8x4xbf16>, vector<4x8xbf16>, vector<8x8xf32> -> vector<8x8xf32>
    %948 = arith.addf %939, %947 : vector<8x8xf32>
    %c6_i32_981 = arith.constant 6 : i32
    %949 = arith.addi %0, %c6_i32_981 : i32
    %c0_i32_982 = arith.constant 0 : i32
    %950 = arith.addi %949, %c0_i32_982 : i32
    %c0_983 = arith.constant 0 : index
    %c1_984 = arith.constant 1 : index
    %951 = arith.index_cast %950 : i32 to index
    %c0_985 = arith.constant 0 : index
    %c0_986 = arith.constant 0 : index
    %952 = vector.load %arg2[%c0_983, %c1_984, %951, %c0_985, %c0_986] : memref<1x4x9x9x4xbf16, #tpu.memory_space<vmem>>, vector<1x1x1x8x4xbf16>
    %953 = vector.shape_cast %952 : vector<1x1x1x8x4xbf16> to vector<8x4xbf16>
    %c1_987 = arith.constant 1 : index
    %c0_988 = arith.constant 0 : index
    %c0_989 = arith.constant 0 : index
    %954 = vector.load %arg3[%c1_987, %c0_988, %c0_989] : memref<16x4x8xbf16, #tpu.memory_space<vmem>>, vector<1x4x8xbf16>
    %955 = vector.shape_cast %954 : vector<1x4x8xbf16> to vector<4x8xbf16>
    %cst_990 = arith.constant dense<0.000000e+00> : vector<8x8xf32>
    %956 = tpu.matmul %953, %955, %cst_990 {dimension_numbers = #tpu.dot_dimension_numbers<[1], [0], [0], [1], [0, 0, 1, 1], [], []>} : vector<8x4xbf16>, vector<4x8xbf16>, vector<8x8xf32> -> vector<8x8xf32>
    %957 = arith.addf %948, %956 : vector<8x8xf32>
    %c6_i32_991 = arith.constant 6 : i32
    %958 = arith.addi %0, %c6_i32_991 : i32
    %c0_i32_992 = arith.constant 0 : i32
    %959 = arith.addi %958, %c0_i32_992 : i32
    %c0_993 = arith.constant 0 : index
    %c0_994 = arith.constant 0 : index
    %960 = arith.index_cast %959 : i32 to index
    %c1_995 = arith.constant 1 : index
    %c0_996 = arith.constant 0 : index
    %961 = vector.load %arg2[%c0_993, %c0_994, %960, %c1_995, %c0_996] : memref<1x4x9x9x4xbf16, #tpu.memory_space<vmem>>, vector<1x1x1x8x4xbf16>
    %962 = vector.shape_cast %961 : vector<1x1x1x8x4xbf16> to vector<8x4xbf16>
    %c2_997 = arith.constant 2 : index
    %c0_998 = arith.constant 0 : index
    %c0_999 = arith.constant 0 : index
    %963 = vector.load %arg3[%c2_997, %c0_998, %c0_999] : memref<16x4x8xbf16, #tpu.memory_space<vmem>>, vector<1x4x8xbf16>
    %964 = vector.shape_cast %963 : vector<1x4x8xbf16> to vector<4x8xbf16>
    %cst_1000 = arith.constant dense<0.000000e+00> : vector<8x8xf32>
    %965 = tpu.matmul %962, %964, %cst_1000 {dimension_numbers = #tpu.dot_dimension_numbers<[1], [0], [0], [1], [0, 0, 1, 1], [], []>} : vector<8x4xbf16>, vector<4x8xbf16>, vector<8x8xf32> -> vector<8x8xf32>
    %966 = arith.addf %957, %965 : vector<8x8xf32>
    %c6_i32_1001 = arith.constant 6 : i32
    %967 = arith.addi %0, %c6_i32_1001 : i32
    %c0_i32_1002 = arith.constant 0 : i32
    %968 = arith.addi %967, %c0_i32_1002 : i32
    %c0_1003 = arith.constant 0 : index
    %c1_1004 = arith.constant 1 : index
    %969 = arith.index_cast %968 : i32 to index
    %c1_1005 = arith.constant 1 : index
    %c0_1006 = arith.constant 0 : index
    %970 = vector.load %arg2[%c0_1003, %c1_1004, %969, %c1_1005, %c0_1006] : memref<1x4x9x9x4xbf16, #tpu.memory_space<vmem>>, vector<1x1x1x8x4xbf16>
    %971 = vector.shape_cast %970 : vector<1x1x1x8x4xbf16> to vector<8x4xbf16>
    %c3_1007 = arith.constant 3 : index
    %c0_1008 = arith.constant 0 : index
    %c0_1009 = arith.constant 0 : index
    %972 = vector.load %arg3[%c3_1007, %c0_1008, %c0_1009] : memref<16x4x8xbf16, #tpu.memory_space<vmem>>, vector<1x4x8xbf16>
    %973 = vector.shape_cast %972 : vector<1x4x8xbf16> to vector<4x8xbf16>
    %cst_1010 = arith.constant dense<0.000000e+00> : vector<8x8xf32>
    %974 = tpu.matmul %971, %973, %cst_1010 {dimension_numbers = #tpu.dot_dimension_numbers<[1], [0], [0], [1], [0, 0, 1, 1], [], []>} : vector<8x4xbf16>, vector<4x8xbf16>, vector<8x8xf32> -> vector<8x8xf32>
    %975 = arith.addf %966, %974 : vector<8x8xf32>
    %c6_i32_1011 = arith.constant 6 : i32
    %976 = arith.addi %0, %c6_i32_1011 : i32
    %c0_i32_1012 = arith.constant 0 : i32
    %977 = arith.addi %976, %c0_i32_1012 : i32
    %c0_1013 = arith.constant 0 : index
    %c2_1014 = arith.constant 2 : index
    %978 = arith.index_cast %977 : i32 to index
    %c0_1015 = arith.constant 0 : index
    %c0_1016 = arith.constant 0 : index
    %979 = vector.load %arg2[%c0_1013, %c2_1014, %978, %c0_1015, %c0_1016] : memref<1x4x9x9x4xbf16, #tpu.memory_space<vmem>>, vector<1x1x1x8x4xbf16>
    %980 = vector.shape_cast %979 : vector<1x1x1x8x4xbf16> to vector<8x4xbf16>
    %c4_1017 = arith.constant 4 : index
    %c0_1018 = arith.constant 0 : index
    %c0_1019 = arith.constant 0 : index
    %981 = vector.load %arg3[%c4_1017, %c0_1018, %c0_1019] : memref<16x4x8xbf16, #tpu.memory_space<vmem>>, vector<1x4x8xbf16>
    %982 = vector.shape_cast %981 : vector<1x4x8xbf16> to vector<4x8xbf16>
    %cst_1020 = arith.constant dense<0.000000e+00> : vector<8x8xf32>
    %983 = tpu.matmul %980, %982, %cst_1020 {dimension_numbers = #tpu.dot_dimension_numbers<[1], [0], [0], [1], [0, 0, 1, 1], [], []>} : vector<8x4xbf16>, vector<4x8xbf16>, vector<8x8xf32> -> vector<8x8xf32>
    %984 = arith.addf %975, %983 : vector<8x8xf32>
    %c6_i32_1021 = arith.constant 6 : i32
    %985 = arith.addi %0, %c6_i32_1021 : i32
    %c0_i32_1022 = arith.constant 0 : i32
    %986 = arith.addi %985, %c0_i32_1022 : i32
    %c0_1023 = arith.constant 0 : index
    %c3_1024 = arith.constant 3 : index
    %987 = arith.index_cast %986 : i32 to index
    %c0_1025 = arith.constant 0 : index
    %c0_1026 = arith.constant 0 : index
    %988 = vector.load %arg2[%c0_1023, %c3_1024, %987, %c0_1025, %c0_1026] : memref<1x4x9x9x4xbf16, #tpu.memory_space<vmem>>, vector<1x1x1x8x4xbf16>
    %989 = vector.shape_cast %988 : vector<1x1x1x8x4xbf16> to vector<8x4xbf16>
    %c5_1027 = arith.constant 5 : index
    %c0_1028 = arith.constant 0 : index
    %c0_1029 = arith.constant 0 : index
    %990 = vector.load %arg3[%c5_1027, %c0_1028, %c0_1029] : memref<16x4x8xbf16, #tpu.memory_space<vmem>>, vector<1x4x8xbf16>
    %991 = vector.shape_cast %990 : vector<1x4x8xbf16> to vector<4x8xbf16>
    %cst_1030 = arith.constant dense<0.000000e+00> : vector<8x8xf32>
    %992 = tpu.matmul %989, %991, %cst_1030 {dimension_numbers = #tpu.dot_dimension_numbers<[1], [0], [0], [1], [0, 0, 1, 1], [], []>} : vector<8x4xbf16>, vector<4x8xbf16>, vector<8x8xf32> -> vector<8x8xf32>
    %993 = arith.addf %984, %992 : vector<8x8xf32>
    %c6_i32_1031 = arith.constant 6 : i32
    %994 = arith.addi %0, %c6_i32_1031 : i32
    %c0_i32_1032 = arith.constant 0 : i32
    %995 = arith.addi %994, %c0_i32_1032 : i32
    %c0_1033 = arith.constant 0 : index
    %c2_1034 = arith.constant 2 : index
    %996 = arith.index_cast %995 : i32 to index
    %c1_1035 = arith.constant 1 : index
    %c0_1036 = arith.constant 0 : index
    %997 = vector.load %arg2[%c0_1033, %c2_1034, %996, %c1_1035, %c0_1036] : memref<1x4x9x9x4xbf16, #tpu.memory_space<vmem>>, vector<1x1x1x8x4xbf16>
    %998 = vector.shape_cast %997 : vector<1x1x1x8x4xbf16> to vector<8x4xbf16>
    %c6_1037 = arith.constant 6 : index
    %c0_1038 = arith.constant 0 : index
    %c0_1039 = arith.constant 0 : index
    %999 = vector.load %arg3[%c6_1037, %c0_1038, %c0_1039] : memref<16x4x8xbf16, #tpu.memory_space<vmem>>, vector<1x4x8xbf16>
    %1000 = vector.shape_cast %999 : vector<1x4x8xbf16> to vector<4x8xbf16>
    %cst_1040 = arith.constant dense<0.000000e+00> : vector<8x8xf32>
    %1001 = tpu.matmul %998, %1000, %cst_1040 {dimension_numbers = #tpu.dot_dimension_numbers<[1], [0], [0], [1], [0, 0, 1, 1], [], []>} : vector<8x4xbf16>, vector<4x8xbf16>, vector<8x8xf32> -> vector<8x8xf32>
    %1002 = arith.addf %993, %1001 : vector<8x8xf32>
    %c6_i32_1041 = arith.constant 6 : i32
    %1003 = arith.addi %0, %c6_i32_1041 : i32
    %c0_i32_1042 = arith.constant 0 : i32
    %1004 = arith.addi %1003, %c0_i32_1042 : i32
    %c0_1043 = arith.constant 0 : index
    %c3_1044 = arith.constant 3 : index
    %1005 = arith.index_cast %1004 : i32 to index
    %c1_1045 = arith.constant 1 : index
    %c0_1046 = arith.constant 0 : index
    %1006 = vector.load %arg2[%c0_1043, %c3_1044, %1005, %c1_1045, %c0_1046] : memref<1x4x9x9x4xbf16, #tpu.memory_space<vmem>>, vector<1x1x1x8x4xbf16>
    %1007 = vector.shape_cast %1006 : vector<1x1x1x8x4xbf16> to vector<8x4xbf16>
    %c7_1047 = arith.constant 7 : index
    %c0_1048 = arith.constant 0 : index
    %c0_1049 = arith.constant 0 : index
    %1008 = vector.load %arg3[%c7_1047, %c0_1048, %c0_1049] : memref<16x4x8xbf16, #tpu.memory_space<vmem>>, vector<1x4x8xbf16>
    %1009 = vector.shape_cast %1008 : vector<1x4x8xbf16> to vector<4x8xbf16>
    %cst_1050 = arith.constant dense<0.000000e+00> : vector<8x8xf32>
    %1010 = tpu.matmul %1007, %1009, %cst_1050 {dimension_numbers = #tpu.dot_dimension_numbers<[1], [0], [0], [1], [0, 0, 1, 1], [], []>} : vector<8x4xbf16>, vector<4x8xbf16>, vector<8x8xf32> -> vector<8x8xf32>
    %1011 = arith.addf %1002, %1010 : vector<8x8xf32>
    %c6_i32_1051 = arith.constant 6 : i32
    %1012 = arith.addi %0, %c6_i32_1051 : i32
    %c1_i32_1052 = arith.constant 1 : i32
    %1013 = arith.addi %1012, %c1_i32_1052 : i32
    %c0_1053 = arith.constant 0 : index
    %c0_1054 = arith.constant 0 : index
    %1014 = arith.index_cast %1013 : i32 to index
    %c0_1055 = arith.constant 0 : index
    %c0_1056 = arith.constant 0 : index
    %1015 = vector.load %arg2[%c0_1053, %c0_1054, %1014, %c0_1055, %c0_1056] : memref<1x4x9x9x4xbf16, #tpu.memory_space<vmem>>, vector<1x1x1x8x4xbf16>
    %1016 = vector.shape_cast %1015 : vector<1x1x1x8x4xbf16> to vector<8x4xbf16>
    %c8_1057 = arith.constant 8 : index
    %c0_1058 = arith.constant 0 : index
    %c0_1059 = arith.constant 0 : index
    %1017 = vector.load %arg3[%c8_1057, %c0_1058, %c0_1059] : memref<16x4x8xbf16, #tpu.memory_space<vmem>>, vector<1x4x8xbf16>
    %1018 = vector.shape_cast %1017 : vector<1x4x8xbf16> to vector<4x8xbf16>
    %cst_1060 = arith.constant dense<0.000000e+00> : vector<8x8xf32>
    %1019 = tpu.matmul %1016, %1018, %cst_1060 {dimension_numbers = #tpu.dot_dimension_numbers<[1], [0], [0], [1], [0, 0, 1, 1], [], []>} : vector<8x4xbf16>, vector<4x8xbf16>, vector<8x8xf32> -> vector<8x8xf32>
    %1020 = arith.addf %1011, %1019 : vector<8x8xf32>
    %c6_i32_1061 = arith.constant 6 : i32
    %1021 = arith.addi %0, %c6_i32_1061 : i32
    %c1_i32_1062 = arith.constant 1 : i32
    %1022 = arith.addi %1021, %c1_i32_1062 : i32
    %c0_1063 = arith.constant 0 : index
    %c1_1064 = arith.constant 1 : index
    %1023 = arith.index_cast %1022 : i32 to index
    %c0_1065 = arith.constant 0 : index
    %c0_1066 = arith.constant 0 : index
    %1024 = vector.load %arg2[%c0_1063, %c1_1064, %1023, %c0_1065, %c0_1066] : memref<1x4x9x9x4xbf16, #tpu.memory_space<vmem>>, vector<1x1x1x8x4xbf16>
    %1025 = vector.shape_cast %1024 : vector<1x1x1x8x4xbf16> to vector<8x4xbf16>
    %c9_1067 = arith.constant 9 : index
    %c0_1068 = arith.constant 0 : index
    %c0_1069 = arith.constant 0 : index
    %1026 = vector.load %arg3[%c9_1067, %c0_1068, %c0_1069] : memref<16x4x8xbf16, #tpu.memory_space<vmem>>, vector<1x4x8xbf16>
    %1027 = vector.shape_cast %1026 : vector<1x4x8xbf16> to vector<4x8xbf16>
    %cst_1070 = arith.constant dense<0.000000e+00> : vector<8x8xf32>
    %1028 = tpu.matmul %1025, %1027, %cst_1070 {dimension_numbers = #tpu.dot_dimension_numbers<[1], [0], [0], [1], [0, 0, 1, 1], [], []>} : vector<8x4xbf16>, vector<4x8xbf16>, vector<8x8xf32> -> vector<8x8xf32>
    %1029 = arith.addf %1020, %1028 : vector<8x8xf32>
    %c6_i32_1071 = arith.constant 6 : i32
    %1030 = arith.addi %0, %c6_i32_1071 : i32
    %c1_i32_1072 = arith.constant 1 : i32
    %1031 = arith.addi %1030, %c1_i32_1072 : i32
    %c0_1073 = arith.constant 0 : index
    %c0_1074 = arith.constant 0 : index
    %1032 = arith.index_cast %1031 : i32 to index
    %c1_1075 = arith.constant 1 : index
    %c0_1076 = arith.constant 0 : index
    %1033 = vector.load %arg2[%c0_1073, %c0_1074, %1032, %c1_1075, %c0_1076] : memref<1x4x9x9x4xbf16, #tpu.memory_space<vmem>>, vector<1x1x1x8x4xbf16>
    %1034 = vector.shape_cast %1033 : vector<1x1x1x8x4xbf16> to vector<8x4xbf16>
    %c10_1077 = arith.constant 10 : index
    %c0_1078 = arith.constant 0 : index
    %c0_1079 = arith.constant 0 : index
    %1035 = vector.load %arg3[%c10_1077, %c0_1078, %c0_1079] : memref<16x4x8xbf16, #tpu.memory_space<vmem>>, vector<1x4x8xbf16>
    %1036 = vector.shape_cast %1035 : vector<1x4x8xbf16> to vector<4x8xbf16>
    %cst_1080 = arith.constant dense<0.000000e+00> : vector<8x8xf32>
    %1037 = tpu.matmul %1034, %1036, %cst_1080 {dimension_numbers = #tpu.dot_dimension_numbers<[1], [0], [0], [1], [0, 0, 1, 1], [], []>} : vector<8x4xbf16>, vector<4x8xbf16>, vector<8x8xf32> -> vector<8x8xf32>
    %1038 = arith.addf %1029, %1037 : vector<8x8xf32>
    %c6_i32_1081 = arith.constant 6 : i32
    %1039 = arith.addi %0, %c6_i32_1081 : i32
    %c1_i32_1082 = arith.constant 1 : i32
    %1040 = arith.addi %1039, %c1_i32_1082 : i32
    %c0_1083 = arith.constant 0 : index
    %c1_1084 = arith.constant 1 : index
    %1041 = arith.index_cast %1040 : i32 to index
    %c1_1085 = arith.constant 1 : index
    %c0_1086 = arith.constant 0 : index
    %1042 = vector.load %arg2[%c0_1083, %c1_1084, %1041, %c1_1085, %c0_1086] : memref<1x4x9x9x4xbf16, #tpu.memory_space<vmem>>, vector<1x1x1x8x4xbf16>
    %1043 = vector.shape_cast %1042 : vector<1x1x1x8x4xbf16> to vector<8x4xbf16>
    %c11_1087 = arith.constant 11 : index
    %c0_1088 = arith.constant 0 : index
    %c0_1089 = arith.constant 0 : index
    %1044 = vector.load %arg3[%c11_1087, %c0_1088, %c0_1089] : memref<16x4x8xbf16, #tpu.memory_space<vmem>>, vector<1x4x8xbf16>
    %1045 = vector.shape_cast %1044 : vector<1x4x8xbf16> to vector<4x8xbf16>
    %cst_1090 = arith.constant dense<0.000000e+00> : vector<8x8xf32>
    %1046 = tpu.matmul %1043, %1045, %cst_1090 {dimension_numbers = #tpu.dot_dimension_numbers<[1], [0], [0], [1], [0, 0, 1, 1], [], []>} : vector<8x4xbf16>, vector<4x8xbf16>, vector<8x8xf32> -> vector<8x8xf32>
    %1047 = arith.addf %1038, %1046 : vector<8x8xf32>
    %c6_i32_1091 = arith.constant 6 : i32
    %1048 = arith.addi %0, %c6_i32_1091 : i32
    %c1_i32_1092 = arith.constant 1 : i32
    %1049 = arith.addi %1048, %c1_i32_1092 : i32
    %c0_1093 = arith.constant 0 : index
    %c2_1094 = arith.constant 2 : index
    %1050 = arith.index_cast %1049 : i32 to index
    %c0_1095 = arith.constant 0 : index
    %c0_1096 = arith.constant 0 : index
    %1051 = vector.load %arg2[%c0_1093, %c2_1094, %1050, %c0_1095, %c0_1096] : memref<1x4x9x9x4xbf16, #tpu.memory_space<vmem>>, vector<1x1x1x8x4xbf16>
    %1052 = vector.shape_cast %1051 : vector<1x1x1x8x4xbf16> to vector<8x4xbf16>
    %c12_1097 = arith.constant 12 : index
    %c0_1098 = arith.constant 0 : index
    %c0_1099 = arith.constant 0 : index
    %1053 = vector.load %arg3[%c12_1097, %c0_1098, %c0_1099] : memref<16x4x8xbf16, #tpu.memory_space<vmem>>, vector<1x4x8xbf16>
    %1054 = vector.shape_cast %1053 : vector<1x4x8xbf16> to vector<4x8xbf16>
    %cst_1100 = arith.constant dense<0.000000e+00> : vector<8x8xf32>
    %1055 = tpu.matmul %1052, %1054, %cst_1100 {dimension_numbers = #tpu.dot_dimension_numbers<[1], [0], [0], [1], [0, 0, 1, 1], [], []>} : vector<8x4xbf16>, vector<4x8xbf16>, vector<8x8xf32> -> vector<8x8xf32>
    %1056 = arith.addf %1047, %1055 : vector<8x8xf32>
    %c6_i32_1101 = arith.constant 6 : i32
    %1057 = arith.addi %0, %c6_i32_1101 : i32
    %c1_i32_1102 = arith.constant 1 : i32
    %1058 = arith.addi %1057, %c1_i32_1102 : i32
    %c0_1103 = arith.constant 0 : index
    %c3_1104 = arith.constant 3 : index
    %1059 = arith.index_cast %1058 : i32 to index
    %c0_1105 = arith.constant 0 : index
    %c0_1106 = arith.constant 0 : index
    %1060 = vector.load %arg2[%c0_1103, %c3_1104, %1059, %c0_1105, %c0_1106] : memref<1x4x9x9x4xbf16, #tpu.memory_space<vmem>>, vector<1x1x1x8x4xbf16>
    %1061 = vector.shape_cast %1060 : vector<1x1x1x8x4xbf16> to vector<8x4xbf16>
    %c13_1107 = arith.constant 13 : index
    %c0_1108 = arith.constant 0 : index
    %c0_1109 = arith.constant 0 : index
    %1062 = vector.load %arg3[%c13_1107, %c0_1108, %c0_1109] : memref<16x4x8xbf16, #tpu.memory_space<vmem>>, vector<1x4x8xbf16>
    %1063 = vector.shape_cast %1062 : vector<1x4x8xbf16> to vector<4x8xbf16>
    %cst_1110 = arith.constant dense<0.000000e+00> : vector<8x8xf32>
    %1064 = tpu.matmul %1061, %1063, %cst_1110 {dimension_numbers = #tpu.dot_dimension_numbers<[1], [0], [0], [1], [0, 0, 1, 1], [], []>} : vector<8x4xbf16>, vector<4x8xbf16>, vector<8x8xf32> -> vector<8x8xf32>
    %1065 = arith.addf %1056, %1064 : vector<8x8xf32>
    %c6_i32_1111 = arith.constant 6 : i32
    %1066 = arith.addi %0, %c6_i32_1111 : i32
    %c1_i32_1112 = arith.constant 1 : i32
    %1067 = arith.addi %1066, %c1_i32_1112 : i32
    %c0_1113 = arith.constant 0 : index
    %c2_1114 = arith.constant 2 : index
    %1068 = arith.index_cast %1067 : i32 to index
    %c1_1115 = arith.constant 1 : index
    %c0_1116 = arith.constant 0 : index
    %1069 = vector.load %arg2[%c0_1113, %c2_1114, %1068, %c1_1115, %c0_1116] : memref<1x4x9x9x4xbf16, #tpu.memory_space<vmem>>, vector<1x1x1x8x4xbf16>
    %1070 = vector.shape_cast %1069 : vector<1x1x1x8x4xbf16> to vector<8x4xbf16>
    %c14_1117 = arith.constant 14 : index
    %c0_1118 = arith.constant 0 : index
    %c0_1119 = arith.constant 0 : index
    %1071 = vector.load %arg3[%c14_1117, %c0_1118, %c0_1119] : memref<16x4x8xbf16, #tpu.memory_space<vmem>>, vector<1x4x8xbf16>
    %1072 = vector.shape_cast %1071 : vector<1x4x8xbf16> to vector<4x8xbf16>
    %cst_1120 = arith.constant dense<0.000000e+00> : vector<8x8xf32>
    %1073 = tpu.matmul %1070, %1072, %cst_1120 {dimension_numbers = #tpu.dot_dimension_numbers<[1], [0], [0], [1], [0, 0, 1, 1], [], []>} : vector<8x4xbf16>, vector<4x8xbf16>, vector<8x8xf32> -> vector<8x8xf32>
    %1074 = arith.addf %1065, %1073 : vector<8x8xf32>
    %c6_i32_1121 = arith.constant 6 : i32
    %1075 = arith.addi %0, %c6_i32_1121 : i32
    %c1_i32_1122 = arith.constant 1 : i32
    %1076 = arith.addi %1075, %c1_i32_1122 : i32
    %c0_1123 = arith.constant 0 : index
    %c3_1124 = arith.constant 3 : index
    %1077 = arith.index_cast %1076 : i32 to index
    %c1_1125 = arith.constant 1 : index
    %c0_1126 = arith.constant 0 : index
    %1078 = vector.load %arg2[%c0_1123, %c3_1124, %1077, %c1_1125, %c0_1126] : memref<1x4x9x9x4xbf16, #tpu.memory_space<vmem>>, vector<1x1x1x8x4xbf16>
    %1079 = vector.shape_cast %1078 : vector<1x1x1x8x4xbf16> to vector<8x4xbf16>
    %c15_1127 = arith.constant 15 : index
    %c0_1128 = arith.constant 0 : index
    %c0_1129 = arith.constant 0 : index
    %1080 = vector.load %arg3[%c15_1127, %c0_1128, %c0_1129] : memref<16x4x8xbf16, #tpu.memory_space<vmem>>, vector<1x4x8xbf16>
    %1081 = vector.shape_cast %1080 : vector<1x4x8xbf16> to vector<4x8xbf16>
    %cst_1130 = arith.constant dense<0.000000e+00> : vector<8x8xf32>
    %1082 = tpu.matmul %1079, %1081, %cst_1130 {dimension_numbers = #tpu.dot_dimension_numbers<[1], [0], [0], [1], [0, 0, 1, 1], [], []>} : vector<8x4xbf16>, vector<4x8xbf16>, vector<8x8xf32> -> vector<8x8xf32>
    %1083 = arith.addf %1074, %1082 : vector<8x8xf32>
    %1084 = arith.truncf %1083 : vector<8x8xf32> to vector<8x8xbf16>
    %c0_1131 = arith.constant 0 : index
    %c48 = arith.constant 48 : index
    %c0_1132 = arith.constant 0 : index
    %1085 = vector.load %arg4[%c0_1131, %c48, %c0_1132] : memref<1x64x8xbf16, #tpu.memory_space<vmem>>, vector<1x8x8xbf16>
    %1086 = vector.shape_cast %1085 : vector<1x8x8xbf16> to vector<8x8xbf16>
    %1087 = vector.shape_cast %1084 : vector<8x8xbf16> to vector<1x8x8xbf16>
    tpu.vector_store %arg4[%c0_1131, %c48, %c0_1132], %1087 {strides = array<i32>} : memref<1x64x8xbf16, #tpu.memory_space<vmem>>, vector<1x8x8xbf16>,
    %cst_1133 = arith.constant dense<0.000000e+00> : vector<8xf32>
    %1088 = vector.multi_reduction <add>, %1083, %cst_1133 [0] : vector<8x8xf32> to vector<8xf32>
    %1089 = vector.shape_cast %1088 : vector<8xf32> to vector<1x8xf32>
    %1090 = arith.addf %934, %1089 : vector<1x8xf32>
    %1091 = arith.mulf %1083, %1083 : vector<8x8xf32>
    %cst_1134 = arith.constant dense<0.000000e+00> : vector<8xf32>
    %1092 = vector.multi_reduction <add>, %1091, %cst_1134 [0] : vector<8x8xf32> to vector<8xf32>
    %1093 = vector.shape_cast %1092 : vector<8xf32> to vector<1x8xf32>
    %1094 = arith.addf %938, %1093 : vector<1x8xf32>
    %cst_1135 = arith.constant 0.000000e+00 : f32
    %1095 = vector.broadcast %cst_1135 : f32 to vector<8x8xf32>
    %c7_i32 = arith.constant 7 : i32
    %1096 = arith.addi %0, %c7_i32 : i32
    %c0_i32_1136 = arith.constant 0 : i32
    %1097 = arith.addi %1096, %c0_i32_1136 : i32
    %c0_1137 = arith.constant 0 : index
    %c0_1138 = arith.constant 0 : index
    %1098 = arith.index_cast %1097 : i32 to index
    %c0_1139 = arith.constant 0 : index
    %c0_1140 = arith.constant 0 : index
    %1099 = vector.load %arg2[%c0_1137, %c0_1138, %1098, %c0_1139, %c0_1140] : memref<1x4x9x9x4xbf16, #tpu.memory_space<vmem>>, vector<1x1x1x8x4xbf16>
    %1100 = vector.shape_cast %1099 : vector<1x1x1x8x4xbf16> to vector<8x4xbf16>
    %c0_1141 = arith.constant 0 : index
    %c0_1142 = arith.constant 0 : index
    %c0_1143 = arith.constant 0 : index
    %1101 = vector.load %arg3[%c0_1141, %c0_1142, %c0_1143] : memref<16x4x8xbf16, #tpu.memory_space<vmem>>, vector<1x4x8xbf16>
    %1102 = vector.shape_cast %1101 : vector<1x4x8xbf16> to vector<4x8xbf16>
    %cst_1144 = arith.constant dense<0.000000e+00> : vector<8x8xf32>
    %1103 = tpu.matmul %1100, %1102, %cst_1144 {dimension_numbers = #tpu.dot_dimension_numbers<[1], [0], [0], [1], [0, 0, 1, 1], [], []>} : vector<8x4xbf16>, vector<4x8xbf16>, vector<8x8xf32> -> vector<8x8xf32>
    %1104 = arith.addf %1095, %1103 : vector<8x8xf32>
    %c7_i32_1145 = arith.constant 7 : i32
    %1105 = arith.addi %0, %c7_i32_1145 : i32
    %c0_i32_1146 = arith.constant 0 : i32
    %1106 = arith.addi %1105, %c0_i32_1146 : i32
    %c0_1147 = arith.constant 0 : index
    %c1_1148 = arith.constant 1 : index
    %1107 = arith.index_cast %1106 : i32 to index
    %c0_1149 = arith.constant 0 : index
    %c0_1150 = arith.constant 0 : index
    %1108 = vector.load %arg2[%c0_1147, %c1_1148, %1107, %c0_1149, %c0_1150] : memref<1x4x9x9x4xbf16, #tpu.memory_space<vmem>>, vector<1x1x1x8x4xbf16>
    %1109 = vector.shape_cast %1108 : vector<1x1x1x8x4xbf16> to vector<8x4xbf16>
    %c1_1151 = arith.constant 1 : index
    %c0_1152 = arith.constant 0 : index
    %c0_1153 = arith.constant 0 : index
    %1110 = vector.load %arg3[%c1_1151, %c0_1152, %c0_1153] : memref<16x4x8xbf16, #tpu.memory_space<vmem>>, vector<1x4x8xbf16>
    %1111 = vector.shape_cast %1110 : vector<1x4x8xbf16> to vector<4x8xbf16>
    %cst_1154 = arith.constant dense<0.000000e+00> : vector<8x8xf32>
    %1112 = tpu.matmul %1109, %1111, %cst_1154 {dimension_numbers = #tpu.dot_dimension_numbers<[1], [0], [0], [1], [0, 0, 1, 1], [], []>} : vector<8x4xbf16>, vector<4x8xbf16>, vector<8x8xf32> -> vector<8x8xf32>
    %1113 = arith.addf %1104, %1112 : vector<8x8xf32>
    %c7_i32_1155 = arith.constant 7 : i32
    %1114 = arith.addi %0, %c7_i32_1155 : i32
    %c0_i32_1156 = arith.constant 0 : i32
    %1115 = arith.addi %1114, %c0_i32_1156 : i32
    %c0_1157 = arith.constant 0 : index
    %c0_1158 = arith.constant 0 : index
    %1116 = arith.index_cast %1115 : i32 to index
    %c1_1159 = arith.constant 1 : index
    %c0_1160 = arith.constant 0 : index
    %1117 = vector.load %arg2[%c0_1157, %c0_1158, %1116, %c1_1159, %c0_1160] : memref<1x4x9x9x4xbf16, #tpu.memory_space<vmem>>, vector<1x1x1x8x4xbf16>
    %1118 = vector.shape_cast %1117 : vector<1x1x1x8x4xbf16> to vector<8x4xbf16>
    %c2_1161 = arith.constant 2 : index
    %c0_1162 = arith.constant 0 : index
    %c0_1163 = arith.constant 0 : index
    %1119 = vector.load %arg3[%c2_1161, %c0_1162, %c0_1163] : memref<16x4x8xbf16, #tpu.memory_space<vmem>>, vector<1x4x8xbf16>
    %1120 = vector.shape_cast %1119 : vector<1x4x8xbf16> to vector<4x8xbf16>
    %cst_1164 = arith.constant dense<0.000000e+00> : vector<8x8xf32>
    %1121 = tpu.matmul %1118, %1120, %cst_1164 {dimension_numbers = #tpu.dot_dimension_numbers<[1], [0], [0], [1], [0, 0, 1, 1], [], []>} : vector<8x4xbf16>, vector<4x8xbf16>, vector<8x8xf32> -> vector<8x8xf32>
    %1122 = arith.addf %1113, %1121 : vector<8x8xf32>
    %c7_i32_1165 = arith.constant 7 : i32
    %1123 = arith.addi %0, %c7_i32_1165 : i32
    %c0_i32_1166 = arith.constant 0 : i32
    %1124 = arith.addi %1123, %c0_i32_1166 : i32
    %c0_1167 = arith.constant 0 : index
    %c1_1168 = arith.constant 1 : index
    %1125 = arith.index_cast %1124 : i32 to index
    %c1_1169 = arith.constant 1 : index
    %c0_1170 = arith.constant 0 : index
    %1126 = vector.load %arg2[%c0_1167, %c1_1168, %1125, %c1_1169, %c0_1170] : memref<1x4x9x9x4xbf16, #tpu.memory_space<vmem>>, vector<1x1x1x8x4xbf16>
    %1127 = vector.shape_cast %1126 : vector<1x1x1x8x4xbf16> to vector<8x4xbf16>
    %c3_1171 = arith.constant 3 : index
    %c0_1172 = arith.constant 0 : index
    %c0_1173 = arith.constant 0 : index
    %1128 = vector.load %arg3[%c3_1171, %c0_1172, %c0_1173] : memref<16x4x8xbf16, #tpu.memory_space<vmem>>, vector<1x4x8xbf16>
    %1129 = vector.shape_cast %1128 : vector<1x4x8xbf16> to vector<4x8xbf16>
    %cst_1174 = arith.constant dense<0.000000e+00> : vector<8x8xf32>
    %1130 = tpu.matmul %1127, %1129, %cst_1174 {dimension_numbers = #tpu.dot_dimension_numbers<[1], [0], [0], [1], [0, 0, 1, 1], [], []>} : vector<8x4xbf16>, vector<4x8xbf16>, vector<8x8xf32> -> vector<8x8xf32>
    %1131 = arith.addf %1122, %1130 : vector<8x8xf32>
    %c7_i32_1175 = arith.constant 7 : i32
    %1132 = arith.addi %0, %c7_i32_1175 : i32
    %c0_i32_1176 = arith.constant 0 : i32
    %1133 = arith.addi %1132, %c0_i32_1176 : i32
    %c0_1177 = arith.constant 0 : index
    %c2_1178 = arith.constant 2 : index
    %1134 = arith.index_cast %1133 : i32 to index
    %c0_1179 = arith.constant 0 : index
    %c0_1180 = arith.constant 0 : index
    %1135 = vector.load %arg2[%c0_1177, %c2_1178, %1134, %c0_1179, %c0_1180] : memref<1x4x9x9x4xbf16, #tpu.memory_space<vmem>>, vector<1x1x1x8x4xbf16>
    %1136 = vector.shape_cast %1135 : vector<1x1x1x8x4xbf16> to vector<8x4xbf16>
    %c4_1181 = arith.constant 4 : index
    %c0_1182 = arith.constant 0 : index
    %c0_1183 = arith.constant 0 : index
    %1137 = vector.load %arg3[%c4_1181, %c0_1182, %c0_1183] : memref<16x4x8xbf16, #tpu.memory_space<vmem>>, vector<1x4x8xbf16>
    %1138 = vector.shape_cast %1137 : vector<1x4x8xbf16> to vector<4x8xbf16>
    %cst_1184 = arith.constant dense<0.000000e+00> : vector<8x8xf32>
    %1139 = tpu.matmul %1136, %1138, %cst_1184 {dimension_numbers = #tpu.dot_dimension_numbers<[1], [0], [0], [1], [0, 0, 1, 1], [], []>} : vector<8x4xbf16>, vector<4x8xbf16>, vector<8x8xf32> -> vector<8x8xf32>
    %1140 = arith.addf %1131, %1139 : vector<8x8xf32>
    %c7_i32_1185 = arith.constant 7 : i32
    %1141 = arith.addi %0, %c7_i32_1185 : i32
    %c0_i32_1186 = arith.constant 0 : i32
    %1142 = arith.addi %1141, %c0_i32_1186 : i32
    %c0_1187 = arith.constant 0 : index
    %c3_1188 = arith.constant 3 : index
    %1143 = arith.index_cast %1142 : i32 to index
    %c0_1189 = arith.constant 0 : index
    %c0_1190 = arith.constant 0 : index
    %1144 = vector.load %arg2[%c0_1187, %c3_1188, %1143, %c0_1189, %c0_1190] : memref<1x4x9x9x4xbf16, #tpu.memory_space<vmem>>, vector<1x1x1x8x4xbf16>
    %1145 = vector.shape_cast %1144 : vector<1x1x1x8x4xbf16> to vector<8x4xbf16>
    %c5_1191 = arith.constant 5 : index
    %c0_1192 = arith.constant 0 : index
    %c0_1193 = arith.constant 0 : index
    %1146 = vector.load %arg3[%c5_1191, %c0_1192, %c0_1193] : memref<16x4x8xbf16, #tpu.memory_space<vmem>>, vector<1x4x8xbf16>
    %1147 = vector.shape_cast %1146 : vector<1x4x8xbf16> to vector<4x8xbf16>
    %cst_1194 = arith.constant dense<0.000000e+00> : vector<8x8xf32>
    %1148 = tpu.matmul %1145, %1147, %cst_1194 {dimension_numbers = #tpu.dot_dimension_numbers<[1], [0], [0], [1], [0, 0, 1, 1], [], []>} : vector<8x4xbf16>, vector<4x8xbf16>, vector<8x8xf32> -> vector<8x8xf32>
    %1149 = arith.addf %1140, %1148 : vector<8x8xf32>
    %c7_i32_1195 = arith.constant 7 : i32
    %1150 = arith.addi %0, %c7_i32_1195 : i32
    %c0_i32_1196 = arith.constant 0 : i32
    %1151 = arith.addi %1150, %c0_i32_1196 : i32
    %c0_1197 = arith.constant 0 : index
    %c2_1198 = arith.constant 2 : index
    %1152 = arith.index_cast %1151 : i32 to index
    %c1_1199 = arith.constant 1 : index
    %c0_1200 = arith.constant 0 : index
    %1153 = vector.load %arg2[%c0_1197, %c2_1198, %1152, %c1_1199, %c0_1200] : memref<1x4x9x9x4xbf16, #tpu.memory_space<vmem>>, vector<1x1x1x8x4xbf16>
    %1154 = vector.shape_cast %1153 : vector<1x1x1x8x4xbf16> to vector<8x4xbf16>
    %c6_1201 = arith.constant 6 : index
    %c0_1202 = arith.constant 0 : index
    %c0_1203 = arith.constant 0 : index
    %1155 = vector.load %arg3[%c6_1201, %c0_1202, %c0_1203] : memref<16x4x8xbf16, #tpu.memory_space<vmem>>, vector<1x4x8xbf16>
    %1156 = vector.shape_cast %1155 : vector<1x4x8xbf16> to vector<4x8xbf16>
    %cst_1204 = arith.constant dense<0.000000e+00> : vector<8x8xf32>
    %1157 = tpu.matmul %1154, %1156, %cst_1204 {dimension_numbers = #tpu.dot_dimension_numbers<[1], [0], [0], [1], [0, 0, 1, 1], [], []>} : vector<8x4xbf16>, vector<4x8xbf16>, vector<8x8xf32> -> vector<8x8xf32>
    %1158 = arith.addf %1149, %1157 : vector<8x8xf32>
    %c7_i32_1205 = arith.constant 7 : i32
    %1159 = arith.addi %0, %c7_i32_1205 : i32
    %c0_i32_1206 = arith.constant 0 : i32
    %1160 = arith.addi %1159, %c0_i32_1206 : i32
    %c0_1207 = arith.constant 0 : index
    %c3_1208 = arith.constant 3 : index
    %1161 = arith.index_cast %1160 : i32 to index
    %c1_1209 = arith.constant 1 : index
    %c0_1210 = arith.constant 0 : index
    %1162 = vector.load %arg2[%c0_1207, %c3_1208, %1161, %c1_1209, %c0_1210] : memref<1x4x9x9x4xbf16, #tpu.memory_space<vmem>>, vector<1x1x1x8x4xbf16>
    %1163 = vector.shape_cast %1162 : vector<1x1x1x8x4xbf16> to vector<8x4xbf16>
    %c7_1211 = arith.constant 7 : index
    %c0_1212 = arith.constant 0 : index
    %c0_1213 = arith.constant 0 : index
    %1164 = vector.load %arg3[%c7_1211, %c0_1212, %c0_1213] : memref<16x4x8xbf16, #tpu.memory_space<vmem>>, vector<1x4x8xbf16>
    %1165 = vector.shape_cast %1164 : vector<1x4x8xbf16> to vector<4x8xbf16>
    %cst_1214 = arith.constant dense<0.000000e+00> : vector<8x8xf32>
    %1166 = tpu.matmul %1163, %1165, %cst_1214 {dimension_numbers = #tpu.dot_dimension_numbers<[1], [0], [0], [1], [0, 0, 1, 1], [], []>} : vector<8x4xbf16>, vector<4x8xbf16>, vector<8x8xf32> -> vector<8x8xf32>
    %1167 = arith.addf %1158, %1166 : vector<8x8xf32>
    %c7_i32_1215 = arith.constant 7 : i32
    %1168 = arith.addi %0, %c7_i32_1215 : i32
    %c1_i32_1216 = arith.constant 1 : i32
    %1169 = arith.addi %1168, %c1_i32_1216 : i32
    %c0_1217 = arith.constant 0 : index
    %c0_1218 = arith.constant 0 : index
    %1170 = arith.index_cast %1169 : i32 to index
    %c0_1219 = arith.constant 0 : index
    %c0_1220 = arith.constant 0 : index
    %1171 = vector.load %arg2[%c0_1217, %c0_1218, %1170, %c0_1219, %c0_1220] : memref<1x4x9x9x4xbf16, #tpu.memory_space<vmem>>, vector<1x1x1x8x4xbf16>
    %1172 = vector.shape_cast %1171 : vector<1x1x1x8x4xbf16> to vector<8x4xbf16>
    %c8_1221 = arith.constant 8 : index
    %c0_1222 = arith.constant 0 : index
    %c0_1223 = arith.constant 0 : index
    %1173 = vector.load %arg3[%c8_1221, %c0_1222, %c0_1223] : memref<16x4x8xbf16, #tpu.memory_space<vmem>>, vector<1x4x8xbf16>
    %1174 = vector.shape_cast %1173 : vector<1x4x8xbf16> to vector<4x8xbf16>
    %cst_1224 = arith.constant dense<0.000000e+00> : vector<8x8xf32>
    %1175 = tpu.matmul %1172, %1174, %cst_1224 {dimension_numbers = #tpu.dot_dimension_numbers<[1], [0], [0], [1], [0, 0, 1, 1], [], []>} : vector<8x4xbf16>, vector<4x8xbf16>, vector<8x8xf32> -> vector<8x8xf32>
    %1176 = arith.addf %1167, %1175 : vector<8x8xf32>
    %c7_i32_1225 = arith.constant 7 : i32
    %1177 = arith.addi %0, %c7_i32_1225 : i32
    %c1_i32_1226 = arith.constant 1 : i32
    %1178 = arith.addi %1177, %c1_i32_1226 : i32
    %c0_1227 = arith.constant 0 : index
    %c1_1228 = arith.constant 1 : index
    %1179 = arith.index_cast %1178 : i32 to index
    %c0_1229 = arith.constant 0 : index
    %c0_1230 = arith.constant 0 : index
    %1180 = vector.load %arg2[%c0_1227, %c1_1228, %1179, %c0_1229, %c0_1230] : memref<1x4x9x9x4xbf16, #tpu.memory_space<vmem>>, vector<1x1x1x8x4xbf16>
    %1181 = vector.shape_cast %1180 : vector<1x1x1x8x4xbf16> to vector<8x4xbf16>
    %c9_1231 = arith.constant 9 : index
    %c0_1232 = arith.constant 0 : index
    %c0_1233 = arith.constant 0 : index
    %1182 = vector.load %arg3[%c9_1231, %c0_1232, %c0_1233] : memref<16x4x8xbf16, #tpu.memory_space<vmem>>, vector<1x4x8xbf16>
    %1183 = vector.shape_cast %1182 : vector<1x4x8xbf16> to vector<4x8xbf16>
    %cst_1234 = arith.constant dense<0.000000e+00> : vector<8x8xf32>
    %1184 = tpu.matmul %1181, %1183, %cst_1234 {dimension_numbers = #tpu.dot_dimension_numbers<[1], [0], [0], [1], [0, 0, 1, 1], [], []>} : vector<8x4xbf16>, vector<4x8xbf16>, vector<8x8xf32> -> vector<8x8xf32>
    %1185 = arith.addf %1176, %1184 : vector<8x8xf32>
    %c7_i32_1235 = arith.constant 7 : i32
    %1186 = arith.addi %0, %c7_i32_1235 : i32
    %c1_i32_1236 = arith.constant 1 : i32
    %1187 = arith.addi %1186, %c1_i32_1236 : i32
    %c0_1237 = arith.constant 0 : index
    %c0_1238 = arith.constant 0 : index
    %1188 = arith.index_cast %1187 : i32 to index
    %c1_1239 = arith.constant 1 : index
    %c0_1240 = arith.constant 0 : index
    %1189 = vector.load %arg2[%c0_1237, %c0_1238, %1188, %c1_1239, %c0_1240] : memref<1x4x9x9x4xbf16, #tpu.memory_space<vmem>>, vector<1x1x1x8x4xbf16>
    %1190 = vector.shape_cast %1189 : vector<1x1x1x8x4xbf16> to vector<8x4xbf16>
    %c10_1241 = arith.constant 10 : index
    %c0_1242 = arith.constant 0 : index
    %c0_1243 = arith.constant 0 : index
    %1191 = vector.load %arg3[%c10_1241, %c0_1242, %c0_1243] : memref<16x4x8xbf16, #tpu.memory_space<vmem>>, vector<1x4x8xbf16>
    %1192 = vector.shape_cast %1191 : vector<1x4x8xbf16> to vector<4x8xbf16>
    %cst_1244 = arith.constant dense<0.000000e+00> : vector<8x8xf32>
    %1193 = tpu.matmul %1190, %1192, %cst_1244 {dimension_numbers = #tpu.dot_dimension_numbers<[1], [0], [0], [1], [0, 0, 1, 1], [], []>} : vector<8x4xbf16>, vector<4x8xbf16>, vector<8x8xf32> -> vector<8x8xf32>
    %1194 = arith.addf %1185, %1193 : vector<8x8xf32>
    %c7_i32_1245 = arith.constant 7 : i32
    %1195 = arith.addi %0, %c7_i32_1245 : i32
    %c1_i32_1246 = arith.constant 1 : i32
    %1196 = arith.addi %1195, %c1_i32_1246 : i32
    %c0_1247 = arith.constant 0 : index
    %c1_1248 = arith.constant 1 : index
    %1197 = arith.index_cast %1196 : i32 to index
    %c1_1249 = arith.constant 1 : index
    %c0_1250 = arith.constant 0 : index
    %1198 = vector.load %arg2[%c0_1247, %c1_1248, %1197, %c1_1249, %c0_1250] : memref<1x4x9x9x4xbf16, #tpu.memory_space<vmem>>, vector<1x1x1x8x4xbf16>
    %1199 = vector.shape_cast %1198 : vector<1x1x1x8x4xbf16> to vector<8x4xbf16>
    %c11_1251 = arith.constant 11 : index
    %c0_1252 = arith.constant 0 : index
    %c0_1253 = arith.constant 0 : index
    %1200 = vector.load %arg3[%c11_1251, %c0_1252, %c0_1253] : memref<16x4x8xbf16, #tpu.memory_space<vmem>>, vector<1x4x8xbf16>
    %1201 = vector.shape_cast %1200 : vector<1x4x8xbf16> to vector<4x8xbf16>
    %cst_1254 = arith.constant dense<0.000000e+00> : vector<8x8xf32>
    %1202 = tpu.matmul %1199, %1201, %cst_1254 {dimension_numbers = #tpu.dot_dimension_numbers<[1], [0], [0], [1], [0, 0, 1, 1], [], []>} : vector<8x4xbf16>, vector<4x8xbf16>, vector<8x8xf32> -> vector<8x8xf32>
    %1203 = arith.addf %1194, %1202 : vector<8x8xf32>
    %c7_i32_1255 = arith.constant 7 : i32
    %1204 = arith.addi %0, %c7_i32_1255 : i32
    %c1_i32_1256 = arith.constant 1 : i32
    %1205 = arith.addi %1204, %c1_i32_1256 : i32
    %c0_1257 = arith.constant 0 : index
    %c2_1258 = arith.constant 2 : index
    %1206 = arith.index_cast %1205 : i32 to index
    %c0_1259 = arith.constant 0 : index
    %c0_1260 = arith.constant 0 : index
    %1207 = vector.load %arg2[%c0_1257, %c2_1258, %1206, %c0_1259, %c0_1260] : memref<1x4x9x9x4xbf16, #tpu.memory_space<vmem>>, vector<1x1x1x8x4xbf16>
    %1208 = vector.shape_cast %1207 : vector<1x1x1x8x4xbf16> to vector<8x4xbf16>
    %c12_1261 = arith.constant 12 : index
    %c0_1262 = arith.constant 0 : index
    %c0_1263 = arith.constant 0 : index
    %1209 = vector.load %arg3[%c12_1261, %c0_1262, %c0_1263] : memref<16x4x8xbf16, #tpu.memory_space<vmem>>, vector<1x4x8xbf16>
    %1210 = vector.shape_cast %1209 : vector<1x4x8xbf16> to vector<4x8xbf16>
    %cst_1264 = arith.constant dense<0.000000e+00> : vector<8x8xf32>
    %1211 = tpu.matmul %1208, %1210, %cst_1264 {dimension_numbers = #tpu.dot_dimension_numbers<[1], [0], [0], [1], [0, 0, 1, 1], [], []>} : vector<8x4xbf16>, vector<4x8xbf16>, vector<8x8xf32> -> vector<8x8xf32>
    %1212 = arith.addf %1203, %1211 : vector<8x8xf32>
    %c7_i32_1265 = arith.constant 7 : i32
    %1213 = arith.addi %0, %c7_i32_1265 : i32
    %c1_i32_1266 = arith.constant 1 : i32
    %1214 = arith.addi %1213, %c1_i32_1266 : i32
    %c0_1267 = arith.constant 0 : index
    %c3_1268 = arith.constant 3 : index
    %1215 = arith.index_cast %1214 : i32 to index
    %c0_1269 = arith.constant 0 : index
    %c0_1270 = arith.constant 0 : index
    %1216 = vector.load %arg2[%c0_1267, %c3_1268, %1215, %c0_1269, %c0_1270] : memref<1x4x9x9x4xbf16, #tpu.memory_space<vmem>>, vector<1x1x1x8x4xbf16>
    %1217 = vector.shape_cast %1216 : vector<1x1x1x8x4xbf16> to vector<8x4xbf16>
    %c13_1271 = arith.constant 13 : index
    %c0_1272 = arith.constant 0 : index
    %c0_1273 = arith.constant 0 : index
    %1218 = vector.load %arg3[%c13_1271, %c0_1272, %c0_1273] : memref<16x4x8xbf16, #tpu.memory_space<vmem>>, vector<1x4x8xbf16>
    %1219 = vector.shape_cast %1218 : vector<1x4x8xbf16> to vector<4x8xbf16>
    %cst_1274 = arith.constant dense<0.000000e+00> : vector<8x8xf32>
    %1220 = tpu.matmul %1217, %1219, %cst_1274 {dimension_numbers = #tpu.dot_dimension_numbers<[1], [0], [0], [1], [0, 0, 1, 1], [], []>} : vector<8x4xbf16>, vector<4x8xbf16>, vector<8x8xf32> -> vector<8x8xf32>
    %1221 = arith.addf %1212, %1220 : vector<8x8xf32>
    %c7_i32_1275 = arith.constant 7 : i32
    %1222 = arith.addi %0, %c7_i32_1275 : i32
    %c1_i32_1276 = arith.constant 1 : i32
    %1223 = arith.addi %1222, %c1_i32_1276 : i32
    %c0_1277 = arith.constant 0 : index
    %c2_1278 = arith.constant 2 : index
    %1224 = arith.index_cast %1223 : i32 to index
    %c1_1279 = arith.constant 1 : index
    %c0_1280 = arith.constant 0 : index
    %1225 = vector.load %arg2[%c0_1277, %c2_1278, %1224, %c1_1279, %c0_1280] : memref<1x4x9x9x4xbf16, #tpu.memory_space<vmem>>, vector<1x1x1x8x4xbf16>
    %1226 = vector.shape_cast %1225 : vector<1x1x1x8x4xbf16> to vector<8x4xbf16>
    %c14_1281 = arith.constant 14 : index
    %c0_1282 = arith.constant 0 : index
    %c0_1283 = arith.constant 0 : index
    %1227 = vector.load %arg3[%c14_1281, %c0_1282, %c0_1283] : memref<16x4x8xbf16, #tpu.memory_space<vmem>>, vector<1x4x8xbf16>
    %1228 = vector.shape_cast %1227 : vector<1x4x8xbf16> to vector<4x8xbf16>
    %cst_1284 = arith.constant dense<0.000000e+00> : vector<8x8xf32>
    %1229 = tpu.matmul %1226, %1228, %cst_1284 {dimension_numbers = #tpu.dot_dimension_numbers<[1], [0], [0], [1], [0, 0, 1, 1], [], []>} : vector<8x4xbf16>, vector<4x8xbf16>, vector<8x8xf32> -> vector<8x8xf32>
    %1230 = arith.addf %1221, %1229 : vector<8x8xf32>
    %c7_i32_1285 = arith.constant 7 : i32
    %1231 = arith.addi %0, %c7_i32_1285 : i32
    %c1_i32_1286 = arith.constant 1 : i32
    %1232 = arith.addi %1231, %c1_i32_1286 : i32
    %c0_1287 = arith.constant 0 : index
    %c3_1288 = arith.constant 3 : index
    %1233 = arith.index_cast %1232 : i32 to index
    %c1_1289 = arith.constant 1 : index
    %c0_1290 = arith.constant 0 : index
    %1234 = vector.load %arg2[%c0_1287, %c3_1288, %1233, %c1_1289, %c0_1290] : memref<1x4x9x9x4xbf16, #tpu.memory_space<vmem>>, vector<1x1x1x8x4xbf16>
    %1235 = vector.shape_cast %1234 : vector<1x1x1x8x4xbf16> to vector<8x4xbf16>
    %c15_1291 = arith.constant 15 : index
    %c0_1292 = arith.constant 0 : index
    %c0_1293 = arith.constant 0 : index
    %1236 = vector.load %arg3[%c15_1291, %c0_1292, %c0_1293] : memref<16x4x8xbf16, #tpu.memory_space<vmem>>, vector<1x4x8xbf16>
    %1237 = vector.shape_cast %1236 : vector<1x4x8xbf16> to vector<4x8xbf16>
    %cst_1294 = arith.constant dense<0.000000e+00> : vector<8x8xf32>
    %1238 = tpu.matmul %1235, %1237, %cst_1294 {dimension_numbers = #tpu.dot_dimension_numbers<[1], [0], [0], [1], [0, 0, 1, 1], [], []>} : vector<8x4xbf16>, vector<4x8xbf16>, vector<8x8xf32> -> vector<8x8xf32>
    %1239 = arith.addf %1230, %1238 : vector<8x8xf32>
    %1240 = arith.truncf %1239 : vector<8x8xf32> to vector<8x8xbf16>
    %c0_1295 = arith.constant 0 : index
    %c56 = arith.constant 56 : index
    %c0_1296 = arith.constant 0 : index
    %1241 = vector.load %arg4[%c0_1295, %c56, %c0_1296] : memref<1x64x8xbf16, #tpu.memory_space<vmem>>, vector<1x8x8xbf16>
    %1242 = vector.shape_cast %1241 : vector<1x8x8xbf16> to vector<8x8xbf16>
    %1243 = vector.shape_cast %1240 : vector<8x8xbf16> to vector<1x8x8xbf16>
    tpu.vector_store %arg4[%c0_1295, %c56, %c0_1296], %1243 {strides = array<i32>} : memref<1x64x8xbf16, #tpu.memory_space<vmem>>, vector<1x8x8xbf16>,
    %cst_1297 = arith.constant dense<0.000000e+00> : vector<8xf32>
    %1244 = vector.multi_reduction <add>, %1239, %cst_1297 [0] : vector<8x8xf32> to vector<8xf32>
    %1245 = vector.shape_cast %1244 : vector<8xf32> to vector<1x8xf32>
    %1246 = arith.addf %1090, %1245 : vector<1x8xf32>
    %1247 = arith.mulf %1239, %1239 : vector<8x8xf32>
    %cst_1298 = arith.constant dense<0.000000e+00> : vector<8xf32>
    %1248 = vector.multi_reduction <add>, %1247, %cst_1298 [0] : vector<8x8xf32> to vector<8xf32>
    %1249 = vector.shape_cast %1248 : vector<8xf32> to vector<1x8xf32>
    %1250 = arith.addf %1094, %1249 : vector<1x8xf32>
    %c0_i32_1299 = arith.constant 0 : i32
    %1251 = arith.cmpi eq, %arg1, %c0_i32_1299 : i32
    %1252 = arith.extui %1251 : i1 to i32
    %c0_i32_1300 = arith.constant 0 : i32
    %1253 = arith.cmpi ne, %1252, %c0_i32_1300 : i32
    scf.if %1253 {
      %cst_1313 = arith.constant 0.000000e+00 : f32
      %1262 = vector.broadcast %cst_1313 : f32 to vector<1x1x8xf32>
      %c0_1314 = arith.constant 0 : index
      %c0_1315 = arith.constant 0 : index
      %c0_1316 = arith.constant 0 : index
      %1263 = vector.load %arg5[%c0_1314, %c0_1315, %c0_1316] : memref<1x1x8xf32, #tpu.memory_space<vmem>>, vector<1x1x8xf32>
      tpu.vector_store %arg5[%c0_1314, %c0_1315, %c0_1316], %1262 {strides = array<i32>} : memref<1x1x8xf32, #tpu.memory_space<vmem>>, vector<1x1x8xf32>,
      %cst_1317 = arith.constant 0.000000e+00 : f32
      %1264 = vector.broadcast %cst_1317 : f32 to vector<1x1x8xf32>
      %c0_1318 = arith.constant 0 : index
      %c0_1319 = arith.constant 0 : index
      %c0_1320 = arith.constant 0 : index
      %1265 = vector.load %arg6[%c0_1318, %c0_1319, %c0_1320] : memref<1x1x8xf32, #tpu.memory_space<vmem>>, vector<1x1x8xf32>
      tpu.vector_store %arg6[%c0_1318, %c0_1319, %c0_1320], %1264 {strides = array<i32>} : memref<1x1x8xf32, #tpu.memory_space<vmem>>, vector<1x1x8xf32>,
    } else {
    }
    %c0_1301 = arith.constant 0 : index
    %c0_1302 = arith.constant 0 : index
    %c0_1303 = arith.constant 0 : index
    %1254 = vector.load %arg5[%c0_1301, %c0_1302, %c0_1303] : memref<1x1x8xf32, #tpu.memory_space<vmem>>, vector<1x1x8xf32>
    %1255 = vector.shape_cast %1246 : vector<1x8xf32> to vector<1x1x8xf32>
    %1256 = arith.addf %1254, %1255 : vector<1x1x8xf32>
    %c0_1304 = arith.constant 0 : index
    %c0_1305 = arith.constant 0 : index
    %c0_1306 = arith.constant 0 : index
    %1257 = vector.load %arg5[%c0_1304, %c0_1305, %c0_1306] : memref<1x1x8xf32, #tpu.memory_space<vmem>>, vector<1x1x8xf32>
    tpu.vector_store %arg5[%c0_1304, %c0_1305, %c0_1306], %1256 {strides = array<i32>} : memref<1x1x8xf32, #tpu.memory_space<vmem>>, vector<1x1x8xf32>,
    %c0_1307 = arith.constant 0 : index
    %c0_1308 = arith.constant 0 : index
    %c0_1309 = arith.constant 0 : index
    %1258 = vector.load %arg6[%c0_1307, %c0_1308, %c0_1309] : memref<1x1x8xf32, #tpu.memory_space<vmem>>, vector<1x1x8xf32>
    %1259 = vector.shape_cast %1250 : vector<1x8xf32> to vector<1x1x8xf32>
    %1260 = arith.addf %1258, %1259 : vector<1x1x8xf32>
    %c0_1310 = arith.constant 0 : index
    %c0_1311 = arith.constant 0 : index
    %c0_1312 = arith.constant 0 : index
    %1261 = vector.load %arg6[%c0_1310, %c0_1311, %c0_1312] : memref<1x1x8xf32, #tpu.memory_space<vmem>>, vector<1x1x8xf32>
    tpu.vector_store %arg6[%c0_1310, %c0_1311, %c0_1312], %1260 {strides = array<i32>} : memref<1x1x8xf32, #tpu.memory_space<vmem>>, vector<1x1x8xf32>,
    return
  }
  func.func @transform_0(%arg0: i32, %arg1: i32) -> (i32, i32, i32, i32, i32) {
    %c0_i32 = arith.constant 0 : i32
    %c0_i32_0 = arith.constant 0 : i32
    %c0_i32_1 = arith.constant 0 : i32
    %c0_i32_2 = arith.constant 0 : i32
    %c0_i32_3 = arith.constant 0 : i32
    return %arg0, %c0_i32, %c0_i32_0, %c0_i32_1, %c0_i32_2 : i32, i32, i32, i32, i32
  }
  func.func @transform_1(%arg0: i32, %arg1: i32) -> (i32, i32, i32) {
    %c0_i32 = arith.constant 0 : i32
    %c0_i32_0 = arith.constant 0 : i32
    %c0_i32_1 = arith.constant 0 : i32
    %c0_i32_2 = arith.constant 0 : i32
    return %c0_i32, %c0_i32_0, %c0_i32_1 : i32, i32, i32
  }
  func.func @transform_2(%arg0: i32, %arg1: i32) -> (i32, i32, i32) {
    %c0_i32 = arith.constant 0 : i32
    %c0_i32_0 = arith.constant 0 : i32
    return %arg0, %arg1, %c0_i32 : i32, i32, i32
  }
  func.func @transform_3(%arg0: i32, %arg1: i32) -> (i32, i32, i32) {
    %c0_i32 = arith.constant 0 : i32
    %c0_i32_0 = arith.constant 0 : i32
    %c0_i32_1 = arith.constant 0 : i32
    return %arg0, %c0_i32, %c0_i32_0 : i32, i32, i32
  }
  func.func @transform_4(%arg0: i32, %arg1: i32) -> (i32, i32, i32) {
    %c0_i32 = arith.constant 0 : i32
    %c0_i32_0 = arith.constant 0 : i32
    %c0_i32_1 = arith.constant 0 : i32
    return %arg0, %c0_i32, %c0_i32_0 : i32, i32, i32
  }
}

</mosaic_0001>

<llo_original>
// kernel: unet_block_forward.3
$region0: #{unet_block_forward.3}
  #allocation0 [shape = 'u32[]', space=smem, size = 0x4, offset = 0x4, fixed_abs, tag = 'smem constant byte address 0x4 - core index']
  #allocation1 [shape = 'u32[72,128]{1,0:T(1,128)}', space=vmem, size = 0x9000, scoped, tag = 'internal scratch']
  %s0 = inlined_call_operand.vmem [shape: bf16[2,64,8], index: 0, kind: input, shape index: {}]
  %s1 = inlined_call_operand.vmem [shape: f32[1,8], index: 1, kind: input, shape index: {}]
  %s2 = inlined_call_operand.vmem [shape: f32[1,8], index: 2, kind: input, shape index: {}]
  %s3 = inlined_call_operand.vmem [shape: f32[2,8,64], index: 3, kind: output, shape index: {}]
  %s4 = sld [smem:[#allocation0]]
  $region45: #{unet_block_forward.3} parent=0
    _
  %s6 = ssub.s32 1, %s4
  %s7 = scalar_select 0, %s6, %s4
  loop: start=0, step=1, limit=4
  $region2: #{unet_block_forward.3} parent=0 // loop_pre_header
    _
  $region3: #{unet_block_forward.3} parent=0 // loop_header
    %s9 = sphi 0, %s13
    %p10 = scmp.ge.s32.totalorder %s9, 4
    %s16 = sphi 0, %s28
    %s17 = sphi 0, %s24
    %s18 = sphi 0, %s16
    %s19 = sphi 0, %s17
    %s20 = sphi 0, %s18
    %s21 = sphi 0, %s19
    %s33 = sphi 0, %s35
    %s36 = sphi 0, %s33
    %s37 = sphi 0, %s36
    %s53 = sphi 0, %s37
    %s57 = sphi 0, %s57
    %s59 = sphi 0, %s57
    %s60 = sphi 0, %s59
    %s74 = sphi 0, %s60
    %s78 = sphi 0, %s78
    %s80 = sphi 0, %s78
    %s81 = sphi 0, %s80
    %s95 = sphi 0, %s81
    %s103 = sphi 0, %s105
    %s106 = sphi 0, %s103
    %s107 = sphi 0, %s106
    %s123 = sphi 0, %s107
  $region4: #{unet_block_forward.3} parent=0 // loop_header_branch
    %12 = sbr.rel (%p10) target = $region8
  $region5: #{unet_block_forward.3} parent=0 // loop_body
    %s14 = ssub.s32 %s9, 1
    %s15 = ssub.s32 %s9, 2
    %s22 = sadd.s32 1, %s17
    %p23 = scmp.ge.s32.totalorder %s22, 1
    %s24 = scalar_select %p23, 0, %s22
    %s25 = sadd.s32 1, %s16
    %s26 = scalar_select %p23, %s25, %s16
    %p27 = scmp.ge.s32.totalorder %s26, 2
    %s28 = scalar_select %p27, 0, %s26
    %s29 = ssub.s32 %s16, %s28
    %s30 = ssub.s32 %s17, %s24
    %s31 = sor.u32 %s29, %s30
    %p32 = scmp.eq.s32.totalorder %s31, 0
    %s34 = sadd.s32 %s33, 1
    %s35 = scalar_select %p32, %s33, %s34
    %p38 = pneg %p32
    %p39 = scmp.eq.s32.totalorder %s9, 1
    %p40 = por %p38, %p39
    %p41 = scmp.ne.s32.totalorder %s33, %s36
    %p42 = scmp.eq.s32.totalorder %s9, 0
    %p43 = por %p41, %p42
    %p44 = scmp.ne.s32.totalorder %s33, %s36
    %p45 = scmp.eq.s32.totalorder %s14, 1
    %p46 = por %p44, %p45
    %p47 = scmp.ne.s32.totalorder %s36, %s37
    %p48 = scmp.eq.s32.totalorder %s14, 0
    %p49 = por %p47, %p48
    %p50 = scmp.ne.s32.totalorder %s36, %s37
    %p51 = scmp.eq.s32.totalorder %s15, 1
    %p52 = por %p50, %p51
    %p54 = scmp.ne.s32.totalorder %s37, %s53
    %p55 = scmp.eq.s32.totalorder %s15, 0
    %p56 = por %p54, %p55
    %s58 = sadd.s32 %s57, 1
    %p61 = scmp.eq.s32.totalorder %s9, 1
    %p62 = scmp.ne.s32.totalorder %s57, %s59
    %p63 = scmp.eq.s32.totalorder %s9, 0
    %p64 = por %p62, %p63
    %p65 = scmp.ne.s32.totalorder %s57, %s59
    %p66 = scmp.eq.s32.totalorder %s14, 1
    %p67 = por %p65, %p66
    %p68 = scmp.ne.s32.totalorder %s59, %s60
    %p69 = scmp.eq.s32.totalorder %s14, 0
    %p70 = por %p68, %p69
    %p71 = scmp.ne.s32.totalorder %s59, %s60
    %p72 = scmp.eq.s32.totalorder %s15, 1
    %p73 = por %p71, %p72
    %p75 = scmp.ne.s32.totalorder %s60, %s74
    %p76 = scmp.eq.s32.totalorder %s15, 0
    %p77 = por %p75, %p76
    %s79 = sadd.s32 %s78, 1
    %p82 = scmp.eq.s32.totalorder %s9, 1
    %p83 = scmp.ne.s32.totalorder %s78, %s80
    %p84 = scmp.eq.s32.totalorder %s9, 0
    %p85 = por %p83, %p84
    %p86 = scmp.ne.s32.totalorder %s78, %s80
    %p87 = scmp.eq.s32.totalorder %s14, 1
    %p88 = por %p86, %p87
    %p89 = scmp.ne.s32.totalorder %s80, %s81
    %p90 = scmp.eq.s32.totalorder %s14, 0
    %p91 = por %p89, %p90
    %p92 = scmp.ne.s32.totalorder %s80, %s81
    %p93 = scmp.eq.s32.totalorder %s15, 1
    %p94 = por %p92, %p93
    %p96 = scmp.ne.s32.totalorder %s81, %s95
    %p97 = scmp.eq.s32.totalorder %s15, 0
    %p98 = por %p96, %p97
    %s99 = ssub.s32 %s16, %s28
    %s100 = ssub.s32 %s17, %s24
    %s101 = sor.u32 %s99, %s100
    %p102 = scmp.eq.s32.totalorder %s101, 0
    %s104 = sadd.s32 %s103, 1
    %s105 = scalar_select %p102, %s103, %s104
    %p108 = pneg %p102
    %p109 = scmp.eq.s32.totalorder %s9, 1
    %p110 = por %p108, %p109
    %p111 = scmp.ne.s32.totalorder %s103, %s106
    %p112 = scmp.eq.s32.totalorder %s9, 0
    %p113 = por %p111, %p112
    %p114 = scmp.ne.s32.totalorder %s103, %s106
    %p115 = scmp.eq.s32.totalorder %s14, 1
    %p116 = por %p114, %p115
    %p117 = scmp.ne.s32.totalorder %s106, %s107
    %p118 = scmp.eq.s32.totalorder %s14, 0
    %p119 = por %p117, %p118
    %p120 = scmp.ne.s32.totalorder %s106, %s107
    %p121 = scmp.eq.s32.totalorder %s15, 1
    %p122 = por %p120, %p121
    %p124 = scmp.ne.s32.totalorder %s107, %s123
    %p125 = scmp.eq.s32.totalorder %s15, 0
    %p126 = por %p124, %p125
    %p127 = scmp.le.s32.totalorder 1, %s9
    %p128 = scmp.lt.s32.totalorder %s9, 3
    %p129 = pnand %p127, %p128
    %p130 = pneg %p129
    // Predicated region
    $region9: #{unet_block_forward.3} parent=5 // pred_check
      _
    $region10: #{unet_block_forward.3} parent=5 // pred_check_branch
      %132 = sbr.rel (%p129) target = $region12
    $region11: #{unet_block_forward.3} parent=5 // pred_region
      %s133 = ssub.s32 %s9, 1
      // Predicated region
      $region13: #{unet_block_forward.3} parent=11 // pred_check
        %p134 = pneg %p70
      $region14: #{unet_block_forward.3} parent=11 // pred_check_branch
        %136 = sbr.rel (%p134) target = $region16
      $region15: #{unet_block_forward.3} parent=11 // pred_region
        _
      $region16: #{unet_block_forward.3} parent=11 // pred_fallthru
        _
      // Predicated region
      $region17: #{unet_block_forward.3} parent=11 // pred_check
        %p137 = pneg %p91
      $region18: #{unet_block_forward.3} parent=11 // pred_check_branch
        %139 = sbr.rel (%p137) target = $region20
      $region19: #{unet_block_forward.3} parent=11 // pred_region
        _
      $region20: #{unet_block_forward.3} parent=11 // pred_fallthru
        _
    $region12: #{unet_block_forward.3} parent=5 // pred_fallthru
      _
    %p140 = scmp.lt.s32.totalorder %s9, 2
    // Predicated region
    $region21: #{unet_block_forward.3} parent=5 // pred_check
      %p141 = pneg %p140
    $region22: #{unet_block_forward.3} parent=5 // pred_check_branch
      %143 = sbr.rel (%p141) target = $region24
    $region23: #{unet_block_forward.3} parent=5 // pred_region
      // Predicated region
      $region25: #{unet_block_forward.3} parent=23 // pred_check
        %p144 = pneg %p43
      $region26: #{unet_block_forward.3} parent=23 // pred_check_branch
        %146 = sbr.rel (%p144) target = $region28
      $region27: #{unet_block_forward.3} parent=23 // pred_region
        %s147 = smul.u32 8, %s17
        %p148 = scmp.lt.s32.totalorder %s16, 1
        %s149 = scalar_select %p148, %s16, 1
        %p150 = scmp.lt.s32.totalorder %s147, 7
        %s151 = scalar_select %p150, %s147, 7
        %s152 = smul.addr %s149, 8
        %s153 = sadd.s32 %s151, %s152
        %s154 = smul.addr %s153, 4
        %s155 = scalar_lea.vmem %s0, %s154
        %s156 = smul.u32 8, %s17
      $region28: #{unet_block_forward.3} parent=23 // pred_fallthru
        _
    $region24: #{unet_block_forward.3} parent=5 // pred_fallthru
      _
    %p157 = scmp.le.s32.totalorder 1, %s9
    %p158 = scmp.lt.s32.totalorder %s9, 3
    %p159 = pnand %p157, %p158
    %p160 = pneg %p159
    // Predicated region
    $region29: #{unet_block_forward.3} parent=5 // pred_check
      _
    $region30: #{unet_block_forward.3} parent=5 // pred_check_branch
      %162 = sbr.rel (%p159) target = $region32
    $region31: #{unet_block_forward.3} parent=5 // pred_region
      %s163 = ssub.s32 %s9, 1
      %s164 = smul.u32 8, %s19
      %p165 = scmp.lt.s32.totalorder %s18, 1
      %s166 = scalar_select %p165, %s18, 1
      %p167 = scmp.lt.s32.totalorder %s164, 7
      %s168 = scalar_select %p167, %s164, 7
      %s169 = smul.addr %s166, 8
      %s170 = sadd.s32 %s168, %s169
      %s171 = smul.addr %s170, 4
      %s172 = scalar_lea.vmem %s0, %s171
      %p173 = pneg %p49
      %p174 = pneg %p46
      %p175 = pneg %p70
      %p176 = pneg %p67
      %p177 = pneg %p91
      %p178 = pneg %p88
      %p179 = pneg %p119
      %p180 = pneg %p116
      %p181 = scmp.lt.s32.totalorder %s18, 1
      %s182 = scalar_select %p181, %s18, 1
      %p183 = scmp.lt.s32.totalorder %s19, 0
      %s184 = scalar_select %p183, %s19, 0
      %s185 = sadd.s32 %s184, %s182
      %s186 = smul.addr %s185, 8
      %s187 = scalar_lea.vmem %s3, %s186
      %s188 = smul.u32 8, %s19
      %p189 = scmp.lt.s32.totalorder %s18, 1
      %s190 = scalar_select %p189, %s18, 1
      %p191 = scmp.lt.s32.totalorder %s188, 7
      %s192 = scalar_select %p191, %s188, 7
      %s193 = smul.addr %s190, 8
      %s194 = sadd.s32 %s192, %s193
      %s195 = smul.addr %s194, 4
      %s196 = scalar_lea.vmem %s0, %s195
      %s197 = smul.u32 8, %s19
      %p198 = scmp.lt.s32.totalorder %s18, 1
      %s199 = scalar_select %p198, %s18, 1
      %p200 = scmp.lt.s32.totalorder %s19, 0
      %s201 = scalar_select %p200, %s19, 0
      %s202 = sadd.s32 %s201, %s199
      %s203 = smul.addr %s202, 8
      %s204 = scalar_lea.vmem %s3, %s203
      %v205 = vld [vmem:[%s196] sm:$0xf]
      %v206 = vld [vmem:[%s196 + $0x4] sm:$0xf]
      %v207 = vld [vmem:[%s196 + $0x8] sm:$0xf]
      %v208 = vld [vmem:[%s196 + $0xc] sm:$0xf]
      %v209 = vld [vmem:[%s196 + $0x10] sm:$0xf]
      %v210 = vld [vmem:[%s196 + $0x14] sm:$0xf]
      %v211 = vld [vmem:[%s196 + $0x18] sm:$0xf]
      %v212 = vld [vmem:[%s196 + $0x1c] sm:$0xf]
      %v213 = vunpack.c.l.bf16 %v205
      %v214 = vunpack.c.l.bf16 %v206
      %v215 = vunpack.c.l.bf16 %v207
      %v216 = vunpack.c.l.bf16 %v208
      %v217 = vunpack.c.l.bf16 %v209
      %v218 = vunpack.c.l.bf16 %v210
      %v219 = vunpack.c.l.bf16 %v211
      %v220 = vunpack.c.l.bf16 %v212
      %v221 = vld [vmem:[%s1] sm:$0x1]
      %v223 = vperm.slane %v221, 0
      %v225 = vmul.f32 %v213, %v223
      %v226 = vmul.f32 %v214, %v223
      %v227 = vmul.f32 %v215, %v223
      %v228 = vmul.f32 %v216, %v223
      %v229 = vmul.f32 %v217, %v223
      %v230 = vmul.f32 %v218, %v223
      %v231 = vmul.f32 %v219, %v223
      %v232 = vmul.f32 %v220, %v223
      %v233 = vld [vmem:[%s2] sm:$0x1]
      %v235 = vperm.slane %v233, 0
      %v237 = vadd.f32 %v225, %v235
      %v238 = vadd.f32 %v226, %v235
      %v239 = vadd.f32 %v227, %v235
      %v240 = vadd.f32 %v228, %v235
      %v241 = vadd.f32 %v229, %v235
      %v242 = vadd.f32 %v230, %v235
      %v243 = vadd.f32 %v231, %v235
      %v244 = vadd.f32 %v232, %v235
      %v245 = vmax.f32 %v237, 0.0
      %v246 = vmax.f32 %v238, 0.0
      %v247 = vmax.f32 %v239, 0.0
      %v248 = vmax.f32 %v240, 0.0
      %v249 = vmax.f32 %v241, 0.0
      %v250 = vmax.f32 %v242, 0.0
      %v251 = vmax.f32 %v243, 0.0
      %v252 = vmax.f32 %v244, 0.0
      %253 = vxpose.xlu0.b32.start [1/16] %v245, 128
      %254 = vxpose.xlu0.b32.cont [2/16] %v246, 128
      %255 = vxpose.xlu0.b32.cont [3/16] %v247, 128
      %256 = vxpose.xlu0.b32.cont [4/16] %v248, 128
      %257 = vxpose.xlu0.b32.cont [5/16] %v249, 128
      %258 = vxpose.xlu0.b32.cont [6/16] %v250, 128
      %259 = vxpose.xlu0.b32.cont [7/16] %v251, 128
      %260 = vxpose.xlu0.b32.cont [8/16] %v252, 128
      %261 = vxpose.xlu0.b32.cont [9/16] 0.0, 128
      %262 = vxpose.xlu0.b32.cont [10/16] 0.0, 128
      %263 = vxpose.xlu0.b32.cont [11/16] 0.0, 128
      %264 = vxpose.xlu0.b32.cont [12/16] 0.0, 128
      %265 = vxpose.xlu0.b32.cont [13/16] 0.0, 128
      %266 = vxpose.xlu0.b32.cont [14/16] 0.0, 128
      %267 = vxpose.xlu0.b32.cont [15/16] 0.0, 128
      %268 = vxpose.xlu0.b32.end [16/16] 0.0, 128
      %v269 = vpop.trf.xlu0
      %v270 = vpop.trf.xlu0
      %v271 = vpop.trf.xlu0
      %v272 = vpop.trf.xlu0
      %v273 = vpop.trf.xlu0
      %v274 = vpop.trf.xlu0
      %v275 = vpop.trf.xlu0
      %v276 = vpop.trf.xlu0
      %v277 = vpop.trf.xlu0
      %v278 = vpop.trf.xlu0
      %v279 = vpop.trf.xlu0
      %v280 = vpop.trf.xlu0
      %v281 = vpop.trf.xlu0
      %v282 = vpop.trf.xlu0
      %v283 = vpop.trf.xlu0
      %v284 = vpop.trf.xlu0
      %vm285 = vcmask 523264
      %286 = vst.msk [vmem:[%s204] sm:$0xff] %vm285, %v269
      %p287 = scmp.lt.s32.totalorder %s18, 1
      %s288 = scalar_select %p287, %s18, 1
      %p289 = scmp.lt.s32.totalorder %s19, 0
      %s290 = scalar_select %p289, %s19, 0
      %s291 = sadd.s32 %s290, %s288
      %s292 = smul.addr %s291, 8
      %s293 = scalar_lea.vmem %s3, %s292
      // Predicated region
      $region33: #{unet_block_forward.3} parent=31 // pred_check
        %p294 = pneg %p116
      $region34: #{unet_block_forward.3} parent=31 // pred_check_branch
        %296 = sbr.rel (%p294) target = $region36
      $region35: #{unet_block_forward.3} parent=31 // pred_region
        _
      $region36: #{unet_block_forward.3} parent=31 // pred_fallthru
        _
    $region32: #{unet_block_forward.3} parent=5 // pred_fallthru
      _
    %p297 = scmp.le.s32.totalorder 2, %s9
    // Predicated region
    $region37: #{unet_block_forward.3} parent=5 // pred_check
      %p298 = pneg %p297
    $region38: #{unet_block_forward.3} parent=5 // pred_check_branch
      %300 = sbr.rel (%p298) target = $region40
    $region39: #{unet_block_forward.3} parent=5 // pred_region
      %s301 = ssub.s32 %s9, 2
      // Predicated region
      $region41: #{unet_block_forward.3} parent=39 // pred_check
        %p302 = pneg %p122
      $region42: #{unet_block_forward.3} parent=39 // pred_check_branch
        %304 = sbr.rel (%p302) target = $region44
      $region43: #{unet_block_forward.3} parent=39 // pred_region
        %p305 = scmp.lt.s32.totalorder %s20, 1
        %s306 = scalar_select %p305, %s20, 1
        %p307 = scmp.lt.s32.totalorder %s21, 0
        %s308 = scalar_select %p307, %s21, 0
        %s309 = sadd.s32 %s308, %s306
        %s310 = smul.addr %s309, 8
        %s311 = scalar_lea.vmem %s3, %s310
      $region44: #{unet_block_forward.3} parent=39 // pred_fallthru
        _
    $region40: #{unet_block_forward.3} parent=5 // pred_fallthru
      _
  $region6: #{unet_block_forward.3} parent=0 // loop_footer
    %s13 = sadd.s32 1, %s9
  $region7: #{unet_block_forward.3} parent=0 // loop_footer_branch
    %8 = sbr.rel target = $region3
  $region8: #{unet_block_forward.3} parent=0 // loop_exit
    _

// kernel: unet_block_forward.2
$region0: #{unet_block_forward.2}
  #allocation0 [shape = 'u32[]', space=smem, size = 0x4, offset = 0x4, fixed_abs, tag = 'smem constant byte address 0x4 - core index']
  #allocation1 [shape = 'u32[72,128]{1,0:T(1,128)}', space=vmem, size = 0x9000, scoped, tag = 'internal scratch']
  %s0 = inlined_call_operand.vmem [shape: bf16[2,4,9,9,4], index: 0, kind: input, shape index: {}]
  %s1 = inlined_call_operand.vmem [shape: bf16[16,4,8], index: 1, kind: input, shape index: {}]
  %s2 = inlined_call_operand.vmem [shape: bf16[2,64,8], index: 2, kind: output, shape index: {0}]
  %s3 = inlined_call_operand.vmem [shape: f32[2,1,8], index: 3, kind: output, shape index: {1}]
  %s4 = inlined_call_operand.vmem [shape: f32[2,1,8], index: 4, kind: output, shape index: {2}]
  %5 = xla_tuple %s2, %s3, %s4
  %s6 = sld [smem:[#allocation0]]
  $region61: #{unet_block_forward.2} parent=0
    _
  %s8 = ssub.s32 1, %s6
  %s9 = scalar_select 0, %s8, %s6
  loop: start=0, step=1, limit=4
  $region2: #{unet_block_forward.2} parent=0 // loop_pre_header
    _
  $region3: #{unet_block_forward.2} parent=0 // loop_header
    %s11 = sphi 0, %s15
    %p12 = scmp.ge.s32.totalorder %s11, 4
    %s18 = sphi 0, %s30
    %s19 = sphi 0, %s26
    %s20 = sphi 0, %s18
    %s21 = sphi 0, %s19
    %s22 = sphi 0, %s20
    %s23 = sphi 0, %s21
    %s33 = sphi 0, %s35
    %s36 = sphi 0, %s33
    %s37 = sphi 0, %s36
    %s53 = sphi 0, %s37
    %s57 = sphi 0, %s57
    %s59 = sphi 0, %s57
    %s60 = sphi 0, %s59
    %s74 = sphi 0, %s60
    %s82 = sphi 0, %s84
    %s85 = sphi 0, %s82
    %s86 = sphi 0, %s85
    %s102 = sphi 0, %s86
    %s108 = sphi 0, %s110
    %s111 = sphi 0, %s108
    %s112 = sphi 0, %s111
    %s128 = sphi 0, %s112
    %s134 = sphi 0, %s136
    %s137 = sphi 0, %s134
    %s138 = sphi 0, %s137
    %s154 = sphi 0, %s138
  $region4: #{unet_block_forward.2} parent=0 // loop_header_branch
    %14 = sbr.rel (%p12) target = $region8
  $region5: #{unet_block_forward.2} parent=0 // loop_body
    %s16 = ssub.s32 %s11, 1
    %s17 = ssub.s32 %s11, 2
    %s24 = sadd.s32 1, %s19
    %p25 = scmp.ge.s32.totalorder %s24, 1
    %s26 = scalar_select %p25, 0, %s24
    %s27 = sadd.s32 1, %s18
    %s28 = scalar_select %p25, %s27, %s18
    %p29 = scmp.ge.s32.totalorder %s28, 2
    %s30 = scalar_select %p29, 0, %s28
    %s31 = ssub.s32 %s18, %s30
    %p32 = scmp.eq.s32.totalorder %s31, 0
    %s34 = sadd.s32 %s33, 1
    %s35 = scalar_select %p32, %s33, %s34
    %p38 = pneg %p32
    %p39 = scmp.eq.s32.totalorder %s11, 1
    %p40 = por %p38, %p39
    %p41 = scmp.ne.s32.totalorder %s33, %s36
    %p42 = scmp.eq.s32.totalorder %s11, 0
    %p43 = por %p41, %p42
    %p44 = scmp.ne.s32.totalorder %s33, %s36
    %p45 = scmp.eq.s32.totalorder %s16, 1
    %p46 = por %p44, %p45
    %p47 = scmp.ne.s32.totalorder %s36, %s37
    %p48 = scmp.eq.s32.totalorder %s16, 0
    %p49 = por %p47, %p48
    %p50 = scmp.ne.s32.totalorder %s36, %s37
    %p51 = scmp.eq.s32.totalorder %s17, 1
    %p52 = por %p50, %p51
    %p54 = scmp.ne.s32.totalorder %s37, %s53
    %p55 = scmp.eq.s32.totalorder %s17, 0
    %p56 = por %p54, %p55
    %s58 = sadd.s32 %s57, 1
    %p61 = scmp.eq.s32.totalorder %s11, 1
    %p62 = scmp.ne.s32.totalorder %s57, %s59
    %p63 = scmp.eq.s32.totalorder %s11, 0
    %p64 = por %p62, %p63
    %p65 = scmp.ne.s32.totalorder %s57, %s59
    %p66 = scmp.eq.s32.totalorder %s16, 1
    %p67 = por %p65, %p66
    %p68 = scmp.ne.s32.totalorder %s59, %s60
    %p69 = scmp.eq.s32.totalorder %s16, 0
    %p70 = por %p68, %p69
    %p71 = scmp.ne.s32.totalorder %s59, %s60
    %p72 = scmp.eq.s32.totalorder %s17, 1
    %p73 = por %p71, %p72
    %p75 = scmp.ne.s32.totalorder %s60, %s74
    %p76 = scmp.eq.s32.totalorder %s17, 0
    %p77 = por %p75, %p76
    %s78 = ssub.s32 %s18, %s30
    %s79 = ssub.s32 %s19, %s26
    %s80 = sor.u32 %s78, %s79
    %p81 = scmp.eq.s32.totalorder %s80, 0
    %s83 = sadd.s32 %s82, 1
    %s84 = scalar_select %p81, %s82, %s83
    %p87 = pneg %p81
    %p88 = scmp.eq.s32.totalorder %s11, 1
    %p89 = por %p87, %p88
    %p90 = scmp.ne.s32.totalorder %s82, %s85
    %p91 = scmp.eq.s32.totalorder %s11, 0
    %p92 = por %p90, %p91
    %p93 = scmp.ne.s32.totalorder %s82, %s85
    %p94 = scmp.eq.s32.totalorder %s16, 1
    %p95 = por %p93, %p94
    %p96 = scmp.ne.s32.totalorder %s85, %s86
    %p97 = scmp.eq.s32.totalorder %s16, 0
    %p98 = por %p96, %p97
    %p99 = scmp.ne.s32.totalorder %s85, %s86
    %p100 = scmp.eq.s32.totalorder %s17, 1
    %p101 = por %p99, %p100
    %p103 = scmp.ne.s32.totalorder %s86, %s102
    %p104 = scmp.eq.s32.totalorder %s17, 0
    %p105 = por %p103, %p104
    %s106 = ssub.s32 %s18, %s30
    %p107 = scmp.eq.s32.totalorder %s106, 0
    %s109 = sadd.s32 %s108, 1
    %s110 = scalar_select %p107, %s108, %s109
    %p113 = pneg %p107
    %p114 = scmp.eq.s32.totalorder %s11, 1
    %p115 = por %p113, %p114
    %p116 = scmp.ne.s32.totalorder %s108, %s111
    %p117 = scmp.eq.s32.totalorder %s11, 0
    %p118 = por %p116, %p117
    %p119 = scmp.ne.s32.totalorder %s108, %s111
    %p120 = scmp.eq.s32.totalorder %s16, 1
    %p121 = por %p119, %p120
    %p122 = scmp.ne.s32.totalorder %s111, %s112
    %p123 = scmp.eq.s32.totalorder %s16, 0
    %p124 = por %p122, %p123
    %p125 = scmp.ne.s32.totalorder %s111, %s112
    %p126 = scmp.eq.s32.totalorder %s17, 1
    %p127 = por %p125, %p126
    %p129 = scmp.ne.s32.totalorder %s112, %s128
    %p130 = scmp.eq.s32.totalorder %s17, 0
    %p131 = por %p129, %p130
    %s132 = ssub.s32 %s18, %s30
    %p133 = scmp.eq.s32.totalorder %s132, 0
    %s135 = sadd.s32 %s134, 1
    %s136 = scalar_select %p133, %s134, %s135
    %p139 = pneg %p133
    %p140 = scmp.eq.s32.totalorder %s11, 1
    %p141 = por %p139, %p140
    %p142 = scmp.ne.s32.totalorder %s134, %s137
    %p143 = scmp.eq.s32.totalorder %s11, 0
    %p144 = por %p142, %p143
    %p145 = scmp.ne.s32.totalorder %s134, %s137
    %p146 = scmp.eq.s32.totalorder %s16, 1
    %p147 = por %p145, %p146
    %p148 = scmp.ne.s32.totalorder %s137, %s138
    %p149 = scmp.eq.s32.totalorder %s16, 0
    %p150 = por %p148, %p149
    %p151 = scmp.ne.s32.totalorder %s137, %s138
    %p152 = scmp.eq.s32.totalorder %s17, 1
    %p153 = por %p151, %p152
    %p155 = scmp.ne.s32.totalorder %s138, %s154
    %p156 = scmp.eq.s32.totalorder %s17, 0
    %p157 = por %p155, %p156
    %p158 = scmp.le.s32.totalorder 1, %s11
    %p159 = scmp.lt.s32.totalorder %s11, 3
    %p160 = pnand %p158, %p159
    %p161 = pneg %p160
    // Predicated region
    $region9: #{unet_block_forward.2} parent=5 // pred_check
      _
    $region10: #{unet_block_forward.2} parent=5 // pred_check_branch
      %163 = sbr.rel (%p160) target = $region12
    $region11: #{unet_block_forward.2} parent=5 // pred_region
      %s164 = ssub.s32 %s11, 1
      // Predicated region
      $region13: #{unet_block_forward.2} parent=11 // pred_check
        %p165 = pneg %p70
      $region14: #{unet_block_forward.2} parent=11 // pred_check_branch
        %167 = sbr.rel (%p165) target = $region16
      $region15: #{unet_block_forward.2} parent=11 // pred_region
        _
      $region16: #{unet_block_forward.2} parent=11 // pred_fallthru
        _
    $region12: #{unet_block_forward.2} parent=5 // pred_fallthru
      _
    %p168 = scmp.lt.s32.totalorder %s11, 2
    // Predicated region
    $region17: #{unet_block_forward.2} parent=5 // pred_check
      %p169 = pneg %p168
    $region18: #{unet_block_forward.2} parent=5 // pred_check_branch
      %171 = sbr.rel (%p169) target = $region20
    $region19: #{unet_block_forward.2} parent=5 // pred_region
      // Predicated region
      $region21: #{unet_block_forward.2} parent=19 // pred_check
        %p172 = pneg %p43
      $region22: #{unet_block_forward.2} parent=19 // pred_check_branch
        %174 = sbr.rel (%p172) target = $region24
      $region23: #{unet_block_forward.2} parent=19 // pred_region
        %p175 = scmp.lt.s32.totalorder %s18, 1
        %s176 = scalar_select %p175, %s18, 1
        %s177 = smul.addr %s176, 72
        %s178 = smul.addr %s177, 4
        %s179 = scalar_lea.vmem %s0, %s178
      $region24: #{unet_block_forward.2} parent=19 // pred_fallthru
        _
    $region20: #{unet_block_forward.2} parent=5 // pred_fallthru
      _
    %p180 = scmp.le.s32.totalorder 1, %s11
    %p181 = scmp.lt.s32.totalorder %s11, 3
    %p182 = pnand %p180, %p181
    %p183 = pneg %p182
    // Predicated region
    $region25: #{unet_block_forward.2} parent=5 // pred_check
      _
    $region26: #{unet_block_forward.2} parent=5 // pred_check_branch
      %185 = sbr.rel (%p182) target = $region28
    $region27: #{unet_block_forward.2} parent=5 // pred_region
      %s186 = ssub.s32 %s11, 1
      %p187 = scmp.lt.s32.totalorder %s20, 1
      %s188 = scalar_select %p187, %s20, 1
      %s189 = smul.addr %s188, 72
      %s190 = smul.addr %s189, 4
      %s191 = scalar_lea.vmem %s0, %s190
      %p192 = pneg %p49
      %p193 = pneg %p46
      %p194 = pneg %p70
      %p195 = pneg %p67
      %p196 = pneg %p98
      %p197 = pneg %p95
      %s198 = smul.u32 8, %s21
      %p199 = scmp.lt.s32.totalorder %s20, 1
      %s200 = scalar_select %p199, %s20, 1
      %p201 = scmp.lt.s32.totalorder %s198, 7
      %s202 = scalar_select %p201, %s198, 7
      %s203 = smul.addr %s200, 8
      %s204 = sadd.s32 %s202, %s203
      %s205 = smul.addr %s204, 4
      %s206 = scalar_lea.vmem %s2, %s205
      %p207 = pneg %p124
      %p208 = pneg %p121
      %p209 = scmp.lt.s32.totalorder %s20, 1
      %s210 = scalar_select %p209, %s20, 1
      %s211 = scalar_lea.vmem %s3, %s210
      %p212 = pneg %p150
      %p213 = pneg %p147
      %p214 = scmp.lt.s32.totalorder %s20, 1
      %s215 = scalar_select %p214, %s20, 1
      %s216 = scalar_lea.vmem %s4, %s215
      %p217 = scmp.lt.s32.totalorder %s20, 1
      %s218 = scalar_select %p217, %s20, 1
      %s219 = smul.addr %s218, 72
      %s220 = smul.addr %s219, 4
      %s221 = scalar_lea.vmem %s0, %s220
      %s222 = smul.u32 8, %s21
      %p223 = scmp.lt.s32.totalorder %s20, 1
      %s224 = scalar_select %p223, %s20, 1
      %p225 = scmp.lt.s32.totalorder %s222, 7
      %s226 = scalar_select %p225, %s222, 7
      %s227 = smul.addr %s224, 8
      %s228 = sadd.s32 %s226, %s227
      %s229 = smul.addr %s228, 4
      %s230 = scalar_lea.vmem %s2, %s229
      %s231 = smul.u32 8, %s21
      %p232 = scmp.lt.s32.totalorder %s20, 1
      %s233 = scalar_select %p232, %s20, 1
      %s234 = scalar_lea.vmem %s3, %s233
      %p235 = scmp.lt.s32.totalorder %s20, 1
      %s236 = scalar_select %p235, %s20, 1
      %s237 = scalar_lea.vmem %s4, %s236
      %s239 = smul.u32 %s21, 8
      %s240 = smul.u32 %s239, 2
      %s241 = smul.addr %s240, 4
      %s242 = scalar_lea.vmem %s221, %s241
      %v243 = vld [vmem:[%s242] sm:$0xf]
      %v244 = vld [vmem:[%s1] sm:$0x3]
      %s245 = sadd.s32 %s240, 18
      %s246 = smul.addr %s245, 4
      %s247 = scalar_lea.vmem %s221, %s246
      %v248 = vld [vmem:[%s247] sm:$0xf]
      %s249 = scalar_lea.vmem %s1, 2
      %v250 = vld [vmem:[%s249] sm:$0x3]
      %vm251 = vcmask 31744
      %v253 = vsel %vm251, %v248, 0
      %vm255 = vcmask 1041408
      %v257 = vsel %vm255, %v250, 0
      %259 = vmatpush.bf16.msra.mxu0 0
      %260 = vmatpush.bf16.msra.mxu0 0
      %261 = vmatpush.bf16.msra.mxu0 0
      %262 = vmatpush.bf16.msra.mxu0 0
      %263 = vmatpush.bf16.msra.mxu0 0
      %264 = vmatpush.bf16.msra.mxu0 0
      %265 = vmatpush.bf16.msra.mxu0 0
      %266 = vmatpush.bf16.msra.mxu0 %v257
      %267 = vmatmul.bf16.gmra.mxu0 %v253
      %v268 = vpop.f32.mrf.mxu0
      %v269 = vadd.f32 0.0, %v268
      %v270 = vpop.f32.mrf.mxu0
      %271 = vdwg.mxu0
      %v273 = vsel %vm251, %v243, 0
      %v276 = vsel %vm255, %v244, 0
      %278 = vmatpush.bf16.msra.mxu0 0
      %279 = vmatpush.bf16.msra.mxu0 0
      %280 = vmatpush.bf16.msra.mxu0 0
      %281 = vmatpush.bf16.msra.mxu0 0
      %282 = vmatpush.bf16.msra.mxu0 0
      %283 = vmatpush.bf16.msra.mxu0 0
      %284 = vmatpush.bf16.msra.mxu0 0
      %285 = vmatpush.bf16.msra.mxu0 %v276
      %286 = vmatmul.bf16.gmra.mxu0 %v273
      %v287 = vpop.f32.mrf.mxu0
      %v288 = vadd.f32 %v269, %v287
      %v289 = vpop.f32.mrf.mxu0
      %290 = vdwg.mxu0
      %v291 = vld [vmem:[%s242] sm:$0xf]
      %v292 = vld [vmem:[%s242 + $0x4] sm:$0x1]
      %s293 = scalar_lea.vmem %s1, 4
      %v294 = vld [vmem:[%s293] sm:$0x3]
      %v297 = vunpack.c.l.b16 %v291
      %v298 = vunpack.c.l.b16 %v292
      %v299 = vpack.c.b16 %v298, %v297
      %v301 = vshrl.u32 %v299, 16
      %v303 = vshll.u32 %v299, 16
      %v305 = vrot.slane %v303, 1
      %v306 = vor.u32 %v301, %v305
      %v308 = vsel %vm251, %v306, 0
      %v311 = vsel %vm255, %v294, 0
      %313 = vmatpush.bf16.msra.mxu0 0
      %314 = vmatpush.bf16.msra.mxu0 0
      %315 = vmatpush.bf16.msra.mxu0 0
      %316 = vmatpush.bf16.msra.mxu0 0
      %317 = vmatpush.bf16.msra.mxu0 0
      %318 = vmatpush.bf16.msra.mxu0 0
      %319 = vmatpush.bf16.msra.mxu0 0
      %320 = vmatpush.bf16.msra.mxu0 %v311
      %321 = vmatmul.bf16.gmra.mxu0 %v308
      %v322 = vpop.f32.mrf.mxu0
      %v323 = vadd.f32 0.0, %v322
      %v324 = vpop.f32.mrf.mxu0
      %325 = vdwg.mxu0
      %v326 = vadd.f32 %v288, %v323
      %v327 = vld [vmem:[%s247] sm:$0xf]
      %v328 = vld [vmem:[%s247 + $0x4] sm:$0x1]
      %s329 = scalar_lea.vmem %s1, 6
      %v330 = vld [vmem:[%s329] sm:$0x3]
      %v333 = vunpack.c.l.b16 %v327
      %v334 = vunpack.c.l.b16 %v328
      %v335 = vpack.c.b16 %v334, %v333
      %v337 = vshrl.u32 %v335, 16
      %v339 = vshll.u32 %v335, 16
      %v341 = vrot.slane %v339, 1
      %v342 = vor.u32 %v337, %v341
      %v344 = vsel %vm251, %v342, 0
      %v347 = vsel %vm255, %v330, 0
      %349 = vmatpush.bf16.msra.mxu0 0
      %350 = vmatpush.bf16.msra.mxu0 0
      %351 = vmatpush.bf16.msra.mxu0 0
      %352 = vmatpush.bf16.msra.mxu0 0
      %353 = vmatpush.bf16.msra.mxu0 0
      %354 = vmatpush.bf16.msra.mxu0 0
      %355 = vmatpush.bf16.msra.mxu0 0
      %356 = vmatpush.bf16.msra.mxu0 %v347
      %357 = vmatmul.bf16.gmra.mxu0 %v344
      %v358 = vpop.f32.mrf.mxu0
      %v359 = vadd.f32 0.0, %v358
      %v360 = vpop.f32.mrf.mxu0
      %361 = vdwg.mxu0
      %v362 = vadd.f32 %v326, %v359
      %s363 = sadd.s32 %s240, 36
      %s364 = smul.addr %s363, 4
      %s365 = scalar_lea.vmem %s221, %s364
      %v366 = vld [vmem:[%s365] sm:$0xf]
      %s367 = scalar_lea.vmem %s1, 8
      %v368 = vld [vmem:[%s367] sm:$0x3]
      %v370 = vsel %vm251, %v366, 0
      %v373 = vsel %vm255, %v368, 0
      %375 = vmatpush.bf16.msra.mxu0 0
      %376 = vmatpush.bf16.msra.mxu0 0
      %377 = vmatpush.bf16.msra.mxu0 0
      %378 = vmatpush.bf16.msra.mxu0 0
      %379 = vmatpush.bf16.msra.mxu0 0
      %380 = vmatpush.bf16.msra.mxu0 0
      %381 = vmatpush.bf16.msra.mxu0 0
      %382 = vmatpush.bf16.msra.mxu0 %v373
      %383 = vmatmul.bf16.gmra.mxu0 %v370
      %v384 = vpop.f32.mrf.mxu0
      %v385 = vadd.f32 0.0, %v384
      %v386 = vpop.f32.mrf.mxu0
      %387 = vdwg.mxu0
      %v388 = vadd.f32 %v362, %v385
      %s389 = sadd.s32 %s240, 54
      %s390 = smul.addr %s389, 4
      %s391 = scalar_lea.vmem %s221, %s390
      %v392 = vld [vmem:[%s391] sm:$0xf]
      %s393 = scalar_lea.vmem %s1, 10
      %v394 = vld [vmem:[%s393] sm:$0x3]
      %v396 = vsel %vm251, %v392, 0
      %v399 = vsel %vm255, %v394, 0
      %401 = vmatpush.bf16.msra.mxu0 0
      %402 = vmatpush.bf16.msra.mxu0 0
      %403 = vmatpush.bf16.msra.mxu0 0
      %404 = vmatpush.bf16.msra.mxu0 0
      %405 = vmatpush.bf16.msra.mxu0 0
      %406 = vmatpush.bf16.msra.mxu0 0
      %407 = vmatpush.bf16.msra.mxu0 0
      %408 = vmatpush.bf16.msra.mxu0 %v399
      %409 = vmatmul.bf16.gmra.mxu0 %v396
      %v410 = vpop.f32.mrf.mxu0
      %v411 = vadd.f32 0.0, %v410
      %v412 = vpop.f32.mrf.mxu0
      %413 = vdwg.mxu0
      %v414 = vadd.f32 %v388, %v411
      %v415 = vld [vmem:[%s365] sm:$0xf]
      %v416 = vld [vmem:[%s365 + $0x4] sm:$0x1]
      %s417 = scalar_lea.vmem %s1, 12
      %v418 = vld [vmem:[%s417] sm:$0x3]
      %v421 = vunpack.c.l.b16 %v415
      %v422 = vunpack.c.l.b16 %v416
      %v423 = vpack.c.b16 %v422, %v421
      %v425 = vshrl.u32 %v423, 16
      %v427 = vshll.u32 %v423, 16
      %v429 = vrot.slane %v427, 1
      %v430 = vor.u32 %v425, %v429
      %v432 = vsel %vm251, %v430, 0
      %v435 = vsel %vm255, %v418, 0
      %437 = vmatpush.bf16.msra.mxu0 0
      %438 = vmatpush.bf16.msra.mxu0 0
      %439 = vmatpush.bf16.msra.mxu0 0
      %440 = vmatpush.bf16.msra.mxu0 0
      %441 = vmatpush.bf16.msra.mxu0 0
      %442 = vmatpush.bf16.msra.mxu0 0
      %443 = vmatpush.bf16.msra.mxu0 0
      %444 = vmatpush.bf16.msra.mxu0 %v435
      %445 = vmatmul.bf16.gmra.mxu0 %v432
      %v446 = vpop.f32.mrf.mxu0
      %v447 = vadd.f32 0.0, %v446
      %v448 = vpop.f32.mrf.mxu0
      %449 = vdwg.mxu0
      %v450 = vadd.f32 %v414, %v447
      %v451 = vld [vmem:[%s391] sm:$0xf]
      %v452 = vld [vmem:[%s391 + $0x4] sm:$0x1]
      %s453 = scalar_lea.vmem %s1, 14
      %v454 = vld [vmem:[%s453] sm:$0x3]
      %v457 = vunpack.c.l.b16 %v451
      %v458 = vunpack.c.l.b16 %v452
      %v459 = vpack.c.b16 %v458, %v457
      %v461 = vshrl.u32 %v459, 16
      %v463 = vshll.u32 %v459, 16
      %v465 = vrot.slane %v463, 1
      %v466 = vor.u32 %v461, %v465
      %v468 = vsel %vm251, %v466, 0
      %v471 = vsel %vm255, %v454, 0
      %473 = vmatpush.bf16.msra.mxu0 0
      %474 = vmatpush.bf16.msra.mxu0 0
      %475 = vmatpush.bf16.msra.mxu0 0
      %476 = vmatpush.bf16.msra.mxu0 0
      %477 = vmatpush.bf16.msra.mxu0 0
      %478 = vmatpush.bf16.msra.mxu0 0
      %479 = vmatpush.bf16.msra.mxu0 0
      %480 = vmatpush.bf16.msra.mxu0 %v471
      %481 = vmatmul.bf16.gmra.mxu0 %v468
      %v482 = vpop.f32.mrf.mxu0
      %v483 = vadd.f32 0.0, %v482
      %v484 = vpop.f32.mrf.mxu0
      %485 = vdwg.mxu0
      %v486 = vadd.f32 %v450, %v483
      %s487 = sadd.s32 %s239, 1
      %s488 = smul.u32 %s487, 2
      %s489 = smul.addr %s488, 4
      %s490 = scalar_lea.vmem %s221, %s489
      %v491 = vld [vmem:[%s490] sm:$0xf]
      %s492 = scalar_lea.vmem %s1, 16
      %v493 = vld [vmem:[%s492] sm:$0x3]
      %v495 = vsel %vm251, %v491, 0
      %v498 = vsel %vm255, %v493, 0
      %500 = vmatpush.bf16.msra.mxu0 0
      %501 = vmatpush.bf16.msra.mxu0 0
      %502 = vmatpush.bf16.msra.mxu0 0
      %503 = vmatpush.bf16.msra.mxu0 0
      %504 = vmatpush.bf16.msra.mxu0 0
      %505 = vmatpush.bf16.msra.mxu0 0
      %506 = vmatpush.bf16.msra.mxu0 0
      %507 = vmatpush.bf16.msra.mxu0 %v498
      %508 = vmatmul.bf16.gmra.mxu0 %v495
      %v509 = vpop.f32.mrf.mxu0
      %v510 = vadd.f32 0.0, %v509
      %v511 = vpop.f32.mrf.mxu0
      %512 = vdwg.mxu0
      %v513 = vadd.f32 %v486, %v510
      %s514 = sadd.s32 %s488, 18
      %s515 = smul.addr %s514, 4
      %s516 = scalar_lea.vmem %s221, %s515
      %v517 = vld [vmem:[%s516] sm:$0xf]
      %s518 = scalar_lea.vmem %s1, 18
      %v519 = vld [vmem:[%s518] sm:$0x3]
      %v521 = vsel %vm251, %v517, 0
      %v524 = vsel %vm255, %v519, 0
      %526 = vmatpush.bf16.msra.mxu0 0
      %527 = vmatpush.bf16.msra.mxu0 0
      %528 = vmatpush.bf16.msra.mxu0 0
      %529 = vmatpush.bf16.msra.mxu0 0
      %530 = vmatpush.bf16.msra.mxu0 0
      %531 = vmatpush.bf16.msra.mxu0 0
      %532 = vmatpush.bf16.msra.mxu0 0
      %533 = vmatpush.bf16.msra.mxu0 %v524
      %534 = vmatmul.bf16.gmra.mxu0 %v521
      %v535 = vpop.f32.mrf.mxu0
      %v536 = vadd.f32 0.0, %v535
      %v537 = vpop.f32.mrf.mxu0
      %538 = vdwg.mxu0
      %v539 = vadd.f32 %v513, %v536
      %v540 = vld [vmem:[%s490] sm:$0xf]
      %v541 = vld [vmem:[%s490 + $0x4] sm:$0x1]
      %s542 = scalar_lea.vmem %s1, 20
      %v543 = vld [vmem:[%s542] sm:$0x3]
      %v546 = vunpack.c.l.b16 %v540
      %v547 = vunpack.c.l.b16 %v541
      %v548 = vpack.c.b16 %v547, %v546
      %v550 = vshrl.u32 %v548, 16
      %v552 = vshll.u32 %v548, 16
      %v554 = vrot.slane %v552, 1
      %v555 = vor.u32 %v550, %v554
      %v557 = vsel %vm251, %v555, 0
      %v560 = vsel %vm255, %v543, 0
      %562 = vmatpush.bf16.msra.mxu0 0
      %563 = vmatpush.bf16.msra.mxu0 0
      %564 = vmatpush.bf16.msra.mxu0 0
      %565 = vmatpush.bf16.msra.mxu0 0
      %566 = vmatpush.bf16.msra.mxu0 0
      %567 = vmatpush.bf16.msra.mxu0 0
      %568 = vmatpush.bf16.msra.mxu0 0
      %569 = vmatpush.bf16.msra.mxu0 %v560
      %570 = vmatmul.bf16.gmra.mxu0 %v557
      %v571 = vpop.f32.mrf.mxu0
      %v572 = vadd.f32 0.0, %v571
      %v573 = vpop.f32.mrf.mxu0
      %574 = vdwg.mxu0
      %v575 = vadd.f32 %v539, %v572
      %v576 = vld [vmem:[%s516] sm:$0xf]
      %v577 = vld [vmem:[%s516 + $0x4] sm:$0x1]
      %s578 = scalar_lea.vmem %s1, 22
      %v579 = vld [vmem:[%s578] sm:$0x3]
      %v582 = vunpack.c.l.b16 %v576
      %v583 = vunpack.c.l.b16 %v577
      %v584 = vpack.c.b16 %v583, %v582
      %v586 = vshrl.u32 %v584, 16
      %v588 = vshll.u32 %v584, 16
      %v590 = vrot.slane %v588, 1
      %v591 = vor.u32 %v586, %v590
      %v593 = vsel %vm251, %v591, 0
      %v596 = vsel %vm255, %v579, 0
      %598 = vmatpush.bf16.msra.mxu0 0
      %599 = vmatpush.bf16.msra.mxu0 0
      %600 = vmatpush.bf16.msra.mxu0 0
      %601 = vmatpush.bf16.msra.mxu0 0
      %602 = vmatpush.bf16.msra.mxu0 0
      %603 = vmatpush.bf16.msra.mxu0 0
      %604 = vmatpush.bf16.msra.mxu0 0
      %605 = vmatpush.bf16.msra.mxu0 %v596
      %606 = vmatmul.bf16.gmra.mxu0 %v593
      %v607 = vpop.f32.mrf.mxu0
      %v608 = vadd.f32 0.0, %v607
      %v609 = vpop.f32.mrf.mxu0
      %610 = vdwg.mxu0
      %v611 = vadd.f32 %v575, %v608
      %s612 = sadd.s32 %s488, 36
      %s613 = smul.addr %s612, 4
      %s614 = scalar_lea.vmem %s221, %s613
      %v615 = vld [vmem:[%s614] sm:$0xf]
      %s616 = scalar_lea.vmem %s1, 24
      %v617 = vld [vmem:[%s616] sm:$0x3]
      %v619 = vsel %vm251, %v615, 0
      %v622 = vsel %vm255, %v617, 0
      %624 = vmatpush.bf16.msra.mxu0 0
      %625 = vmatpush.bf16.msra.mxu0 0
      %626 = vmatpush.bf16.msra.mxu0 0
      %627 = vmatpush.bf16.msra.mxu0 0
      %628 = vmatpush.bf16.msra.mxu0 0
      %629 = vmatpush.bf16.msra.mxu0 0
      %630 = vmatpush.bf16.msra.mxu0 0
      %631 = vmatpush.bf16.msra.mxu0 %v622
      %632 = vmatmul.bf16.gmra.mxu0 %v619
      %v633 = vpop.f32.mrf.mxu0
      %v634 = vadd.f32 0.0, %v633
      %v635 = vpop.f32.mrf.mxu0
      %636 = vdwg.mxu0
      %v637 = vadd.f32 %v611, %v634
      %s638 = sadd.s32 %s488, 54
      %s639 = smul.addr %s638, 4
      %s640 = scalar_lea.vmem %s221, %s639
      %v641 = vld [vmem:[%s640] sm:$0xf]
      %s642 = scalar_lea.vmem %s1, 26
      %v643 = vld [vmem:[%s642] sm:$0x3]
      %v645 = vsel %vm251, %v641, 0
      %v648 = vsel %vm255, %v643, 0
      %650 = vmatpush.bf16.msra.mxu0 0
      %651 = vmatpush.bf16.msra.mxu0 0
      %652 = vmatpush.bf16.msra.mxu0 0
      %653 = vmatpush.bf16.msra.mxu0 0
      %654 = vmatpush.bf16.msra.mxu0 0
      %655 = vmatpush.bf16.msra.mxu0 0
      %656 = vmatpush.bf16.msra.mxu0 0
      %657 = vmatpush.bf16.msra.mxu0 %v648
      %658 = vmatmul.bf16.gmra.mxu0 %v645
      %v659 = vpop.f32.mrf.mxu0
      %v660 = vadd.f32 0.0, %v659
      %v661 = vpop.f32.mrf.mxu0
      %662 = vdwg.mxu0
      %v663 = vadd.f32 %v637, %v660
      %v664 = vld [vmem:[%s614] sm:$0xf]
      %v665 = vld [vmem:[%s614 + $0x4] sm:$0x1]
      %s666 = scalar_lea.vmem %s1, 28
      %v667 = vld [vmem:[%s666] sm:$0x3]
      %v670 = vunpack.c.l.b16 %v664
      %v671 = vunpack.c.l.b16 %v665
      %v672 = vpack.c.b16 %v671, %v670
      %v674 = vshrl.u32 %v672, 16
      %v676 = vshll.u32 %v672, 16
      %v678 = vrot.slane %v676, 1
      %v679 = vor.u32 %v674, %v678
      %v681 = vsel %vm251, %v679, 0
      %v684 = vsel %vm255, %v667, 0
      %686 = vmatpush.bf16.msra.mxu0 0
      %687 = vmatpush.bf16.msra.mxu0 0
      %688 = vmatpush.bf16.msra.mxu0 0
      %689 = vmatpush.bf16.msra.mxu0 0
      %690 = vmatpush.bf16.msra.mxu0 0
      %691 = vmatpush.bf16.msra.mxu0 0
      %692 = vmatpush.bf16.msra.mxu0 0
      %693 = vmatpush.bf16.msra.mxu0 %v684
      %694 = vmatmul.bf16.gmra.mxu0 %v681
      %v695 = vpop.f32.mrf.mxu0
      %v696 = vadd.f32 0.0, %v695
      %v697 = vpop.f32.mrf.mxu0
      %698 = vdwg.mxu0
      %v699 = vadd.f32 %v663, %v696
      %v700 = vld [vmem:[%s640] sm:$0xf]
      %v701 = vld [vmem:[%s640 + $0x4] sm:$0x1]
      %s702 = scalar_lea.vmem %s1, 30
      %v703 = vld [vmem:[%s702] sm:$0x3]
      %v706 = vunpack.c.l.b16 %v700
      %v707 = vunpack.c.l.b16 %v701
      %v708 = vpack.c.b16 %v707, %v706
      %v710 = vshrl.u32 %v708, 16
      %v712 = vshll.u32 %v708, 16
      %v714 = vrot.slane %v712, 1
      %v715 = vor.u32 %v710, %v714
      %v717 = vsel %vm251, %v715, 0
      %v720 = vsel %vm255, %v703, 0
      %722 = vmatpush.bf16.msra.mxu0 0
      %723 = vmatpush.bf16.msra.mxu0 0
      %724 = vmatpush.bf16.msra.mxu0 0
      %725 = vmatpush.bf16.msra.mxu0 0
      %726 = vmatpush.bf16.msra.mxu0 0
      %727 = vmatpush.bf16.msra.mxu0 0
      %728 = vmatpush.bf16.msra.mxu0 0
      %729 = vmatpush.bf16.msra.mxu0 %v720
      %730 = vmatmul.bf16.gmra.mxu0 %v717
      %v731 = vpop.f32.mrf.mxu0
      %v732 = vadd.f32 0.0, %v731
      %v733 = vpop.f32.mrf.mxu0
      %734 = vdwg.mxu0
      %v735 = vadd.f32 %v699, %v732
      %v736 = vpack.c.bf16 %v735, %v735
      %vm737 = vcmask 60416
      %738 = vst.msk [vmem:[%s230] sm:$0xf] %vm737, %v736
      %vm739 = vcmask 64512
      %v740 = vsel %vm739, %v735, 0.0
      %v741 = vrot.slane %v740, 4
      %v742 = vadd.f32 %v740, %v741
      %v743 = vrot.slane %v742, 2
      %v744 = vadd.f32 %v742, %v743
      %v745 = vrot.slane %v744, 1
      %v746 = vadd.f32 %v744, %v745
      %v747 = vadd.f32 %v746, 0.0
      %v748 = vmul.f32 %v735, %v735
      %v749 = vsel %vm739, %v748, 0.0
      %v750 = vrot.slane %v749, 4
      %v751 = vadd.f32 %v749, %v750
      %v752 = vrot.slane %v751, 2
      %v753 = vadd.f32 %v751, %v752
      %v754 = vrot.slane %v753, 1
      %v755 = vadd.f32 %v753, %v754
      %v756 = vadd.f32 %v755, 0.0
      %v757 = vld [vmem:[%s490] sm:$0xf]
      %v758 = vld [vmem:[%s1] sm:$0x3]
      %v759 = vld [vmem:[%s516] sm:$0xf]
      %v760 = vld [vmem:[%s249] sm:$0x3]
      %v762 = vsel %vm251, %v759, 0
      %v765 = vsel %vm255, %v760, 0
      %767 = vmatpush.bf16.msra.mxu0 0
      %768 = vmatpush.bf16.msra.mxu0 0
      %769 = vmatpush.bf16.msra.mxu0 0
      %770 = vmatpush.bf16.msra.mxu0 0
      %771 = vmatpush.bf16.msra.mxu0 0
      %772 = vmatpush.bf16.msra.mxu0 0
      %773 = vmatpush.bf16.msra.mxu0 0
      %774 = vmatpush.bf16.msra.mxu0 %v765
      %775 = vmatmul.bf16.gmra.mxu0 %v762
      %v776 = vpop.f32.mrf.mxu0
      %v777 = vadd.f32 0.0, %v776
      %v778 = vpop.f32.mrf.mxu0
      %779 = vdwg.mxu0
      %v781 = vsel %vm251, %v757, 0
      %v784 = vsel %vm255, %v758, 0
      %786 = vmatpush.bf16.msra.mxu0 0
      %787 = vmatpush.bf16.msra.mxu0 0
      %788 = vmatpush.bf16.msra.mxu0 0
      %789 = vmatpush.bf16.msra.mxu0 0
      %790 = vmatpush.bf16.msra.mxu0 0
      %791 = vmatpush.bf16.msra.mxu0 0
      %792 = vmatpush.bf16.msra.mxu0 0
      %793 = vmatpush.bf16.msra.mxu0 %v784
      %794 = vmatmul.bf16.gmra.mxu0 %v781
      %v795 = vpop.f32.mrf.mxu0
      %v796 = vadd.f32 %v777, %v795
      %v797 = vpop.f32.mrf.mxu0
      %798 = vdwg.mxu0
      %v799 = vld [vmem:[%s490] sm:$0xf]
      %v800 = vld [vmem:[%s490 + $0x4] sm:$0x1]
      %v801 = vld [vmem:[%s293] sm:$0x3]
      %v804 = vunpack.c.l.b16 %v799
      %v805 = vunpack.c.l.b16 %v800
      %v806 = vpack.c.b16 %v805, %v804
      %v808 = vshrl.u32 %v806, 16
      %v810 = vshll.u32 %v806, 16
      %v812 = vrot.slane %v810, 1
      %v813 = vor.u32 %v808, %v812
      %v815 = vsel %vm251, %v813, 0
      %v818 = vsel %vm255, %v801, 0
      %820 = vmatpush.bf16.msra.mxu0 0
      %821 = vmatpush.bf16.msra.mxu0 0
      %822 = vmatpush.bf16.msra.mxu0 0
      %823 = vmatpush.bf16.msra.mxu0 0
      %824 = vmatpush.bf16.msra.mxu0 0
      %825 = vmatpush.bf16.msra.mxu0 0
      %826 = vmatpush.bf16.msra.mxu0 0
      %827 = vmatpush.bf16.msra.mxu0 %v818
      %828 = vmatmul.bf16.gmra.mxu0 %v815
      %v829 = vpop.f32.mrf.mxu0
      %v830 = vadd.f32 0.0, %v829
      %v831 = vpop.f32.mrf.mxu0
      %832 = vdwg.mxu0
      %v833 = vadd.f32 %v796, %v830
      %v834 = vld [vmem:[%s516] sm:$0xf]
      %v835 = vld [vmem:[%s516 + $0x4] sm:$0x1]
      %v836 = vld [vmem:[%s329] sm:$0x3]
      %v839 = vunpack.c.l.b16 %v834
      %v840 = vunpack.c.l.b16 %v835
      %v841 = vpack.c.b16 %v840, %v839
      %v843 = vshrl.u32 %v841, 16
      %v845 = vshll.u32 %v841, 16
      %v847 = vrot.slane %v845, 1
      %v848 = vor.u32 %v843, %v847
      %v850 = vsel %vm251, %v848, 0
      %v853 = vsel %vm255, %v836, 0
      %855 = vmatpush.bf16.msra.mxu0 0
      %856 = vmatpush.bf16.msra.mxu0 0
      %857 = vmatpush.bf16.msra.mxu0 0
      %858 = vmatpush.bf16.msra.mxu0 0
      %859 = vmatpush.bf16.msra.mxu0 0
      %860 = vmatpush.bf16.msra.mxu0 0
      %861 = vmatpush.bf16.msra.mxu0 0
      %862 = vmatpush.bf16.msra.mxu0 %v853
      %863 = vmatmul.bf16.gmra.mxu0 %v850
      %v864 = vpop.f32.mrf.mxu0
      %v865 = vadd.f32 0.0, %v864
      %v866 = vpop.f32.mrf.mxu0
      %867 = vdwg.mxu0
      %v868 = vadd.f32 %v833, %v865
      %v869 = vld [vmem:[%s614] sm:$0xf]
      %v870 = vld [vmem:[%s367] sm:$0x3]
      %v872 = vsel %vm251, %v869, 0
      %v875 = vsel %vm255, %v870, 0
      %877 = vmatpush.bf16.msra.mxu0 0
      %878 = vmatpush.bf16.msra.mxu0 0
      %879 = vmatpush.bf16.msra.mxu0 0
      %880 = vmatpush.bf16.msra.mxu0 0
      %881 = vmatpush.bf16.msra.mxu0 0
      %882 = vmatpush.bf16.msra.mxu0 0
      %883 = vmatpush.bf16.msra.mxu0 0
      %884 = vmatpush.bf16.msra.mxu0 %v875
      %885 = vmatmul.bf16.gmra.mxu0 %v872
      %v886 = vpop.f32.mrf.mxu0
      %v887 = vadd.f32 0.0, %v886
      %v888 = vpop.f32.mrf.mxu0
      %889 = vdwg.mxu0
      %v890 = vadd.f32 %v868, %v887
      %v891 = vld [vmem:[%s640] sm:$0xf]
      %v892 = vld [vmem:[%s393] sm:$0x3]
      %v894 = vsel %vm251, %v891, 0
      %v897 = vsel %vm255, %v892, 0
      %899 = vmatpush.bf16.msra.mxu0 0
      %900 = vmatpush.bf16.msra.mxu0 0
      %901 = vmatpush.bf16.msra.mxu0 0
      %902 = vmatpush.bf16.msra.mxu0 0
      %903 = vmatpush.bf16.msra.mxu0 0
      %904 = vmatpush.bf16.msra.mxu0 0
      %905 = vmatpush.bf16.msra.mxu0 0
      %906 = vmatpush.bf16.msra.mxu0 %v897
      %907 = vmatmul.bf16.gmra.mxu0 %v894
      %v908 = vpop.f32.mrf.mxu0
      %v909 = vadd.f32 0.0, %v908
      %v910 = vpop.f32.mrf.mxu0
      %911 = vdwg.mxu0
      %v912 = vadd.f32 %v890, %v909
      %v913 = vld [vmem:[%s614] sm:$0xf]
      %v914 = vld [vmem:[%s614 + $0x4] sm:$0x1]
      %v915 = vld [vmem:[%s417] sm:$0x3]
      %v918 = vunpack.c.l.b16 %v913
      %v919 = vunpack.c.l.b16 %v914
      %v920 = vpack.c.b16 %v919, %v918
      %v922 = vshrl.u32 %v920, 16
      %v924 = vshll.u32 %v920, 16
      %v926 = vrot.slane %v924, 1
      %v927 = vor.u32 %v922, %v926
      %v929 = vsel %vm251, %v927, 0
      %v932 = vsel %vm255, %v915, 0
      %934 = vmatpush.bf16.msra.mxu0 0
      %935 = vmatpush.bf16.msra.mxu0 0
      %936 = vmatpush.bf16.msra.mxu0 0
      %937 = vmatpush.bf16.msra.mxu0 0
      %938 = vmatpush.bf16.msra.mxu0 0
      %939 = vmatpush.bf16.msra.mxu0 0
      %940 = vmatpush.bf16.msra.mxu0 0
      %941 = vmatpush.bf16.msra.mxu0 %v932
      %942 = vmatmul.bf16.gmra.mxu0 %v929
      %v943 = vpop.f32.mrf.mxu0
      %v944 = vadd.f32 0.0, %v943
      %v945 = vpop.f32.mrf.mxu0
      %946 = vdwg.mxu0
      %v947 = vadd.f32 %v912, %v944
      %v948 = vld [vmem:[%s640] sm:$0xf]
      %v949 = vld [vmem:[%s640 + $0x4] sm:$0x1]
      %v950 = vld [vmem:[%s453] sm:$0x3]
      %v953 = vunpack.c.l.b16 %v948
      %v954 = vunpack.c.l.b16 %v949
      %v955 = vpack.c.b16 %v954, %v953
      %v957 = vshrl.u32 %v955, 16
      %v959 = vshll.u32 %v955, 16
      %v961 = vrot.slane %v959, 1
      %v962 = vor.u32 %v957, %v961
      %v964 = vsel %vm251, %v962, 0
      %v967 = vsel %vm255, %v950, 0
      %969 = vmatpush.bf16.msra.mxu0 0
      %970 = vmatpush.bf16.msra.mxu0 0
      %971 = vmatpush.bf16.msra.mxu0 0
      %972 = vmatpush.bf16.msra.mxu0 0
      %973 = vmatpush.bf16.msra.mxu0 0
      %974 = vmatpush.bf16.msra.mxu0 0
      %975 = vmatpush.bf16.msra.mxu0 0
      %976 = vmatpush.bf16.msra.mxu0 %v967
      %977 = vmatmul.bf16.gmra.mxu0 %v964
      %v978 = vpop.f32.mrf.mxu0
      %v979 = vadd.f32 0.0, %v978
      %v980 = vpop.f32.mrf.mxu0
      %981 = vdwg.mxu0
      %v982 = vadd.f32 %v947, %v979
      %s983 = sadd.s32 %s239, 2
      %s984 = smul.u32 %s983, 2
      %s985 = smul.addr %s984, 4
      %s986 = scalar_lea.vmem %s221, %s985
      %v987 = vld [vmem:[%s986] sm:$0xf]
      %v988 = vld [vmem:[%s492] sm:$0x3]
      %v990 = vsel %vm251, %v987, 0
      %v993 = vsel %vm255, %v988, 0
      %995 = vmatpush.bf16.msra.mxu0 0
      %996 = vmatpush.bf16.msra.mxu0 0
      %997 = vmatpush.bf16.msra.mxu0 0
      %998 = vmatpush.bf16.msra.mxu0 0
      %999 = vmatpush.bf16.msra.mxu0 0
      %1000 = vmatpush.bf16.msra.mxu0 0
      %1001 = vmatpush.bf16.msra.mxu0 0
      %1002 = vmatpush.bf16.msra.mxu0 %v993
      %1003 = vmatmul.bf16.gmra.mxu0 %v990
      %v1004 = vpop.f32.mrf.mxu0
      %v1005 = vadd.f32 0.0, %v1004
      %v1006 = vpop.f32.mrf.mxu0
      %1007 = vdwg.mxu0
      %v1008 = vadd.f32 %v982, %v1005
      %s1009 = sadd.s32 %s984, 18
      %s1010 = smul.addr %s1009, 4
      %s1011 = scalar_lea.vmem %s221, %s1010
      %v1012 = vld [vmem:[%s1011] sm:$0xf]
      %v1013 = vld [vmem:[%s518] sm:$0x3]
      %v1015 = vsel %vm251, %v1012, 0
      %v1018 = vsel %vm255, %v1013, 0
      %1020 = vmatpush.bf16.msra.mxu0 0
      %1021 = vmatpush.bf16.msra.mxu0 0
      %1022 = vmatpush.bf16.msra.mxu0 0
      %1023 = vmatpush.bf16.msra.mxu0 0
      %1024 = vmatpush.bf16.msra.mxu0 0
      %1025 = vmatpush.bf16.msra.mxu0 0
      %1026 = vmatpush.bf16.msra.mxu0 0
      %1027 = vmatpush.bf16.msra.mxu0 %v1018
      %1028 = vmatmul.bf16.gmra.mxu0 %v1015
      %v1029 = vpop.f32.mrf.mxu0
      %v1030 = vadd.f32 0.0, %v1029
      %v1031 = vpop.f32.mrf.mxu0
      %1032 = vdwg.mxu0
      %v1033 = vadd.f32 %v1008, %v1030
      %v1034 = vld [vmem:[%s986] sm:$0xf]
      %v1035 = vld [vmem:[%s986 + $0x4] sm:$0x1]
      %v1036 = vld [vmem:[%s542] sm:$0x3]
      %v1039 = vunpack.c.l.b16 %v1034
      %v1040 = vunpack.c.l.b16 %v1035
      %v1041 = vpack.c.b16 %v1040, %v1039
      %v1043 = vshrl.u32 %v1041, 16
      %v1045 = vshll.u32 %v1041, 16
      %v1047 = vrot.slane %v1045, 1
      %v1048 = vor.u32 %v1043, %v1047
      %v1050 = vsel %vm251, %v1048, 0
      %v1053 = vsel %vm255, %v1036, 0
      %1055 = vmatpush.bf16.msra.mxu0 0
      %1056 = vmatpush.bf16.msra.mxu0 0
      %1057 = vmatpush.bf16.msra.mxu0 0
      %1058 = vmatpush.bf16.msra.mxu0 0
      %1059 = vmatpush.bf16.msra.mxu0 0
      %1060 = vmatpush.bf16.msra.mxu0 0
      %1061 = vmatpush.bf16.msra.mxu0 0
      %1062 = vmatpush.bf16.msra.mxu0 %v1053
      %1063 = vmatmul.bf16.gmra.mxu0 %v1050
      %v1064 = vpop.f32.mrf.mxu0
      %v1065 = vadd.f32 0.0, %v1064
      %v1066 = vpop.f32.mrf.mxu0
      %1067 = vdwg.mxu0
      %v1068 = vadd.f32 %v1033, %v1065
      %v1069 = vld [vmem:[%s1011] sm:$0xf]
      %v1070 = vld [vmem:[%s1011 + $0x4] sm:$0x1]
      %v1071 = vld [vmem:[%s578] sm:$0x3]
      %v1074 = vunpack.c.l.b16 %v1069
      %v1075 = vunpack.c.l.b16 %v1070
      %v1076 = vpack.c.b16 %v1075, %v1074
      %v1078 = vshrl.u32 %v1076, 16
      %v1080 = vshll.u32 %v1076, 16
      %v1082 = vrot.slane %v1080, 1
      %v1083 = vor.u32 %v1078, %v1082
      %v1085 = vsel %vm251, %v1083, 0
      %v1088 = vsel %vm255, %v1071, 0
      %1090 = vmatpush.bf16.msra.mxu0 0
      %1091 = vmatpush.bf16.msra.mxu0 0
      %1092 = vmatpush.bf16.msra.mxu0 0
      %1093 = vmatpush.bf16.msra.mxu0 0
      %1094 = vmatpush.bf16.msra.mxu0 0
      %1095 = vmatpush.bf16.msra.mxu0 0
      %1096 = vmatpush.bf16.msra.mxu0 0
      %1097 = vmatpush.bf16.msra.mxu0 %v1088
      %1098 = vmatmul.bf16.gmra.mxu0 %v1085
      %v1099 = vpop.f32.mrf.mxu0
      %v1100 = vadd.f32 0.0, %v1099
      %v1101 = vpop.f32.mrf.mxu0
      %1102 = vdwg.mxu0
      %v1103 = vadd.f32 %v1068, %v1100
      %s1104 = sadd.s32 %s984, 36
      %s1105 = smul.addr %s1104, 4
      %s1106 = scalar_lea.vmem %s221, %s1105
      %v1107 = vld [vmem:[%s1106] sm:$0xf]
      %v1108 = vld [vmem:[%s616] sm:$0x3]
      %v1110 = vsel %vm251, %v1107, 0
      %v1113 = vsel %vm255, %v1108, 0
      %1115 = vmatpush.bf16.msra.mxu0 0
      %1116 = vmatpush.bf16.msra.mxu0 0
      %1117 = vmatpush.bf16.msra.mxu0 0
      %1118 = vmatpush.bf16.msra.mxu0 0
      %1119 = vmatpush.bf16.msra.mxu0 0
      %1120 = vmatpush.bf16.msra.mxu0 0
      %1121 = vmatpush.bf16.msra.mxu0 0
      %1122 = vmatpush.bf16.msra.mxu0 %v1113
      %1123 = vmatmul.bf16.gmra.mxu0 %v1110
      %v1124 = vpop.f32.mrf.mxu0
      %v1125 = vadd.f32 0.0, %v1124
      %v1126 = vpop.f32.mrf.mxu0
      %1127 = vdwg.mxu0
      %v1128 = vadd.f32 %v1103, %v1125
      %s1129 = sadd.s32 %s984, 54
      %s1130 = smul.addr %s1129, 4
      %s1131 = scalar_lea.vmem %s221, %s1130
      %v1132 = vld [vmem:[%s1131] sm:$0xf]
      %v1133 = vld [vmem:[%s642] sm:$0x3]
      %v1135 = vsel %vm251, %v1132, 0
      %v1138 = vsel %vm255, %v1133, 0
      %1140 = vmatpush.bf16.msra.mxu0 0
      %1141 = vmatpush.bf16.msra.mxu0 0
      %1142 = vmatpush.bf16.msra.mxu0 0
      %1143 = vmatpush.bf16.msra.mxu0 0
      %1144 = vmatpush.bf16.msra.mxu0 0
      %1145 = vmatpush.bf16.msra.mxu0 0
      %1146 = vmatpush.bf16.msra.mxu0 0
      %1147 = vmatpush.bf16.msra.mxu0 %v1138
      %1148 = vmatmul.bf16.gmra.mxu0 %v1135
      %v1149 = vpop.f32.mrf.mxu0
      %v1150 = vadd.f32 0.0, %v1149
      %v1151 = vpop.f32.mrf.mxu0
      %1152 = vdwg.mxu0
      %v1153 = vadd.f32 %v1128, %v1150
      %v1154 = vld [vmem:[%s1106] sm:$0xf]
      %v1155 = vld [vmem:[%s1106 + $0x4] sm:$0x1]
      %v1156 = vld [vmem:[%s666] sm:$0x3]
      %v1159 = vunpack.c.l.b16 %v1154
      %v1160 = vunpack.c.l.b16 %v1155
      %v1161 = vpack.c.b16 %v1160, %v1159
      %v1163 = vshrl.u32 %v1161, 16
      %v1165 = vshll.u32 %v1161, 16
      %v1167 = vrot.slane %v1165, 1
      %v1168 = vor.u32 %v1163, %v1167
      %v1170 = vsel %vm251, %v1168, 0
      %v1173 = vsel %vm255, %v1156, 0
      %1175 = vmatpush.bf16.msra.mxu0 0
      %1176 = vmatpush.bf16.msra.mxu0 0
      %1177 = vmatpush.bf16.msra.mxu0 0
      %1178 = vmatpush.bf16.msra.mxu0 0
      %1179 = vmatpush.bf16.msra.mxu0 0
      %1180 = vmatpush.bf16.msra.mxu0 0
      %1181 = vmatpush.bf16.msra.mxu0 0
      %1182 = vmatpush.bf16.msra.mxu0 %v1173
      %1183 = vmatmul.bf16.gmra.mxu0 %v1170
      %v1184 = vpop.f32.mrf.mxu0
      %v1185 = vadd.f32 0.0, %v1184
      %v1186 = vpop.f32.mrf.mxu0
      %1187 = vdwg.mxu0
      %v1188 = vadd.f32 %v1153, %v1185
      %v1189 = vld [vmem:[%s1131] sm:$0xf]
      %v1190 = vld [vmem:[%s1131 + $0x4] sm:$0x1]
      %v1191 = vld [vmem:[%s702] sm:$0x3]
      %v1194 = vunpack.c.l.b16 %v1189
      %v1195 = vunpack.c.l.b16 %v1190
      %v1196 = vpack.c.b16 %v1195, %v1194
      %v1198 = vshrl.u32 %v1196, 16
      %v1200 = vshll.u32 %v1196, 16
      %v1202 = vrot.slane %v1200, 1
      %v1203 = vor.u32 %v1198, %v1202
      %v1205 = vsel %vm251, %v1203, 0
      %v1208 = vsel %vm255, %v1191, 0
      %1210 = vmatpush.bf16.msra.mxu0 0
      %1211 = vmatpush.bf16.msra.mxu0 0
      %1212 = vmatpush.bf16.msra.mxu0 0
      %1213 = vmatpush.bf16.msra.mxu0 0
      %1214 = vmatpush.bf16.msra.mxu0 0
      %1215 = vmatpush.bf16.msra.mxu0 0
      %1216 = vmatpush.bf16.msra.mxu0 0
      %1217 = vmatpush.bf16.msra.mxu0 %v1208
      %1218 = vmatmul.bf16.gmra.mxu0 %v1205
      %v1219 = vpop.f32.mrf.mxu0
      %v1220 = vadd.f32 0.0, %v1219
      %v1221 = vpop.f32.mrf.mxu0
      %1222 = vdwg.mxu0
      %v1223 = vadd.f32 %v1188, %v1220
      %v1224 = vpack.c.bf16 %v1223, %v1223
      %1225 = vst.msk [vmem:[%s230 + $0x4] sm:$0xf] %vm737, %v1224
      %v1226 = vsel %vm739, %v1223, 0.0
      %v1227 = vrot.slane %v1226, 4
      %v1228 = vadd.f32 %v1226, %v1227
      %v1229 = vrot.slane %v1228, 2
      %v1230 = vadd.f32 %v1228, %v1229
      %v1231 = vrot.slane %v1230, 1
      %v1232 = vadd.f32 %v1230, %v1231
      %v1233 = vadd.f32 %v747, %v1232
      %v1234 = vmul.f32 %v1223, %v1223
      %v1235 = vsel %vm739, %v1234, 0.0
      %v1236 = vrot.slane %v1235, 4
      %v1237 = vadd.f32 %v1235, %v1236
      %v1238 = vrot.slane %v1237, 2
      %v1239 = vadd.f32 %v1237, %v1238
      %v1240 = vrot.slane %v1239, 1
      %v1241 = vadd.f32 %v1239, %v1240
      %v1242 = vadd.f32 %v756, %v1241
      %v1243 = vld [vmem:[%s986] sm:$0xf]
      %v1244 = vld [vmem:[%s1] sm:$0x3]
      %v1245 = vld [vmem:[%s1011] sm:$0xf]
      %v1246 = vld [vmem:[%s249] sm:$0x3]
      %v1248 = vsel %vm251, %v1245, 0
      %v1251 = vsel %vm255, %v1246, 0
      %1253 = vmatpush.bf16.msra.mxu0 0
      %1254 = vmatpush.bf16.msra.mxu0 0
      %1255 = vmatpush.bf16.msra.mxu0 0
      %1256 = vmatpush.bf16.msra.mxu0 0
      %1257 = vmatpush.bf16.msra.mxu0 0
      %1258 = vmatpush.bf16.msra.mxu0 0
      %1259 = vmatpush.bf16.msra.mxu0 0
      %1260 = vmatpush.bf16.msra.mxu0 %v1251
      %1261 = vmatmul.bf16.gmra.mxu0 %v1248
      %v1262 = vpop.f32.mrf.mxu0
      %v1263 = vadd.f32 0.0, %v1262
      %v1264 = vpop.f32.mrf.mxu0
      %1265 = vdwg.mxu0
      %v1267 = vsel %vm251, %v1243, 0
      %v1270 = vsel %vm255, %v1244, 0
      %1272 = vmatpush.bf16.msra.mxu0 0
      %1273 = vmatpush.bf16.msra.mxu0 0
      %1274 = vmatpush.bf16.msra.mxu0 0
      %1275 = vmatpush.bf16.msra.mxu0 0
      %1276 = vmatpush.bf16.msra.mxu0 0
      %1277 = vmatpush.bf16.msra.mxu0 0
      %1278 = vmatpush.bf16.msra.mxu0 0
      %1279 = vmatpush.bf16.msra.mxu0 %v1270
      %1280 = vmatmul.bf16.gmra.mxu0 %v1267
      %v1281 = vpop.f32.mrf.mxu0
      %v1282 = vadd.f32 %v1263, %v1281
      %v1283 = vpop.f32.mrf.mxu0
      %1284 = vdwg.mxu0
      %v1285 = vld [vmem:[%s986] sm:$0xf]
      %v1286 = vld [vmem:[%s986 + $0x4] sm:$0x1]
      %v1287 = vld [vmem:[%s293] sm:$0x3]
      %v1290 = vunpack.c.l.b16 %v1285
      %v1291 = vunpack.c.l.b16 %v1286
      %v1292 = vpack.c.b16 %v1291, %v1290
      %v1294 = vshrl.u32 %v1292, 16
      %v1296 = vshll.u32 %v1292, 16
      %v1298 = vrot.slane %v1296, 1
      %v1299 = vor.u32 %v1294, %v1298
      %v1301 = vsel %vm251, %v1299, 0
      %v1304 = vsel %vm255, %v1287, 0
      %1306 = vmatpush.bf16.msra.mxu0 0
      %1307 = vmatpush.bf16.msra.mxu0 0
      %1308 = vmatpush.bf16.msra.mxu0 0
      %1309 = vmatpush.bf16.msra.mxu0 0
      %1310 = vmatpush.bf16.msra.mxu0 0
      %1311 = vmatpush.bf16.msra.mxu0 0
      %1312 = vmatpush.bf16.msra.mxu0 0
      %1313 = vmatpush.bf16.msra.mxu0 %v1304
      %1314 = vmatmul.bf16.gmra.mxu0 %v1301
      %v1315 = vpop.f32.mrf.mxu0
      %v1316 = vadd.f32 0.0, %v1315
      %v1317 = vpop.f32.mrf.mxu0
      %1318 = vdwg.mxu0
      %v1319 = vadd.f32 %v1282, %v1316
      %v1320 = vld [vmem:[%s1011] sm:$0xf]
      %v1321 = vld [vmem:[%s1011 + $0x4] sm:$0x1]
      %v1322 = vld [vmem:[%s329] sm:$0x3]
      %v1325 = vunpack.c.l.b16 %v1320
      %v1326 = vunpack.c.l.b16 %v1321
      %v1327 = vpack.c.b16 %v1326, %v1325
      %v1329 = vshrl.u32 %v1327, 16
      %v1331 = vshll.u32 %v1327, 16
      %v1333 = vrot.slane %v1331, 1
      %v1334 = vor.u32 %v1329, %v1333
      %v1336 = vsel %vm251, %v1334, 0
      %v1339 = vsel %vm255, %v1322, 0
      %1341 = vmatpush.bf16.msra.mxu0 0
      %1342 = vmatpush.bf16.msra.mxu0 0
      %1343 = vmatpush.bf16.msra.mxu0 0
      %1344 = vmatpush.bf16.msra.mxu0 0
      %1345 = vmatpush.bf16.msra.mxu0 0
      %1346 = vmatpush.bf16.msra.mxu0 0
      %1347 = vmatpush.bf16.msra.mxu0 0
      %1348 = vmatpush.bf16.msra.mxu0 %v1339
      %1349 = vmatmul.bf16.gmra.mxu0 %v1336
      %v1350 = vpop.f32.mrf.mxu0
      %v1351 = vadd.f32 0.0, %v1350
      %v1352 = vpop.f32.mrf.mxu0
      %1353 = vdwg.mxu0
      %v1354 = vadd.f32 %v1319, %v1351
      %v1355 = vld [vmem:[%s1106] sm:$0xf]
      %v1356 = vld [vmem:[%s367] sm:$0x3]
      %v1358 = vsel %vm251, %v1355, 0
      %v1361 = vsel %vm255, %v1356, 0
      %1363 = vmatpush.bf16.msra.mxu0 0
      %1364 = vmatpush.bf16.msra.mxu0 0
      %1365 = vmatpush.bf16.msra.mxu0 0
      %1366 = vmatpush.bf16.msra.mxu0 0
      %1367 = vmatpush.bf16.msra.mxu0 0
      %1368 = vmatpush.bf16.msra.mxu0 0
      %1369 = vmatpush.bf16.msra.mxu0 0
      %1370 = vmatpush.bf16.msra.mxu0 %v1361
      %1371 = vmatmul.bf16.gmra.mxu0 %v1358
      %v1372 = vpop.f32.mrf.mxu0
      %v1373 = vadd.f32 0.0, %v1372
      %v1374 = vpop.f32.mrf.mxu0
      %1375 = vdwg.mxu0
      %v1376 = vadd.f32 %v1354, %v1373
      %v1377 = vld [vmem:[%s1131] sm:$0xf]
      %v1378 = vld [vmem:[%s393] sm:$0x3]
      %v1380 = vsel %vm251, %v1377, 0
      %v1383 = vsel %vm255, %v1378, 0
      %1385 = vmatpush.bf16.msra.mxu0 0
      %1386 = vmatpush.bf16.msra.mxu0 0
      %1387 = vmatpush.bf16.msra.mxu0 0
      %1388 = vmatpush.bf16.msra.mxu0 0
      %1389 = vmatpush.bf16.msra.mxu0 0
      %1390 = vmatpush.bf16.msra.mxu0 0
      %1391 = vmatpush.bf16.msra.mxu0 0
      %1392 = vmatpush.bf16.msra.mxu0 %v1383
      %1393 = vmatmul.bf16.gmra.mxu0 %v1380
      %v1394 = vpop.f32.mrf.mxu0
      %v1395 = vadd.f32 0.0, %v1394
      %v1396 = vpop.f32.mrf.mxu0
      %1397 = vdwg.mxu0
      %v1398 = vadd.f32 %v1376, %v1395
      %v1399 = vld [vmem:[%s1106] sm:$0xf]
      %v1400 = vld [vmem:[%s1106 + $0x4] sm:$0x1]
      %v1401 = vld [vmem:[%s417] sm:$0x3]
      %v1404 = vunpack.c.l.b16 %v1399
      %v1405 = vunpack.c.l.b16 %v1400
      %v1406 = vpack.c.b16 %v1405, %v1404
      %v1408 = vshrl.u32 %v1406, 16
      %v1410 = vshll.u32 %v1406, 16
      %v1412 = vrot.slane %v1410, 1
      %v1413 = vor.u32 %v1408, %v1412
      %v1415 = vsel %vm251, %v1413, 0
      %v1418 = vsel %vm255, %v1401, 0
      %1420 = vmatpush.bf16.msra.mxu0 0
      %1421 = vmatpush.bf16.msra.mxu0 0
      %1422 = vmatpush.bf16.msra.mxu0 0
      %1423 = vmatpush.bf16.msra.mxu0 0
      %1424 = vmatpush.bf16.msra.mxu0 0
      %1425 = vmatpush.bf16.msra.mxu0 0
      %1426 = vmatpush.bf16.msra.mxu0 0
      %1427 = vmatpush.bf16.msra.mxu0 %v1418
      %1428 = vmatmul.bf16.gmra.mxu0 %v1415
      %v1429 = vpop.f32.mrf.mxu0
      %v1430 = vadd.f32 0.0, %v1429
      %v1431 = vpop.f32.mrf.mxu0
      %1432 = vdwg.mxu0
      %v1433 = vadd.f32 %v1398, %v1430
      %v1434 = vld [vmem:[%s1131] sm:$0xf]
      %v1435 = vld [vmem:[%s1131 + $0x4] sm:$0x1]
      %v1436 = vld [vmem:[%s453] sm:$0x3]
      %v1439 = vunpack.c.l.b16 %v1434
      %v1440 = vunpack.c.l.b16 %v1435
      %v1441 = vpack.c.b16 %v1440, %v1439
      %v1443 = vshrl.u32 %v1441, 16
      %v1445 = vshll.u32 %v1441, 16
      %v1447 = vrot.slane %v1445, 1
      %v1448 = vor.u32 %v1443, %v1447
      %v1450 = vsel %vm251, %v1448, 0
      %v1453 = vsel %vm255, %v1436, 0
      %1455 = vmatpush.bf16.msra.mxu0 0
      %1456 = vmatpush.bf16.msra.mxu0 0
      %1457 = vmatpush.bf16.msra.mxu0 0
      %1458 = vmatpush.bf16.msra.mxu0 0
      %1459 = vmatpush.bf16.msra.mxu0 0
      %1460 = vmatpush.bf16.msra.mxu0 0
      %1461 = vmatpush.bf16.msra.mxu0 0
      %1462 = vmatpush.bf16.msra.mxu0 %v1453
      %1463 = vmatmul.bf16.gmra.mxu0 %v1450
      %v1464 = vpop.f32.mrf.mxu0
      %v1465 = vadd.f32 0.0, %v1464
      %v1466 = vpop.f32.mrf.mxu0
      %1467 = vdwg.mxu0
      %v1468 = vadd.f32 %v1433, %v1465
      %s1469 = sadd.s32 %s239, 3
      %s1470 = smul.u32 %s1469, 2
      %s1471 = smul.addr %s1470, 4
      %s1472 = scalar_lea.vmem %s221, %s1471
      %v1473 = vld [vmem:[%s1472] sm:$0xf]
      %v1474 = vld [vmem:[%s492] sm:$0x3]
      %v1476 = vsel %vm251, %v1473, 0
      %v1479 = vsel %vm255, %v1474, 0
      %1481 = vmatpush.bf16.msra.mxu0 0
      %1482 = vmatpush.bf16.msra.mxu0 0
      %1483 = vmatpush.bf16.msra.mxu0 0
      %1484 = vmatpush.bf16.msra.mxu0 0
      %1485 = vmatpush.bf16.msra.mxu0 0
      %1486 = vmatpush.bf16.msra.mxu0 0
      %1487 = vmatpush.bf16.msra.mxu0 0
      %1488 = vmatpush.bf16.msra.mxu0 %v1479
      %1489 = vmatmul.bf16.gmra.mxu0 %v1476
      %v1490 = vpop.f32.mrf.mxu0
      %v1491 = vadd.f32 0.0, %v1490
      %v1492 = vpop.f32.mrf.mxu0
      %1493 = vdwg.mxu0
      %v1494 = vadd.f32 %v1468, %v1491
      %s1495 = sadd.s32 %s1470, 18
      %s1496 = smul.addr %s1495, 4
      %s1497 = scalar_lea.vmem %s221, %s1496
      %v1498 = vld [vmem:[%s1497] sm:$0xf]
      %v1499 = vld [vmem:[%s518] sm:$0x3]
      %v1501 = vsel %vm251, %v1498, 0
      %v1504 = vsel %vm255, %v1499, 0
      %1506 = vmatpush.bf16.msra.mxu0 0
      %1507 = vmatpush.bf16.msra.mxu0 0
      %1508 = vmatpush.bf16.msra.mxu0 0
      %1509 = vmatpush.bf16.msra.mxu0 0
      %1510 = vmatpush.bf16.msra.mxu0 0
      %1511 = vmatpush.bf16.msra.mxu0 0
      %1512 = vmatpush.bf16.msra.mxu0 0
      %1513 = vmatpush.bf16.msra.mxu0 %v1504
      %1514 = vmatmul.bf16.gmra.mxu0 %v1501
      %v1515 = vpop.f32.mrf.mxu0
      %v1516 = vadd.f32 0.0, %v1515
      %v1517 = vpop.f32.mrf.mxu0
      %1518 = vdwg.mxu0
      %v1519 = vadd.f32 %v1494, %v1516
      %v1520 = vld [vmem:[%s1472] sm:$0xf]
      %v1521 = vld [vmem:[%s1472 + $0x4] sm:$0x1]
      %v1522 = vld [vmem:[%s542] sm:$0x3]
      %v1525 = vunpack.c.l.b16 %v1520
      %v1526 = vunpack.c.l.b16 %v1521
      %v1527 = vpack.c.b16 %v1526, %v1525
      %v1529 = vshrl.u32 %v1527, 16
      %v1531 = vshll.u32 %v1527, 16
      %v1533 = vrot.slane %v1531, 1
      %v1534 = vor.u32 %v1529, %v1533
      %v1536 = vsel %vm251, %v1534, 0
      %v1539 = vsel %vm255, %v1522, 0
      %1541 = vmatpush.bf16.msra.mxu0 0
      %1542 = vmatpush.bf16.msra.mxu0 0
      %1543 = vmatpush.bf16.msra.mxu0 0
      %1544 = vmatpush.bf16.msra.mxu0 0
      %1545 = vmatpush.bf16.msra.mxu0 0
      %1546 = vmatpush.bf16.msra.mxu0 0
      %1547 = vmatpush.bf16.msra.mxu0 0
      %1548 = vmatpush.bf16.msra.mxu0 %v1539
      %1549 = vmatmul.bf16.gmra.mxu0 %v1536
      %v1550 = vpop.f32.mrf.mxu0
      %v1551 = vadd.f32 0.0, %v1550
      %v1552 = vpop.f32.mrf.mxu0
      %1553 = vdwg.mxu0
      %v1554 = vadd.f32 %v1519, %v1551
      %v1555 = vld [vmem:[%s1497] sm:$0xf]
      %v1556 = vld [vmem:[%s1497 + $0x4] sm:$0x1]
      %v1557 = vld [vmem:[%s578] sm:$0x3]
      %v1560 = vunpack.c.l.b16 %v1555
      %v1561 = vunpack.c.l.b16 %v1556
      %v1562 = vpack.c.b16 %v1561, %v1560
      %v1564 = vshrl.u32 %v1562, 16
      %v1566 = vshll.u32 %v1562, 16
      %v1568 = vrot.slane %v1566, 1
      %v1569 = vor.u32 %v1564, %v1568
      %v1571 = vsel %vm251, %v1569, 0
      %v1574 = vsel %vm255, %v1557, 0
      %1576 = vmatpush.bf16.msra.mxu0 0
      %1577 = vmatpush.bf16.msra.mxu0 0
      %1578 = vmatpush.bf16.msra.mxu0 0
      %1579 = vmatpush.bf16.msra.mxu0 0
      %1580 = vmatpush.bf16.msra.mxu0 0
      %1581 = vmatpush.bf16.msra.mxu0 0
      %1582 = vmatpush.bf16.msra.mxu0 0
      %1583 = vmatpush.bf16.msra.mxu0 %v1574
      %1584 = vmatmul.bf16.gmra.mxu0 %v1571
      %v1585 = vpop.f32.mrf.mxu0
      %v1586 = vadd.f32 0.0, %v1585
      %v1587 = vpop.f32.mrf.mxu0
      %1588 = vdwg.mxu0
      %v1589 = vadd.f32 %v1554, %v1586
      %s1590 = sadd.s32 %s1470, 36
      %s1591 = smul.addr %s1590, 4
      %s1592 = scalar_lea.vmem %s221, %s1591
      %v1593 = vld [vmem:[%s1592] sm:$0xf]
      %v1594 = vld [vmem:[%s616] sm:$0x3]
      %v1596 = vsel %vm251, %v1593, 0
      %v1599 = vsel %vm255, %v1594, 0
      %1601 = vmatpush.bf16.msra.mxu0 0
      %1602 = vmatpush.bf16.msra.mxu0 0
      %1603 = vmatpush.bf16.msra.mxu0 0
      %1604 = vmatpush.bf16.msra.mxu0 0
      %1605 = vmatpush.bf16.msra.mxu0 0
      %1606 = vmatpush.bf16.msra.mxu0 0
      %1607 = vmatpush.bf16.msra.mxu0 0
      %1608 = vmatpush.bf16.msra.mxu0 %v1599
      %1609 = vmatmul.bf16.gmra.mxu0 %v1596
      %v1610 = vpop.f32.mrf.mxu0
      %v1611 = vadd.f32 0.0, %v1610
      %v1612 = vpop.f32.mrf.mxu0
      %1613 = vdwg.mxu0
      %v1614 = vadd.f32 %v1589, %v1611
      %s1615 = sadd.s32 %s1470, 54
      %s1616 = smul.addr %s1615, 4
      %s1617 = scalar_lea.vmem %s221, %s1616
      %v1618 = vld [vmem:[%s1617] sm:$0xf]
      %v1619 = vld [vmem:[%s642] sm:$0x3]
      %v1621 = vsel %vm251, %v1618, 0
      %v1624 = vsel %vm255, %v1619, 0
      %1626 = vmatpush.bf16.msra.mxu0 0
      %1627 = vmatpush.bf16.msra.mxu0 0
      %1628 = vmatpush.bf16.msra.mxu0 0
      %1629 = vmatpush.bf16.msra.mxu0 0
      %1630 = vmatpush.bf16.msra.mxu0 0
      %1631 = vmatpush.bf16.msra.mxu0 0
      %1632 = vmatpush.bf16.msra.mxu0 0
      %1633 = vmatpush.bf16.msra.mxu0 %v1624
      %1634 = vmatmul.bf16.gmra.mxu0 %v1621
      %v1635 = vpop.f32.mrf.mxu0
      %v1636 = vadd.f32 0.0, %v1635
      %v1637 = vpop.f32.mrf.mxu0
      %1638 = vdwg.mxu0
      %v1639 = vadd.f32 %v1614, %v1636
      %v1640 = vld [vmem:[%s1592] sm:$0xf]
      %v1641 = vld [vmem:[%s1592 + $0x4] sm:$0x1]
      %v1642 = vld [vmem:[%s666] sm:$0x3]
      %v1645 = vunpack.c.l.b16 %v1640
      %v1646 = vunpack.c.l.b16 %v1641
      %v1647 = vpack.c.b16 %v1646, %v1645
      %v1649 = vshrl.u32 %v1647, 16
      %v1651 = vshll.u32 %v1647, 16
      %v1653 = vrot.slane %v1651, 1
      %v1654 = vor.u32 %v1649, %v1653
      %v1656 = vsel %vm251, %v1654, 0
      %v1659 = vsel %vm255, %v1642, 0
      %1661 = vmatpush.bf16.msra.mxu0 0
      %1662 = vmatpush.bf16.msra.mxu0 0
      %1663 = vmatpush.bf16.msra.mxu0 0
      %1664 = vmatpush.bf16.msra.mxu0 0
      %1665 = vmatpush.bf16.msra.mxu0 0
      %1666 = vmatpush.bf16.msra.mxu0 0
      %1667 = vmatpush.bf16.msra.mxu0 0
      %1668 = vmatpush.bf16.msra.mxu0 %v1659
      %1669 = vmatmul.bf16.gmra.mxu0 %v1656
      %v1670 = vpop.f32.mrf.mxu0
      %v1671 = vadd.f32 0.0, %v1670
      %v1672 = vpop.f32.mrf.mxu0
      %1673 = vdwg.mxu0
      %v1674 = vadd.f32 %v1639, %v1671
      %v1675 = vld [vmem:[%s1617] sm:$0xf]
      %v1676 = vld [vmem:[%s1617 + $0x4] sm:$0x1]
      %v1677 = vld [vmem:[%s702] sm:$0x3]
      %v1680 = vunpack.c.l.b16 %v1675
      %v1681 = vunpack.c.l.b16 %v1676
      %v1682 = vpack.c.b16 %v1681, %v1680
      %v1684 = vshrl.u32 %v1682, 16
      %v1686 = vshll.u32 %v1682, 16
      %v1688 = vrot.slane %v1686, 1
      %v1689 = vor.u32 %v1684, %v1688
      %v1691 = vsel %vm251, %v1689, 0
      %v1694 = vsel %vm255, %v1677, 0
      %1696 = vmatpush.bf16.msra.mxu0 0
      %1697 = vmatpush.bf16.msra.mxu0 0
      %1698 = vmatpush.bf16.msra.mxu0 0
      %1699 = vmatpush.bf16.msra.mxu0 0
      %1700 = vmatpush.bf16.msra.mxu0 0
      %1701 = vmatpush.bf16.msra.mxu0 0
      %1702 = vmatpush.bf16.msra.mxu0 0
      %1703 = vmatpush.bf16.msra.mxu0 %v1694
      %1704 = vmatmul.bf16.gmra.mxu0 %v1691
      %v1705 = vpop.f32.mrf.mxu0
      %v1706 = vadd.f32 0.0, %v1705
      %v1707 = vpop.f32.mrf.mxu0
      %1708 = vdwg.mxu0
      %v1709 = vadd.f32 %v1674, %v1706
      %v1710 = vpack.c.bf16 %v1709, %v1709
      %1711 = vst.msk [vmem:[%s230 + $0x8] sm:$0xf] %vm737, %v1710
      %v1712 = vsel %vm739, %v1709, 0.0
      %v1713 = vrot.slane %v1712, 4
      %v1714 = vadd.f32 %v1712, %v1713
      %v1715 = vrot.slane %v1714, 2
      %v1716 = vadd.f32 %v1714, %v1715
      %v1717 = vrot.slane %v1716, 1
      %v1718 = vadd.f32 %v1716, %v1717
      %v1719 = vadd.f32 %v1233, %v1718
      %v1720 = vmul.f32 %v1709, %v1709
      %v1721 = vsel %vm739, %v1720, 0.0
      %v1722 = vrot.slane %v1721, 4
      %v1723 = vadd.f32 %v1721, %v1722
      %v1724 = vrot.slane %v1723, 2
      %v1725 = vadd.f32 %v1723, %v1724
      %v1726 = vrot.slane %v1725, 1
      %v1727 = vadd.f32 %v1725, %v1726
      %v1728 = vadd.f32 %v1242, %v1727
      %v1729 = vld [vmem:[%s1472] sm:$0xf]
      %v1730 = vld [vmem:[%s1] sm:$0x3]
      %v1731 = vld [vmem:[%s1497] sm:$0xf]
      %v1732 = vld [vmem:[%s249] sm:$0x3]
      %v1734 = vsel %vm251, %v1731, 0
      %v1737 = vsel %vm255, %v1732, 0
      %1739 = vmatpush.bf16.msra.mxu0 0
      %1740 = vmatpush.bf16.msra.mxu0 0
      %1741 = vmatpush.bf16.msra.mxu0 0
      %1742 = vmatpush.bf16.msra.mxu0 0
      %1743 = vmatpush.bf16.msra.mxu0 0
      %1744 = vmatpush.bf16.msra.mxu0 0
      %1745 = vmatpush.bf16.msra.mxu0 0
      %1746 = vmatpush.bf16.msra.mxu0 %v1737
      %1747 = vmatmul.bf16.gmra.mxu0 %v1734
      %v1748 = vpop.f32.mrf.mxu0
      %v1749 = vadd.f32 0.0, %v1748
      %v1750 = vpop.f32.mrf.mxu0
      %1751 = vdwg.mxu0
      %v1753 = vsel %vm251, %v1729, 0
      %v1756 = vsel %vm255, %v1730, 0
      %1758 = vmatpush.bf16.msra.mxu0 0
      %1759 = vmatpush.bf16.msra.mxu0 0
      %1760 = vmatpush.bf16.msra.mxu0 0
      %1761 = vmatpush.bf16.msra.mxu0 0
      %1762 = vmatpush.bf16.msra.mxu0 0
      %1763 = vmatpush.bf16.msra.mxu0 0
      %1764 = vmatpush.bf16.msra.mxu0 0
      %1765 = vmatpush.bf16.msra.mxu0 %v1756
      %1766 = vmatmul.bf16.gmra.mxu0 %v1753
      %v1767 = vpop.f32.mrf.mxu0
      %v1768 = vadd.f32 %v1749, %v1767
      %v1769 = vpop.f32.mrf.mxu0
      %1770 = vdwg.mxu0
      %v1771 = vld [vmem:[%s1472] sm:$0xf]
      %v1772 = vld [vmem:[%s1472 + $0x4] sm:$0x1]
      %v1773 = vld [vmem:[%s293] sm:$0x3]
      %v1776 = vunpack.c.l.b16 %v1771
      %v1777 = vunpack.c.l.b16 %v1772
      %v1778 = vpack.c.b16 %v1777, %v1776
      %v1780 = vshrl.u32 %v1778, 16
      %v1782 = vshll.u32 %v1778, 16
      %v1784 = vrot.slane %v1782, 1
      %v1785 = vor.u32 %v1780, %v1784
      %v1787 = vsel %vm251, %v1785, 0
      %v1790 = vsel %vm255, %v1773, 0
      %1792 = vmatpush.bf16.msra.mxu0 0
      %1793 = vmatpush.bf16.msra.mxu0 0
      %1794 = vmatpush.bf16.msra.mxu0 0
      %1795 = vmatpush.bf16.msra.mxu0 0
      %1796 = vmatpush.bf16.msra.mxu0 0
      %1797 = vmatpush.bf16.msra.mxu0 0
      %1798 = vmatpush.bf16.msra.mxu0 0
      %1799 = vmatpush.bf16.msra.mxu0 %v1790
      %1800 = vmatmul.bf16.gmra.mxu0 %v1787
      %v1801 = vpop.f32.mrf.mxu0
      %v1802 = vadd.f32 0.0, %v1801
      %v1803 = vpop.f32.mrf.mxu0
      %1804 = vdwg.mxu0
      %v1805 = vadd.f32 %v1768, %v1802
      %v1806 = vld [vmem:[%s1497] sm:$0xf]
      %v1807 = vld [vmem:[%s1497 + $0x4] sm:$0x1]
      %v1808 = vld [vmem:[%s329] sm:$0x3]
      %v1811 = vunpack.c.l.b16 %v1806
      %v1812 = vunpack.c.l.b16 %v1807
      %v1813 = vpack.c.b16 %v1812, %v1811
      %v1815 = vshrl.u32 %v1813, 16
      %v1817 = vshll.u32 %v1813, 16
      %v1819 = vrot.slane %v1817, 1
      %v1820 = vor.u32 %v1815, %v1819
      %v1822 = vsel %vm251, %v1820, 0
      %v1825 = vsel %vm255, %v1808, 0
      %1827 = vmatpush.bf16.msra.mxu0 0
      %1828 = vmatpush.bf16.msra.mxu0 0
      %1829 = vmatpush.bf16.msra.mxu0 0
      %1830 = vmatpush.bf16.msra.mxu0 0
      %1831 = vmatpush.bf16.msra.mxu0 0
      %1832 = vmatpush.bf16.msra.mxu0 0
      %1833 = vmatpush.bf16.msra.mxu0 0
      %1834 = vmatpush.bf16.msra.mxu0 %v1825
      %1835 = vmatmul.bf16.gmra.mxu0 %v1822
      %v1836 = vpop.f32.mrf.mxu0
      %v1837 = vadd.f32 0.0, %v1836
      %v1838 = vpop.f32.mrf.mxu0
      %1839 = vdwg.mxu0
      %v1840 = vadd.f32 %v1805, %v1837
      %v1841 = vld [vmem:[%s1592] sm:$0xf]
      %v1842 = vld [vmem:[%s367] sm:$0x3]
      %v1844 = vsel %vm251, %v1841, 0
      %v1847 = vsel %vm255, %v1842, 0
      %1849 = vmatpush.bf16.msra.mxu0 0
      %1850 = vmatpush.bf16.msra.mxu0 0
      %1851 = vmatpush.bf16.msra.mxu0 0
      %1852 = vmatpush.bf16.msra.mxu0 0
      %1853 = vmatpush.bf16.msra.mxu0 0
      %1854 = vmatpush.bf16.msra.mxu0 0
      %1855 = vmatpush.bf16.msra.mxu0 0
      %1856 = vmatpush.bf16.msra.mxu0 %v1847
      %1857 = vmatmul.bf16.gmra.mxu0 %v1844
      %v1858 = vpop.f32.mrf.mxu0
      %v1859 = vadd.f32 0.0, %v1858
      %v1860 = vpop.f32.mrf.mxu0
      %1861 = vdwg.mxu0
      %v1862 = vadd.f32 %v1840, %v1859
      %v1863 = vld [vmem:[%s1617] sm:$0xf]
      %v1864 = vld [vmem:[%s393] sm:$0x3]
      %v1866 = vsel %vm251, %v1863, 0
      %v1869 = vsel %vm255, %v1864, 0
      %1871 = vmatpush.bf16.msra.mxu0 0
      %1872 = vmatpush.bf16.msra.mxu0 0
      %1873 = vmatpush.bf16.msra.mxu0 0
      %1874 = vmatpush.bf16.msra.mxu0 0
      %1875 = vmatpush.bf16.msra.mxu0 0
      %1876 = vmatpush.bf16.msra.mxu0 0
      %1877 = vmatpush.bf16.msra.mxu0 0
      %1878 = vmatpush.bf16.msra.mxu0 %v1869
      %1879 = vmatmul.bf16.gmra.mxu0 %v1866
      %v1880 = vpop.f32.mrf.mxu0
      %v1881 = vadd.f32 0.0, %v1880
      %v1882 = vpop.f32.mrf.mxu0
      %1883 = vdwg.mxu0
      %v1884 = vadd.f32 %v1862, %v1881
      %v1885 = vld [vmem:[%s1592] sm:$0xf]
      %v1886 = vld [vmem:[%s1592 + $0x4] sm:$0x1]
      %v1887 = vld [vmem:[%s417] sm:$0x3]
      %v1890 = vunpack.c.l.b16 %v1885
      %v1891 = vunpack.c.l.b16 %v1886
      %v1892 = vpack.c.b16 %v1891, %v1890
      %v1894 = vshrl.u32 %v1892, 16
      %v1896 = vshll.u32 %v1892, 16
      %v1898 = vrot.slane %v1896, 1
      %v1899 = vor.u32 %v1894, %v1898
      %v1901 = vsel %vm251, %v1899, 0
      %v1904 = vsel %vm255, %v1887, 0
      %1906 = vmatpush.bf16.msra.mxu0 0
      %1907 = vmatpush.bf16.msra.mxu0 0
      %1908 = vmatpush.bf16.msra.mxu0 0
      %1909 = vmatpush.bf16.msra.mxu0 0
      %1910 = vmatpush.bf16.msra.mxu0 0
      %1911 = vmatpush.bf16.msra.mxu0 0
      %1912 = vmatpush.bf16.msra.mxu0 0
      %1913 = vmatpush.bf16.msra.mxu0 %v1904
      %1914 = vmatmul.bf16.gmra.mxu0 %v1901
      %v1915 = vpop.f32.mrf.mxu0
      %v1916 = vadd.f32 0.0, %v1915
      %v1917 = vpop.f32.mrf.mxu0
      %1918 = vdwg.mxu0
      %v1919 = vadd.f32 %v1884, %v1916
      %v1920 = vld [vmem:[%s1617] sm:$0xf]
      %v1921 = vld [vmem:[%s1617 + $0x4] sm:$0x1]
      %v1922 = vld [vmem:[%s453] sm:$0x3]
      %v1925 = vunpack.c.l.b16 %v1920
      %v1926 = vunpack.c.l.b16 %v1921
      %v1927 = vpack.c.b16 %v1926, %v1925
      %v1929 = vshrl.u32 %v1927, 16
      %v1931 = vshll.u32 %v1927, 16
      %v1933 = vrot.slane %v1931, 1
      %v1934 = vor.u32 %v1929, %v1933
      %v1936 = vsel %vm251, %v1934, 0
      %v1939 = vsel %vm255, %v1922, 0
      %1941 = vmatpush.bf16.msra.mxu0 0
      %1942 = vmatpush.bf16.msra.mxu0 0
      %1943 = vmatpush.bf16.msra.mxu0 0
      %1944 = vmatpush.bf16.msra.mxu0 0
      %1945 = vmatpush.bf16.msra.mxu0 0
      %1946 = vmatpush.bf16.msra.mxu0 0
      %1947 = vmatpush.bf16.msra.mxu0 0
      %1948 = vmatpush.bf16.msra.mxu0 %v1939
      %1949 = vmatmul.bf16.gmra.mxu0 %v1936
      %v1950 = vpop.f32.mrf.mxu0
      %v1951 = vadd.f32 0.0, %v1950
      %v1952 = vpop.f32.mrf.mxu0
      %1953 = vdwg.mxu0
      %v1954 = vadd.f32 %v1919, %v1951
      %s1955 = sadd.s32 %s239, 4
      %s1956 = smul.u32 %s1955, 2
      %s1957 = smul.addr %s1956, 4
      %s1958 = scalar_lea.vmem %s221, %s1957
      %v1959 = vld [vmem:[%s1958] sm:$0xf]
      %v1960 = vld [vmem:[%s492] sm:$0x3]
      %v1962 = vsel %vm251, %v1959, 0
      %v1965 = vsel %vm255, %v1960, 0
      %1967 = vmatpush.bf16.msra.mxu0 0
      %1968 = vmatpush.bf16.msra.mxu0 0
      %1969 = vmatpush.bf16.msra.mxu0 0
      %1970 = vmatpush.bf16.msra.mxu0 0
      %1971 = vmatpush.bf16.msra.mxu0 0
      %1972 = vmatpush.bf16.msra.mxu0 0
      %1973 = vmatpush.bf16.msra.mxu0 0
      %1974 = vmatpush.bf16.msra.mxu0 %v1965
      %1975 = vmatmul.bf16.gmra.mxu0 %v1962
      %v1976 = vpop.f32.mrf.mxu0
      %v1977 = vadd.f32 0.0, %v1976
      %v1978 = vpop.f32.mrf.mxu0
      %1979 = vdwg.mxu0
      %v1980 = vadd.f32 %v1954, %v1977
      %s1981 = sadd.s32 %s1956, 18
      %s1982 = smul.addr %s1981, 4
      %s1983 = scalar_lea.vmem %s221, %s1982
      %v1984 = vld [vmem:[%s1983] sm:$0xf]
      %v1985 = vld [vmem:[%s518] sm:$0x3]
      %v1987 = vsel %vm251, %v1984, 0
      %v1990 = vsel %vm255, %v1985, 0
      %1992 = vmatpush.bf16.msra.mxu0 0
      %1993 = vmatpush.bf16.msra.mxu0 0
      %1994 = vmatpush.bf16.msra.mxu0 0
      %1995 = vmatpush.bf16.msra.mxu0 0
      %1996 = vmatpush.bf16.msra.mxu0 0
      %1997 = vmatpush.bf16.msra.mxu0 0
      %1998 = vmatpush.bf16.msra.mxu0 0
      %1999 = vmatpush.bf16.msra.mxu0 %v1990
      %2000 = vmatmul.bf16.gmra.mxu0 %v1987
      %v2001 = vpop.f32.mrf.mxu0
      %v2002 = vadd.f32 0.0, %v2001
      %v2003 = vpop.f32.mrf.mxu0
      %2004 = vdwg.mxu0
      %v2005 = vadd.f32 %v1980, %v2002
      %v2006 = vld [vmem:[%s1958] sm:$0xf]
      %v2007 = vld [vmem:[%s1958 + $0x4] sm:$0x1]
      %v2008 = vld [vmem:[%s542] sm:$0x3]
      %v2011 = vunpack.c.l.b16 %v2006
      %v2012 = vunpack.c.l.b16 %v2007
      %v2013 = vpack.c.b16 %v2012, %v2011
      %v2015 = vshrl.u32 %v2013, 16
      %v2017 = vshll.u32 %v2013, 16
      %v2019 = vrot.slane %v2017, 1
      %v2020 = vor.u32 %v2015, %v2019
      %v2022 = vsel %vm251, %v2020, 0
      %v2025 = vsel %vm255, %v2008, 0
      %2027 = vmatpush.bf16.msra.mxu0 0
      %2028 = vmatpush.bf16.msra.mxu0 0
      %2029 = vmatpush.bf16.msra.mxu0 0
      %2030 = vmatpush.bf16.msra.mxu0 0
      %2031 = vmatpush.bf16.msra.mxu0 0
      %2032 = vmatpush.bf16.msra.mxu0 0
      %2033 = vmatpush.bf16.msra.mxu0 0
      %2034 = vmatpush.bf16.msra.mxu0 %v2025
      %2035 = vmatmul.bf16.gmra.mxu0 %v2022
      %v2036 = vpop.f32.mrf.mxu0
      %v2037 = vadd.f32 0.0, %v2036
      %v2038 = vpop.f32.mrf.mxu0
      %2039 = vdwg.mxu0
      %v2040 = vadd.f32 %v2005, %v2037
      %v2041 = vld [vmem:[%s1983] sm:$0xf]
      %v2042 = vld [vmem:[%s1983 + $0x4] sm:$0x1]
      %v2043 = vld [vmem:[%s578] sm:$0x3]
      %v2046 = vunpack.c.l.b16 %v2041
      %v2047 = vunpack.c.l.b16 %v2042
      %v2048 = vpack.c.b16 %v2047, %v2046
      %v2050 = vshrl.u32 %v2048, 16
      %v2052 = vshll.u32 %v2048, 16
      %v2054 = vrot.slane %v2052, 1
      %v2055 = vor.u32 %v2050, %v2054
      %v2057 = vsel %vm251, %v2055, 0
      %v2060 = vsel %vm255, %v2043, 0
      %2062 = vmatpush.bf16.msra.mxu0 0
      %2063 = vmatpush.bf16.msra.mxu0 0
      %2064 = vmatpush.bf16.msra.mxu0 0
      %2065 = vmatpush.bf16.msra.mxu0 0
      %2066 = vmatpush.bf16.msra.mxu0 0
      %2067 = vmatpush.bf16.msra.mxu0 0
      %2068 = vmatpush.bf16.msra.mxu0 0
      %2069 = vmatpush.bf16.msra.mxu0 %v2060
      %2070 = vmatmul.bf16.gmra.mxu0 %v2057
      %v2071 = vpop.f32.mrf.mxu0
      %v2072 = vadd.f32 0.0, %v2071
      %v2073 = vpop.f32.mrf.mxu0
      %2074 = vdwg.mxu0
      %v2075 = vadd.f32 %v2040, %v2072
      %s2076 = sadd.s32 %s1956, 36
      %s2077 = smul.addr %s2076, 4
      %s2078 = scalar_lea.vmem %s221, %s2077
      %v2079 = vld [vmem:[%s2078] sm:$0xf]
      %v2080 = vld [vmem:[%s616] sm:$0x3]
      %v2082 = vsel %vm251, %v2079, 0
      %v2085 = vsel %vm255, %v2080, 0
      %2087 = vmatpush.bf16.msra.mxu0 0
      %2088 = vmatpush.bf16.msra.mxu0 0
      %2089 = vmatpush.bf16.msra.mxu0 0
      %2090 = vmatpush.bf16.msra.mxu0 0
      %2091 = vmatpush.bf16.msra.mxu0 0
      %2092 = vmatpush.bf16.msra.mxu0 0
      %2093 = vmatpush.bf16.msra.mxu0 0
      %2094 = vmatpush.bf16.msra.mxu0 %v2085
      %2095 = vmatmul.bf16.gmra.mxu0 %v2082
      %v2096 = vpop.f32.mrf.mxu0
      %v2097 = vadd.f32 0.0, %v2096
      %v2098 = vpop.f32.mrf.mxu0
      %2099 = vdwg.mxu0
      %v2100 = vadd.f32 %v2075, %v2097
      %s2101 = sadd.s32 %s1956, 54
      %s2102 = smul.addr %s2101, 4
      %s2103 = scalar_lea.vmem %s221, %s2102
      %v2104 = vld [vmem:[%s2103] sm:$0xf]
      %v2105 = vld [vmem:[%s642] sm:$0x3]
      %v2107 = vsel %vm251, %v2104, 0
      %v2110 = vsel %vm255, %v2105, 0
      %2112 = vmatpush.bf16.msra.mxu0 0
      %2113 = vmatpush.bf16.msra.mxu0 0
      %2114 = vmatpush.bf16.msra.mxu0 0
      %2115 = vmatpush.bf16.msra.mxu0 0
      %2116 = vmatpush.bf16.msra.mxu0 0
      %2117 = vmatpush.bf16.msra.mxu0 0
      %2118 = vmatpush.bf16.msra.mxu0 0
      %2119 = vmatpush.bf16.msra.mxu0 %v2110
      %2120 = vmatmul.bf16.gmra.mxu0 %v2107
      %v2121 = vpop.f32.mrf.mxu0
      %v2122 = vadd.f32 0.0, %v2121
      %v2123 = vpop.f32.mrf.mxu0
      %2124 = vdwg.mxu0
      %v2125 = vadd.f32 %v2100, %v2122
      %v2126 = vld [vmem:[%s2078] sm:$0xf]
      %v2127 = vld [vmem:[%s2078 + $0x4] sm:$0x1]
      %v2128 = vld [vmem:[%s666] sm:$0x3]
      %v2131 = vunpack.c.l.b16 %v2126
      %v2132 = vunpack.c.l.b16 %v2127
      %v2133 = vpack.c.b16 %v2132, %v2131
      %v2135 = vshrl.u32 %v2133, 16
      %v2137 = vshll.u32 %v2133, 16
      %v2139 = vrot.slane %v2137, 1
      %v2140 = vor.u32 %v2135, %v2139
      %v2142 = vsel %vm251, %v2140, 0
      %v2145 = vsel %vm255, %v2128, 0
      %2147 = vmatpush.bf16.msra.mxu0 0
      %2148 = vmatpush.bf16.msra.mxu0 0
      %2149 = vmatpush.bf16.msra.mxu0 0
      %2150 = vmatpush.bf16.msra.mxu0 0
      %2151 = vmatpush.bf16.msra.mxu0 0
      %2152 = vmatpush.bf16.msra.mxu0 0
      %2153 = vmatpush.bf16.msra.mxu0 0
      %2154 = vmatpush.bf16.msra.mxu0 %v2145
      %2155 = vmatmul.bf16.gmra.mxu0 %v2142
      %v2156 = vpop.f32.mrf.mxu0
      %v2157 = vadd.f32 0.0, %v2156
      %v2158 = vpop.f32.mrf.mxu0
      %2159 = vdwg.mxu0
      %v2160 = vadd.f32 %v2125, %v2157
      %v2161 = vld [vmem:[%s2103] sm:$0xf]
      %v2162 = vld [vmem:[%s2103 + $0x4] sm:$0x1]
      %v2163 = vld [vmem:[%s702] sm:$0x3]
      %v2166 = vunpack.c.l.b16 %v2161
      %v2167 = vunpack.c.l.b16 %v2162
      %v2168 = vpack.c.b16 %v2167, %v2166
      %v2170 = vshrl.u32 %v2168, 16
      %v2172 = vshll.u32 %v2168, 16
      %v2174 = vrot.slane %v2172, 1
      %v2175 = vor.u32 %v2170, %v2174
      %v2177 = vsel %vm251, %v2175, 0
      %v2180 = vsel %vm255, %v2163, 0
      %2182 = vmatpush.bf16.msra.mxu0 0
      %2183 = vmatpush.bf16.msra.mxu0 0
      %2184 = vmatpush.bf16.msra.mxu0 0
      %2185 = vmatpush.bf16.msra.mxu0 0
      %2186 = vmatpush.bf16.msra.mxu0 0
      %2187 = vmatpush.bf16.msra.mxu0 0
      %2188 = vmatpush.bf16.msra.mxu0 0
      %2189 = vmatpush.bf16.msra.mxu0 %v2180
      %2190 = vmatmul.bf16.gmra.mxu0 %v2177
      %v2191 = vpop.f32.mrf.mxu0
      %v2192 = vadd.f32 0.0, %v2191
      %v2193 = vpop.f32.mrf.mxu0
      %2194 = vdwg.mxu0
      %v2195 = vadd.f32 %v2160, %v2192
      %v2196 = vpack.c.bf16 %v2195, %v2195
      %2197 = vst.msk [vmem:[%s230 + $0xc] sm:$0xf] %vm737, %v2196
      %v2198 = vsel %vm739, %v2195, 0.0
      %v2199 = vrot.slane %v2198, 4
      %v2200 = vadd.f32 %v2198, %v2199
      %v2201 = vrot.slane %v2200, 2
      %v2202 = vadd.f32 %v2200, %v2201
      %v2203 = vrot.slane %v2202, 1
      %v2204 = vadd.f32 %v2202, %v2203
      %v2205 = vadd.f32 %v1719, %v2204
      %v2206 = vmul.f32 %v2195, %v2195
      %v2207 = vsel %vm739, %v2206, 0.0
      %v2208 = vrot.slane %v2207, 4
      %v2209 = vadd.f32 %v2207, %v2208
      %v2210 = vrot.slane %v2209, 2
      %v2211 = vadd.f32 %v2209, %v2210
      %v2212 = vrot.slane %v2211, 1
      %v2213 = vadd.f32 %v2211, %v2212
      %v2214 = vadd.f32 %v1728, %v2213
      %v2215 = vld [vmem:[%s1958] sm:$0xf]
      %v2216 = vld [vmem:[%s1] sm:$0x3]
      %v2217 = vld [vmem:[%s1983] sm:$0xf]
      %v2218 = vld [vmem:[%s249] sm:$0x3]
      %v2220 = vsel %vm251, %v2217, 0
      %v2223 = vsel %vm255, %v2218, 0
      %2225 = vmatpush.bf16.msra.mxu0 0
      %2226 = vmatpush.bf16.msra.mxu0 0
      %2227 = vmatpush.bf16.msra.mxu0 0
      %2228 = vmatpush.bf16.msra.mxu0 0
      %2229 = vmatpush.bf16.msra.mxu0 0
      %2230 = vmatpush.bf16.msra.mxu0 0
      %2231 = vmatpush.bf16.msra.mxu0 0
      %2232 = vmatpush.bf16.msra.mxu0 %v2223
      %2233 = vmatmul.bf16.gmra.mxu0 %v2220
      %v2234 = vpop.f32.mrf.mxu0
      %v2235 = vadd.f32 0.0, %v2234
      %v2236 = vpop.f32.mrf.mxu0
      %2237 = vdwg.mxu0
      %v2239 = vsel %vm251, %v2215, 0
      %v2242 = vsel %vm255, %v2216, 0
      %2244 = vmatpush.bf16.msra.mxu0 0
      %2245 = vmatpush.bf16.msra.mxu0 0
      %2246 = vmatpush.bf16.msra.mxu0 0
      %2247 = vmatpush.bf16.msra.mxu0 0
      %2248 = vmatpush.bf16.msra.mxu0 0
      %2249 = vmatpush.bf16.msra.mxu0 0
      %2250 = vmatpush.bf16.msra.mxu0 0
      %2251 = vmatpush.bf16.msra.mxu0 %v2242
      %2252 = vmatmul.bf16.gmra.mxu0 %v2239
      %v2253 = vpop.f32.mrf.mxu0
      %v2254 = vadd.f32 %v2235, %v2253
      %v2255 = vpop.f32.mrf.mxu0
      %2256 = vdwg.mxu0
      %v2257 = vld [vmem:[%s1958] sm:$0xf]
      %v2258 = vld [vmem:[%s1958 + $0x4] sm:$0x1]
      %v2259 = vld [vmem:[%s293] sm:$0x3]
      %v2262 = vunpack.c.l.b16 %v2257
      %v2263 = vunpack.c.l.b16 %v2258
      %v2264 = vpack.c.b16 %v2263, %v2262
      %v2266 = vshrl.u32 %v2264, 16
      %v2268 = vshll.u32 %v2264, 16
      %v2270 = vrot.slane %v2268, 1
      %v2271 = vor.u32 %v2266, %v2270
      %v2273 = vsel %vm251, %v2271, 0
      %v2276 = vsel %vm255, %v2259, 0
      %2278 = vmatpush.bf16.msra.mxu0 0
      %2279 = vmatpush.bf16.msra.mxu0 0
      %2280 = vmatpush.bf16.msra.mxu0 0
      %2281 = vmatpush.bf16.msra.mxu0 0
      %2282 = vmatpush.bf16.msra.mxu0 0
      %2283 = vmatpush.bf16.msra.mxu0 0
      %2284 = vmatpush.bf16.msra.mxu0 0
      %2285 = vmatpush.bf16.msra.mxu0 %v2276
      %2286 = vmatmul.bf16.gmra.mxu0 %v2273
      %v2287 = vpop.f32.mrf.mxu0
      %v2288 = vadd.f32 0.0, %v2287
      %v2289 = vpop.f32.mrf.mxu0
      %2290 = vdwg.mxu0
      %v2291 = vadd.f32 %v2254, %v2288
      %v2292 = vld [vmem:[%s1983] sm:$0xf]
      %v2293 = vld [vmem:[%s1983 + $0x4] sm:$0x1]
      %v2294 = vld [vmem:[%s329] sm:$0x3]
      %v2297 = vunpack.c.l.b16 %v2292
      %v2298 = vunpack.c.l.b16 %v2293
      %v2299 = vpack.c.b16 %v2298, %v2297
      %v2301 = vshrl.u32 %v2299, 16
      %v2303 = vshll.u32 %v2299, 16
      %v2305 = vrot.slane %v2303, 1
      %v2306 = vor.u32 %v2301, %v2305
      %v2308 = vsel %vm251, %v2306, 0
      %v2311 = vsel %vm255, %v2294, 0
      %2313 = vmatpush.bf16.msra.mxu0 0
      %2314 = vmatpush.bf16.msra.mxu0 0
      %2315 = vmatpush.bf16.msra.mxu0 0
      %2316 = vmatpush.bf16.msra.mxu0 0
      %2317 = vmatpush.bf16.msra.mxu0 0
      %2318 = vmatpush.bf16.msra.mxu0 0
      %2319 = vmatpush.bf16.msra.mxu0 0
      %2320 = vmatpush.bf16.msra.mxu0 %v2311
      %2321 = vmatmul.bf16.gmra.mxu0 %v2308
      %v2322 = vpop.f32.mrf.mxu0
      %v2323 = vadd.f32 0.0, %v2322
      %v2324 = vpop.f32.mrf.mxu0
      %2325 = vdwg.mxu0
      %v2326 = vadd.f32 %v2291, %v2323
      %v2327 = vld [vmem:[%s2078] sm:$0xf]
      %v2328 = vld [vmem:[%s367] sm:$0x3]
      %v2330 = vsel %vm251, %v2327, 0
      %v2333 = vsel %vm255, %v2328, 0
      %2335 = vmatpush.bf16.msra.mxu0 0
      %2336 = vmatpush.bf16.msra.mxu0 0
      %2337 = vmatpush.bf16.msra.mxu0 0
      %2338 = vmatpush.bf16.msra.mxu0 0
      %2339 = vmatpush.bf16.msra.mxu0 0
      %2340 = vmatpush.bf16.msra.mxu0 0
      %2341 = vmatpush.bf16.msra.mxu0 0
      %2342 = vmatpush.bf16.msra.mxu0 %v2333
      %2343 = vmatmul.bf16.gmra.mxu0 %v2330
      %v2344 = vpop.f32.mrf.mxu0
      %v2345 = vadd.f32 0.0, %v2344
      %v2346 = vpop.f32.mrf.mxu0
      %2347 = vdwg.mxu0
      %v2348 = vadd.f32 %v2326, %v2345
      %v2349 = vld [vmem:[%s2103] sm:$0xf]
      %v2350 = vld [vmem:[%s393] sm:$0x3]
      %v2352 = vsel %vm251, %v2349, 0
      %v2355 = vsel %vm255, %v2350, 0
      %2357 = vmatpush.bf16.msra.mxu0 0
      %2358 = vmatpush.bf16.msra.mxu0 0
      %2359 = vmatpush.bf16.msra.mxu0 0
      %2360 = vmatpush.bf16.msra.mxu0 0
      %2361 = vmatpush.bf16.msra.mxu0 0
      %2362 = vmatpush.bf16.msra.mxu0 0
      %2363 = vmatpush.bf16.msra.mxu0 0
      %2364 = vmatpush.bf16.msra.mxu0 %v2355
      %2365 = vmatmul.bf16.gmra.mxu0 %v2352
      %v2366 = vpop.f32.mrf.mxu0
      %v2367 = vadd.f32 0.0, %v2366
      %v2368 = vpop.f32.mrf.mxu0
      %2369 = vdwg.mxu0
      %v2370 = vadd.f32 %v2348, %v2367
      %v2371 = vld [vmem:[%s2078] sm:$0xf]
      %v2372 = vld [vmem:[%s2078 + $0x4] sm:$0x1]
      %v2373 = vld [vmem:[%s417] sm:$0x3]
      %v2376 = vunpack.c.l.b16 %v2371
      %v2377 = vunpack.c.l.b16 %v2372
      %v2378 = vpack.c.b16 %v2377, %v2376
      %v2380 = vshrl.u32 %v2378, 16
      %v2382 = vshll.u32 %v2378, 16
      %v2384 = vrot.slane %v2382, 1
      %v2385 = vor.u32 %v2380, %v2384
      %v2387 = vsel %vm251, %v2385, 0
      %v2390 = vsel %vm255, %v2373, 0
      %2392 = vmatpush.bf16.msra.mxu0 0
      %2393 = vmatpush.bf16.msra.mxu0 0
      %2394 = vmatpush.bf16.msra.mxu0 0
      %2395 = vmatpush.bf16.msra.mxu0 0
      %2396 = vmatpush.bf16.msra.mxu0 0
      %2397 = vmatpush.bf16.msra.mxu0 0
      %2398 = vmatpush.bf16.msra.mxu0 0
      %2399 = vmatpush.bf16.msra.mxu0 %v2390
      %2400 = vmatmul.bf16.gmra.mxu0 %v2387
      %v2401 = vpop.f32.mrf.mxu0
      %v2402 = vadd.f32 0.0, %v2401
      %v2403 = vpop.f32.mrf.mxu0
      %2404 = vdwg.mxu0
      %v2405 = vadd.f32 %v2370, %v2402
      %v2406 = vld [vmem:[%s2103] sm:$0xf]
      %v2407 = vld [vmem:[%s2103 + $0x4] sm:$0x1]
      %v2408 = vld [vmem:[%s453] sm:$0x3]
      %v2411 = vunpack.c.l.b16 %v2406
      %v2412 = vunpack.c.l.b16 %v2407
      %v2413 = vpack.c.b16 %v2412, %v2411
      %v2415 = vshrl.u32 %v2413, 16
      %v2417 = vshll.u32 %v2413, 16
      %v2419 = vrot.slane %v2417, 1
      %v2420 = vor.u32 %v2415, %v2419
      %v2422 = vsel %vm251, %v2420, 0
      %v2425 = vsel %vm255, %v2408, 0
      %2427 = vmatpush.bf16.msra.mxu0 0
      %2428 = vmatpush.bf16.msra.mxu0 0
      %2429 = vmatpush.bf16.msra.mxu0 0
      %2430 = vmatpush.bf16.msra.mxu0 0
      %2431 = vmatpush.bf16.msra.mxu0 0
      %2432 = vmatpush.bf16.msra.mxu0 0
      %2433 = vmatpush.bf16.msra.mxu0 0
      %2434 = vmatpush.bf16.msra.mxu0 %v2425
      %2435 = vmatmul.bf16.gmra.mxu0 %v2422
      %v2436 = vpop.f32.mrf.mxu0
      %v2437 = vadd.f32 0.0, %v2436
      %v2438 = vpop.f32.mrf.mxu0
      %2439 = vdwg.mxu0
      %v2440 = vadd.f32 %v2405, %v2437
      %s2441 = sadd.s32 %s239, 5
      %s2442 = smul.u32 %s2441, 2
      %s2443 = smul.addr %s2442, 4
      %s2444 = scalar_lea.vmem %s221, %s2443
      %v2445 = vld [vmem:[%s2444] sm:$0xf]
      %v2446 = vld [vmem:[%s492] sm:$0x3]
      %v2448 = vsel %vm251, %v2445, 0
      %v2451 = vsel %vm255, %v2446, 0
      %2453 = vmatpush.bf16.msra.mxu0 0
      %2454 = vmatpush.bf16.msra.mxu0 0
      %2455 = vmatpush.bf16.msra.mxu0 0
      %2456 = vmatpush.bf16.msra.mxu0 0
      %2457 = vmatpush.bf16.msra.mxu0 0
      %2458 = vmatpush.bf16.msra.mxu0 0
      %2459 = vmatpush.bf16.msra.mxu0 0
      %2460 = vmatpush.bf16.msra.mxu0 %v2451
      %2461 = vmatmul.bf16.gmra.mxu0 %v2448
      %v2462 = vpop.f32.mrf.mxu0
      %v2463 = vadd.f32 0.0, %v2462
      %v2464 = vpop.f32.mrf.mxu0
      %2465 = vdwg.mxu0
      %v2466 = vadd.f32 %v2440, %v2463
      %s2467 = sadd.s32 %s2442, 18
      %s2468 = smul.addr %s2467, 4
      %s2469 = scalar_lea.vmem %s221, %s2468
      %v2470 = vld [vmem:[%s2469] sm:$0xf]
      %v2471 = vld [vmem:[%s518] sm:$0x3]
      %v2473 = vsel %vm251, %v2470, 0
      %v2476 = vsel %vm255, %v2471, 0
      %2478 = vmatpush.bf16.msra.mxu0 0
      %2479 = vmatpush.bf16.msra.mxu0 0
      %2480 = vmatpush.bf16.msra.mxu0 0
      %2481 = vmatpush.bf16.msra.mxu0 0
      %2482 = vmatpush.bf16.msra.mxu0 0
      %2483 = vmatpush.bf16.msra.mxu0 0
      %2484 = vmatpush.bf16.msra.mxu0 0
      %2485 = vmatpush.bf16.msra.mxu0 %v2476
      %2486 = vmatmul.bf16.gmra.mxu0 %v2473
      %v2487 = vpop.f32.mrf.mxu0
      %v2488 = vadd.f32 0.0, %v2487
      %v2489 = vpop.f32.mrf.mxu0
      %2490 = vdwg.mxu0
      %v2491 = vadd.f32 %v2466, %v2488
      %v2492 = vld [vmem:[%s2444] sm:$0xf]
      %v2493 = vld [vmem:[%s2444 + $0x4] sm:$0x1]
      %v2494 = vld [vmem:[%s542] sm:$0x3]
      %v2497 = vunpack.c.l.b16 %v2492
      %v2498 = vunpack.c.l.b16 %v2493
      %v2499 = vpack.c.b16 %v2498, %v2497
      %v2501 = vshrl.u32 %v2499, 16
      %v2503 = vshll.u32 %v2499, 16
      %v2505 = vrot.slane %v2503, 1
      %v2506 = vor.u32 %v2501, %v2505
      %v2508 = vsel %vm251, %v2506, 0
      %v2511 = vsel %vm255, %v2494, 0
      %2513 = vmatpush.bf16.msra.mxu0 0
      %2514 = vmatpush.bf16.msra.mxu0 0
      %2515 = vmatpush.bf16.msra.mxu0 0
      %2516 = vmatpush.bf16.msra.mxu0 0
      %2517 = vmatpush.bf16.msra.mxu0 0
      %2518 = vmatpush.bf16.msra.mxu0 0
      %2519 = vmatpush.bf16.msra.mxu0 0
      %2520 = vmatpush.bf16.msra.mxu0 %v2511
      %2521 = vmatmul.bf16.gmra.mxu0 %v2508
      %v2522 = vpop.f32.mrf.mxu0
      %v2523 = vadd.f32 0.0, %v2522
      %v2524 = vpop.f32.mrf.mxu0
      %2525 = vdwg.mxu0
      %v2526 = vadd.f32 %v2491, %v2523
      %v2527 = vld [vmem:[%s2469] sm:$0xf]
      %v2528 = vld [vmem:[%s2469 + $0x4] sm:$0x1]
      %v2529 = vld [vmem:[%s578] sm:$0x3]
      %v2532 = vunpack.c.l.b16 %v2527
      %v2533 = vunpack.c.l.b16 %v2528
      %v2534 = vpack.c.b16 %v2533, %v2532
      %v2536 = vshrl.u32 %v2534, 16
      %v2538 = vshll.u32 %v2534, 16
      %v2540 = vrot.slane %v2538, 1
      %v2541 = vor.u32 %v2536, %v2540
      %v2543 = vsel %vm251, %v2541, 0
      %v2546 = vsel %vm255, %v2529, 0
      %2548 = vmatpush.bf16.msra.mxu0 0
      %2549 = vmatpush.bf16.msra.mxu0 0
      %2550 = vmatpush.bf16.msra.mxu0 0
      %2551 = vmatpush.bf16.msra.mxu0 0
      %2552 = vmatpush.bf16.msra.mxu0 0
      %2553 = vmatpush.bf16.msra.mxu0 0
      %2554 = vmatpush.bf16.msra.mxu0 0
      %2555 = vmatpush.bf16.msra.mxu0 %v2546
      %2556 = vmatmul.bf16.gmra.mxu0 %v2543
      %v2557 = vpop.f32.mrf.mxu0
      %v2558 = vadd.f32 0.0, %v2557
      %v2559 = vpop.f32.mrf.mxu0
      %2560 = vdwg.mxu0
      %v2561 = vadd.f32 %v2526, %v2558
      %s2562 = sadd.s32 %s2442, 36
      %s2563 = smul.addr %s2562, 4
      %s2564 = scalar_lea.vmem %s221, %s2563
      %v2565 = vld [vmem:[%s2564] sm:$0xf]
      %v2566 = vld [vmem:[%s616] sm:$0x3]
      %v2568 = vsel %vm251, %v2565, 0
      %v2571 = vsel %vm255, %v2566, 0
      %2573 = vmatpush.bf16.msra.mxu0 0
      %2574 = vmatpush.bf16.msra.mxu0 0
      %2575 = vmatpush.bf16.msra.mxu0 0
      %2576 = vmatpush.bf16.msra.mxu0 0
      %2577 = vmatpush.bf16.msra.mxu0 0
      %2578 = vmatpush.bf16.msra.mxu0 0
      %2579 = vmatpush.bf16.msra.mxu0 0
      %2580 = vmatpush.bf16.msra.mxu0 %v2571
      %2581 = vmatmul.bf16.gmra.mxu0 %v2568
      %v2582 = vpop.f32.mrf.mxu0
      %v2583 = vadd.f32 0.0, %v2582
      %v2584 = vpop.f32.mrf.mxu0
      %2585 = vdwg.mxu0
      %v2586 = vadd.f32 %v2561, %v2583
      %s2587 = sadd.s32 %s2442, 54
      %s2588 = smul.addr %s2587, 4
      %s2589 = scalar_lea.vmem %s221, %s2588
      %v2590 = vld [vmem:[%s2589] sm:$0xf]
      %v2591 = vld [vmem:[%s642] sm:$0x3]
      %v2593 = vsel %vm251, %v2590, 0
      %v2596 = vsel %vm255, %v2591, 0
      %2598 = vmatpush.bf16.msra.mxu0 0
      %2599 = vmatpush.bf16.msra.mxu0 0
      %2600 = vmatpush.bf16.msra.mxu0 0
      %2601 = vmatpush.bf16.msra.mxu0 0
      %2602 = vmatpush.bf16.msra.mxu0 0
      %2603 = vmatpush.bf16.msra.mxu0 0
      %2604 = vmatpush.bf16.msra.mxu0 0
      %2605 = vmatpush.bf16.msra.mxu0 %v2596
      %2606 = vmatmul.bf16.gmra.mxu0 %v2593
      %v2607 = vpop.f32.mrf.mxu0
      %v2608 = vadd.f32 0.0, %v2607
      %v2609 = vpop.f32.mrf.mxu0
      %2610 = vdwg.mxu0
      %v2611 = vadd.f32 %v2586, %v2608
      %v2612 = vld [vmem:[%s2564] sm:$0xf]
      %v2613 = vld [vmem:[%s2564 + $0x4] sm:$0x1]
      %v2614 = vld [vmem:[%s666] sm:$0x3]
      %v2617 = vunpack.c.l.b16 %v2612
      %v2618 = vunpack.c.l.b16 %v2613
      %v2619 = vpack.c.b16 %v2618, %v2617
      %v2621 = vshrl.u32 %v2619, 16
      %v2623 = vshll.u32 %v2619, 16
      %v2625 = vrot.slane %v2623, 1
      %v2626 = vor.u32 %v2621, %v2625
      %v2628 = vsel %vm251, %v2626, 0
      %v2631 = vsel %vm255, %v2614, 0
      %2633 = vmatpush.bf16.msra.mxu0 0
      %2634 = vmatpush.bf16.msra.mxu0 0
      %2635 = vmatpush.bf16.msra.mxu0 0
      %2636 = vmatpush.bf16.msra.mxu0 0
      %2637 = vmatpush.bf16.msra.mxu0 0
      %2638 = vmatpush.bf16.msra.mxu0 0
      %2639 = vmatpush.bf16.msra.mxu0 0
      %2640 = vmatpush.bf16.msra.mxu0 %v2631
      %2641 = vmatmul.bf16.gmra.mxu0 %v2628
      %v2642 = vpop.f32.mrf.mxu0
      %v2643 = vadd.f32 0.0, %v2642
      %v2644 = vpop.f32.mrf.mxu0
      %2645 = vdwg.mxu0
      %v2646 = vadd.f32 %v2611, %v2643
      %v2647 = vld [vmem:[%s2589] sm:$0xf]
      %v2648 = vld [vmem:[%s2589 + $0x4] sm:$0x1]
      %v2649 = vld [vmem:[%s702] sm:$0x3]
      %v2652 = vunpack.c.l.b16 %v2647
      %v2653 = vunpack.c.l.b16 %v2648
      %v2654 = vpack.c.b16 %v2653, %v2652
      %v2656 = vshrl.u32 %v2654, 16
      %v2658 = vshll.u32 %v2654, 16
      %v2660 = vrot.slane %v2658, 1
      %v2661 = vor.u32 %v2656, %v2660
      %v2663 = vsel %vm251, %v2661, 0
      %v2666 = vsel %vm255, %v2649, 0
      %2668 = vmatpush.bf16.msra.mxu0 0
      %2669 = vmatpush.bf16.msra.mxu0 0
      %2670 = vmatpush.bf16.msra.mxu0 0
      %2671 = vmatpush.bf16.msra.mxu0 0
      %2672 = vmatpush.bf16.msra.mxu0 0
      %2673 = vmatpush.bf16.msra.mxu0 0
      %2674 = vmatpush.bf16.msra.mxu0 0
      %2675 = vmatpush.bf16.msra.mxu0 %v2666
      %2676 = vmatmul.bf16.gmra.mxu0 %v2663
      %v2677 = vpop.f32.mrf.mxu0
      %v2678 = vadd.f32 0.0, %v2677
      %v2679 = vpop.f32.mrf.mxu0
      %2680 = vdwg.mxu0
      %v2681 = vadd.f32 %v2646, %v2678
      %v2682 = vpack.c.bf16 %v2681, %v2681
      %2683 = vst.msk [vmem:[%s230 + $0x10] sm:$0xf] %vm737, %v2682
      %v2684 = vsel %vm739, %v2681, 0.0
      %v2685 = vrot.slane %v2684, 4
      %v2686 = vadd.f32 %v2684, %v2685
      %v2687 = vrot.slane %v2686, 2
      %v2688 = vadd.f32 %v2686, %v2687
      %v2689 = vrot.slane %v2688, 1
      %v2690 = vadd.f32 %v2688, %v2689
      %v2691 = vadd.f32 %v2205, %v2690
      %v2692 = vmul.f32 %v2681, %v2681
      %v2693 = vsel %vm739, %v2692, 0.0
      %v2694 = vrot.slane %v2693, 4
      %v2695 = vadd.f32 %v2693, %v2694
      %v2696 = vrot.slane %v2695, 2
      %v2697 = vadd.f32 %v2695, %v2696
      %v2698 = vrot.slane %v2697, 1
      %v2699 = vadd.f32 %v2697, %v2698
      %v2700 = vadd.f32 %v2214, %v2699
      %v2701 = vld [vmem:[%s2444] sm:$0xf]
      %v2702 = vld [vmem:[%s1] sm:$0x3]
      %v2703 = vld [vmem:[%s2469] sm:$0xf]
      %v2704 = vld [vmem:[%s249] sm:$0x3]
      %v2706 = vsel %vm251, %v2703, 0
      %v2709 = vsel %vm255, %v2704, 0
      %2711 = vmatpush.bf16.msra.mxu0 0
      %2712 = vmatpush.bf16.msra.mxu0 0
      %2713 = vmatpush.bf16.msra.mxu0 0
      %2714 = vmatpush.bf16.msra.mxu0 0
      %2715 = vmatpush.bf16.msra.mxu0 0
      %2716 = vmatpush.bf16.msra.mxu0 0
      %2717 = vmatpush.bf16.msra.mxu0 0
      %2718 = vmatpush.bf16.msra.mxu0 %v2709
      %2719 = vmatmul.bf16.gmra.mxu0 %v2706
      %v2720 = vpop.f32.mrf.mxu0
      %v2721 = vadd.f32 0.0, %v2720
      %v2722 = vpop.f32.mrf.mxu0
      %2723 = vdwg.mxu0
      %v2725 = vsel %vm251, %v2701, 0
      %v2728 = vsel %vm255, %v2702, 0
      %2730 = vmatpush.bf16.msra.mxu0 0
      %2731 = vmatpush.bf16.msra.mxu0 0
      %2732 = vmatpush.bf16.msra.mxu0 0
      %2733 = vmatpush.bf16.msra.mxu0 0
      %2734 = vmatpush.bf16.msra.mxu0 0
      %2735 = vmatpush.bf16.msra.mxu0 0
      %2736 = vmatpush.bf16.msra.mxu0 0
      %2737 = vmatpush.bf16.msra.mxu0 %v2728
      %2738 = vmatmul.bf16.gmra.mxu0 %v2725
      %v2739 = vpop.f32.mrf.mxu0
      %v2740 = vadd.f32 %v2721, %v2739
      %v2741 = vpop.f32.mrf.mxu0
      %2742 = vdwg.mxu0
      %v2743 = vld [vmem:[%s2444] sm:$0xf]
      %v2744 = vld [vmem:[%s2444 + $0x4] sm:$0x1]
      %v2745 = vld [vmem:[%s293] sm:$0x3]
      %v2748 = vunpack.c.l.b16 %v2743
      %v2749 = vunpack.c.l.b16 %v2744
      %v2750 = vpack.c.b16 %v2749, %v2748
      %v2752 = vshrl.u32 %v2750, 16
      %v2754 = vshll.u32 %v2750, 16
      %v2756 = vrot.slane %v2754, 1
      %v2757 = vor.u32 %v2752, %v2756
      %v2759 = vsel %vm251, %v2757, 0
      %v2762 = vsel %vm255, %v2745, 0
      %2764 = vmatpush.bf16.msra.mxu0 0
      %2765 = vmatpush.bf16.msra.mxu0 0
      %2766 = vmatpush.bf16.msra.mxu0 0
      %2767 = vmatpush.bf16.msra.mxu0 0
      %2768 = vmatpush.bf16.msra.mxu0 0
      %2769 = vmatpush.bf16.msra.mxu0 0
      %2770 = vmatpush.bf16.msra.mxu0 0
      %2771 = vmatpush.bf16.msra.mxu0 %v2762
      %2772 = vmatmul.bf16.gmra.mxu0 %v2759
      %v2773 = vpop.f32.mrf.mxu0
      %v2774 = vadd.f32 0.0, %v2773
      %v2775 = vpop.f32.mrf.mxu0
      %2776 = vdwg.mxu0
      %v2777 = vadd.f32 %v2740, %v2774
      %v2778 = vld [vmem:[%s2469] sm:$0xf]
      %v2779 = vld [vmem:[%s2469 + $0x4] sm:$0x1]
      %v2780 = vld [vmem:[%s329] sm:$0x3]
      %v2783 = vunpack.c.l.b16 %v2778
      %v2784 = vunpack.c.l.b16 %v2779
      %v2785 = vpack.c.b16 %v2784, %v2783
      %v2787 = vshrl.u32 %v2785, 16
      %v2789 = vshll.u32 %v2785, 16
      %v2791 = vrot.slane %v2789, 1
      %v2792 = vor.u32 %v2787, %v2791
      %v2794 = vsel %vm251, %v2792, 0
      %v2797 = vsel %vm255, %v2780, 0
      %2799 = vmatpush.bf16.msra.mxu0 0
      %2800 = vmatpush.bf16.msra.mxu0 0
      %2801 = vmatpush.bf16.msra.mxu0 0
      %2802 = vmatpush.bf16.msra.mxu0 0
      %2803 = vmatpush.bf16.msra.mxu0 0
      %2804 = vmatpush.bf16.msra.mxu0 0
      %2805 = vmatpush.bf16.msra.mxu0 0
      %2806 = vmatpush.bf16.msra.mxu0 %v2797
      %2807 = vmatmul.bf16.gmra.mxu0 %v2794
      %v2808 = vpop.f32.mrf.mxu0
      %v2809 = vadd.f32 0.0, %v2808
      %v2810 = vpop.f32.mrf.mxu0
      %2811 = vdwg.mxu0
      %v2812 = vadd.f32 %v2777, %v2809
      %v2813 = vld [vmem:[%s2564] sm:$0xf]
      %v2814 = vld [vmem:[%s367] sm:$0x3]
      %v2816 = vsel %vm251, %v2813, 0
      %v2819 = vsel %vm255, %v2814, 0
      %2821 = vmatpush.bf16.msra.mxu0 0
      %2822 = vmatpush.bf16.msra.mxu0 0
      %2823 = vmatpush.bf16.msra.mxu0 0
      %2824 = vmatpush.bf16.msra.mxu0 0
      %2825 = vmatpush.bf16.msra.mxu0 0
      %2826 = vmatpush.bf16.msra.mxu0 0
      %2827 = vmatpush.bf16.msra.mxu0 0
      %2828 = vmatpush.bf16.msra.mxu0 %v2819
      %2829 = vmatmul.bf16.gmra.mxu0 %v2816
      %v2830 = vpop.f32.mrf.mxu0
      %v2831 = vadd.f32 0.0, %v2830
      %v2832 = vpop.f32.mrf.mxu0
      %2833 = vdwg.mxu0
      %v2834 = vadd.f32 %v2812, %v2831
      %v2835 = vld [vmem:[%s2589] sm:$0xf]
      %v2836 = vld [vmem:[%s393] sm:$0x3]
      %v2838 = vsel %vm251, %v2835, 0
      %v2841 = vsel %vm255, %v2836, 0
      %2843 = vmatpush.bf16.msra.mxu0 0
      %2844 = vmatpush.bf16.msra.mxu0 0
      %2845 = vmatpush.bf16.msra.mxu0 0
      %2846 = vmatpush.bf16.msra.mxu0 0
      %2847 = vmatpush.bf16.msra.mxu0 0
      %2848 = vmatpush.bf16.msra.mxu0 0
      %2849 = vmatpush.bf16.msra.mxu0 0
      %2850 = vmatpush.bf16.msra.mxu0 %v2841
      %2851 = vmatmul.bf16.gmra.mxu0 %v2838
      %v2852 = vpop.f32.mrf.mxu0
      %v2853 = vadd.f32 0.0, %v2852
      %v2854 = vpop.f32.mrf.mxu0
      %2855 = vdwg.mxu0
      %v2856 = vadd.f32 %v2834, %v2853
      %v2857 = vld [vmem:[%s2564] sm:$0xf]
      %v2858 = vld [vmem:[%s2564 + $0x4] sm:$0x1]
      %v2859 = vld [vmem:[%s417] sm:$0x3]
      %v2862 = vunpack.c.l.b16 %v2857
      %v2863 = vunpack.c.l.b16 %v2858
      %v2864 = vpack.c.b16 %v2863, %v2862
      %v2866 = vshrl.u32 %v2864, 16
      %v2868 = vshll.u32 %v2864, 16
      %v2870 = vrot.slane %v2868, 1
      %v2871 = vor.u32 %v2866, %v2870
      %v2873 = vsel %vm251, %v2871, 0
      %v2876 = vsel %vm255, %v2859, 0
      %2878 = vmatpush.bf16.msra.mxu0 0
      %2879 = vmatpush.bf16.msra.mxu0 0
      %2880 = vmatpush.bf16.msra.mxu0 0
      %2881 = vmatpush.bf16.msra.mxu0 0
      %2882 = vmatpush.bf16.msra.mxu0 0
      %2883 = vmatpush.bf16.msra.mxu0 0
      %2884 = vmatpush.bf16.msra.mxu0 0
      %2885 = vmatpush.bf16.msra.mxu0 %v2876
      %2886 = vmatmul.bf16.gmra.mxu0 %v2873
      %v2887 = vpop.f32.mrf.mxu0
      %v2888 = vadd.f32 0.0, %v2887
      %v2889 = vpop.f32.mrf.mxu0
      %2890 = vdwg.mxu0
      %v2891 = vadd.f32 %v2856, %v2888
      %v2892 = vld [vmem:[%s2589] sm:$0xf]
      %v2893 = vld [vmem:[%s2589 + $0x4] sm:$0x1]
      %v2894 = vld [vmem:[%s453] sm:$0x3]
      %v2897 = vunpack.c.l.b16 %v2892
      %v2898 = vunpack.c.l.b16 %v2893
      %v2899 = vpack.c.b16 %v2898, %v2897
      %v2901 = vshrl.u32 %v2899, 16
      %v2903 = vshll.u32 %v2899, 16
      %v2905 = vrot.slane %v2903, 1
      %v2906 = vor.u32 %v2901, %v2905
      %v2908 = vsel %vm251, %v2906, 0
      %v2911 = vsel %vm255, %v2894, 0
      %2913 = vmatpush.bf16.msra.mxu0 0
      %2914 = vmatpush.bf16.msra.mxu0 0
      %2915 = vmatpush.bf16.msra.mxu0 0
      %2916 = vmatpush.bf16.msra.mxu0 0
      %2917 = vmatpush.bf16.msra.mxu0 0
      %2918 = vmatpush.bf16.msra.mxu0 0
      %2919 = vmatpush.bf16.msra.mxu0 0
      %2920 = vmatpush.bf16.msra.mxu0 %v2911
      %2921 = vmatmul.bf16.gmra.mxu0 %v2908
      %v2922 = vpop.f32.mrf.mxu0
      %v2923 = vadd.f32 0.0, %v2922
      %v2924 = vpop.f32.mrf.mxu0
      %2925 = vdwg.mxu0
      %v2926 = vadd.f32 %v2891, %v2923
      %s2927 = sadd.s32 %s239, 6
      %s2928 = smul.u32 %s2927, 2
      %s2929 = smul.addr %s2928, 4
      %s2930 = scalar_lea.vmem %s221, %s2929
      %v2931 = vld [vmem:[%s2930] sm:$0xf]
      %v2932 = vld [vmem:[%s492] sm:$0x3]
      %v2934 = vsel %vm251, %v2931, 0
      %v2937 = vsel %vm255, %v2932, 0
      %2939 = vmatpush.bf16.msra.mxu0 0
      %2940 = vmatpush.bf16.msra.mxu0 0
      %2941 = vmatpush.bf16.msra.mxu0 0
      %2942 = vmatpush.bf16.msra.mxu0 0
      %2943 = vmatpush.bf16.msra.mxu0 0
      %2944 = vmatpush.bf16.msra.mxu0 0
      %2945 = vmatpush.bf16.msra.mxu0 0
      %2946 = vmatpush.bf16.msra.mxu0 %v2937
      %2947 = vmatmul.bf16.gmra.mxu0 %v2934
      %v2948 = vpop.f32.mrf.mxu0
      %v2949 = vadd.f32 0.0, %v2948
      %v2950 = vpop.f32.mrf.mxu0
      %2951 = vdwg.mxu0
      %v2952 = vadd.f32 %v2926, %v2949
      %s2953 = sadd.s32 %s2928, 18
      %s2954 = smul.addr %s2953, 4
      %s2955 = scalar_lea.vmem %s221, %s2954
      %v2956 = vld [vmem:[%s2955] sm:$0xf]
      %v2957 = vld [vmem:[%s518] sm:$0x3]
      %v2959 = vsel %vm251, %v2956, 0
      %v2962 = vsel %vm255, %v2957, 0
      %2964 = vmatpush.bf16.msra.mxu0 0
      %2965 = vmatpush.bf16.msra.mxu0 0
      %2966 = vmatpush.bf16.msra.mxu0 0
      %2967 = vmatpush.bf16.msra.mxu0 0
      %2968 = vmatpush.bf16.msra.mxu0 0
      %2969 = vmatpush.bf16.msra.mxu0 0
      %2970 = vmatpush.bf16.msra.mxu0 0
      %2971 = vmatpush.bf16.msra.mxu0 %v2962
      %2972 = vmatmul.bf16.gmra.mxu0 %v2959
      %v2973 = vpop.f32.mrf.mxu0
      %v2974 = vadd.f32 0.0, %v2973
      %v2975 = vpop.f32.mrf.mxu0
      %2976 = vdwg.mxu0
      %v2977 = vadd.f32 %v2952, %v2974
      %v2978 = vld [vmem:[%s2930] sm:$0xf]
      %v2979 = vld [vmem:[%s2930 + $0x4] sm:$0x1]
      %v2980 = vld [vmem:[%s542] sm:$0x3]
      %v2983 = vunpack.c.l.b16 %v2978
      %v2984 = vunpack.c.l.b16 %v2979
      %v2985 = vpack.c.b16 %v2984, %v2983
      %v2987 = vshrl.u32 %v2985, 16
      %v2989 = vshll.u32 %v2985, 16
      %v2991 = vrot.slane %v2989, 1
      %v2992 = vor.u32 %v2987, %v2991
      %v2994 = vsel %vm251, %v2992, 0
      %v2997 = vsel %vm255, %v2980, 0
      %2999 = vmatpush.bf16.msra.mxu0 0
      %3000 = vmatpush.bf16.msra.mxu0 0
      %3001 = vmatpush.bf16.msra.mxu0 0
      %3002 = vmatpush.bf16.msra.mxu0 0
      %3003 = vmatpush.bf16.msra.mxu0 0
      %3004 = vmatpush.bf16.msra.mxu0 0
      %3005 = vmatpush.bf16.msra.mxu0 0
      %3006 = vmatpush.bf16.msra.mxu0 %v2997
      %3007 = vmatmul.bf16.gmra.mxu0 %v2994
      %v3008 = vpop.f32.mrf.mxu0
      %v3009 = vadd.f32 0.0, %v3008
      %v3010 = vpop.f32.mrf.mxu0
      %3011 = vdwg.mxu0
      %v3012 = vadd.f32 %v2977, %v3009
      %v3013 = vld [vmem:[%s2955] sm:$0xf]
      %v3014 = vld [vmem:[%s2955 + $0x4] sm:$0x1]
      %v3015 = vld [vmem:[%s578] sm:$0x3]
      %v3018 = vunpack.c.l.b16 %v3013
      %v3019 = vunpack.c.l.b16 %v3014
      %v3020 = vpack.c.b16 %v3019, %v3018
      %v3022 = vshrl.u32 %v3020, 16
      %v3024 = vshll.u32 %v3020, 16
      %v3026 = vrot.slane %v3024, 1
      %v3027 = vor.u32 %v3022, %v3026
      %v3029 = vsel %vm251, %v3027, 0
      %v3032 = vsel %vm255, %v3015, 0
      %3034 = vmatpush.bf16.msra.mxu0 0
      %3035 = vmatpush.bf16.msra.mxu0 0
      %3036 = vmatpush.bf16.msra.mxu0 0
      %3037 = vmatpush.bf16.msra.mxu0 0
      %3038 = vmatpush.bf16.msra.mxu0 0
      %3039 = vmatpush.bf16.msra.mxu0 0
      %3040 = vmatpush.bf16.msra.mxu0 0
      %3041 = vmatpush.bf16.msra.mxu0 %v3032
      %3042 = vmatmul.bf16.gmra.mxu0 %v3029
      %v3043 = vpop.f32.mrf.mxu0
      %v3044 = vadd.f32 0.0, %v3043
      %v3045 = vpop.f32.mrf.mxu0
      %3046 = vdwg.mxu0
      %v3047 = vadd.f32 %v3012, %v3044
      %s3048 = sadd.s32 %s2928, 36
      %s3049 = smul.addr %s3048, 4
      %s3050 = scalar_lea.vmem %s221, %s3049
      %v3051 = vld [vmem:[%s3050] sm:$0xf]
      %v3052 = vld [vmem:[%s616] sm:$0x3]
      %v3054 = vsel %vm251, %v3051, 0
      %v3057 = vsel %vm255, %v3052, 0
      %3059 = vmatpush.bf16.msra.mxu0 0
      %3060 = vmatpush.bf16.msra.mxu0 0
      %3061 = vmatpush.bf16.msra.mxu0 0
      %3062 = vmatpush.bf16.msra.mxu0 0
      %3063 = vmatpush.bf16.msra.mxu0 0
      %3064 = vmatpush.bf16.msra.mxu0 0
      %3065 = vmatpush.bf16.msra.mxu0 0
      %3066 = vmatpush.bf16.msra.mxu0 %v3057
      %3067 = vmatmul.bf16.gmra.mxu0 %v3054
      %v3068 = vpop.f32.mrf.mxu0
      %v3069 = vadd.f32 0.0, %v3068
      %v3070 = vpop.f32.mrf.mxu0
      %3071 = vdwg.mxu0
      %v3072 = vadd.f32 %v3047, %v3069
      %s3073 = sadd.s32 %s2928, 54
      %s3074 = smul.addr %s3073, 4
      %s3075 = scalar_lea.vmem %s221, %s3074
      %v3076 = vld [vmem:[%s3075] sm:$0xf]
      %v3077 = vld [vmem:[%s642] sm:$0x3]
      %v3079 = vsel %vm251, %v3076, 0
      %v3082 = vsel %vm255, %v3077, 0
      %3084 = vmatpush.bf16.msra.mxu0 0
      %3085 = vmatpush.bf16.msra.mxu0 0
      %3086 = vmatpush.bf16.msra.mxu0 0
      %3087 = vmatpush.bf16.msra.mxu0 0
      %3088 = vmatpush.bf16.msra.mxu0 0
      %3089 = vmatpush.bf16.msra.mxu0 0
      %3090 = vmatpush.bf16.msra.mxu0 0
      %3091 = vmatpush.bf16.msra.mxu0 %v3082
      %3092 = vmatmul.bf16.gmra.mxu0 %v3079
      %v3093 = vpop.f32.mrf.mxu0
      %v3094 = vadd.f32 0.0, %v3093
      %v3095 = vpop.f32.mrf.mxu0
      %3096 = vdwg.mxu0
      %v3097 = vadd.f32 %v3072, %v3094
      %v3098 = vld [vmem:[%s3050] sm:$0xf]
      %v3099 = vld [vmem:[%s3050 + $0x4] sm:$0x1]
      %v3100 = vld [vmem:[%s666] sm:$0x3]
      %v3103 = vunpack.c.l.b16 %v3098
      %v3104 = vunpack.c.l.b16 %v3099
      %v3105 = vpack.c.b16 %v3104, %v3103
      %v3107 = vshrl.u32 %v3105, 16
      %v3109 = vshll.u32 %v3105, 16
      %v3111 = vrot.slane %v3109, 1
      %v3112 = vor.u32 %v3107, %v3111
      %v3114 = vsel %vm251, %v3112, 0
      %v3117 = vsel %vm255, %v3100, 0
      %3119 = vmatpush.bf16.msra.mxu0 0
      %3120 = vmatpush.bf16.msra.mxu0 0
      %3121 = vmatpush.bf16.msra.mxu0 0
      %3122 = vmatpush.bf16.msra.mxu0 0
      %3123 = vmatpush.bf16.msra.mxu0 0
      %3124 = vmatpush.bf16.msra.mxu0 0
      %3125 = vmatpush.bf16.msra.mxu0 0
      %3126 = vmatpush.bf16.msra.mxu0 %v3117
      %3127 = vmatmul.bf16.gmra.mxu0 %v3114
      %v3128 = vpop.f32.mrf.mxu0
      %v3129 = vadd.f32 0.0, %v3128
      %v3130 = vpop.f32.mrf.mxu0
      %3131 = vdwg.mxu0
      %v3132 = vadd.f32 %v3097, %v3129
      %v3133 = vld [vmem:[%s3075] sm:$0xf]
      %v3134 = vld [vmem:[%s3075 + $0x4] sm:$0x1]
      %v3135 = vld [vmem:[%s702] sm:$0x3]
      %v3138 = vunpack.c.l.b16 %v3133
      %v3139 = vunpack.c.l.b16 %v3134
      %v3140 = vpack.c.b16 %v3139, %v3138
      %v3142 = vshrl.u32 %v3140, 16
      %v3144 = vshll.u32 %v3140, 16
      %v3146 = vrot.slane %v3144, 1
      %v3147 = vor.u32 %v3142, %v3146
      %v3149 = vsel %vm251, %v3147, 0
      %v3152 = vsel %vm255, %v3135, 0
      %3154 = vmatpush.bf16.msra.mxu0 0
      %3155 = vmatpush.bf16.msra.mxu0 0
      %3156 = vmatpush.bf16.msra.mxu0 0
      %3157 = vmatpush.bf16.msra.mxu0 0
      %3158 = vmatpush.bf16.msra.mxu0 0
      %3159 = vmatpush.bf16.msra.mxu0 0
      %3160 = vmatpush.bf16.msra.mxu0 0
      %3161 = vmatpush.bf16.msra.mxu0 %v3152
      %3162 = vmatmul.bf16.gmra.mxu0 %v3149
      %v3163 = vpop.f32.mrf.mxu0
      %v3164 = vadd.f32 0.0, %v3163
      %v3165 = vpop.f32.mrf.mxu0
      %3166 = vdwg.mxu0
      %v3167 = vadd.f32 %v3132, %v3164
      %v3168 = vpack.c.bf16 %v3167, %v3167
      %3169 = vst.msk [vmem:[%s230 + $0x14] sm:$0xf] %vm737, %v3168
      %v3170 = vsel %vm739, %v3167, 0.0
      %v3171 = vrot.slane %v3170, 4
      %v3172 = vadd.f32 %v3170, %v3171
      %v3173 = vrot.slane %v3172, 2
      %v3174 = vadd.f32 %v3172, %v3173
      %v3175 = vrot.slane %v3174, 1
      %v3176 = vadd.f32 %v3174, %v3175
      %v3177 = vadd.f32 %v2691, %v3176
      %v3178 = vmul.f32 %v3167, %v3167
      %v3179 = vsel %vm739, %v3178, 0.0
      %v3180 = vrot.slane %v3179, 4
      %v3181 = vadd.f32 %v3179, %v3180
      %v3182 = vrot.slane %v3181, 2
      %v3183 = vadd.f32 %v3181, %v3182
      %v3184 = vrot.slane %v3183, 1
      %v3185 = vadd.f32 %v3183, %v3184
      %v3186 = vadd.f32 %v2700, %v3185
      %v3187 = vld [vmem:[%s2930] sm:$0xf]
      %v3188 = vld [vmem:[%s1] sm:$0x3]
      %v3189 = vld [vmem:[%s2955] sm:$0xf]
      %v3190 = vld [vmem:[%s249] sm:$0x3]
      %v3192 = vsel %vm251, %v3189, 0
      %v3195 = vsel %vm255, %v3190, 0
      %3197 = vmatpush.bf16.msra.mxu0 0
      %3198 = vmatpush.bf16.msra.mxu0 0
      %3199 = vmatpush.bf16.msra.mxu0 0
      %3200 = vmatpush.bf16.msra.mxu0 0
      %3201 = vmatpush.bf16.msra.mxu0 0
      %3202 = vmatpush.bf16.msra.mxu0 0
      %3203 = vmatpush.bf16.msra.mxu0 0
      %3204 = vmatpush.bf16.msra.mxu0 %v3195
      %3205 = vmatmul.bf16.gmra.mxu0 %v3192
      %v3206 = vpop.f32.mrf.mxu0
      %v3207 = vadd.f32 0.0, %v3206
      %v3208 = vpop.f32.mrf.mxu0
      %3209 = vdwg.mxu0
      %v3211 = vsel %vm251, %v3187, 0
      %v3214 = vsel %vm255, %v3188, 0
      %3216 = vmatpush.bf16.msra.mxu0 0
      %3217 = vmatpush.bf16.msra.mxu0 0
      %3218 = vmatpush.bf16.msra.mxu0 0
      %3219 = vmatpush.bf16.msra.mxu0 0
      %3220 = vmatpush.bf16.msra.mxu0 0
      %3221 = vmatpush.bf16.msra.mxu0 0
      %3222 = vmatpush.bf16.msra.mxu0 0
      %3223 = vmatpush.bf16.msra.mxu0 %v3214
      %3224 = vmatmul.bf16.gmra.mxu0 %v3211
      %v3225 = vpop.f32.mrf.mxu0
      %v3226 = vadd.f32 %v3207, %v3225
      %v3227 = vpop.f32.mrf.mxu0
      %3228 = vdwg.mxu0
      %v3229 = vld [vmem:[%s2930] sm:$0xf]
      %v3230 = vld [vmem:[%s2930 + $0x4] sm:$0x1]
      %v3231 = vld [vmem:[%s293] sm:$0x3]
      %v3234 = vunpack.c.l.b16 %v3229
      %v3235 = vunpack.c.l.b16 %v3230
      %v3236 = vpack.c.b16 %v3235, %v3234
      %v3238 = vshrl.u32 %v3236, 16
      %v3240 = vshll.u32 %v3236, 16
      %v3242 = vrot.slane %v3240, 1
      %v3243 = vor.u32 %v3238, %v3242
      %v3245 = vsel %vm251, %v3243, 0
      %v3248 = vsel %vm255, %v3231, 0
      %3250 = vmatpush.bf16.msra.mxu0 0
      %3251 = vmatpush.bf16.msra.mxu0 0
      %3252 = vmatpush.bf16.msra.mxu0 0
      %3253 = vmatpush.bf16.msra.mxu0 0
      %3254 = vmatpush.bf16.msra.mxu0 0
      %3255 = vmatpush.bf16.msra.mxu0 0
      %3256 = vmatpush.bf16.msra.mxu0 0
      %3257 = vmatpush.bf16.msra.mxu0 %v3248
      %3258 = vmatmul.bf16.gmra.mxu0 %v3245
      %v3259 = vpop.f32.mrf.mxu0
      %v3260 = vadd.f32 0.0, %v3259
      %v3261 = vpop.f32.mrf.mxu0
      %3262 = vdwg.mxu0
      %v3263 = vadd.f32 %v3226, %v3260
      %v3264 = vld [vmem:[%s2955] sm:$0xf]
      %v3265 = vld [vmem:[%s2955 + $0x4] sm:$0x1]
      %v3266 = vld [vmem:[%s329] sm:$0x3]
      %v3269 = vunpack.c.l.b16 %v3264
      %v3270 = vunpack.c.l.b16 %v3265
      %v3271 = vpack.c.b16 %v3270, %v3269
      %v3273 = vshrl.u32 %v3271, 16
      %v3275 = vshll.u32 %v3271, 16
      %v3277 = vrot.slane %v3275, 1
      %v3278 = vor.u32 %v3273, %v3277
      %v3280 = vsel %vm251, %v3278, 0
      %v3283 = vsel %vm255, %v3266, 0
      %3285 = vmatpush.bf16.msra.mxu0 0
      %3286 = vmatpush.bf16.msra.mxu0 0
      %3287 = vmatpush.bf16.msra.mxu0 0
      %3288 = vmatpush.bf16.msra.mxu0 0
      %3289 = vmatpush.bf16.msra.mxu0 0
      %3290 = vmatpush.bf16.msra.mxu0 0
      %3291 = vmatpush.bf16.msra.mxu0 0
      %3292 = vmatpush.bf16.msra.mxu0 %v3283
      %3293 = vmatmul.bf16.gmra.mxu0 %v3280
      %v3294 = vpop.f32.mrf.mxu0
      %v3295 = vadd.f32 0.0, %v3294
      %v3296 = vpop.f32.mrf.mxu0
      %3297 = vdwg.mxu0
      %v3298 = vadd.f32 %v3263, %v3295
      %v3299 = vld [vmem:[%s3050] sm:$0xf]
      %v3300 = vld [vmem:[%s367] sm:$0x3]
      %v3302 = vsel %vm251, %v3299, 0
      %v3305 = vsel %vm255, %v3300, 0
      %3307 = vmatpush.bf16.msra.mxu0 0
      %3308 = vmatpush.bf16.msra.mxu0 0
      %3309 = vmatpush.bf16.msra.mxu0 0
      %3310 = vmatpush.bf16.msra.mxu0 0
      %3311 = vmatpush.bf16.msra.mxu0 0
      %3312 = vmatpush.bf16.msra.mxu0 0
      %3313 = vmatpush.bf16.msra.mxu0 0
      %3314 = vmatpush.bf16.msra.mxu0 %v3305
      %3315 = vmatmul.bf16.gmra.mxu0 %v3302
      %v3316 = vpop.f32.mrf.mxu0
      %v3317 = vadd.f32 0.0, %v3316
      %v3318 = vpop.f32.mrf.mxu0
      %3319 = vdwg.mxu0
      %v3320 = vadd.f32 %v3298, %v3317
      %v3321 = vld [vmem:[%s3075] sm:$0xf]
      %v3322 = vld [vmem:[%s393] sm:$0x3]
      %v3324 = vsel %vm251, %v3321, 0
      %v3327 = vsel %vm255, %v3322, 0
      %3329 = vmatpush.bf16.msra.mxu0 0
      %3330 = vmatpush.bf16.msra.mxu0 0
      %3331 = vmatpush.bf16.msra.mxu0 0
      %3332 = vmatpush.bf16.msra.mxu0 0
      %3333 = vmatpush.bf16.msra.mxu0 0
      %3334 = vmatpush.bf16.msra.mxu0 0
      %3335 = vmatpush.bf16.msra.mxu0 0
      %3336 = vmatpush.bf16.msra.mxu0 %v3327
      %3337 = vmatmul.bf16.gmra.mxu0 %v3324
      %v3338 = vpop.f32.mrf.mxu0
      %v3339 = vadd.f32 0.0, %v3338
      %v3340 = vpop.f32.mrf.mxu0
      %3341 = vdwg.mxu0
      %v3342 = vadd.f32 %v3320, %v3339
      %v3343 = vld [vmem:[%s3050] sm:$0xf]
      %v3344 = vld [vmem:[%s3050 + $0x4] sm:$0x1]
      %v3345 = vld [vmem:[%s417] sm:$0x3]
      %v3348 = vunpack.c.l.b16 %v3343
      %v3349 = vunpack.c.l.b16 %v3344
      %v3350 = vpack.c.b16 %v3349, %v3348
      %v3352 = vshrl.u32 %v3350, 16
      %v3354 = vshll.u32 %v3350, 16
      %v3356 = vrot.slane %v3354, 1
      %v3357 = vor.u32 %v3352, %v3356
      %v3359 = vsel %vm251, %v3357, 0
      %v3362 = vsel %vm255, %v3345, 0
      %3364 = vmatpush.bf16.msra.mxu0 0
      %3365 = vmatpush.bf16.msra.mxu0 0
      %3366 = vmatpush.bf16.msra.mxu0 0
      %3367 = vmatpush.bf16.msra.mxu0 0
      %3368 = vmatpush.bf16.msra.mxu0 0
      %3369 = vmatpush.bf16.msra.mxu0 0
      %3370 = vmatpush.bf16.msra.mxu0 0
      %3371 = vmatpush.bf16.msra.mxu0 %v3362
      %3372 = vmatmul.bf16.gmra.mxu0 %v3359
      %v3373 = vpop.f32.mrf.mxu0
      %v3374 = vadd.f32 0.0, %v3373
      %v3375 = vpop.f32.mrf.mxu0
      %3376 = vdwg.mxu0
      %v3377 = vadd.f32 %v3342, %v3374
      %v3378 = vld [vmem:[%s3075] sm:$0xf]
      %v3379 = vld [vmem:[%s3075 + $0x4] sm:$0x1]
      %v3380 = vld [vmem:[%s453] sm:$0x3]
      %v3383 = vunpack.c.l.b16 %v3378
      %v3384 = vunpack.c.l.b16 %v3379
      %v3385 = vpack.c.b16 %v3384, %v3383
      %v3387 = vshrl.u32 %v3385, 16
      %v3389 = vshll.u32 %v3385, 16
      %v3391 = vrot.slane %v3389, 1
      %v3392 = vor.u32 %v3387, %v3391
      %v3394 = vsel %vm251, %v3392, 0
      %v3397 = vsel %vm255, %v3380, 0
      %3399 = vmatpush.bf16.msra.mxu0 0
      %3400 = vmatpush.bf16.msra.mxu0 0
      %3401 = vmatpush.bf16.msra.mxu0 0
      %3402 = vmatpush.bf16.msra.mxu0 0
      %3403 = vmatpush.bf16.msra.mxu0 0
      %3404 = vmatpush.bf16.msra.mxu0 0
      %3405 = vmatpush.bf16.msra.mxu0 0
      %3406 = vmatpush.bf16.msra.mxu0 %v3397
      %3407 = vmatmul.bf16.gmra.mxu0 %v3394
      %v3408 = vpop.f32.mrf.mxu0
      %v3409 = vadd.f32 0.0, %v3408
      %v3410 = vpop.f32.mrf.mxu0
      %3411 = vdwg.mxu0
      %v3412 = vadd.f32 %v3377, %v3409
      %s3413 = sadd.s32 %s239, 7
      %s3414 = smul.u32 %s3413, 2
      %s3415 = smul.addr %s3414, 4
      %s3416 = scalar_lea.vmem %s221, %s3415
      %v3417 = vld [vmem:[%s3416] sm:$0xf]
      %v3418 = vld [vmem:[%s492] sm:$0x3]
      %v3420 = vsel %vm251, %v3417, 0
      %v3423 = vsel %vm255, %v3418, 0
      %3425 = vmatpush.bf16.msra.mxu0 0
      %3426 = vmatpush.bf16.msra.mxu0 0
      %3427 = vmatpush.bf16.msra.mxu0 0
      %3428 = vmatpush.bf16.msra.mxu0 0
      %3429 = vmatpush.bf16.msra.mxu0 0
      %3430 = vmatpush.bf16.msra.mxu0 0
      %3431 = vmatpush.bf16.msra.mxu0 0
      %3432 = vmatpush.bf16.msra.mxu0 %v3423
      %3433 = vmatmul.bf16.gmra.mxu0 %v3420
      %v3434 = vpop.f32.mrf.mxu0
      %v3435 = vadd.f32 0.0, %v3434
      %v3436 = vpop.f32.mrf.mxu0
      %3437 = vdwg.mxu0
      %v3438 = vadd.f32 %v3412, %v3435
      %s3439 = sadd.s32 %s3414, 18
      %s3440 = smul.addr %s3439, 4
      %s3441 = scalar_lea.vmem %s221, %s3440
      %v3442 = vld [vmem:[%s3441] sm:$0xf]
      %v3443 = vld [vmem:[%s518] sm:$0x3]
      %v3445 = vsel %vm251, %v3442, 0
      %v3448 = vsel %vm255, %v3443, 0
      %3450 = vmatpush.bf16.msra.mxu0 0
      %3451 = vmatpush.bf16.msra.mxu0 0
      %3452 = vmatpush.bf16.msra.mxu0 0
      %3453 = vmatpush.bf16.msra.mxu0 0
      %3454 = vmatpush.bf16.msra.mxu0 0
      %3455 = vmatpush.bf16.msra.mxu0 0
      %3456 = vmatpush.bf16.msra.mxu0 0
      %3457 = vmatpush.bf16.msra.mxu0 %v3448
      %3458 = vmatmul.bf16.gmra.mxu0 %v3445
      %v3459 = vpop.f32.mrf.mxu0
      %v3460 = vadd.f32 0.0, %v3459
      %v3461 = vpop.f32.mrf.mxu0
      %3462 = vdwg.mxu0
      %v3463 = vadd.f32 %v3438, %v3460
      %v3464 = vld [vmem:[%s3416] sm:$0xf]
      %v3465 = vld [vmem:[%s3416 + $0x4] sm:$0x1]
      %v3466 = vld [vmem:[%s542] sm:$0x3]
      %v3469 = vunpack.c.l.b16 %v3464
      %v3470 = vunpack.c.l.b16 %v3465
      %v3471 = vpack.c.b16 %v3470, %v3469
      %v3473 = vshrl.u32 %v3471, 16
      %v3475 = vshll.u32 %v3471, 16
      %v3477 = vrot.slane %v3475, 1
      %v3478 = vor.u32 %v3473, %v3477
      %v3480 = vsel %vm251, %v3478, 0
      %v3483 = vsel %vm255, %v3466, 0
      %3485 = vmatpush.bf16.msra.mxu0 0
      %3486 = vmatpush.bf16.msra.mxu0 0
      %3487 = vmatpush.bf16.msra.mxu0 0
      %3488 = vmatpush.bf16.msra.mxu0 0
      %3489 = vmatpush.bf16.msra.mxu0 0
      %3490 = vmatpush.bf16.msra.mxu0 0
      %3491 = vmatpush.bf16.msra.mxu0 0
      %3492 = vmatpush.bf16.msra.mxu0 %v3483
      %3493 = vmatmul.bf16.gmra.mxu0 %v3480
      %v3494 = vpop.f32.mrf.mxu0
      %v3495 = vadd.f32 0.0, %v3494
      %v3496 = vpop.f32.mrf.mxu0
      %3497 = vdwg.mxu0
      %v3498 = vadd.f32 %v3463, %v3495
      %v3499 = vld [vmem:[%s3441] sm:$0xf]
      %v3500 = vld [vmem:[%s3441 + $0x4] sm:$0x1]
      %v3501 = vld [vmem:[%s578] sm:$0x3]
      %v3504 = vunpack.c.l.b16 %v3499
      %v3505 = vunpack.c.l.b16 %v3500
      %v3506 = vpack.c.b16 %v3505, %v3504
      %v3508 = vshrl.u32 %v3506, 16
      %v3510 = vshll.u32 %v3506, 16
      %v3512 = vrot.slane %v3510, 1
      %v3513 = vor.u32 %v3508, %v3512
      %v3515 = vsel %vm251, %v3513, 0
      %v3518 = vsel %vm255, %v3501, 0
      %3520 = vmatpush.bf16.msra.mxu0 0
      %3521 = vmatpush.bf16.msra.mxu0 0
      %3522 = vmatpush.bf16.msra.mxu0 0
      %3523 = vmatpush.bf16.msra.mxu0 0
      %3524 = vmatpush.bf16.msra.mxu0 0
      %3525 = vmatpush.bf16.msra.mxu0 0
      %3526 = vmatpush.bf16.msra.mxu0 0
      %3527 = vmatpush.bf16.msra.mxu0 %v3518
      %3528 = vmatmul.bf16.gmra.mxu0 %v3515
      %v3529 = vpop.f32.mrf.mxu0
      %v3530 = vadd.f32 0.0, %v3529
      %v3531 = vpop.f32.mrf.mxu0
      %3532 = vdwg.mxu0
      %v3533 = vadd.f32 %v3498, %v3530
      %s3534 = sadd.s32 %s3414, 36
      %s3535 = smul.addr %s3534, 4
      %s3536 = scalar_lea.vmem %s221, %s3535
      %v3537 = vld [vmem:[%s3536] sm:$0xf]
      %v3538 = vld [vmem:[%s616] sm:$0x3]
      %v3540 = vsel %vm251, %v3537, 0
      %v3543 = vsel %vm255, %v3538, 0
      %3545 = vmatpush.bf16.msra.mxu0 0
      %3546 = vmatpush.bf16.msra.mxu0 0
      %3547 = vmatpush.bf16.msra.mxu0 0
      %3548 = vmatpush.bf16.msra.mxu0 0
      %3549 = vmatpush.bf16.msra.mxu0 0
      %3550 = vmatpush.bf16.msra.mxu0 0
      %3551 = vmatpush.bf16.msra.mxu0 0
      %3552 = vmatpush.bf16.msra.mxu0 %v3543
      %3553 = vmatmul.bf16.gmra.mxu0 %v3540
      %v3554 = vpop.f32.mrf.mxu0
      %v3555 = vadd.f32 0.0, %v3554
      %v3556 = vpop.f32.mrf.mxu0
      %3557 = vdwg.mxu0
      %v3558 = vadd.f32 %v3533, %v3555
      %s3559 = sadd.s32 %s3414, 54
      %s3560 = smul.addr %s3559, 4
      %s3561 = scalar_lea.vmem %s221, %s3560
      %v3562 = vld [vmem:[%s3561] sm:$0xf]
      %v3563 = vld [vmem:[%s642] sm:$0x3]
      %v3565 = vsel %vm251, %v3562, 0
      %v3568 = vsel %vm255, %v3563, 0
      %3570 = vmatpush.bf16.msra.mxu0 0
      %3571 = vmatpush.bf16.msra.mxu0 0
      %3572 = vmatpush.bf16.msra.mxu0 0
      %3573 = vmatpush.bf16.msra.mxu0 0
      %3574 = vmatpush.bf16.msra.mxu0 0
      %3575 = vmatpush.bf16.msra.mxu0 0
      %3576 = vmatpush.bf16.msra.mxu0 0
      %3577 = vmatpush.bf16.msra.mxu0 %v3568
      %3578 = vmatmul.bf16.gmra.mxu0 %v3565
      %v3579 = vpop.f32.mrf.mxu0
      %v3580 = vadd.f32 0.0, %v3579
      %v3581 = vpop.f32.mrf.mxu0
      %3582 = vdwg.mxu0
      %v3583 = vadd.f32 %v3558, %v3580
      %v3584 = vld [vmem:[%s3536] sm:$0xf]
      %v3585 = vld [vmem:[%s3536 + $0x4] sm:$0x1]
      %v3586 = vld [vmem:[%s666] sm:$0x3]
      %v3589 = vunpack.c.l.b16 %v3584
      %v3590 = vunpack.c.l.b16 %v3585
      %v3591 = vpack.c.b16 %v3590, %v3589
      %v3593 = vshrl.u32 %v3591, 16
      %v3595 = vshll.u32 %v3591, 16
      %v3597 = vrot.slane %v3595, 1
      %v3598 = vor.u32 %v3593, %v3597
      %v3600 = vsel %vm251, %v3598, 0
      %v3603 = vsel %vm255, %v3586, 0
      %3605 = vmatpush.bf16.msra.mxu0 0
      %3606 = vmatpush.bf16.msra.mxu0 0
      %3607 = vmatpush.bf16.msra.mxu0 0
      %3608 = vmatpush.bf16.msra.mxu0 0
      %3609 = vmatpush.bf16.msra.mxu0 0
      %3610 = vmatpush.bf16.msra.mxu0 0
      %3611 = vmatpush.bf16.msra.mxu0 0
      %3612 = vmatpush.bf16.msra.mxu0 %v3603
      %3613 = vmatmul.bf16.gmra.mxu0 %v3600
      %v3614 = vpop.f32.mrf.mxu0
      %v3615 = vadd.f32 0.0, %v3614
      %v3616 = vpop.f32.mrf.mxu0
      %3617 = vdwg.mxu0
      %v3618 = vadd.f32 %v3583, %v3615
      %v3619 = vld [vmem:[%s3561] sm:$0xf]
      %v3620 = vld [vmem:[%s3561 + $0x4] sm:$0x1]
      %v3621 = vld [vmem:[%s702] sm:$0x3]
      %v3624 = vunpack.c.l.b16 %v3619
      %v3625 = vunpack.c.l.b16 %v3620
      %v3626 = vpack.c.b16 %v3625, %v3624
      %v3628 = vshrl.u32 %v3626, 16
      %v3630 = vshll.u32 %v3626, 16
      %v3632 = vrot.slane %v3630, 1
      %v3633 = vor.u32 %v3628, %v3632
      %v3635 = vsel %vm251, %v3633, 0
      %v3638 = vsel %vm255, %v3621, 0
      %3640 = vmatpush.bf16.msra.mxu0 0
      %3641 = vmatpush.bf16.msra.mxu0 0
      %3642 = vmatpush.bf16.msra.mxu0 0
      %3643 = vmatpush.bf16.msra.mxu0 0
      %3644 = vmatpush.bf16.msra.mxu0 0
      %3645 = vmatpush.bf16.msra.mxu0 0
      %3646 = vmatpush.bf16.msra.mxu0 0
      %3647 = vmatpush.bf16.msra.mxu0 %v3638
      %3648 = vmatmul.bf16.gmra.mxu0 %v3635
      %v3649 = vpop.f32.mrf.mxu0
      %v3650 = vadd.f32 0.0, %v3649
      %v3651 = vpop.f32.mrf.mxu0
      %3652 = vdwg.mxu0
      %v3653 = vadd.f32 %v3618, %v3650
      %v3654 = vpack.c.bf16 %v3653, %v3653
      %3655 = vst.msk [vmem:[%s230 + $0x18] sm:$0xf] %vm737, %v3654
      %v3656 = vsel %vm739, %v3653, 0.0
      %v3657 = vrot.slane %v3656, 4
      %v3658 = vadd.f32 %v3656, %v3657
      %v3659 = vrot.slane %v3658, 2
      %v3660 = vadd.f32 %v3658, %v3659
      %v3661 = vrot.slane %v3660, 1
      %v3662 = vadd.f32 %v3660, %v3661
      %v3663 = vadd.f32 %v3177, %v3662
      %v3664 = vmul.f32 %v3653, %v3653
      %v3665 = vsel %vm739, %v3664, 0.0
      %v3666 = vrot.slane %v3665, 4
      %v3667 = vadd.f32 %v3665, %v3666
      %v3668 = vrot.slane %v3667, 2
      %v3669 = vadd.f32 %v3667, %v3668
      %v3670 = vrot.slane %v3669, 1
      %v3671 = vadd.f32 %v3669, %v3670
      %v3672 = vadd.f32 %v3186, %v3671
      %v3673 = vld [vmem:[%s3416] sm:$0xf]
      %v3674 = vld [vmem:[%s1] sm:$0x3]
      %v3675 = vld [vmem:[%s3441] sm:$0xf]
      %v3676 = vld [vmem:[%s249] sm:$0x3]
      %v3678 = vsel %vm251, %v3675, 0
      %v3681 = vsel %vm255, %v3676, 0
      %3683 = vmatpush.bf16.msra.mxu0 0
      %3684 = vmatpush.bf16.msra.mxu0 0
      %3685 = vmatpush.bf16.msra.mxu0 0
      %3686 = vmatpush.bf16.msra.mxu0 0
      %3687 = vmatpush.bf16.msra.mxu0 0
      %3688 = vmatpush.bf16.msra.mxu0 0
      %3689 = vmatpush.bf16.msra.mxu0 0
      %3690 = vmatpush.bf16.msra.mxu0 %v3681
      %3691 = vmatmul.bf16.gmra.mxu0 %v3678
      %v3692 = vpop.f32.mrf.mxu0
      %v3693 = vadd.f32 0.0, %v3692
      %v3694 = vpop.f32.mrf.mxu0
      %3695 = vdwg.mxu0
      %v3697 = vsel %vm251, %v3673, 0
      %v3700 = vsel %vm255, %v3674, 0
      %3702 = vmatpush.bf16.msra.mxu0 0
      %3703 = vmatpush.bf16.msra.mxu0 0
      %3704 = vmatpush.bf16.msra.mxu0 0
      %3705 = vmatpush.bf16.msra.mxu0 0
      %3706 = vmatpush.bf16.msra.mxu0 0
      %3707 = vmatpush.bf16.msra.mxu0 0
      %3708 = vmatpush.bf16.msra.mxu0 0
      %3709 = vmatpush.bf16.msra.mxu0 %v3700
      %3710 = vmatmul.bf16.gmra.mxu0 %v3697
      %v3711 = vpop.f32.mrf.mxu0
      %v3712 = vadd.f32 %v3693, %v3711
      %v3713 = vpop.f32.mrf.mxu0
      %3714 = vdwg.mxu0
      %v3715 = vld [vmem:[%s3416] sm:$0xf]
      %v3716 = vld [vmem:[%s3416 + $0x4] sm:$0x1]
      %v3717 = vld [vmem:[%s293] sm:$0x3]
      %v3720 = vunpack.c.l.b16 %v3715
      %v3721 = vunpack.c.l.b16 %v3716
      %v3722 = vpack.c.b16 %v3721, %v3720
      %v3724 = vshrl.u32 %v3722, 16
      %v3726 = vshll.u32 %v3722, 16
      %v3728 = vrot.slane %v3726, 1
      %v3729 = vor.u32 %v3724, %v3728
      %v3731 = vsel %vm251, %v3729, 0
      %v3734 = vsel %vm255, %v3717, 0
      %3736 = vmatpush.bf16.msra.mxu0 0
      %3737 = vmatpush.bf16.msra.mxu0 0
      %3738 = vmatpush.bf16.msra.mxu0 0
      %3739 = vmatpush.bf16.msra.mxu0 0
      %3740 = vmatpush.bf16.msra.mxu0 0
      %3741 = vmatpush.bf16.msra.mxu0 0
      %3742 = vmatpush.bf16.msra.mxu0 0
      %3743 = vmatpush.bf16.msra.mxu0 %v3734
      %3744 = vmatmul.bf16.gmra.mxu0 %v3731
      %v3745 = vpop.f32.mrf.mxu0
      %v3746 = vadd.f32 0.0, %v3745
      %v3747 = vpop.f32.mrf.mxu0
      %3748 = vdwg.mxu0
      %v3749 = vadd.f32 %v3712, %v3746
      %v3750 = vld [vmem:[%s3441] sm:$0xf]
      %v3751 = vld [vmem:[%s3441 + $0x4] sm:$0x1]
      %v3752 = vld [vmem:[%s329] sm:$0x3]
      %v3755 = vunpack.c.l.b16 %v3750
      %v3756 = vunpack.c.l.b16 %v3751
      %v3757 = vpack.c.b16 %v3756, %v3755
      %v3759 = vshrl.u32 %v3757, 16
      %v3761 = vshll.u32 %v3757, 16
      %v3763 = vrot.slane %v3761, 1
      %v3764 = vor.u32 %v3759, %v3763
      %v3766 = vsel %vm251, %v3764, 0
      %v3769 = vsel %vm255, %v3752, 0
      %3771 = vmatpush.bf16.msra.mxu0 0
      %3772 = vmatpush.bf16.msra.mxu0 0
      %3773 = vmatpush.bf16.msra.mxu0 0
      %3774 = vmatpush.bf16.msra.mxu0 0
      %3775 = vmatpush.bf16.msra.mxu0 0
      %3776 = vmatpush.bf16.msra.mxu0 0
      %3777 = vmatpush.bf16.msra.mxu0 0
      %3778 = vmatpush.bf16.msra.mxu0 %v3769
      %3779 = vmatmul.bf16.gmra.mxu0 %v3766
      %v3780 = vpop.f32.mrf.mxu0
      %v3781 = vadd.f32 0.0, %v3780
      %v3782 = vpop.f32.mrf.mxu0
      %3783 = vdwg.mxu0
      %v3784 = vadd.f32 %v3749, %v3781
      %v3785 = vld [vmem:[%s3536] sm:$0xf]
      %v3786 = vld [vmem:[%s367] sm:$0x3]
      %v3788 = vsel %vm251, %v3785, 0
      %v3791 = vsel %vm255, %v3786, 0
      %3793 = vmatpush.bf16.msra.mxu0 0
      %3794 = vmatpush.bf16.msra.mxu0 0
      %3795 = vmatpush.bf16.msra.mxu0 0
      %3796 = vmatpush.bf16.msra.mxu0 0
      %3797 = vmatpush.bf16.msra.mxu0 0
      %3798 = vmatpush.bf16.msra.mxu0 0
      %3799 = vmatpush.bf16.msra.mxu0 0
      %3800 = vmatpush.bf16.msra.mxu0 %v3791
      %3801 = vmatmul.bf16.gmra.mxu0 %v3788
      %v3802 = vpop.f32.mrf.mxu0
      %v3803 = vadd.f32 0.0, %v3802
      %v3804 = vpop.f32.mrf.mxu0
      %3805 = vdwg.mxu0
      %v3806 = vadd.f32 %v3784, %v3803
      %v3807 = vld [vmem:[%s3561] sm:$0xf]
      %v3808 = vld [vmem:[%s393] sm:$0x3]
      %v3810 = vsel %vm251, %v3807, 0
      %v3813 = vsel %vm255, %v3808, 0
      %3815 = vmatpush.bf16.msra.mxu0 0
      %3816 = vmatpush.bf16.msra.mxu0 0
      %3817 = vmatpush.bf16.msra.mxu0 0
      %3818 = vmatpush.bf16.msra.mxu0 0
      %3819 = vmatpush.bf16.msra.mxu0 0
      %3820 = vmatpush.bf16.msra.mxu0 0
      %3821 = vmatpush.bf16.msra.mxu0 0
      %3822 = vmatpush.bf16.msra.mxu0 %v3813
      %3823 = vmatmul.bf16.gmra.mxu0 %v3810
      %v3824 = vpop.f32.mrf.mxu0
      %v3825 = vadd.f32 0.0, %v3824
      %v3826 = vpop.f32.mrf.mxu0
      %3827 = vdwg.mxu0
      %v3828 = vadd.f32 %v3806, %v3825
      %v3829 = vld [vmem:[%s3536] sm:$0xf]
      %v3830 = vld [vmem:[%s3536 + $0x4] sm:$0x1]
      %v3831 = vld [vmem:[%s417] sm:$0x3]
      %v3834 = vunpack.c.l.b16 %v3829
      %v3835 = vunpack.c.l.b16 %v3830
      %v3836 = vpack.c.b16 %v3835, %v3834
      %v3838 = vshrl.u32 %v3836, 16
      %v3840 = vshll.u32 %v3836, 16
      %v3842 = vrot.slane %v3840, 1
      %v3843 = vor.u32 %v3838, %v3842
      %v3845 = vsel %vm251, %v3843, 0
      %v3848 = vsel %vm255, %v3831, 0
      %3850 = vmatpush.bf16.msra.mxu0 0
      %3851 = vmatpush.bf16.msra.mxu0 0
      %3852 = vmatpush.bf16.msra.mxu0 0
      %3853 = vmatpush.bf16.msra.mxu0 0
      %3854 = vmatpush.bf16.msra.mxu0 0
      %3855 = vmatpush.bf16.msra.mxu0 0
      %3856 = vmatpush.bf16.msra.mxu0 0
      %3857 = vmatpush.bf16.msra.mxu0 %v3848
      %3858 = vmatmul.bf16.gmra.mxu0 %v3845
      %v3859 = vpop.f32.mrf.mxu0
      %v3860 = vadd.f32 0.0, %v3859
      %v3861 = vpop.f32.mrf.mxu0
      %3862 = vdwg.mxu0
      %v3863 = vadd.f32 %v3828, %v3860
      %v3864 = vld [vmem:[%s3561] sm:$0xf]
      %v3865 = vld [vmem:[%s3561 + $0x4] sm:$0x1]
      %v3866 = vld [vmem:[%s453] sm:$0x3]
      %v3869 = vunpack.c.l.b16 %v3864
      %v3870 = vunpack.c.l.b16 %v3865
      %v3871 = vpack.c.b16 %v3870, %v3869
      %v3873 = vshrl.u32 %v3871, 16
      %v3875 = vshll.u32 %v3871, 16
      %v3877 = vrot.slane %v3875, 1
      %v3878 = vor.u32 %v3873, %v3877
      %v3880 = vsel %vm251, %v3878, 0
      %v3883 = vsel %vm255, %v3866, 0
      %3885 = vmatpush.bf16.msra.mxu0 0
      %3886 = vmatpush.bf16.msra.mxu0 0
      %3887 = vmatpush.bf16.msra.mxu0 0
      %3888 = vmatpush.bf16.msra.mxu0 0
      %3889 = vmatpush.bf16.msra.mxu0 0
      %3890 = vmatpush.bf16.msra.mxu0 0
      %3891 = vmatpush.bf16.msra.mxu0 0
      %3892 = vmatpush.bf16.msra.mxu0 %v3883
      %3893 = vmatmul.bf16.gmra.mxu0 %v3880
      %v3894 = vpop.f32.mrf.mxu0
      %v3895 = vadd.f32 0.0, %v3894
      %v3896 = vpop.f32.mrf.mxu0
      %3897 = vdwg.mxu0
      %v3898 = vadd.f32 %v3863, %v3895
      %s3899 = sadd.s32 %s239, 8
      %s3900 = smul.u32 %s3899, 2
      %s3901 = smul.addr %s3900, 4
      %s3902 = scalar_lea.vmem %s221, %s3901
      %v3903 = vld [vmem:[%s3902] sm:$0xf]
      %v3904 = vld [vmem:[%s492] sm:$0x3]
      %v3906 = vsel %vm251, %v3903, 0
      %v3909 = vsel %vm255, %v3904, 0
      %3911 = vmatpush.bf16.msra.mxu0 0
      %3912 = vmatpush.bf16.msra.mxu0 0
      %3913 = vmatpush.bf16.msra.mxu0 0
      %3914 = vmatpush.bf16.msra.mxu0 0
      %3915 = vmatpush.bf16.msra.mxu0 0
      %3916 = vmatpush.bf16.msra.mxu0 0
      %3917 = vmatpush.bf16.msra.mxu0 0
      %3918 = vmatpush.bf16.msra.mxu0 %v3909
      %3919 = vmatmul.bf16.gmra.mxu0 %v3906
      %v3920 = vpop.f32.mrf.mxu0
      %v3921 = vadd.f32 0.0, %v3920
      %v3922 = vpop.f32.mrf.mxu0
      %3923 = vdwg.mxu0
      %v3924 = vadd.f32 %v3898, %v3921
      %s3925 = sadd.s32 %s3900, 18
      %s3926 = smul.addr %s3925, 4
      %s3927 = scalar_lea.vmem %s221, %s3926
      %v3928 = vld [vmem:[%s3927] sm:$0xf]
      %v3929 = vld [vmem:[%s518] sm:$0x3]
      %v3931 = vsel %vm251, %v3928, 0
      %v3934 = vsel %vm255, %v3929, 0
      %3936 = vmatpush.bf16.msra.mxu0 0
      %3937 = vmatpush.bf16.msra.mxu0 0
      %3938 = vmatpush.bf16.msra.mxu0 0
      %3939 = vmatpush.bf16.msra.mxu0 0
      %3940 = vmatpush.bf16.msra.mxu0 0
      %3941 = vmatpush.bf16.msra.mxu0 0
      %3942 = vmatpush.bf16.msra.mxu0 0
      %3943 = vmatpush.bf16.msra.mxu0 %v3934
      %3944 = vmatmul.bf16.gmra.mxu0 %v3931
      %v3945 = vpop.f32.mrf.mxu0
      %v3946 = vadd.f32 0.0, %v3945
      %v3947 = vpop.f32.mrf.mxu0
      %3948 = vdwg.mxu0
      %v3949 = vadd.f32 %v3924, %v3946
      %v3950 = vld [vmem:[%s3902] sm:$0xf]
      %v3951 = vld [vmem:[%s3902 + $0x4] sm:$0x1]
      %v3952 = vld [vmem:[%s542] sm:$0x3]
      %v3955 = vunpack.c.l.b16 %v3950
      %v3956 = vunpack.c.l.b16 %v3951
      %v3957 = vpack.c.b16 %v3956, %v3955
      %v3959 = vshrl.u32 %v3957, 16
      %v3961 = vshll.u32 %v3957, 16
      %v3963 = vrot.slane %v3961, 1
      %v3964 = vor.u32 %v3959, %v3963
      %v3966 = vsel %vm251, %v3964, 0
      %v3969 = vsel %vm255, %v3952, 0
      %3971 = vmatpush.bf16.msra.mxu0 0
      %3972 = vmatpush.bf16.msra.mxu0 0
      %3973 = vmatpush.bf16.msra.mxu0 0
      %3974 = vmatpush.bf16.msra.mxu0 0
      %3975 = vmatpush.bf16.msra.mxu0 0
      %3976 = vmatpush.bf16.msra.mxu0 0
      %3977 = vmatpush.bf16.msra.mxu0 0
      %3978 = vmatpush.bf16.msra.mxu0 %v3969
      %3979 = vmatmul.bf16.gmra.mxu0 %v3966
      %v3980 = vpop.f32.mrf.mxu0
      %v3981 = vadd.f32 0.0, %v3980
      %v3982 = vpop.f32.mrf.mxu0
      %3983 = vdwg.mxu0
      %v3984 = vadd.f32 %v3949, %v3981
      %v3985 = vld [vmem:[%s3927] sm:$0xf]
      %v3986 = vld [vmem:[%s3927 + $0x4] sm:$0x1]
      %v3987 = vld [vmem:[%s578] sm:$0x3]
      %v3990 = vunpack.c.l.b16 %v3985
      %v3991 = vunpack.c.l.b16 %v3986
      %v3992 = vpack.c.b16 %v3991, %v3990
      %v3994 = vshrl.u32 %v3992, 16
      %v3996 = vshll.u32 %v3992, 16
      %v3998 = vrot.slane %v3996, 1
      %v3999 = vor.u32 %v3994, %v3998
      %v4001 = vsel %vm251, %v3999, 0
      %v4004 = vsel %vm255, %v3987, 0
      %4006 = vmatpush.bf16.msra.mxu0 0
      %4007 = vmatpush.bf16.msra.mxu0 0
      %4008 = vmatpush.bf16.msra.mxu0 0
      %4009 = vmatpush.bf16.msra.mxu0 0
      %4010 = vmatpush.bf16.msra.mxu0 0
      %4011 = vmatpush.bf16.msra.mxu0 0
      %4012 = vmatpush.bf16.msra.mxu0 0
      %4013 = vmatpush.bf16.msra.mxu0 %v4004
      %4014 = vmatmul.bf16.gmra.mxu0 %v4001
      %v4015 = vpop.f32.mrf.mxu0
      %v4016 = vadd.f32 0.0, %v4015
      %v4017 = vpop.f32.mrf.mxu0
      %4018 = vdwg.mxu0
      %v4019 = vadd.f32 %v3984, %v4016
      %s4020 = sadd.s32 %s3900, 36
      %s4021 = smul.addr %s4020, 4
      %s4022 = scalar_lea.vmem %s221, %s4021
      %v4023 = vld [vmem:[%s4022] sm:$0xf]
      %v4024 = vld [vmem:[%s616] sm:$0x3]
      %v4026 = vsel %vm251, %v4023, 0
      %v4029 = vsel %vm255, %v4024, 0
      %4031 = vmatpush.bf16.msra.mxu0 0
      %4032 = vmatpush.bf16.msra.mxu0 0
      %4033 = vmatpush.bf16.msra.mxu0 0
      %4034 = vmatpush.bf16.msra.mxu0 0
      %4035 = vmatpush.bf16.msra.mxu0 0
      %4036 = vmatpush.bf16.msra.mxu0 0
      %4037 = vmatpush.bf16.msra.mxu0 0
      %4038 = vmatpush.bf16.msra.mxu0 %v4029
      %4039 = vmatmul.bf16.gmra.mxu0 %v4026
      %v4040 = vpop.f32.mrf.mxu0
      %v4041 = vadd.f32 0.0, %v4040
      %v4042 = vpop.f32.mrf.mxu0
      %4043 = vdwg.mxu0
      %v4044 = vadd.f32 %v4019, %v4041
      %s4045 = sadd.s32 %s3900, 54
      %s4046 = smul.addr %s4045, 4
      %s4047 = scalar_lea.vmem %s221, %s4046
      %v4048 = vld [vmem:[%s4047] sm:$0xf]
      %v4049 = vld [vmem:[%s642] sm:$0x3]
      %v4051 = vsel %vm251, %v4048, 0
      %v4054 = vsel %vm255, %v4049, 0
      %4056 = vmatpush.bf16.msra.mxu0 0
      %4057 = vmatpush.bf16.msra.mxu0 0
      %4058 = vmatpush.bf16.msra.mxu0 0
      %4059 = vmatpush.bf16.msra.mxu0 0
      %4060 = vmatpush.bf16.msra.mxu0 0
      %4061 = vmatpush.bf16.msra.mxu0 0
      %4062 = vmatpush.bf16.msra.mxu0 0
      %4063 = vmatpush.bf16.msra.mxu0 %v4054
      %4064 = vmatmul.bf16.gmra.mxu0 %v4051
      %v4065 = vpop.f32.mrf.mxu0
      %v4066 = vadd.f32 0.0, %v4065
      %v4067 = vpop.f32.mrf.mxu0
      %4068 = vdwg.mxu0
      %v4069 = vadd.f32 %v4044, %v4066
      %v4070 = vld [vmem:[%s4022] sm:$0xf]
      %v4071 = vld [vmem:[%s4022 + $0x4] sm:$0x1]
      %v4072 = vld [vmem:[%s666] sm:$0x3]
      %v4075 = vunpack.c.l.b16 %v4070
      %v4076 = vunpack.c.l.b16 %v4071
      %v4077 = vpack.c.b16 %v4076, %v4075
      %v4079 = vshrl.u32 %v4077, 16
      %v4081 = vshll.u32 %v4077, 16
      %v4083 = vrot.slane %v4081, 1
      %v4084 = vor.u32 %v4079, %v4083
      %v4086 = vsel %vm251, %v4084, 0
      %v4089 = vsel %vm255, %v4072, 0
      %4091 = vmatpush.bf16.msra.mxu0 0
      %4092 = vmatpush.bf16.msra.mxu0 0
      %4093 = vmatpush.bf16.msra.mxu0 0
      %4094 = vmatpush.bf16.msra.mxu0 0
      %4095 = vmatpush.bf16.msra.mxu0 0
      %4096 = vmatpush.bf16.msra.mxu0 0
      %4097 = vmatpush.bf16.msra.mxu0 0
      %4098 = vmatpush.bf16.msra.mxu0 %v4089
      %4099 = vmatmul.bf16.gmra.mxu0 %v4086
      %v4100 = vpop.f32.mrf.mxu0
      %v4101 = vadd.f32 0.0, %v4100
      %v4102 = vpop.f32.mrf.mxu0
      %4103 = vdwg.mxu0
      %v4104 = vadd.f32 %v4069, %v4101
      %v4105 = vld [vmem:[%s4047] sm:$0xf]
      %v4106 = vld [vmem:[%s4047 + $0x4] sm:$0x1]
      %v4107 = vld [vmem:[%s702] sm:$0x3]
      %v4110 = vunpack.c.l.b16 %v4105
      %v4111 = vunpack.c.l.b16 %v4106
      %v4112 = vpack.c.b16 %v4111, %v4110
      %v4114 = vshrl.u32 %v4112, 16
      %v4116 = vshll.u32 %v4112, 16
      %v4118 = vrot.slane %v4116, 1
      %v4119 = vor.u32 %v4114, %v4118
      %v4121 = vsel %vm251, %v4119, 0
      %v4124 = vsel %vm255, %v4107, 0
      %4126 = vmatpush.bf16.msra.mxu0 0
      %4127 = vmatpush.bf16.msra.mxu0 0
      %4128 = vmatpush.bf16.msra.mxu0 0
      %4129 = vmatpush.bf16.msra.mxu0 0
      %4130 = vmatpush.bf16.msra.mxu0 0
      %4131 = vmatpush.bf16.msra.mxu0 0
      %4132 = vmatpush.bf16.msra.mxu0 0
      %4133 = vmatpush.bf16.msra.mxu0 %v4124
      %4134 = vmatmul.bf16.gmra.mxu0 %v4121
      %v4135 = vpop.f32.mrf.mxu0
      %v4136 = vadd.f32 0.0, %v4135
      %v4137 = vpop.f32.mrf.mxu0
      %4138 = vdwg.mxu0
      %v4139 = vadd.f32 %v4104, %v4136
      %v4140 = vpack.c.bf16 %v4139, %v4139
      %4141 = vst.msk [vmem:[%s230 + $0x1c] sm:$0xf] %vm737, %v4140
      %v4142 = vsel %vm739, %v4139, 0.0
      %v4143 = vrot.slane %v4142, 4
      %v4144 = vadd.f32 %v4142, %v4143
      %v4145 = vrot.slane %v4144, 2
      %v4146 = vadd.f32 %v4144, %v4145
      %v4147 = vrot.slane %v4146, 1
      %v4148 = vadd.f32 %v4146, %v4147
      %v4149 = vadd.f32 %v3663, %v4148
      %v4150 = vmul.f32 %v4139, %v4139
      %v4151 = vsel %vm739, %v4150, 0.0
      %v4152 = vrot.slane %v4151, 4
      %v4153 = vadd.f32 %v4151, %v4152
      %v4154 = vrot.slane %v4153, 2
      %v4155 = vadd.f32 %v4153, %v4154
      %v4156 = vrot.slane %v4155, 1
      %v4157 = vadd.f32 %v4155, %v4156
      %v4158 = vadd.f32 %v3672, %v4157
      %p4159 = scmp.eq.s32.totalorder %s21, 0
      // Predicated region
      $region29: #{unet_block_forward.2} parent=27 // pred_check
        %p4160 = pneg %p4159
      $region30: #{unet_block_forward.2} parent=27 // pred_check_branch
        %4162 = sbr.rel (%p4160) target = $region32
      $region31: #{unet_block_forward.2} parent=27 // pred_region
        %vm4163 = vcmask 57344
        %4164 = vst.msk [vmem:[%s234] sm:$0x1] %vm4163, 0.0
        %4165 = vst.msk [vmem:[%s237] sm:$0x1] %vm4163, 0.0
      $region32: #{unet_block_forward.2} parent=27 // pred_fallthru
        _
      %v4166 = vld [vmem:[%s234] sm:$0x1]
      %v4167 = vadd.f32 %v4166, %v4149
      %vm4168 = vcmask 57344
      %4169 = vst.msk [vmem:[%s234] sm:$0x1] %vm4168, %v4167
      %v4170 = vld [vmem:[%s237] sm:$0x1]
      %v4171 = vadd.f32 %v4170, %v4158
      %4172 = vst.msk [vmem:[%s237] sm:$0x1] %vm4168, %v4171
      %s4173 = smul.u32 8, %s21
      %p4174 = scmp.lt.s32.totalorder %s20, 1
      %s4175 = scalar_select %p4174, %s20, 1
      %p4176 = scmp.lt.s32.totalorder %s4173, 7
      %s4177 = scalar_select %p4176, %s4173, 7
      %s4178 = smul.addr %s4175, 8
      %s4179 = sadd.s32 %s4177, %s4178
      %s4180 = smul.addr %s4179, 4
      %s4181 = scalar_lea.vmem %s2, %s4180
      %p4182 = scmp.lt.s32.totalorder %s20, 1
      %s4183 = scalar_select %p4182, %s20, 1
      %s4184 = scalar_lea.vmem %s3, %s4183
      %p4185 = scmp.lt.s32.totalorder %s20, 1
      %s4186 = scalar_select %p4185, %s20, 1
      %s4187 = scalar_lea.vmem %s4, %s4186
      // Predicated region
      $region33: #{unet_block_forward.2} parent=27 // pred_check
        %p4188 = pneg %p95
      $region34: #{unet_block_forward.2} parent=27 // pred_check_branch
        %4190 = sbr.rel (%p4188) target = $region36
      $region35: #{unet_block_forward.2} parent=27 // pred_region
        %s4191 = smul.u32 8, %s21
      $region36: #{unet_block_forward.2} parent=27 // pred_fallthru
        _
      // Predicated region
      $region37: #{unet_block_forward.2} parent=27 // pred_check
        %p4192 = pneg %p121
      $region38: #{unet_block_forward.2} parent=27 // pred_check_branch
        %4194 = sbr.rel (%p4192) target = $region40
      $region39: #{unet_block_forward.2} parent=27 // pred_region
        _
      $region40: #{unet_block_forward.2} parent=27 // pred_fallthru
        _
      // Predicated region
      $region41: #{unet_block_forward.2} parent=27 // pred_check
        %p4195 = pneg %p147
      $region42: #{unet_block_forward.2} parent=27 // pred_check_branch
        %4197 = sbr.rel (%p4195) target = $region44
      $region43: #{unet_block_forward.2} parent=27 // pred_region
        _
      $region44: #{unet_block_forward.2} parent=27 // pred_fallthru
        _
    $region28: #{unet_block_forward.2} parent=5 // pred_fallthru
      _
    %p4198 = scmp.le.s32.totalorder 2, %s11
    // Predicated region
    $region45: #{unet_block_forward.2} parent=5 // pred_check
      %p4199 = pneg %p4198
    $region46: #{unet_block_forward.2} parent=5 // pred_check_branch
      %4201 = sbr.rel (%p4199) target = $region48
    $region47: #{unet_block_forward.2} parent=5 // pred_region
      %s4202 = ssub.s32 %s11, 2
      // Predicated region
      $region49: #{unet_block_forward.2} parent=47 // pred_check
        %p4203 = pneg %p101
      $region50: #{unet_block_forward.2} parent=47 // pred_check_branch
        %4205 = sbr.rel (%p4203) target = $region52
      $region51: #{unet_block_forward.2} parent=47 // pred_region
        %s4206 = smul.u32 8, %s23
        %p4207 = scmp.lt.s32.totalorder %s22, 1
        %s4208 = scalar_select %p4207, %s22, 1
        %p4209 = scmp.lt.s32.totalorder %s4206, 7
        %s4210 = scalar_select %p4209, %s4206, 7
        %s4211 = smul.addr %s4208, 8
        %s4212 = sadd.s32 %s4210, %s4211
        %s4213 = smul.addr %s4212, 4
        %s4214 = scalar_lea.vmem %s2, %s4213
      $region52: #{unet_block_forward.2} parent=47 // pred_fallthru
        _
      // Predicated region
      $region53: #{unet_block_forward.2} parent=47 // pred_check
        %p4215 = pneg %p127
      $region54: #{unet_block_forward.2} parent=47 // pred_check_branch
        %4217 = sbr.rel (%p4215) target = $region56
      $region55: #{unet_block_forward.2} parent=47 // pred_region
        %p4218 = scmp.lt.s32.totalorder %s22, 1
        %s4219 = scalar_select %p4218, %s22, 1
        %s4220 = scalar_lea.vmem %s3, %s4219
      $region56: #{unet_block_forward.2} parent=47 // pred_fallthru
        _
      // Predicated region
      $region57: #{unet_block_forward.2} parent=47 // pred_check
        %p4221 = pneg %p153
      $region58: #{unet_block_forward.2} parent=47 // pred_check_branch
        %4223 = sbr.rel (%p4221) target = $region60
      $region59: #{unet_block_forward.2} parent=47 // pred_region
        %p4224 = scmp.lt.s32.totalorder %s22, 1
        %s4225 = scalar_select %p4224, %s22, 1
        %s4226 = scalar_lea.vmem %s4, %s4225
      $region60: #{unet_block_forward.2} parent=47 // pred_fallthru
        _
    $region48: #{unet_block_forward.2} parent=5 // pred_fallthru
      _
  $region6: #{unet_block_forward.2} parent=0 // loop_footer
    %s15 = sadd.s32 1, %s11
  $region7: #{unet_block_forward.2} parent=0 // loop_footer_branch
    %10 = sbr.rel target = $region3
  $region8: #{unet_block_forward.2} parent=0 // loop_exit
    _

</llo_original>
